<compile_context>
chip_gen: v7x
topology: tpu7x:2x2x1
jax: 0.10.0
libtpu: 0.0.40
codegen_flags: <defaults>
</compile_context>

<pallas_src>
import jax
import jax.numpy as jnp
from jax.experimental import pallas as pl
from jax.experimental.pallas import tpu as pltpu

# ----------------------------- model sizes ---------------------------------
NUM_FRAMES = 16     # num_frames
NUM_JOINTS = 16     # num_joints (asserted == poses.shape[1] in the torch code)
NUM_ACTIONS = 10    # num_actions
NUM_FEAT = 8        # nf : visual-feature channels of the pose estimator
IMG_H = IMG_W = 16  # small spatial size (heatmaps/features share this size)
HW = IMG_H * IMG_W


# --------------------------- in-kernel helpers ------------------------------
def _window_maxes(h):
    """h: (F, NJ, NA) action map (frames, joints, actions on lanes).

    Returns the 16 window maxes of a 4x4/stride-4 max pool over
    (frames, joints), each shaped (1, 1, NA).  Uses only contiguous static
    slices and small reductions so it lowers cleanly in Mosaic.
    """
    wins = []
    for ti in range(4):
        hrow = jnp.max(h[4 * ti:4 * ti + 4], axis=0, keepdims=True)       # (1, NJ, NA)
        for tj in range(4):
            wins.append(jnp.max(hrow[:, 4 * tj:4 * tj + 4, :], axis=1,
                                keepdims=True))                           # (1, 1, NA)
    return wins


def _maxmin_softmax_head(wins):
    """MaxMinPooling(4x4) + Softmax2d on the pooled (A, 4, 4) intermediate,
    expressed on its 16 window-max vectors.  Returns a (1, NA) probability row.
    TODO(synk): MaxMinPooling source not provided; interpreted as max+min pool.
    """
    mx = wins[0]
    mn = wins[0]
    for wv in wins[1:]:
        mx = jnp.maximum(mx, wv)
        mn = jnp.minimum(mn, wv)
    pooled = (mx + mn)[0]                                    # (1, NA)
    m = jnp.max(pooled, axis=-1, keepdims=True)
    e = jnp.exp(pooled - m)
    return e * pl.reciprocal(jnp.sum(e, axis=-1, keepdims=True), approx=True)


# ----------------------- the fused forward kernel ---------------------------
def _deephar_fused_kernel(
        x_ref, wf_ref, bf_ref, wh_ref,
        pw1_ref, pb1_ref, pw2_ref, pb2_ref,
        vw1_ref, vb1_ref, vw2_ref, vb2_ref,
        hww_ref, hwb_ref,
        poses_ref, ppred_ref, vpred_ref, final_ref):
    H, W = IMG_H, IMG_W

    x = x_ref[...]                                           # (F, 3, HW)
    wf = wf_ref[...]                                         # (NF, 3)
    bf = bf_ref[...]                                         # (NF, 1)
    wh = wh_ref[...]                                         # (NJ, 3)

    # ---- pose-estimator stand-in: 1x1 convs as K=3 VPU multiply-adds ------
    # TODO(synk): Stem / ReceptionBlock source not provided; synthetic
    # shape-faithful stand-in (1x1 conv features + spatial-softmax heatmaps
    # + soft-argmax poses).
    feats = (wf[None, :, 0:1] * x[:, 0:1, :] +
             wf[None, :, 1:2] * x[:, 1:2, :] +
             wf[None, :, 2:3] * x[:, 2:3, :] + bf[None, :, :])
    feats = jnp.maximum(feats, 0.0)                          # (F, NF, HW)

    logits = (wh[None, :, 0:1] * x[:, 0:1, :] +
              wh[None, :, 1:2] * x[:, 1:2, :] +
              wh[None, :, 2:3] * x[:, 2:3, :])               # (F, NJ, HW)

    # spatial softmax over HW (exp -> EUP, reductions -> XLU)
    m = jnp.max(logits, axis=-1, keepdims=True)
    e = jnp.exp(logits - m)
    s = jnp.sum(e, axis=-1, keepdims=True)
    heat = e * pl.reciprocal(s, approx=True)                 # (F, NJ, HW)

    # soft-argmax pose regression (float-only index math, no int div/mod)
    fidx = jax.lax.broadcasted_iota(jnp.int32, (1, 1, HW), 2).astype(jnp.float32)
    row = jnp.floor(fidx * (1.0 / W))
    col = fidx - row * W
    gx = (col + 0.5) * (1.0 / W)
    gy = (row + 0.5) * (1.0 / H)
    px = jnp.sum(heat * gx, axis=-1, keepdims=True)          # (F, NJ, 1)
    py = jnp.sum(heat * gy, axis=-1, keepdims=True)          # (F, NJ, 1)
    conf = jnp.max(heat, axis=-1, keepdims=True)             # (F, NJ, 1)

    poses_ref[:, :, 0:1] = px
    poses_ref[:, :, 1:2] = py
    poses_ref[:, :, 2:3] = conf

    # ---- features * heatmaps spatial reduction (MXU, K = HW = 256) --------
    # y[f, j, c] = sum_hw heat[f, j, hw] * feats[f, c, hw]   (channels-last)
    y = jnp.einsum('fjs,fcs->fjc', heat, feats,
                   preferred_element_type=jnp.float32)       # (F, NJ, NF)

    # ---- action models (PoseModel / VisualModel stand-ins), channels-last --
    # TODO(synk): PoseModel/VisualModel source not provided; two 1x1-conv +
    # relu stages per branch with 4x4 max-pooled intermediates.
    pw1 = pw1_ref[...]   # (2, NA)
    pb1 = pb1_ref[...]   # (1, NA)
    pw2 = pw2_ref[...]   # (NA, NA)  [k, a] layout
    pb2 = pb2_ref[...]
    vw1 = vw1_ref[...]   # (NF, NA)
    vb1 = vb1_ref[...]
    vw2 = vw2_ref[...]   # (NA, NA)
    vb2 = vb2_ref[...]

    # pose branch, stage 1: K = 2 (pose_cube = poses[:, :, 0:2], VPU)
    h1p = jnp.maximum(px * pw1[0:1, :][None] + py * pw1[1:2, :][None]
                      + pb1[None], 0.0)                      # (F, NJ, NA)

    # visual branch, stage 1: K = NF = 8 (action_cube = y, VPU)
    h1v = y[:, :, 0:1] * vw1[0:1, :][None]
    for k in range(1, NUM_FEAT):
        h1v = h1v + y[:, :, k:k + 1] * vw1[k:k + 1, :][None]
    h1v = jnp.maximum(h1v + vb1[None], 0.0)                  # (F, NJ, NA)

    # stage 2 (both branches): K = NA = 10 (VPU)
    h2p = h1p[:, :, 0:1] * pw2[0:1, :][None]
    h2v = h1v[:, :, 0:1] * vw2[0:1, :][None]
    for k in range(1, NUM_ACTIONS):
        h2p = h2p + h1p[:, :, k:k + 1] * pw2[k:k + 1, :][None]
        h2v = h2v + h1v[:, :, k:k + 1] * vw2[k:k + 1, :][None]
    h2p = jnp.maximum(h2p + pb2[None], 0.0)                  # (F, NJ, NA)
    h2v = jnp.maximum(h2v + vb2[None], 0.0)                  # (F, NJ, NA)

    # ---- 4x4 max-pool -> MaxMin + Softmax heads ----------------------------
    w1p = _window_maxes(h1p)
    w2p = _window_maxes(h2p)
    w1v = _window_maxes(h1v)
    w2v = _window_maxes(h2v)

    ppred_ref[0:1, :] = _maxmin_softmax_head(w1p)
    ppred_ref[1:2, :] = _maxmin_softmax_head(w2p)
    vpred_ref[0:1, :] = _maxmin_softmax_head(w1v)
    vpred_ref[1:2, :] = _maxmin_softmax_head(w2v)

    # HeatmapWeighting (per-action affine stand-in) on the last intermediates,
    # then the final MaxMin + Softmax head.
    # TODO(synk): HeatmapWeighting source not provided; per-action affine.
    hww = hww_ref[...][None]                                 # (1, 1, NA)
    hwb = hwb_ref[...][None]                                 # (1, 1, NA)
    fwins = [(w2v[i] * hww + hwb) + (w2p[i] * hww + hwb) for i in range(16)]
    final_ref[...] = _maxmin_softmax_head(fwins)


# ------------------------------- wrapper ------------------------------------
def _full_block(shape):
    nd = len(shape)
    return pl.BlockSpec(shape, lambda i, _nd=nd: (0,) * _nd)


def deephar_smaller_forward(x, params):
    F, C, H, W = x.shape
    assert (F, C, H, W) == (NUM_FRAMES, 3, IMG_H, IMG_W)
    xf = x.reshape(F, C, H * W).astype(jnp.float32)

    # Lane-oriented weight layouts (tiny XLA reshapes/transposes, fused in jit).
    args = (
        xf,                                           # (F, 3, HW)
        params["w_feat"],                             # (NF, 3)
        params["b_feat"].reshape(NUM_FEAT, 1),        # (NF, 1)
        params["w_hm"],                               # (NJ, 3)
        params["pm_w1"].T,                            # (2, NA)
        params["pm_b1"].reshape(1, NUM_ACTIONS),
        params["pm_w2"].T,                            # (NA, NA)
        params["pm_b2"].reshape(1, NUM_ACTIONS),
        params["vm_w1"].T,                            # (NF, NA)
        params["vm_b1"].reshape(1, NUM_ACTIONS),
        params["vm_w2"].T,                            # (NA, NA)
        params["vm_b2"].reshape(1, NUM_ACTIONS),
        params["hw_w"].reshape(1, NUM_ACTIONS),
        params["hw_b"].reshape(1, NUM_ACTIONS),
    )

    out_shape = (
        jax.ShapeDtypeStruct((F, NUM_JOINTS, 3), jnp.float32),   # poses
        jax.ShapeDtypeStruct((2, NUM_ACTIONS), jnp.float32),     # pose-branch preds
        jax.ShapeDtypeStruct((2, NUM_ACTIONS), jnp.float32),     # visual-branch preds
        jax.ShapeDtypeStruct((1, NUM_ACTIONS), jnp.float32),     # final prediction
    )

    poses, ppred, vpred, final = pl.pallas_call(
        _deephar_fused_kernel,
        out_shape=out_shape,
        grid=(1,),
        in_specs=[_full_block(a.shape) for a in args],
        out_specs=tuple(_full_block(s.shape) for s in out_shape),
        compiler_params=pltpu.CompilerParams(
            dimension_semantics=("arbitrary",)),
    )(*args)

    # TODO(synk): real model concatenates pose1/pose2 from two ReceptionBlocks;
    # only one pose branch exists in the stand-in, so it is stacked twice.
    train_poses = jnp.stack([poses, poses], axis=1)              # (F, 2, NJ, 3)

    return (train_poses,
            poses,
            ppred[None],                                         # (1, 2, NA)
            vpred[None],                                         # (1, 2, NA)
            final[None])                                         # (1, 1, NA)


# ================================= main =====================================
def make_params(key):
    ks = jax.random.split(key, 8)
    n = lambda k, s, sc=0.1: sc * jax.random.normal(k, s, dtype=jnp.float32)
    return {
        "w_feat": n(ks[0], (NUM_FEAT, 3)),
        "b_feat": jnp.zeros((NUM_FEAT,), jnp.float32),
        "w_hm": n(ks[1], (NUM_JOINTS, 3)),
        "pm_w1": n(ks[2], (NUM_ACTIONS, 2)),
        "pm_b1": jnp.zeros((NUM_ACTIONS,), jnp.float32),
        "pm_w2": n(ks[3], (NUM_ACTIONS, NUM_ACTIONS)),
        "pm_b2": jnp.zeros((NUM_ACTIONS,), jnp.float32),
        "vm_w1": n(ks[4], (NUM_ACTIONS, NUM_FEAT)),
        "vm_b1": jnp.zeros((NUM_ACTIONS,), jnp.float32),
        "vm_w2": n(ks[5], (NUM_ACTIONS, NUM_ACTIONS)),
        "vm_b2": jnp.zeros((NUM_ACTIONS,), jnp.float32),
        "hw_w": 1.0 + n(ks[6], (NUM_ACTIONS,)),
        "hw_b": jnp.zeros((NUM_ACTIONS,), jnp.float32),
    }


if __name__ == "__main__":
    key = jax.random.PRNGKey(0)
    k_x, k_p = jax.random.split(key)
    # x: a clip of NUM_FRAMES RGB frames, NCHW per frame (small spatial size).
    x = jax.random.normal(k_x, (NUM_FRAMES, 3, IMG_H, IMG_W), dtype=jnp.float32)
    params = make_params(k_p)

    outs = jax.jit(deephar_smaller_forward)(x, params)
    outs = jax.block_until_ready(outs)

    train_poses, poses, pose_preds, vis_preds, final_output = outs
    assert train_poses.shape == (NUM_FRAMES, 2, NUM_JOINTS, 3)
    assert poses.shape == (NUM_FRAMES, NUM_JOINTS, 3)
    assert pose_preds.shape == (1, 2, NUM_ACTIONS)
    assert vis_preds.shape == (1, 2, NUM_ACTIONS)
    assert final_output.shape == (1, 1, NUM_ACTIONS)
    print("KERNEL_OK")
</pallas_src>

<mosaic_0001>
module attributes {stable_mosaic.version = 11 : i64} {
  func.func @_deephar_fused_kernel(%arg0: i32, %arg1: memref<16x3x256xf32, #tpu.memory_space<vmem>>, %arg2: memref<8x3xf32, #tpu.memory_space<vmem>>, %arg3: memref<8x1xf32, #tpu.memory_space<vmem>>, %arg4: memref<16x3xf32, #tpu.memory_space<vmem>>, %arg5: memref<2x10xf32, #tpu.memory_space<vmem>>, %arg6: memref<1x10xf32, #tpu.memory_space<vmem>>, %arg7: memref<10x10xf32, #tpu.memory_space<vmem>>, %arg8: memref<1x10xf32, #tpu.memory_space<vmem>>, %arg9: memref<8x10xf32, #tpu.memory_space<vmem>>, %arg10: memref<1x10xf32, #tpu.memory_space<vmem>>, %arg11: memref<10x10xf32, #tpu.memory_space<vmem>>, %arg12: memref<1x10xf32, #tpu.memory_space<vmem>>, %arg13: memref<1x10xf32, #tpu.memory_space<vmem>>, %arg14: memref<1x10xf32, #tpu.memory_space<vmem>>, %arg15: memref<16x16x3xf32, #tpu.memory_space<vmem>>, %arg16: memref<2x10xf32, #tpu.memory_space<vmem>>, %arg17: memref<2x10xf32, #tpu.memory_space<vmem>>, %arg18: memref<1x10xf32, #tpu.memory_space<vmem>>) attributes {dimension_semantics = [#tpu.dimension_semantics<arbitrary>], iteration_bounds = array<i64: 1>, scalar_prefetch = 0 : i64, scratch_operands = 0 : i64, tpu.core_type = #tpu.core_type<tc>, window_params = [{pipeline_mode = #tpu.pipeline_mode<synchronous>, transform_indices = @transform_0, window_bounds = array<i64: 16, 3, 256>}, {pipeline_mode = #tpu.pipeline_mode<synchronous>, transform_indices = @transform_1, window_bounds = array<i64: 8, 3>}, {pipeline_mode = #tpu.pipeline_mode<synchronous>, transform_indices = @transform_2, window_bounds = array<i64: 8, 1>}, {pipeline_mode = #tpu.pipeline_mode<synchronous>, transform_indices = @transform_3, window_bounds = array<i64: 16, 3>}, {pipeline_mode = #tpu.pipeline_mode<synchronous>, transform_indices = @transform_4, window_bounds = array<i64: 2, 10>}, {pipeline_mode = #tpu.pipeline_mode<synchronous>, transform_indices = @transform_5, window_bounds = array<i64: 1, 10>}, {pipeline_mode = #tpu.pipeline_mode<synchronous>, transform_indices = @transform_6, window_bounds = array<i64: 10, 10>}, {pipeline_mode = #tpu.pipeline_mode<synchronous>, transform_indices = @transform_7, window_bounds = array<i64: 1, 10>}, {pipeline_mode = #tpu.pipeline_mode<synchronous>, transform_indices = @transform_8, window_bounds = array<i64: 8, 10>}, {pipeline_mode = #tpu.pipeline_mode<synchronous>, transform_indices = @transform_9, window_bounds = array<i64: 1, 10>}, {pipeline_mode = #tpu.pipeline_mode<synchronous>, transform_indices = @transform_10, window_bounds = array<i64: 10, 10>}, {pipeline_mode = #tpu.pipeline_mode<synchronous>, transform_indices = @transform_11, window_bounds = array<i64: 1, 10>}, {pipeline_mode = #tpu.pipeline_mode<synchronous>, transform_indices = @transform_12, window_bounds = array<i64: 1, 10>}, {pipeline_mode = #tpu.pipeline_mode<synchronous>, transform_indices = @transform_13, window_bounds = array<i64: 1, 10>}, {pipeline_mode = #tpu.pipeline_mode<synchronous>, transform_indices = @transform_14, window_bounds = array<i64: 16, 16, 3>}, {pipeline_mode = #tpu.pipeline_mode<synchronous>, transform_indices = @transform_15, window_bounds = array<i64: 2, 10>}, {pipeline_mode = #tpu.pipeline_mode<synchronous>, transform_indices = @transform_16, window_bounds = array<i64: 2, 10>}, {pipeline_mode = #tpu.pipeline_mode<synchronous>, transform_indices = @transform_17, window_bounds = array<i64: 1, 10>}]} {
    %c0 = arith.constant 0 : index
    %c0_0 = arith.constant 0 : index
    %c0_1 = arith.constant 0 : index
    %0 = vector.load %arg1[%c0, %c0_0, %c0_1] : memref<16x3x256xf32, #tpu.memory_space<vmem>>, vector<16x3x256xf32>
    %c0_2 = arith.constant 0 : index
    %c0_3 = arith.constant 0 : index
    %1 = vector.load %arg2[%c0_2, %c0_3] : memref<8x3xf32, #tpu.memory_space<vmem>>, vector<8x3xf32>
    %c0_4 = arith.constant 0 : index
    %c0_5 = arith.constant 0 : index
    %2 = vector.load %arg3[%c0_4, %c0_5] : memref<8x1xf32, #tpu.memory_space<vmem>>, vector<8x1xf32>
    %c0_6 = arith.constant 0 : index
    %c0_7 = arith.constant 0 : index
    %3 = vector.load %arg4[%c0_6, %c0_7] : memref<16x3xf32, #tpu.memory_space<vmem>>, vector<16x3xf32>
    %4 = vector.extract_strided_slice %1 {offsets = [0, 0], sizes = [8, 1], strides = [1, 1]} : vector<8x3xf32> to vector<8x1xf32>
    %5 = vector.shape_cast %4 : vector<8x1xf32> to vector<1x8x1xf32>
    %6 = vector.extract_strided_slice %0 {offsets = [0, 0, 0], sizes = [16, 1, 256], strides = [1, 1, 1]} : vector<16x3x256xf32> to vector<16x1x256xf32>
    %7 = vector.broadcast %5 : vector<1x8x1xf32> to vector<16x8x256xf32>
    %8 = vector.broadcast %6 : vector<16x1x256xf32> to vector<16x8x256xf32>
    %9 = arith.mulf %7, %8 : vector<16x8x256xf32>
    %10 = vector.extract_strided_slice %1 {offsets = [0, 1], sizes = [8, 1], strides = [1, 1]} : vector<8x3xf32> to vector<8x1xf32>
    %11 = vector.shape_cast %10 : vector<8x1xf32> to vector<1x8x1xf32>
    %12 = vector.extract_strided_slice %0 {offsets = [0, 1, 0], sizes = [16, 1, 256], strides = [1, 1, 1]} : vector<16x3x256xf32> to vector<16x1x256xf32>
    %13 = vector.broadcast %11 : vector<1x8x1xf32> to vector<16x8x256xf32>
    %14 = vector.broadcast %12 : vector<16x1x256xf32> to vector<16x8x256xf32>
    %15 = arith.mulf %13, %14 : vector<16x8x256xf32>
    %16 = arith.addf %9, %15 : vector<16x8x256xf32>
    %17 = vector.extract_strided_slice %1 {offsets = [0, 2], sizes = [8, 1], strides = [1, 1]} : vector<8x3xf32> to vector<8x1xf32>
    %18 = vector.shape_cast %17 : vector<8x1xf32> to vector<1x8x1xf32>
    %19 = vector.extract_strided_slice %0 {offsets = [0, 2, 0], sizes = [16, 1, 256], strides = [1, 1, 1]} : vector<16x3x256xf32> to vector<16x1x256xf32>
    %20 = vector.broadcast %18 : vector<1x8x1xf32> to vector<16x8x256xf32>
    %21 = vector.broadcast %19 : vector<16x1x256xf32> to vector<16x8x256xf32>
    %22 = arith.mulf %20, %21 : vector<16x8x256xf32>
    %23 = arith.addf %16, %22 : vector<16x8x256xf32>
    %24 = vector.shape_cast %2 : vector<8x1xf32> to vector<1x8x1xf32>
    %25 = vector.broadcast %24 : vector<1x8x1xf32> to vector<16x8x256xf32>
    %26 = arith.addf %23, %25 : vector<16x8x256xf32>
    %cst = arith.constant 0.000000e+00 : f32
    %27 = vector.broadcast %cst : f32 to vector<16x8x256xf32>
    %28 = arith.maximumf %26, %27 : vector<16x8x256xf32>
    %29 = vector.extract_strided_slice %3 {offsets = [0, 0], sizes = [16, 1], strides = [1, 1]} : vector<16x3xf32> to vector<16x1xf32>
    %30 = vector.shape_cast %29 : vector<16x1xf32> to vector<1x16x1xf32>
    %31 = vector.extract_strided_slice %0 {offsets = [0, 0, 0], sizes = [16, 1, 256], strides = [1, 1, 1]} : vector<16x3x256xf32> to vector<16x1x256xf32>
    %32 = vector.broadcast %30 : vector<1x16x1xf32> to vector<16x16x256xf32>
    %33 = vector.broadcast %31 : vector<16x1x256xf32> to vector<16x16x256xf32>
    %34 = arith.mulf %32, %33 : vector<16x16x256xf32>
    %35 = vector.extract_strided_slice %3 {offsets = [0, 1], sizes = [16, 1], strides = [1, 1]} : vector<16x3xf32> to vector<16x1xf32>
    %36 = vector.shape_cast %35 : vector<16x1xf32> to vector<1x16x1xf32>
    %37 = vector.extract_strided_slice %0 {offsets = [0, 1, 0], sizes = [16, 1, 256], strides = [1, 1, 1]} : vector<16x3x256xf32> to vector<16x1x256xf32>
    %38 = vector.broadcast %36 : vector<1x16x1xf32> to vector<16x16x256xf32>
    %39 = vector.broadcast %37 : vector<16x1x256xf32> to vector<16x16x256xf32>
    %40 = arith.mulf %38, %39 : vector<16x16x256xf32>
    %41 = arith.addf %34, %40 : vector<16x16x256xf32>
    %42 = vector.extract_strided_slice %3 {offsets = [0, 2], sizes = [16, 1], strides = [1, 1]} : vector<16x3xf32> to vector<16x1xf32>
    %43 = vector.shape_cast %42 : vector<16x1xf32> to vector<1x16x1xf32>
    %44 = vector.extract_strided_slice %0 {offsets = [0, 2, 0], sizes = [16, 1, 256], strides = [1, 1, 1]} : vector<16x3x256xf32> to vector<16x1x256xf32>
    %45 = vector.broadcast %43 : vector<1x16x1xf32> to vector<16x16x256xf32>
    %46 = vector.broadcast %44 : vector<16x1x256xf32> to vector<16x16x256xf32>
    %47 = arith.mulf %45, %46 : vector<16x16x256xf32>
    %48 = arith.addf %41, %47 : vector<16x16x256xf32>
    %cst_8 = arith.constant dense<0xFF800000> : vector<16x16xf32>
    %49 = vector.multi_reduction <maximumf>, %48, %cst_8 [2] : vector<16x16x256xf32> to vector<16x16xf32>
    %50 = vector.shape_cast %49 : vector<16x16xf32> to vector<16x16x1xf32>
    %51 = vector.broadcast %50 : vector<16x16x1xf32> to vector<16x16x256xf32>
    %52 = arith.subf %48, %51 : vector<16x16x256xf32>
    %53 = math.exp %52 : vector<16x16x256xf32>
    %cst_9 = arith.constant dense<0.000000e+00> : vector<16x16xf32>
    %54 = vector.multi_reduction <add>, %53, %cst_9 [2] : vector<16x16x256xf32> to vector<16x16xf32>
    %55 = vector.shape_cast %54 : vector<16x16xf32> to vector<16x16x1xf32>
    %56 = tpu.reciprocal %55 {approx = true} : vector<16x16x1xf32> -> vector<16x16x1xf32>
    %57 = vector.broadcast %56 : vector<16x16x1xf32> to vector<16x16x256xf32>
    %58 = arith.mulf %53, %57 : vector<16x16x256xf32>
    %59 = tpu.iota {dimensions = array<i32: 2>} : vector<1x1x256xi32>
    %60 = arith.sitofp %59 : vector<1x1x256xi32> to vector<1x1x256xf32>
    %cst_10 = arith.constant 6.250000e-02 : f32
    %61 = vector.broadcast %cst_10 : f32 to vector<1x1x256xf32>
    %62 = arith.mulf %60, %61 : vector<1x1x256xf32>
    %63 = math.floor %62 : vector<1x1x256xf32>
    %cst_11 = arith.constant 1.600000e+01 : f32
    %64 = vector.broadcast %cst_11 : f32 to vector<1x1x256xf32>
    %65 = arith.mulf %63, %64 : vector<1x1x256xf32>
    %66 = arith.subf %60, %65 : vector<1x1x256xf32>
    %cst_12 = arith.constant 5.000000e-01 : f32
    %67 = vector.broadcast %cst_12 : f32 to vector<1x1x256xf32>
    %68 = arith.addf %66, %67 : vector<1x1x256xf32>
    %cst_13 = arith.constant 6.250000e-02 : f32
    %69 = vector.broadcast %cst_13 : f32 to vector<1x1x256xf32>
    %70 = arith.mulf %68, %69 : vector<1x1x256xf32>
    %cst_14 = arith.constant 5.000000e-01 : f32
    %71 = vector.broadcast %cst_14 : f32 to vector<1x1x256xf32>
    %72 = arith.addf %63, %71 : vector<1x1x256xf32>
    %cst_15 = arith.constant 6.250000e-02 : f32
    %73 = vector.broadcast %cst_15 : f32 to vector<1x1x256xf32>
    %74 = arith.mulf %72, %73 : vector<1x1x256xf32>
    %75 = vector.broadcast %70 : vector<1x1x256xf32> to vector<16x16x256xf32>
    %76 = arith.mulf %58, %75 : vector<16x16x256xf32>
    %cst_16 = arith.constant dense<0.000000e+00> : vector<16x16xf32>
    %77 = vector.multi_reduction <add>, %76, %cst_16 [2] : vector<16x16x256xf32> to vector<16x16xf32>
    %78 = vector.shape_cast %77 : vector<16x16xf32> to vector<16x16x1xf32>
    %79 = vector.broadcast %74 : vector<1x1x256xf32> to vector<16x16x256xf32>
    %80 = arith.mulf %58, %79 : vector<16x16x256xf32>
    %cst_17 = arith.constant dense<0.000000e+00> : vector<16x16xf32>
    %81 = vector.multi_reduction <add>, %80, %cst_17 [2] : vector<16x16x256xf32> to vector<16x16xf32>
    %82 = vector.shape_cast %81 : vector<16x16xf32> to vector<16x16x1xf32>
    %cst_18 = arith.constant dense<0xFF800000> : vector<16x16xf32>
    %83 = vector.multi_reduction <maximumf>, %58, %cst_18 [2] : vector<16x16x256xf32> to vector<16x16xf32>
    %84 = vector.shape_cast %83 : vector<16x16xf32> to vector<16x16x1xf32>
    %c0_19 = arith.constant 0 : index
    %c0_20 = arith.constant 0 : index
    %c0_21 = arith.constant 0 : index
    %85 = vector.load %arg15[%c0_19, %c0_20, %c0_21] : memref<16x16x3xf32, #tpu.memory_space<vmem>>, vector<16x16x1xf32>
    tpu.vector_store %arg15[%c0_19, %c0_20, %c0_21], %78 {strides = array<i32>} : memref<16x16x3xf32, #tpu.memory_space<vmem>>, vector<16x16x1xf32>,
    %c0_22 = arith.constant 0 : index
    %c0_23 = arith.constant 0 : index
    %c1 = arith.constant 1 : index
    %86 = vector.load %arg15[%c0_22, %c0_23, %c1] : memref<16x16x3xf32, #tpu.memory_space<vmem>>, vector<16x16x1xf32>
    tpu.vector_store %arg15[%c0_22, %c0_23, %c1], %82 {strides = array<i32>} : memref<16x16x3xf32, #tpu.memory_space<vmem>>, vector<16x16x1xf32>,
    %c0_24 = arith.constant 0 : index
    %c0_25 = arith.constant 0 : index
    %c2 = arith.constant 2 : index
    %87 = vector.load %arg15[%c0_24, %c0_25, %c2] : memref<16x16x3xf32, #tpu.memory_space<vmem>>, vector<16x16x1xf32>
    tpu.vector_store %arg15[%c0_24, %c0_25, %c2], %84 {strides = array<i32>} : memref<16x16x3xf32, #tpu.memory_space<vmem>>, vector<16x16x1xf32>,
    "tpu.trace_start"() <{level = 10 : i32, message = "fjs,fcs->fjc"}> : () -> ()
    %cst_26 = arith.constant dense<0.000000e+00> : vector<16x16x8xf32>
    %88 = tpu.matmul %58, %28, %cst_26 {dimension_numbers = #tpu.dot_dimension_numbers<[2], [2], [1], [1], [0, 0, 0, 1, 1, 1], [0], [0]>} : vector<16x16x256xf32>, vector<16x8x256xf32>, vector<16x16x8xf32> -> vector<16x16x8xf32>
    "tpu.trace_stop"() : () -> ()
    %c0_27 = arith.constant 0 : index
    %c0_28 = arith.constant 0 : index
    %89 = vector.load %arg5[%c0_27, %c0_28] : memref<2x10xf32, #tpu.memory_space<vmem>>, vector<2x10xf32>
    %c0_29 = arith.constant 0 : index
    %c0_30 = arith.constant 0 : index
    %90 = vector.load %arg6[%c0_29, %c0_30] : memref<1x10xf32, #tpu.memory_space<vmem>>, vector<1x10xf32>
    %c0_31 = arith.constant 0 : index
    %c0_32 = arith.constant 0 : index
    %91 = vector.load %arg7[%c0_31, %c0_32] : memref<10x10xf32, #tpu.memory_space<vmem>>, vector<10x10xf32>
    %c0_33 = arith.constant 0 : index
    %c0_34 = arith.constant 0 : index
    %92 = vector.load %arg8[%c0_33, %c0_34] : memref<1x10xf32, #tpu.memory_space<vmem>>, vector<1x10xf32>
    %c0_35 = arith.constant 0 : index
    %c0_36 = arith.constant 0 : index
    %93 = vector.load %arg9[%c0_35, %c0_36] : memref<8x10xf32, #tpu.memory_space<vmem>>, vector<8x10xf32>
    %c0_37 = arith.constant 0 : index
    %c0_38 = arith.constant 0 : index
    %94 = vector.load %arg10[%c0_37, %c0_38] : memref<1x10xf32, #tpu.memory_space<vmem>>, vector<1x10xf32>
    %c0_39 = arith.constant 0 : index
    %c0_40 = arith.constant 0 : index
    %95 = vector.load %arg11[%c0_39, %c0_40] : memref<10x10xf32, #tpu.memory_space<vmem>>, vector<10x10xf32>
    %c0_41 = arith.constant 0 : index
    %c0_42 = arith.constant 0 : index
    %96 = vector.load %arg12[%c0_41, %c0_42] : memref<1x10xf32, #tpu.memory_space<vmem>>, vector<1x10xf32>
    %97 = vector.extract_strided_slice %89 {offsets = [0, 0], sizes = [1, 10], strides = [1, 1]} : vector<2x10xf32> to vector<1x10xf32>
    %98 = vector.shape_cast %97 : vector<1x10xf32> to vector<1x1x10xf32>
    %99 = vector.broadcast %78 : vector<16x16x1xf32> to vector<16x16x10xf32>
    %100 = vector.broadcast %98 : vector<1x1x10xf32> to vector<16x16x10xf32>
    %101 = arith.mulf %99, %100 : vector<16x16x10xf32>
    %102 = vector.extract_strided_slice %89 {offsets = [1, 0], sizes = [1, 10], strides = [1, 1]} : vector<2x10xf32> to vector<1x10xf32>
    %103 = vector.shape_cast %102 : vector<1x10xf32> to vector<1x1x10xf32>
    %104 = vector.broadcast %82 : vector<16x16x1xf32> to vector<16x16x10xf32>
    %105 = vector.broadcast %103 : vector<1x1x10xf32> to vector<16x16x10xf32>
    %106 = arith.mulf %104, %105 : vector<16x16x10xf32>
    %107 = arith.addf %101, %106 : vector<16x16x10xf32>
    %108 = vector.shape_cast %90 : vector<1x10xf32> to vector<1x1x10xf32>
    %109 = vector.broadcast %108 : vector<1x1x10xf32> to vector<16x16x10xf32>
    %110 = arith.addf %107, %109 : vector<16x16x10xf32>
    %cst_43 = arith.constant 0.000000e+00 : f32
    %111 = vector.broadcast %cst_43 : f32 to vector<16x16x10xf32>
    %112 = arith.maximumf %110, %111 : vector<16x16x10xf32>
    %113 = vector.extract_strided_slice %88 {offsets = [0, 0, 0], sizes = [16, 16, 1], strides = [1, 1, 1]} : vector<16x16x8xf32> to vector<16x16x1xf32>
    %114 = vector.extract_strided_slice %93 {offsets = [0, 0], sizes = [1, 10], strides = [1, 1]} : vector<8x10xf32> to vector<1x10xf32>
    %115 = vector.shape_cast %114 : vector<1x10xf32> to vector<1x1x10xf32>
    %116 = vector.broadcast %113 : vector<16x16x1xf32> to vector<16x16x10xf32>
    %117 = vector.broadcast %115 : vector<1x1x10xf32> to vector<16x16x10xf32>
    %118 = arith.mulf %116, %117 : vector<16x16x10xf32>
    %119 = vector.extract_strided_slice %88 {offsets = [0, 0, 1], sizes = [16, 16, 1], strides = [1, 1, 1]} : vector<16x16x8xf32> to vector<16x16x1xf32>
    %120 = vector.extract_strided_slice %93 {offsets = [1, 0], sizes = [1, 10], strides = [1, 1]} : vector<8x10xf32> to vector<1x10xf32>
    %121 = vector.shape_cast %120 : vector<1x10xf32> to vector<1x1x10xf32>
    %122 = vector.broadcast %119 : vector<16x16x1xf32> to vector<16x16x10xf32>
    %123 = vector.broadcast %121 : vector<1x1x10xf32> to vector<16x16x10xf32>
    %124 = arith.mulf %122, %123 : vector<16x16x10xf32>
    %125 = arith.addf %118, %124 : vector<16x16x10xf32>
    %126 = vector.extract_strided_slice %88 {offsets = [0, 0, 2], sizes = [16, 16, 1], strides = [1, 1, 1]} : vector<16x16x8xf32> to vector<16x16x1xf32>
    %127 = vector.extract_strided_slice %93 {offsets = [2, 0], sizes = [1, 10], strides = [1, 1]} : vector<8x10xf32> to vector<1x10xf32>
    %128 = vector.shape_cast %127 : vector<1x10xf32> to vector<1x1x10xf32>
    %129 = vector.broadcast %126 : vector<16x16x1xf32> to vector<16x16x10xf32>
    %130 = vector.broadcast %128 : vector<1x1x10xf32> to vector<16x16x10xf32>
    %131 = arith.mulf %129, %130 : vector<16x16x10xf32>
    %132 = arith.addf %125, %131 : vector<16x16x10xf32>
    %133 = vector.extract_strided_slice %88 {offsets = [0, 0, 3], sizes = [16, 16, 1], strides = [1, 1, 1]} : vector<16x16x8xf32> to vector<16x16x1xf32>
    %134 = vector.extract_strided_slice %93 {offsets = [3, 0], sizes = [1, 10], strides = [1, 1]} : vector<8x10xf32> to vector<1x10xf32>
    %135 = vector.shape_cast %134 : vector<1x10xf32> to vector<1x1x10xf32>
    %136 = vector.broadcast %133 : vector<16x16x1xf32> to vector<16x16x10xf32>
    %137 = vector.broadcast %135 : vector<1x1x10xf32> to vector<16x16x10xf32>
    %138 = arith.mulf %136, %137 : vector<16x16x10xf32>
    %139 = arith.addf %132, %138 : vector<16x16x10xf32>
    %140 = vector.extract_strided_slice %88 {offsets = [0, 0, 4], sizes = [16, 16, 1], strides = [1, 1, 1]} : vector<16x16x8xf32> to vector<16x16x1xf32>
    %141 = vector.extract_strided_slice %93 {offsets = [4, 0], sizes = [1, 10], strides = [1, 1]} : vector<8x10xf32> to vector<1x10xf32>
    %142 = vector.shape_cast %141 : vector<1x10xf32> to vector<1x1x10xf32>
    %143 = vector.broadcast %140 : vector<16x16x1xf32> to vector<16x16x10xf32>
    %144 = vector.broadcast %142 : vector<1x1x10xf32> to vector<16x16x10xf32>
    %145 = arith.mulf %143, %144 : vector<16x16x10xf32>
    %146 = arith.addf %139, %145 : vector<16x16x10xf32>
    %147 = vector.extract_strided_slice %88 {offsets = [0, 0, 5], sizes = [16, 16, 1], strides = [1, 1, 1]} : vector<16x16x8xf32> to vector<16x16x1xf32>
    %148 = vector.extract_strided_slice %93 {offsets = [5, 0], sizes = [1, 10], strides = [1, 1]} : vector<8x10xf32> to vector<1x10xf32>
    %149 = vector.shape_cast %148 : vector<1x10xf32> to vector<1x1x10xf32>
    %150 = vector.broadcast %147 : vector<16x16x1xf32> to vector<16x16x10xf32>
    %151 = vector.broadcast %149 : vector<1x1x10xf32> to vector<16x16x10xf32>
    %152 = arith.mulf %150, %151 : vector<16x16x10xf32>
    %153 = arith.addf %146, %152 : vector<16x16x10xf32>
    %154 = vector.extract_strided_slice %88 {offsets = [0, 0, 6], sizes = [16, 16, 1], strides = [1, 1, 1]} : vector<16x16x8xf32> to vector<16x16x1xf32>
    %155 = vector.extract_strided_slice %93 {offsets = [6, 0], sizes = [1, 10], strides = [1, 1]} : vector<8x10xf32> to vector<1x10xf32>
    %156 = vector.shape_cast %155 : vector<1x10xf32> to vector<1x1x10xf32>
    %157 = vector.broadcast %154 : vector<16x16x1xf32> to vector<16x16x10xf32>
    %158 = vector.broadcast %156 : vector<1x1x10xf32> to vector<16x16x10xf32>
    %159 = arith.mulf %157, %158 : vector<16x16x10xf32>
    %160 = arith.addf %153, %159 : vector<16x16x10xf32>
    %161 = vector.extract_strided_slice %88 {offsets = [0, 0, 7], sizes = [16, 16, 1], strides = [1, 1, 1]} : vector<16x16x8xf32> to vector<16x16x1xf32>
    %162 = vector.extract_strided_slice %93 {offsets = [7, 0], sizes = [1, 10], strides = [1, 1]} : vector<8x10xf32> to vector<1x10xf32>
    %163 = vector.shape_cast %162 : vector<1x10xf32> to vector<1x1x10xf32>
    %164 = vector.broadcast %161 : vector<16x16x1xf32> to vector<16x16x10xf32>
    %165 = vector.broadcast %163 : vector<1x1x10xf32> to vector<16x16x10xf32>
    %166 = arith.mulf %164, %165 : vector<16x16x10xf32>
    %167 = arith.addf %160, %166 : vector<16x16x10xf32>
    %168 = vector.shape_cast %94 : vector<1x10xf32> to vector<1x1x10xf32>
    %169 = vector.broadcast %168 : vector<1x1x10xf32> to vector<16x16x10xf32>
    %170 = arith.addf %167, %169 : vector<16x16x10xf32>
    %cst_44 = arith.constant 0.000000e+00 : f32
    %171 = vector.broadcast %cst_44 : f32 to vector<16x16x10xf32>
    %172 = arith.maximumf %170, %171 : vector<16x16x10xf32>
    %173 = vector.extract_strided_slice %112 {offsets = [0, 0, 0], sizes = [16, 16, 1], strides = [1, 1, 1]} : vector<16x16x10xf32> to vector<16x16x1xf32>
    %174 = vector.extract_strided_slice %91 {offsets = [0, 0], sizes = [1, 10], strides = [1, 1]} : vector<10x10xf32> to vector<1x10xf32>
    %175 = vector.shape_cast %174 : vector<1x10xf32> to vector<1x1x10xf32>
    %176 = vector.broadcast %173 : vector<16x16x1xf32> to vector<16x16x10xf32>
    %177 = vector.broadcast %175 : vector<1x1x10xf32> to vector<16x16x10xf32>
    %178 = arith.mulf %176, %177 : vector<16x16x10xf32>
    %179 = vector.extract_strided_slice %172 {offsets = [0, 0, 0], sizes = [16, 16, 1], strides = [1, 1, 1]} : vector<16x16x10xf32> to vector<16x16x1xf32>
    %180 = vector.extract_strided_slice %95 {offsets = [0, 0], sizes = [1, 10], strides = [1, 1]} : vector<10x10xf32> to vector<1x10xf32>
    %181 = vector.shape_cast %180 : vector<1x10xf32> to vector<1x1x10xf32>
    %182 = vector.broadcast %179 : vector<16x16x1xf32> to vector<16x16x10xf32>
    %183 = vector.broadcast %181 : vector<1x1x10xf32> to vector<16x16x10xf32>
    %184 = arith.mulf %182, %183 : vector<16x16x10xf32>
    %185 = vector.extract_strided_slice %112 {offsets = [0, 0, 1], sizes = [16, 16, 1], strides = [1, 1, 1]} : vector<16x16x10xf32> to vector<16x16x1xf32>
    %186 = vector.extract_strided_slice %91 {offsets = [1, 0], sizes = [1, 10], strides = [1, 1]} : vector<10x10xf32> to vector<1x10xf32>
    %187 = vector.shape_cast %186 : vector<1x10xf32> to vector<1x1x10xf32>
    %188 = vector.broadcast %185 : vector<16x16x1xf32> to vector<16x16x10xf32>
    %189 = vector.broadcast %187 : vector<1x1x10xf32> to vector<16x16x10xf32>
    %190 = arith.mulf %188, %189 : vector<16x16x10xf32>
    %191 = arith.addf %178, %190 : vector<16x16x10xf32>
    %192 = vector.extract_strided_slice %172 {offsets = [0, 0, 1], sizes = [16, 16, 1], strides = [1, 1, 1]} : vector<16x16x10xf32> to vector<16x16x1xf32>
    %193 = vector.extract_strided_slice %95 {offsets = [1, 0], sizes = [1, 10], strides = [1, 1]} : vector<10x10xf32> to vector<1x10xf32>
    %194 = vector.shape_cast %193 : vector<1x10xf32> to vector<1x1x10xf32>
    %195 = vector.broadcast %192 : vector<16x16x1xf32> to vector<16x16x10xf32>
    %196 = vector.broadcast %194 : vector<1x1x10xf32> to vector<16x16x10xf32>
    %197 = arith.mulf %195, %196 : vector<16x16x10xf32>
    %198 = arith.addf %184, %197 : vector<16x16x10xf32>
    %199 = vector.extract_strided_slice %112 {offsets = [0, 0, 2], sizes = [16, 16, 1], strides = [1, 1, 1]} : vector<16x16x10xf32> to vector<16x16x1xf32>
    %200 = vector.extract_strided_slice %91 {offsets = [2, 0], sizes = [1, 10], strides = [1, 1]} : vector<10x10xf32> to vector<1x10xf32>
    %201 = vector.shape_cast %200 : vector<1x10xf32> to vector<1x1x10xf32>
    %202 = vector.broadcast %199 : vector<16x16x1xf32> to vector<16x16x10xf32>
    %203 = vector.broadcast %201 : vector<1x1x10xf32> to vector<16x16x10xf32>
    %204 = arith.mulf %202, %203 : vector<16x16x10xf32>
    %205 = arith.addf %191, %204 : vector<16x16x10xf32>
    %206 = vector.extract_strided_slice %172 {offsets = [0, 0, 2], sizes = [16, 16, 1], strides = [1, 1, 1]} : vector<16x16x10xf32> to vector<16x16x1xf32>
    %207 = vector.extract_strided_slice %95 {offsets = [2, 0], sizes = [1, 10], strides = [1, 1]} : vector<10x10xf32> to vector<1x10xf32>
    %208 = vector.shape_cast %207 : vector<1x10xf32> to vector<1x1x10xf32>
    %209 = vector.broadcast %206 : vector<16x16x1xf32> to vector<16x16x10xf32>
    %210 = vector.broadcast %208 : vector<1x1x10xf32> to vector<16x16x10xf32>
    %211 = arith.mulf %209, %210 : vector<16x16x10xf32>
    %212 = arith.addf %198, %211 : vector<16x16x10xf32>
    %213 = vector.extract_strided_slice %112 {offsets = [0, 0, 3], sizes = [16, 16, 1], strides = [1, 1, 1]} : vector<16x16x10xf32> to vector<16x16x1xf32>
    %214 = vector.extract_strided_slice %91 {offsets = [3, 0], sizes = [1, 10], strides = [1, 1]} : vector<10x10xf32> to vector<1x10xf32>
    %215 = vector.shape_cast %214 : vector<1x10xf32> to vector<1x1x10xf32>
    %216 = vector.broadcast %213 : vector<16x16x1xf32> to vector<16x16x10xf32>
    %217 = vector.broadcast %215 : vector<1x1x10xf32> to vector<16x16x10xf32>
    %218 = arith.mulf %216, %217 : vector<16x16x10xf32>
    %219 = arith.addf %205, %218 : vector<16x16x10xf32>
    %220 = vector.extract_strided_slice %172 {offsets = [0, 0, 3], sizes = [16, 16, 1], strides = [1, 1, 1]} : vector<16x16x10xf32> to vector<16x16x1xf32>
    %221 = vector.extract_strided_slice %95 {offsets = [3, 0], sizes = [1, 10], strides = [1, 1]} : vector<10x10xf32> to vector<1x10xf32>
    %222 = vector.shape_cast %221 : vector<1x10xf32> to vector<1x1x10xf32>
    %223 = vector.broadcast %220 : vector<16x16x1xf32> to vector<16x16x10xf32>
    %224 = vector.broadcast %222 : vector<1x1x10xf32> to vector<16x16x10xf32>
    %225 = arith.mulf %223, %224 : vector<16x16x10xf32>
    %226 = arith.addf %212, %225 : vector<16x16x10xf32>
    %227 = vector.extract_strided_slice %112 {offsets = [0, 0, 4], sizes = [16, 16, 1], strides = [1, 1, 1]} : vector<16x16x10xf32> to vector<16x16x1xf32>
    %228 = vector.extract_strided_slice %91 {offsets = [4, 0], sizes = [1, 10], strides = [1, 1]} : vector<10x10xf32> to vector<1x10xf32>
    %229 = vector.shape_cast %228 : vector<1x10xf32> to vector<1x1x10xf32>
    %230 = vector.broadcast %227 : vector<16x16x1xf32> to vector<16x16x10xf32>
    %231 = vector.broadcast %229 : vector<1x1x10xf32> to vector<16x16x10xf32>
    %232 = arith.mulf %230, %231 : vector<16x16x10xf32>
    %233 = arith.addf %219, %232 : vector<16x16x10xf32>
    %234 = vector.extract_strided_slice %172 {offsets = [0, 0, 4], sizes = [16, 16, 1], strides = [1, 1, 1]} : vector<16x16x10xf32> to vector<16x16x1xf32>
    %235 = vector.extract_strided_slice %95 {offsets = [4, 0], sizes = [1, 10], strides = [1, 1]} : vector<10x10xf32> to vector<1x10xf32>
    %236 = vector.shape_cast %235 : vector<1x10xf32> to vector<1x1x10xf32>
    %237 = vector.broadcast %234 : vector<16x16x1xf32> to vector<16x16x10xf32>
    %238 = vector.broadcast %236 : vector<1x1x10xf32> to vector<16x16x10xf32>
    %239 = arith.mulf %237, %238 : vector<16x16x10xf32>
    %240 = arith.addf %226, %239 : vector<16x16x10xf32>
    %241 = vector.extract_strided_slice %112 {offsets = [0, 0, 5], sizes = [16, 16, 1], strides = [1, 1, 1]} : vector<16x16x10xf32> to vector<16x16x1xf32>
    %242 = vector.extract_strided_slice %91 {offsets = [5, 0], sizes = [1, 10], strides = [1, 1]} : vector<10x10xf32> to vector<1x10xf32>
    %243 = vector.shape_cast %242 : vector<1x10xf32> to vector<1x1x10xf32>
    %244 = vector.broadcast %241 : vector<16x16x1xf32> to vector<16x16x10xf32>
    %245 = vector.broadcast %243 : vector<1x1x10xf32> to vector<16x16x10xf32>
    %246 = arith.mulf %244, %245 : vector<16x16x10xf32>
    %247 = arith.addf %233, %246 : vector<16x16x10xf32>
    %248 = vector.extract_strided_slice %172 {offsets = [0, 0, 5], sizes = [16, 16, 1], strides = [1, 1, 1]} : vector<16x16x10xf32> to vector<16x16x1xf32>
    %249 = vector.extract_strided_slice %95 {offsets = [5, 0], sizes = [1, 10], strides = [1, 1]} : vector<10x10xf32> to vector<1x10xf32>
    %250 = vector.shape_cast %249 : vector<1x10xf32> to vector<1x1x10xf32>
    %251 = vector.broadcast %248 : vector<16x16x1xf32> to vector<16x16x10xf32>
    %252 = vector.broadcast %250 : vector<1x1x10xf32> to vector<16x16x10xf32>
    %253 = arith.mulf %251, %252 : vector<16x16x10xf32>
    %254 = arith.addf %240, %253 : vector<16x16x10xf32>
    %255 = vector.extract_strided_slice %112 {offsets = [0, 0, 6], sizes = [16, 16, 1], strides = [1, 1, 1]} : vector<16x16x10xf32> to vector<16x16x1xf32>
    %256 = vector.extract_strided_slice %91 {offsets = [6, 0], sizes = [1, 10], strides = [1, 1]} : vector<10x10xf32> to vector<1x10xf32>
    %257 = vector.shape_cast %256 : vector<1x10xf32> to vector<1x1x10xf32>
    %258 = vector.broadcast %255 : vector<16x16x1xf32> to vector<16x16x10xf32>
    %259 = vector.broadcast %257 : vector<1x1x10xf32> to vector<16x16x10xf32>
    %260 = arith.mulf %258, %259 : vector<16x16x10xf32>
    %261 = arith.addf %247, %260 : vector<16x16x10xf32>
    %262 = vector.extract_strided_slice %172 {offsets = [0, 0, 6], sizes = [16, 16, 1], strides = [1, 1, 1]} : vector<16x16x10xf32> to vector<16x16x1xf32>
    %263 = vector.extract_strided_slice %95 {offsets = [6, 0], sizes = [1, 10], strides = [1, 1]} : vector<10x10xf32> to vector<1x10xf32>
    %264 = vector.shape_cast %263 : vector<1x10xf32> to vector<1x1x10xf32>
    %265 = vector.broadcast %262 : vector<16x16x1xf32> to vector<16x16x10xf32>
    %266 = vector.broadcast %264 : vector<1x1x10xf32> to vector<16x16x10xf32>
    %267 = arith.mulf %265, %266 : vector<16x16x10xf32>
    %268 = arith.addf %254, %267 : vector<16x16x10xf32>
    %269 = vector.extract_strided_slice %112 {offsets = [0, 0, 7], sizes = [16, 16, 1], strides = [1, 1, 1]} : vector<16x16x10xf32> to vector<16x16x1xf32>
    %270 = vector.extract_strided_slice %91 {offsets = [7, 0], sizes = [1, 10], strides = [1, 1]} : vector<10x10xf32> to vector<1x10xf32>
    %271 = vector.shape_cast %270 : vector<1x10xf32> to vector<1x1x10xf32>
    %272 = vector.broadcast %269 : vector<16x16x1xf32> to vector<16x16x10xf32>
    %273 = vector.broadcast %271 : vector<1x1x10xf32> to vector<16x16x10xf32>
    %274 = arith.mulf %272, %273 : vector<16x16x10xf32>
    %275 = arith.addf %261, %274 : vector<16x16x10xf32>
    %276 = vector.extract_strided_slice %172 {offsets = [0, 0, 7], sizes = [16, 16, 1], strides = [1, 1, 1]} : vector<16x16x10xf32> to vector<16x16x1xf32>
    %277 = vector.extract_strided_slice %95 {offsets = [7, 0], sizes = [1, 10], strides = [1, 1]} : vector<10x10xf32> to vector<1x10xf32>
    %278 = vector.shape_cast %277 : vector<1x10xf32> to vector<1x1x10xf32>
    %279 = vector.broadcast %276 : vector<16x16x1xf32> to vector<16x16x10xf32>
    %280 = vector.broadcast %278 : vector<1x1x10xf32> to vector<16x16x10xf32>
    %281 = arith.mulf %279, %280 : vector<16x16x10xf32>
    %282 = arith.addf %268, %281 : vector<16x16x10xf32>
    %283 = vector.extract_strided_slice %112 {offsets = [0, 0, 8], sizes = [16, 16, 1], strides = [1, 1, 1]} : vector<16x16x10xf32> to vector<16x16x1xf32>
    %284 = vector.extract_strided_slice %91 {offsets = [8, 0], sizes = [1, 10], strides = [1, 1]} : vector<10x10xf32> to vector<1x10xf32>
    %285 = vector.shape_cast %284 : vector<1x10xf32> to vector<1x1x10xf32>
    %286 = vector.broadcast %283 : vector<16x16x1xf32> to vector<16x16x10xf32>
    %287 = vector.broadcast %285 : vector<1x1x10xf32> to vector<16x16x10xf32>
    %288 = arith.mulf %286, %287 : vector<16x16x10xf32>
    %289 = arith.addf %275, %288 : vector<16x16x10xf32>
    %290 = vector.extract_strided_slice %172 {offsets = [0, 0, 8], sizes = [16, 16, 1], strides = [1, 1, 1]} : vector<16x16x10xf32> to vector<16x16x1xf32>
    %291 = vector.extract_strided_slice %95 {offsets = [8, 0], sizes = [1, 10], strides = [1, 1]} : vector<10x10xf32> to vector<1x10xf32>
    %292 = vector.shape_cast %291 : vector<1x10xf32> to vector<1x1x10xf32>
    %293 = vector.broadcast %290 : vector<16x16x1xf32> to vector<16x16x10xf32>
    %294 = vector.broadcast %292 : vector<1x1x10xf32> to vector<16x16x10xf32>
    %295 = arith.mulf %293, %294 : vector<16x16x10xf32>
    %296 = arith.addf %282, %295 : vector<16x16x10xf32>
    %297 = vector.extract_strided_slice %112 {offsets = [0, 0, 9], sizes = [16, 16, 1], strides = [1, 1, 1]} : vector<16x16x10xf32> to vector<16x16x1xf32>
    %298 = vector.extract_strided_slice %91 {offsets = [9, 0], sizes = [1, 10], strides = [1, 1]} : vector<10x10xf32> to vector<1x10xf32>
    %299 = vector.shape_cast %298 : vector<1x10xf32> to vector<1x1x10xf32>
    %300 = vector.broadcast %297 : vector<16x16x1xf32> to vector<16x16x10xf32>
    %301 = vector.broadcast %299 : vector<1x1x10xf32> to vector<16x16x10xf32>
    %302 = arith.mulf %300, %301 : vector<16x16x10xf32>
    %303 = arith.addf %289, %302 : vector<16x16x10xf32>
    %304 = vector.extract_strided_slice %172 {offsets = [0, 0, 9], sizes = [16, 16, 1], strides = [1, 1, 1]} : vector<16x16x10xf32> to vector<16x16x1xf32>
    %305 = vector.extract_strided_slice %95 {offsets = [9, 0], sizes = [1, 10], strides = [1, 1]} : vector<10x10xf32> to vector<1x10xf32>
    %306 = vector.shape_cast %305 : vector<1x10xf32> to vector<1x1x10xf32>
    %307 = vector.broadcast %304 : vector<16x16x1xf32> to vector<16x16x10xf32>
    %308 = vector.broadcast %306 : vector<1x1x10xf32> to vector<16x16x10xf32>
    %309 = arith.mulf %307, %308 : vector<16x16x10xf32>
    %310 = arith.addf %296, %309 : vector<16x16x10xf32>
    %311 = vector.shape_cast %92 : vector<1x10xf32> to vector<1x1x10xf32>
    %312 = vector.broadcast %311 : vector<1x1x10xf32> to vector<16x16x10xf32>
    %313 = arith.addf %303, %312 : vector<16x16x10xf32>
    %cst_45 = arith.constant 0.000000e+00 : f32
    %314 = vector.broadcast %cst_45 : f32 to vector<16x16x10xf32>
    %315 = arith.maximumf %313, %314 : vector<16x16x10xf32>
    %316 = vector.shape_cast %96 : vector<1x10xf32> to vector<1x1x10xf32>
    %317 = vector.broadcast %316 : vector<1x1x10xf32> to vector<16x16x10xf32>
    %318 = arith.addf %310, %317 : vector<16x16x10xf32>
    %cst_46 = arith.constant 0.000000e+00 : f32
    %319 = vector.broadcast %cst_46 : f32 to vector<16x16x10xf32>
    %320 = arith.maximumf %318, %319 : vector<16x16x10xf32>
    %321 = vector.extract_strided_slice %112 {offsets = [0, 0, 0], sizes = [4, 16, 10], strides = [1, 1, 1]} : vector<16x16x10xf32> to vector<4x16x10xf32>
    %cst_47 = arith.constant dense<0xFF800000> : vector<16x10xf32>
    %322 = vector.multi_reduction <maximumf>, %321, %cst_47 [0] : vector<4x16x10xf32> to vector<16x10xf32>
    %323 = vector.shape_cast %322 : vector<16x10xf32> to vector<1x16x10xf32>
    %324 = vector.extract_strided_slice %323 {offsets = [0, 0, 0], sizes = [1, 4, 10], strides = [1, 1, 1]} : vector<1x16x10xf32> to vector<1x4x10xf32>
    %cst_48 = arith.constant dense<0xFF800000> : vector<1x10xf32>
    %325 = vector.multi_reduction <maximumf>, %324, %cst_48 [1] : vector<1x4x10xf32> to vector<1x10xf32>
    %326 = vector.shape_cast %325 : vector<1x10xf32> to vector<1x1x10xf32>
    %327 = vector.extract_strided_slice %323 {offsets = [0, 4, 0], sizes = [1, 4, 10], strides = [1, 1, 1]} : vector<1x16x10xf32> to vector<1x4x10xf32>
    %cst_49 = arith.constant dense<0xFF800000> : vector<1x10xf32>
    %328 = vector.multi_reduction <maximumf>, %327, %cst_49 [1] : vector<1x4x10xf32> to vector<1x10xf32>
    %329 = vector.shape_cast %328 : vector<1x10xf32> to vector<1x1x10xf32>
    %330 = vector.extract_strided_slice %323 {offsets = [0, 8, 0], sizes = [1, 4, 10], strides = [1, 1, 1]} : vector<1x16x10xf32> to vector<1x4x10xf32>
    %cst_50 = arith.constant dense<0xFF800000> : vector<1x10xf32>
    %331 = vector.multi_reduction <maximumf>, %330, %cst_50 [1] : vector<1x4x10xf32> to vector<1x10xf32>
    %332 = vector.shape_cast %331 : vector<1x10xf32> to vector<1x1x10xf32>
    %333 = vector.extract_strided_slice %323 {offsets = [0, 12, 0], sizes = [1, 4, 10], strides = [1, 1, 1]} : vector<1x16x10xf32> to vector<1x4x10xf32>
    %cst_51 = arith.constant dense<0xFF800000> : vector<1x10xf32>
    %334 = vector.multi_reduction <maximumf>, %333, %cst_51 [1] : vector<1x4x10xf32> to vector<1x10xf32>
    %335 = vector.shape_cast %334 : vector<1x10xf32> to vector<1x1x10xf32>
    %336 = vector.extract_strided_slice %112 {offsets = [4, 0, 0], sizes = [4, 16, 10], strides = [1, 1, 1]} : vector<16x16x10xf32> to vector<4x16x10xf32>
    %cst_52 = arith.constant dense<0xFF800000> : vector<16x10xf32>
    %337 = vector.multi_reduction <maximumf>, %336, %cst_52 [0] : vector<4x16x10xf32> to vector<16x10xf32>
    %338 = vector.shape_cast %337 : vector<16x10xf32> to vector<1x16x10xf32>
    %339 = vector.extract_strided_slice %338 {offsets = [0, 0, 0], sizes = [1, 4, 10], strides = [1, 1, 1]} : vector<1x16x10xf32> to vector<1x4x10xf32>
    %cst_53 = arith.constant dense<0xFF800000> : vector<1x10xf32>
    %340 = vector.multi_reduction <maximumf>, %339, %cst_53 [1] : vector<1x4x10xf32> to vector<1x10xf32>
    %341 = vector.shape_cast %340 : vector<1x10xf32> to vector<1x1x10xf32>
    %342 = vector.extract_strided_slice %338 {offsets = [0, 4, 0], sizes = [1, 4, 10], strides = [1, 1, 1]} : vector<1x16x10xf32> to vector<1x4x10xf32>
    %cst_54 = arith.constant dense<0xFF800000> : vector<1x10xf32>
    %343 = vector.multi_reduction <maximumf>, %342, %cst_54 [1] : vector<1x4x10xf32> to vector<1x10xf32>
    %344 = vector.shape_cast %343 : vector<1x10xf32> to vector<1x1x10xf32>
    %345 = vector.extract_strided_slice %338 {offsets = [0, 8, 0], sizes = [1, 4, 10], strides = [1, 1, 1]} : vector<1x16x10xf32> to vector<1x4x10xf32>
    %cst_55 = arith.constant dense<0xFF800000> : vector<1x10xf32>
    %346 = vector.multi_reduction <maximumf>, %345, %cst_55 [1] : vector<1x4x10xf32> to vector<1x10xf32>
    %347 = vector.shape_cast %346 : vector<1x10xf32> to vector<1x1x10xf32>
    %348 = vector.extract_strided_slice %338 {offsets = [0, 12, 0], sizes = [1, 4, 10], strides = [1, 1, 1]} : vector<1x16x10xf32> to vector<1x4x10xf32>
    %cst_56 = arith.constant dense<0xFF800000> : vector<1x10xf32>
    %349 = vector.multi_reduction <maximumf>, %348, %cst_56 [1] : vector<1x4x10xf32> to vector<1x10xf32>
    %350 = vector.shape_cast %349 : vector<1x10xf32> to vector<1x1x10xf32>
    %351 = vector.extract_strided_slice %112 {offsets = [8, 0, 0], sizes = [4, 16, 10], strides = [1, 1, 1]} : vector<16x16x10xf32> to vector<4x16x10xf32>
    %cst_57 = arith.constant dense<0xFF800000> : vector<16x10xf32>
    %352 = vector.multi_reduction <maximumf>, %351, %cst_57 [0] : vector<4x16x10xf32> to vector<16x10xf32>
    %353 = vector.shape_cast %352 : vector<16x10xf32> to vector<1x16x10xf32>
    %354 = vector.extract_strided_slice %353 {offsets = [0, 0, 0], sizes = [1, 4, 10], strides = [1, 1, 1]} : vector<1x16x10xf32> to vector<1x4x10xf32>
    %cst_58 = arith.constant dense<0xFF800000> : vector<1x10xf32>
    %355 = vector.multi_reduction <maximumf>, %354, %cst_58 [1] : vector<1x4x10xf32> to vector<1x10xf32>
    %356 = vector.shape_cast %355 : vector<1x10xf32> to vector<1x1x10xf32>
    %357 = vector.extract_strided_slice %353 {offsets = [0, 4, 0], sizes = [1, 4, 10], strides = [1, 1, 1]} : vector<1x16x10xf32> to vector<1x4x10xf32>
    %cst_59 = arith.constant dense<0xFF800000> : vector<1x10xf32>
    %358 = vector.multi_reduction <maximumf>, %357, %cst_59 [1] : vector<1x4x10xf32> to vector<1x10xf32>
    %359 = vector.shape_cast %358 : vector<1x10xf32> to vector<1x1x10xf32>
    %360 = vector.extract_strided_slice %353 {offsets = [0, 8, 0], sizes = [1, 4, 10], strides = [1, 1, 1]} : vector<1x16x10xf32> to vector<1x4x10xf32>
    %cst_60 = arith.constant dense<0xFF800000> : vector<1x10xf32>
    %361 = vector.multi_reduction <maximumf>, %360, %cst_60 [1] : vector<1x4x10xf32> to vector<1x10xf32>
    %362 = vector.shape_cast %361 : vector<1x10xf32> to vector<1x1x10xf32>
    %363 = vector.extract_strided_slice %353 {offsets = [0, 12, 0], sizes = [1, 4, 10], strides = [1, 1, 1]} : vector<1x16x10xf32> to vector<1x4x10xf32>
    %cst_61 = arith.constant dense<0xFF800000> : vector<1x10xf32>
    %364 = vector.multi_reduction <maximumf>, %363, %cst_61 [1] : vector<1x4x10xf32> to vector<1x10xf32>
    %365 = vector.shape_cast %364 : vector<1x10xf32> to vector<1x1x10xf32>
    %366 = vector.extract_strided_slice %112 {offsets = [12, 0, 0], sizes = [4, 16, 10], strides = [1, 1, 1]} : vector<16x16x10xf32> to vector<4x16x10xf32>
    %cst_62 = arith.constant dense<0xFF800000> : vector<16x10xf32>
    %367 = vector.multi_reduction <maximumf>, %366, %cst_62 [0] : vector<4x16x10xf32> to vector<16x10xf32>
    %368 = vector.shape_cast %367 : vector<16x10xf32> to vector<1x16x10xf32>
    %369 = vector.extract_strided_slice %368 {offsets = [0, 0, 0], sizes = [1, 4, 10], strides = [1, 1, 1]} : vector<1x16x10xf32> to vector<1x4x10xf32>
    %cst_63 = arith.constant dense<0xFF800000> : vector<1x10xf32>
    %370 = vector.multi_reduction <maximumf>, %369, %cst_63 [1] : vector<1x4x10xf32> to vector<1x10xf32>
    %371 = vector.shape_cast %370 : vector<1x10xf32> to vector<1x1x10xf32>
    %372 = vector.extract_strided_slice %368 {offsets = [0, 4, 0], sizes = [1, 4, 10], strides = [1, 1, 1]} : vector<1x16x10xf32> to vector<1x4x10xf32>
    %cst_64 = arith.constant dense<0xFF800000> : vector<1x10xf32>
    %373 = vector.multi_reduction <maximumf>, %372, %cst_64 [1] : vector<1x4x10xf32> to vector<1x10xf32>
    %374 = vector.shape_cast %373 : vector<1x10xf32> to vector<1x1x10xf32>
    %375 = vector.extract_strided_slice %368 {offsets = [0, 8, 0], sizes = [1, 4, 10], strides = [1, 1, 1]} : vector<1x16x10xf32> to vector<1x4x10xf32>
    %cst_65 = arith.constant dense<0xFF800000> : vector<1x10xf32>
    %376 = vector.multi_reduction <maximumf>, %375, %cst_65 [1] : vector<1x4x10xf32> to vector<1x10xf32>
    %377 = vector.shape_cast %376 : vector<1x10xf32> to vector<1x1x10xf32>
    %378 = vector.extract_strided_slice %368 {offsets = [0, 12, 0], sizes = [1, 4, 10], strides = [1, 1, 1]} : vector<1x16x10xf32> to vector<1x4x10xf32>
    %cst_66 = arith.constant dense<0xFF800000> : vector<1x10xf32>
    %379 = vector.multi_reduction <maximumf>, %378, %cst_66 [1] : vector<1x4x10xf32> to vector<1x10xf32>
    %380 = vector.shape_cast %379 : vector<1x10xf32> to vector<1x1x10xf32>
    %381 = vector.extract_strided_slice %315 {offsets = [0, 0, 0], sizes = [4, 16, 10], strides = [1, 1, 1]} : vector<16x16x10xf32> to vector<4x16x10xf32>
    %cst_67 = arith.constant dense<0xFF800000> : vector<16x10xf32>
    %382 = vector.multi_reduction <maximumf>, %381, %cst_67 [0] : vector<4x16x10xf32> to vector<16x10xf32>
    %383 = vector.shape_cast %382 : vector<16x10xf32> to vector<1x16x10xf32>
    %384 = vector.extract_strided_slice %383 {offsets = [0, 0, 0], sizes = [1, 4, 10], strides = [1, 1, 1]} : vector<1x16x10xf32> to vector<1x4x10xf32>
    %cst_68 = arith.constant dense<0xFF800000> : vector<1x10xf32>
    %385 = vector.multi_reduction <maximumf>, %384, %cst_68 [1] : vector<1x4x10xf32> to vector<1x10xf32>
    %386 = vector.shape_cast %385 : vector<1x10xf32> to vector<1x1x10xf32>
    %387 = vector.extract_strided_slice %383 {offsets = [0, 4, 0], sizes = [1, 4, 10], strides = [1, 1, 1]} : vector<1x16x10xf32> to vector<1x4x10xf32>
    %cst_69 = arith.constant dense<0xFF800000> : vector<1x10xf32>
    %388 = vector.multi_reduction <maximumf>, %387, %cst_69 [1] : vector<1x4x10xf32> to vector<1x10xf32>
    %389 = vector.shape_cast %388 : vector<1x10xf32> to vector<1x1x10xf32>
    %390 = vector.extract_strided_slice %383 {offsets = [0, 8, 0], sizes = [1, 4, 10], strides = [1, 1, 1]} : vector<1x16x10xf32> to vector<1x4x10xf32>
    %cst_70 = arith.constant dense<0xFF800000> : vector<1x10xf32>
    %391 = vector.multi_reduction <maximumf>, %390, %cst_70 [1] : vector<1x4x10xf32> to vector<1x10xf32>
    %392 = vector.shape_cast %391 : vector<1x10xf32> to vector<1x1x10xf32>
    %393 = vector.extract_strided_slice %383 {offsets = [0, 12, 0], sizes = [1, 4, 10], strides = [1, 1, 1]} : vector<1x16x10xf32> to vector<1x4x10xf32>
    %cst_71 = arith.constant dense<0xFF800000> : vector<1x10xf32>
    %394 = vector.multi_reduction <maximumf>, %393, %cst_71 [1] : vector<1x4x10xf32> to vector<1x10xf32>
    %395 = vector.shape_cast %394 : vector<1x10xf32> to vector<1x1x10xf32>
    %396 = vector.extract_strided_slice %315 {offsets = [4, 0, 0], sizes = [4, 16, 10], strides = [1, 1, 1]} : vector<16x16x10xf32> to vector<4x16x10xf32>
    %cst_72 = arith.constant dense<0xFF800000> : vector<16x10xf32>
    %397 = vector.multi_reduction <maximumf>, %396, %cst_72 [0] : vector<4x16x10xf32> to vector<16x10xf32>
    %398 = vector.shape_cast %397 : vector<16x10xf32> to vector<1x16x10xf32>
    %399 = vector.extract_strided_slice %398 {offsets = [0, 0, 0], sizes = [1, 4, 10], strides = [1, 1, 1]} : vector<1x16x10xf32> to vector<1x4x10xf32>
    %cst_73 = arith.constant dense<0xFF800000> : vector<1x10xf32>
    %400 = vector.multi_reduction <maximumf>, %399, %cst_73 [1] : vector<1x4x10xf32> to vector<1x10xf32>
    %401 = vector.shape_cast %400 : vector<1x10xf32> to vector<1x1x10xf32>
    %402 = vector.extract_strided_slice %398 {offsets = [0, 4, 0], sizes = [1, 4, 10], strides = [1, 1, 1]} : vector<1x16x10xf32> to vector<1x4x10xf32>
    %cst_74 = arith.constant dense<0xFF800000> : vector<1x10xf32>
    %403 = vector.multi_reduction <maximumf>, %402, %cst_74 [1] : vector<1x4x10xf32> to vector<1x10xf32>
    %404 = vector.shape_cast %403 : vector<1x10xf32> to vector<1x1x10xf32>
    %405 = vector.extract_strided_slice %398 {offsets = [0, 8, 0], sizes = [1, 4, 10], strides = [1, 1, 1]} : vector<1x16x10xf32> to vector<1x4x10xf32>
    %cst_75 = arith.constant dense<0xFF800000> : vector<1x10xf32>
    %406 = vector.multi_reduction <maximumf>, %405, %cst_75 [1] : vector<1x4x10xf32> to vector<1x10xf32>
    %407 = vector.shape_cast %406 : vector<1x10xf32> to vector<1x1x10xf32>
    %408 = vector.extract_strided_slice %398 {offsets = [0, 12, 0], sizes = [1, 4, 10], strides = [1, 1, 1]} : vector<1x16x10xf32> to vector<1x4x10xf32>
    %cst_76 = arith.constant dense<0xFF800000> : vector<1x10xf32>
    %409 = vector.multi_reduction <maximumf>, %408, %cst_76 [1] : vector<1x4x10xf32> to vector<1x10xf32>
    %410 = vector.shape_cast %409 : vector<1x10xf32> to vector<1x1x10xf32>
    %411 = vector.extract_strided_slice %315 {offsets = [8, 0, 0], sizes = [4, 16, 10], strides = [1, 1, 1]} : vector<16x16x10xf32> to vector<4x16x10xf32>
    %cst_77 = arith.constant dense<0xFF800000> : vector<16x10xf32>
    %412 = vector.multi_reduction <maximumf>, %411, %cst_77 [0] : vector<4x16x10xf32> to vector<16x10xf32>
    %413 = vector.shape_cast %412 : vector<16x10xf32> to vector<1x16x10xf32>
    %414 = vector.extract_strided_slice %413 {offsets = [0, 0, 0], sizes = [1, 4, 10], strides = [1, 1, 1]} : vector<1x16x10xf32> to vector<1x4x10xf32>
    %cst_78 = arith.constant dense<0xFF800000> : vector<1x10xf32>
    %415 = vector.multi_reduction <maximumf>, %414, %cst_78 [1] : vector<1x4x10xf32> to vector<1x10xf32>
    %416 = vector.shape_cast %415 : vector<1x10xf32> to vector<1x1x10xf32>
    %417 = vector.extract_strided_slice %413 {offsets = [0, 4, 0], sizes = [1, 4, 10], strides = [1, 1, 1]} : vector<1x16x10xf32> to vector<1x4x10xf32>
    %cst_79 = arith.constant dense<0xFF800000> : vector<1x10xf32>
    %418 = vector.multi_reduction <maximumf>, %417, %cst_79 [1] : vector<1x4x10xf32> to vector<1x10xf32>
    %419 = vector.shape_cast %418 : vector<1x10xf32> to vector<1x1x10xf32>
    %420 = vector.extract_strided_slice %413 {offsets = [0, 8, 0], sizes = [1, 4, 10], strides = [1, 1, 1]} : vector<1x16x10xf32> to vector<1x4x10xf32>
    %cst_80 = arith.constant dense<0xFF800000> : vector<1x10xf32>
    %421 = vector.multi_reduction <maximumf>, %420, %cst_80 [1] : vector<1x4x10xf32> to vector<1x10xf32>
    %422 = vector.shape_cast %421 : vector<1x10xf32> to vector<1x1x10xf32>
    %423 = vector.extract_strided_slice %413 {offsets = [0, 12, 0], sizes = [1, 4, 10], strides = [1, 1, 1]} : vector<1x16x10xf32> to vector<1x4x10xf32>
    %cst_81 = arith.constant dense<0xFF800000> : vector<1x10xf32>
    %424 = vector.multi_reduction <maximumf>, %423, %cst_81 [1] : vector<1x4x10xf32> to vector<1x10xf32>
    %425 = vector.shape_cast %424 : vector<1x10xf32> to vector<1x1x10xf32>
    %426 = vector.extract_strided_slice %315 {offsets = [12, 0, 0], sizes = [4, 16, 10], strides = [1, 1, 1]} : vector<16x16x10xf32> to vector<4x16x10xf32>
    %cst_82 = arith.constant dense<0xFF800000> : vector<16x10xf32>
    %427 = vector.multi_reduction <maximumf>, %426, %cst_82 [0] : vector<4x16x10xf32> to vector<16x10xf32>
    %428 = vector.shape_cast %427 : vector<16x10xf32> to vector<1x16x10xf32>
    %429 = vector.extract_strided_slice %428 {offsets = [0, 0, 0], sizes = [1, 4, 10], strides = [1, 1, 1]} : vector<1x16x10xf32> to vector<1x4x10xf32>
    %cst_83 = arith.constant dense<0xFF800000> : vector<1x10xf32>
    %430 = vector.multi_reduction <maximumf>, %429, %cst_83 [1] : vector<1x4x10xf32> to vector<1x10xf32>
    %431 = vector.shape_cast %430 : vector<1x10xf32> to vector<1x1x10xf32>
    %432 = vector.extract_strided_slice %428 {offsets = [0, 4, 0], sizes = [1, 4, 10], strides = [1, 1, 1]} : vector<1x16x10xf32> to vector<1x4x10xf32>
    %cst_84 = arith.constant dense<0xFF800000> : vector<1x10xf32>
    %433 = vector.multi_reduction <maximumf>, %432, %cst_84 [1] : vector<1x4x10xf32> to vector<1x10xf32>
    %434 = vector.shape_cast %433 : vector<1x10xf32> to vector<1x1x10xf32>
    %435 = vector.extract_strided_slice %428 {offsets = [0, 8, 0], sizes = [1, 4, 10], strides = [1, 1, 1]} : vector<1x16x10xf32> to vector<1x4x10xf32>
    %cst_85 = arith.constant dense<0xFF800000> : vector<1x10xf32>
    %436 = vector.multi_reduction <maximumf>, %435, %cst_85 [1] : vector<1x4x10xf32> to vector<1x10xf32>
    %437 = vector.shape_cast %436 : vector<1x10xf32> to vector<1x1x10xf32>
    %438 = vector.extract_strided_slice %428 {offsets = [0, 12, 0], sizes = [1, 4, 10], strides = [1, 1, 1]} : vector<1x16x10xf32> to vector<1x4x10xf32>
    %cst_86 = arith.constant dense<0xFF800000> : vector<1x10xf32>
    %439 = vector.multi_reduction <maximumf>, %438, %cst_86 [1] : vector<1x4x10xf32> to vector<1x10xf32>
    %440 = vector.shape_cast %439 : vector<1x10xf32> to vector<1x1x10xf32>
    %441 = vector.extract_strided_slice %172 {offsets = [0, 0, 0], sizes = [4, 16, 10], strides = [1, 1, 1]} : vector<16x16x10xf32> to vector<4x16x10xf32>
    %cst_87 = arith.constant dense<0xFF800000> : vector<16x10xf32>
    %442 = vector.multi_reduction <maximumf>, %441, %cst_87 [0] : vector<4x16x10xf32> to vector<16x10xf32>
    %443 = vector.shape_cast %442 : vector<16x10xf32> to vector<1x16x10xf32>
    %444 = vector.extract_strided_slice %443 {offsets = [0, 0, 0], sizes = [1, 4, 10], strides = [1, 1, 1]} : vector<1x16x10xf32> to vector<1x4x10xf32>
    %cst_88 = arith.constant dense<0xFF800000> : vector<1x10xf32>
    %445 = vector.multi_reduction <maximumf>, %444, %cst_88 [1] : vector<1x4x10xf32> to vector<1x10xf32>
    %446 = vector.shape_cast %445 : vector<1x10xf32> to vector<1x1x10xf32>
    %447 = vector.extract_strided_slice %443 {offsets = [0, 4, 0], sizes = [1, 4, 10], strides = [1, 1, 1]} : vector<1x16x10xf32> to vector<1x4x10xf32>
    %cst_89 = arith.constant dense<0xFF800000> : vector<1x10xf32>
    %448 = vector.multi_reduction <maximumf>, %447, %cst_89 [1] : vector<1x4x10xf32> to vector<1x10xf32>
    %449 = vector.shape_cast %448 : vector<1x10xf32> to vector<1x1x10xf32>
    %450 = vector.extract_strided_slice %443 {offsets = [0, 8, 0], sizes = [1, 4, 10], strides = [1, 1, 1]} : vector<1x16x10xf32> to vector<1x4x10xf32>
    %cst_90 = arith.constant dense<0xFF800000> : vector<1x10xf32>
    %451 = vector.multi_reduction <maximumf>, %450, %cst_90 [1] : vector<1x4x10xf32> to vector<1x10xf32>
    %452 = vector.shape_cast %451 : vector<1x10xf32> to vector<1x1x10xf32>
    %453 = vector.extract_strided_slice %443 {offsets = [0, 12, 0], sizes = [1, 4, 10], strides = [1, 1, 1]} : vector<1x16x10xf32> to vector<1x4x10xf32>
    %cst_91 = arith.constant dense<0xFF800000> : vector<1x10xf32>
    %454 = vector.multi_reduction <maximumf>, %453, %cst_91 [1] : vector<1x4x10xf32> to vector<1x10xf32>
    %455 = vector.shape_cast %454 : vector<1x10xf32> to vector<1x1x10xf32>
    %456 = vector.extract_strided_slice %172 {offsets = [4, 0, 0], sizes = [4, 16, 10], strides = [1, 1, 1]} : vector<16x16x10xf32> to vector<4x16x10xf32>
    %cst_92 = arith.constant dense<0xFF800000> : vector<16x10xf32>
    %457 = vector.multi_reduction <maximumf>, %456, %cst_92 [0] : vector<4x16x10xf32> to vector<16x10xf32>
    %458 = vector.shape_cast %457 : vector<16x10xf32> to vector<1x16x10xf32>
    %459 = vector.extract_strided_slice %458 {offsets = [0, 0, 0], sizes = [1, 4, 10], strides = [1, 1, 1]} : vector<1x16x10xf32> to vector<1x4x10xf32>
    %cst_93 = arith.constant dense<0xFF800000> : vector<1x10xf32>
    %460 = vector.multi_reduction <maximumf>, %459, %cst_93 [1] : vector<1x4x10xf32> to vector<1x10xf32>
    %461 = vector.shape_cast %460 : vector<1x10xf32> to vector<1x1x10xf32>
    %462 = vector.extract_strided_slice %458 {offsets = [0, 4, 0], sizes = [1, 4, 10], strides = [1, 1, 1]} : vector<1x16x10xf32> to vector<1x4x10xf32>
    %cst_94 = arith.constant dense<0xFF800000> : vector<1x10xf32>
    %463 = vector.multi_reduction <maximumf>, %462, %cst_94 [1] : vector<1x4x10xf32> to vector<1x10xf32>
    %464 = vector.shape_cast %463 : vector<1x10xf32> to vector<1x1x10xf32>
    %465 = vector.extract_strided_slice %458 {offsets = [0, 8, 0], sizes = [1, 4, 10], strides = [1, 1, 1]} : vector<1x16x10xf32> to vector<1x4x10xf32>
    %cst_95 = arith.constant dense<0xFF800000> : vector<1x10xf32>
    %466 = vector.multi_reduction <maximumf>, %465, %cst_95 [1] : vector<1x4x10xf32> to vector<1x10xf32>
    %467 = vector.shape_cast %466 : vector<1x10xf32> to vector<1x1x10xf32>
    %468 = vector.extract_strided_slice %458 {offsets = [0, 12, 0], sizes = [1, 4, 10], strides = [1, 1, 1]} : vector<1x16x10xf32> to vector<1x4x10xf32>
    %cst_96 = arith.constant dense<0xFF800000> : vector<1x10xf32>
    %469 = vector.multi_reduction <maximumf>, %468, %cst_96 [1] : vector<1x4x10xf32> to vector<1x10xf32>
    %470 = vector.shape_cast %469 : vector<1x10xf32> to vector<1x1x10xf32>
    %471 = vector.extract_strided_slice %172 {offsets = [8, 0, 0], sizes = [4, 16, 10], strides = [1, 1, 1]} : vector<16x16x10xf32> to vector<4x16x10xf32>
    %cst_97 = arith.constant dense<0xFF800000> : vector<16x10xf32>
    %472 = vector.multi_reduction <maximumf>, %471, %cst_97 [0] : vector<4x16x10xf32> to vector<16x10xf32>
    %473 = vector.shape_cast %472 : vector<16x10xf32> to vector<1x16x10xf32>
    %474 = vector.extract_strided_slice %473 {offsets = [0, 0, 0], sizes = [1, 4, 10], strides = [1, 1, 1]} : vector<1x16x10xf32> to vector<1x4x10xf32>
    %cst_98 = arith.constant dense<0xFF800000> : vector<1x10xf32>
    %475 = vector.multi_reduction <maximumf>, %474, %cst_98 [1] : vector<1x4x10xf32> to vector<1x10xf32>
    %476 = vector.shape_cast %475 : vector<1x10xf32> to vector<1x1x10xf32>
    %477 = vector.extract_strided_slice %473 {offsets = [0, 4, 0], sizes = [1, 4, 10], strides = [1, 1, 1]} : vector<1x16x10xf32> to vector<1x4x10xf32>
    %cst_99 = arith.constant dense<0xFF800000> : vector<1x10xf32>
    %478 = vector.multi_reduction <maximumf>, %477, %cst_99 [1] : vector<1x4x10xf32> to vector<1x10xf32>
    %479 = vector.shape_cast %478 : vector<1x10xf32> to vector<1x1x10xf32>
    %480 = vector.extract_strided_slice %473 {offsets = [0, 8, 0], sizes = [1, 4, 10], strides = [1, 1, 1]} : vector<1x16x10xf32> to vector<1x4x10xf32>
    %cst_100 = arith.constant dense<0xFF800000> : vector<1x10xf32>
    %481 = vector.multi_reduction <maximumf>, %480, %cst_100 [1] : vector<1x4x10xf32> to vector<1x10xf32>
    %482 = vector.shape_cast %481 : vector<1x10xf32> to vector<1x1x10xf32>
    %483 = vector.extract_strided_slice %473 {offsets = [0, 12, 0], sizes = [1, 4, 10], strides = [1, 1, 1]} : vector<1x16x10xf32> to vector<1x4x10xf32>
    %cst_101 = arith.constant dense<0xFF800000> : vector<1x10xf32>
    %484 = vector.multi_reduction <maximumf>, %483, %cst_101 [1] : vector<1x4x10xf32> to vector<1x10xf32>
    %485 = vector.shape_cast %484 : vector<1x10xf32> to vector<1x1x10xf32>
    %486 = vector.extract_strided_slice %172 {offsets = [12, 0, 0], sizes = [4, 16, 10], strides = [1, 1, 1]} : vector<16x16x10xf32> to vector<4x16x10xf32>
    %cst_102 = arith.constant dense<0xFF800000> : vector<16x10xf32>
    %487 = vector.multi_reduction <maximumf>, %486, %cst_102 [0] : vector<4x16x10xf32> to vector<16x10xf32>
    %488 = vector.shape_cast %487 : vector<16x10xf32> to vector<1x16x10xf32>
    %489 = vector.extract_strided_slice %488 {offsets = [0, 0, 0], sizes = [1, 4, 10], strides = [1, 1, 1]} : vector<1x16x10xf32> to vector<1x4x10xf32>
    %cst_103 = arith.constant dense<0xFF800000> : vector<1x10xf32>
    %490 = vector.multi_reduction <maximumf>, %489, %cst_103 [1] : vector<1x4x10xf32> to vector<1x10xf32>
    %491 = vector.shape_cast %490 : vector<1x10xf32> to vector<1x1x10xf32>
    %492 = vector.extract_strided_slice %488 {offsets = [0, 4, 0], sizes = [1, 4, 10], strides = [1, 1, 1]} : vector<1x16x10xf32> to vector<1x4x10xf32>
    %cst_104 = arith.constant dense<0xFF800000> : vector<1x10xf32>
    %493 = vector.multi_reduction <maximumf>, %492, %cst_104 [1] : vector<1x4x10xf32> to vector<1x10xf32>
    %494 = vector.shape_cast %493 : vector<1x10xf32> to vector<1x1x10xf32>
    %495 = vector.extract_strided_slice %488 {offsets = [0, 8, 0], sizes = [1, 4, 10], strides = [1, 1, 1]} : vector<1x16x10xf32> to vector<1x4x10xf32>
    %cst_105 = arith.constant dense<0xFF800000> : vector<1x10xf32>
    %496 = vector.multi_reduction <maximumf>, %495, %cst_105 [1] : vector<1x4x10xf32> to vector<1x10xf32>
    %497 = vector.shape_cast %496 : vector<1x10xf32> to vector<1x1x10xf32>
    %498 = vector.extract_strided_slice %488 {offsets = [0, 12, 0], sizes = [1, 4, 10], strides = [1, 1, 1]} : vector<1x16x10xf32> to vector<1x4x10xf32>
    %cst_106 = arith.constant dense<0xFF800000> : vector<1x10xf32>
    %499 = vector.multi_reduction <maximumf>, %498, %cst_106 [1] : vector<1x4x10xf32> to vector<1x10xf32>
    %500 = vector.shape_cast %499 : vector<1x10xf32> to vector<1x1x10xf32>
    %501 = vector.extract_strided_slice %320 {offsets = [0, 0, 0], sizes = [4, 16, 10], strides = [1, 1, 1]} : vector<16x16x10xf32> to vector<4x16x10xf32>
    %cst_107 = arith.constant dense<0xFF800000> : vector<16x10xf32>
    %502 = vector.multi_reduction <maximumf>, %501, %cst_107 [0] : vector<4x16x10xf32> to vector<16x10xf32>
    %503 = vector.shape_cast %502 : vector<16x10xf32> to vector<1x16x10xf32>
    %504 = vector.extract_strided_slice %503 {offsets = [0, 0, 0], sizes = [1, 4, 10], strides = [1, 1, 1]} : vector<1x16x10xf32> to vector<1x4x10xf32>
    %cst_108 = arith.constant dense<0xFF800000> : vector<1x10xf32>
    %505 = vector.multi_reduction <maximumf>, %504, %cst_108 [1] : vector<1x4x10xf32> to vector<1x10xf32>
    %506 = vector.shape_cast %505 : vector<1x10xf32> to vector<1x1x10xf32>
    %507 = vector.extract_strided_slice %503 {offsets = [0, 4, 0], sizes = [1, 4, 10], strides = [1, 1, 1]} : vector<1x16x10xf32> to vector<1x4x10xf32>
    %cst_109 = arith.constant dense<0xFF800000> : vector<1x10xf32>
    %508 = vector.multi_reduction <maximumf>, %507, %cst_109 [1] : vector<1x4x10xf32> to vector<1x10xf32>
    %509 = vector.shape_cast %508 : vector<1x10xf32> to vector<1x1x10xf32>
    %510 = vector.extract_strided_slice %503 {offsets = [0, 8, 0], sizes = [1, 4, 10], strides = [1, 1, 1]} : vector<1x16x10xf32> to vector<1x4x10xf32>
    %cst_110 = arith.constant dense<0xFF800000> : vector<1x10xf32>
    %511 = vector.multi_reduction <maximumf>, %510, %cst_110 [1] : vector<1x4x10xf32> to vector<1x10xf32>
    %512 = vector.shape_cast %511 : vector<1x10xf32> to vector<1x1x10xf32>
    %513 = vector.extract_strided_slice %503 {offsets = [0, 12, 0], sizes = [1, 4, 10], strides = [1, 1, 1]} : vector<1x16x10xf32> to vector<1x4x10xf32>
    %cst_111 = arith.constant dense<0xFF800000> : vector<1x10xf32>
    %514 = vector.multi_reduction <maximumf>, %513, %cst_111 [1] : vector<1x4x10xf32> to vector<1x10xf32>
    %515 = vector.shape_cast %514 : vector<1x10xf32> to vector<1x1x10xf32>
    %516 = vector.extract_strided_slice %320 {offsets = [4, 0, 0], sizes = [4, 16, 10], strides = [1, 1, 1]} : vector<16x16x10xf32> to vector<4x16x10xf32>
    %cst_112 = arith.constant dense<0xFF800000> : vector<16x10xf32>
    %517 = vector.multi_reduction <maximumf>, %516, %cst_112 [0] : vector<4x16x10xf32> to vector<16x10xf32>
    %518 = vector.shape_cast %517 : vector<16x10xf32> to vector<1x16x10xf32>
    %519 = vector.extract_strided_slice %518 {offsets = [0, 0, 0], sizes = [1, 4, 10], strides = [1, 1, 1]} : vector<1x16x10xf32> to vector<1x4x10xf32>
    %cst_113 = arith.constant dense<0xFF800000> : vector<1x10xf32>
    %520 = vector.multi_reduction <maximumf>, %519, %cst_113 [1] : vector<1x4x10xf32> to vector<1x10xf32>
    %521 = vector.shape_cast %520 : vector<1x10xf32> to vector<1x1x10xf32>
    %522 = vector.extract_strided_slice %518 {offsets = [0, 4, 0], sizes = [1, 4, 10], strides = [1, 1, 1]} : vector<1x16x10xf32> to vector<1x4x10xf32>
    %cst_114 = arith.constant dense<0xFF800000> : vector<1x10xf32>
    %523 = vector.multi_reduction <maximumf>, %522, %cst_114 [1] : vector<1x4x10xf32> to vector<1x10xf32>
    %524 = vector.shape_cast %523 : vector<1x10xf32> to vector<1x1x10xf32>
    %525 = vector.extract_strided_slice %518 {offsets = [0, 8, 0], sizes = [1, 4, 10], strides = [1, 1, 1]} : vector<1x16x10xf32> to vector<1x4x10xf32>
    %cst_115 = arith.constant dense<0xFF800000> : vector<1x10xf32>
    %526 = vector.multi_reduction <maximumf>, %525, %cst_115 [1] : vector<1x4x10xf32> to vector<1x10xf32>
    %527 = vector.shape_cast %526 : vector<1x10xf32> to vector<1x1x10xf32>
    %528 = vector.extract_strided_slice %518 {offsets = [0, 12, 0], sizes = [1, 4, 10], strides = [1, 1, 1]} : vector<1x16x10xf32> to vector<1x4x10xf32>
    %cst_116 = arith.constant dense<0xFF800000> : vector<1x10xf32>
    %529 = vector.multi_reduction <maximumf>, %528, %cst_116 [1] : vector<1x4x10xf32> to vector<1x10xf32>
    %530 = vector.shape_cast %529 : vector<1x10xf32> to vector<1x1x10xf32>
    %531 = vector.extract_strided_slice %320 {offsets = [8, 0, 0], sizes = [4, 16, 10], strides = [1, 1, 1]} : vector<16x16x10xf32> to vector<4x16x10xf32>
    %cst_117 = arith.constant dense<0xFF800000> : vector<16x10xf32>
    %532 = vector.multi_reduction <maximumf>, %531, %cst_117 [0] : vector<4x16x10xf32> to vector<16x10xf32>
    %533 = vector.shape_cast %532 : vector<16x10xf32> to vector<1x16x10xf32>
    %534 = vector.extract_strided_slice %533 {offsets = [0, 0, 0], sizes = [1, 4, 10], strides = [1, 1, 1]} : vector<1x16x10xf32> to vector<1x4x10xf32>
    %cst_118 = arith.constant dense<0xFF800000> : vector<1x10xf32>
    %535 = vector.multi_reduction <maximumf>, %534, %cst_118 [1] : vector<1x4x10xf32> to vector<1x10xf32>
    %536 = vector.shape_cast %535 : vector<1x10xf32> to vector<1x1x10xf32>
    %537 = vector.extract_strided_slice %533 {offsets = [0, 4, 0], sizes = [1, 4, 10], strides = [1, 1, 1]} : vector<1x16x10xf32> to vector<1x4x10xf32>
    %cst_119 = arith.constant dense<0xFF800000> : vector<1x10xf32>
    %538 = vector.multi_reduction <maximumf>, %537, %cst_119 [1] : vector<1x4x10xf32> to vector<1x10xf32>
    %539 = vector.shape_cast %538 : vector<1x10xf32> to vector<1x1x10xf32>
    %540 = vector.extract_strided_slice %533 {offsets = [0, 8, 0], sizes = [1, 4, 10], strides = [1, 1, 1]} : vector<1x16x10xf32> to vector<1x4x10xf32>
    %cst_120 = arith.constant dense<0xFF800000> : vector<1x10xf32>
    %541 = vector.multi_reduction <maximumf>, %540, %cst_120 [1] : vector<1x4x10xf32> to vector<1x10xf32>
    %542 = vector.shape_cast %541 : vector<1x10xf32> to vector<1x1x10xf32>
    %543 = vector.extract_strided_slice %533 {offsets = [0, 12, 0], sizes = [1, 4, 10], strides = [1, 1, 1]} : vector<1x16x10xf32> to vector<1x4x10xf32>
    %cst_121 = arith.constant dense<0xFF800000> : vector<1x10xf32>
    %544 = vector.multi_reduction <maximumf>, %543, %cst_121 [1] : vector<1x4x10xf32> to vector<1x10xf32>
    %545 = vector.shape_cast %544 : vector<1x10xf32> to vector<1x1x10xf32>
    %546 = vector.extract_strided_slice %320 {offsets = [12, 0, 0], sizes = [4, 16, 10], strides = [1, 1, 1]} : vector<16x16x10xf32> to vector<4x16x10xf32>
    %cst_122 = arith.constant dense<0xFF800000> : vector<16x10xf32>
    %547 = vector.multi_reduction <maximumf>, %546, %cst_122 [0] : vector<4x16x10xf32> to vector<16x10xf32>
    %548 = vector.shape_cast %547 : vector<16x10xf32> to vector<1x16x10xf32>
    %549 = vector.extract_strided_slice %548 {offsets = [0, 0, 0], sizes = [1, 4, 10], strides = [1, 1, 1]} : vector<1x16x10xf32> to vector<1x4x10xf32>
    %cst_123 = arith.constant dense<0xFF800000> : vector<1x10xf32>
    %550 = vector.multi_reduction <maximumf>, %549, %cst_123 [1] : vector<1x4x10xf32> to vector<1x10xf32>
    %551 = vector.shape_cast %550 : vector<1x10xf32> to vector<1x1x10xf32>
    %552 = vector.extract_strided_slice %548 {offsets = [0, 4, 0], sizes = [1, 4, 10], strides = [1, 1, 1]} : vector<1x16x10xf32> to vector<1x4x10xf32>
    %cst_124 = arith.constant dense<0xFF800000> : vector<1x10xf32>
    %553 = vector.multi_reduction <maximumf>, %552, %cst_124 [1] : vector<1x4x10xf32> to vector<1x10xf32>
    %554 = vector.shape_cast %553 : vector<1x10xf32> to vector<1x1x10xf32>
    %555 = vector.extract_strided_slice %548 {offsets = [0, 8, 0], sizes = [1, 4, 10], strides = [1, 1, 1]} : vector<1x16x10xf32> to vector<1x4x10xf32>
    %cst_125 = arith.constant dense<0xFF800000> : vector<1x10xf32>
    %556 = vector.multi_reduction <maximumf>, %555, %cst_125 [1] : vector<1x4x10xf32> to vector<1x10xf32>
    %557 = vector.shape_cast %556 : vector<1x10xf32> to vector<1x1x10xf32>
    %558 = vector.extract_strided_slice %548 {offsets = [0, 12, 0], sizes = [1, 4, 10], strides = [1, 1, 1]} : vector<1x16x10xf32> to vector<1x4x10xf32>
    %cst_126 = arith.constant dense<0xFF800000> : vector<1x10xf32>
    %559 = vector.multi_reduction <maximumf>, %558, %cst_126 [1] : vector<1x4x10xf32> to vector<1x10xf32>
    %560 = vector.shape_cast %559 : vector<1x10xf32> to vector<1x1x10xf32>
    %561 = arith.maximumf %326, %329 : vector<1x1x10xf32>
    %562 = arith.minimumf %326, %329 : vector<1x1x10xf32>
    %563 = arith.maximumf %561, %332 : vector<1x1x10xf32>
    %564 = arith.minimumf %562, %332 : vector<1x1x10xf32>
    %565 = arith.maximumf %563, %335 : vector<1x1x10xf32>
    %566 = arith.minimumf %564, %335 : vector<1x1x10xf32>
    %567 = arith.maximumf %565, %341 : vector<1x1x10xf32>
    %568 = arith.minimumf %566, %341 : vector<1x1x10xf32>
    %569 = arith.maximumf %567, %344 : vector<1x1x10xf32>
    %570 = arith.minimumf %568, %344 : vector<1x1x10xf32>
    %571 = arith.maximumf %569, %347 : vector<1x1x10xf32>
    %572 = arith.minimumf %570, %347 : vector<1x1x10xf32>
    %573 = arith.maximumf %571, %350 : vector<1x1x10xf32>
    %574 = arith.minimumf %572, %350 : vector<1x1x10xf32>
    %575 = arith.maximumf %573, %356 : vector<1x1x10xf32>
    %576 = arith.minimumf %574, %356 : vector<1x1x10xf32>
    %577 = arith.maximumf %575, %359 : vector<1x1x10xf32>
    %578 = arith.minimumf %576, %359 : vector<1x1x10xf32>
    %579 = arith.maximumf %577, %362 : vector<1x1x10xf32>
    %580 = arith.minimumf %578, %362 : vector<1x1x10xf32>
    %581 = arith.maximumf %579, %365 : vector<1x1x10xf32>
    %582 = arith.minimumf %580, %365 : vector<1x1x10xf32>
    %583 = arith.maximumf %581, %371 : vector<1x1x10xf32>
    %584 = arith.minimumf %582, %371 : vector<1x1x10xf32>
    %585 = arith.maximumf %583, %374 : vector<1x1x10xf32>
    %586 = arith.minimumf %584, %374 : vector<1x1x10xf32>
    %587 = arith.maximumf %585, %377 : vector<1x1x10xf32>
    %588 = arith.minimumf %586, %377 : vector<1x1x10xf32>
    %589 = arith.maximumf %587, %380 : vector<1x1x10xf32>
    %590 = arith.minimumf %588, %380 : vector<1x1x10xf32>
    %591 = arith.addf %589, %590 : vector<1x1x10xf32>
    %592 = vector.shape_cast %591 : vector<1x1x10xf32> to vector<1x10xf32>
    %cst_127 = arith.constant dense<0xFF800000> : vector<1xf32>
    %593 = vector.multi_reduction <maximumf>, %592, %cst_127 [1] : vector<1x10xf32> to vector<1xf32>
    %594 = vector.shape_cast %593 : vector<1xf32> to vector<1x1xf32>
    %595 = vector.broadcast %594 : vector<1x1xf32> to vector<1x10xf32>
    %596 = arith.subf %592, %595 : vector<1x10xf32>
    %597 = math.exp %596 : vector<1x10xf32>
    %cst_128 = arith.constant dense<0.000000e+00> : vector<1xf32>
    %598 = vector.multi_reduction <add>, %597, %cst_128 [1] : vector<1x10xf32> to vector<1xf32>
    %599 = vector.shape_cast %598 : vector<1xf32> to vector<1x1xf32>
    %600 = tpu.reciprocal %599 {approx = true} : vector<1x1xf32> -> vector<1x1xf32>
    %601 = vector.broadcast %600 : vector<1x1xf32> to vector<1x10xf32>
    %602 = arith.mulf %597, %601 : vector<1x10xf32>
    %c0_129 = arith.constant 0 : index
    %c0_130 = arith.constant 0 : index
    %603 = vector.load %arg16[%c0_129, %c0_130] : memref<2x10xf32, #tpu.memory_space<vmem>>, vector<1x10xf32>
    tpu.vector_store %arg16[%c0_129, %c0_130], %602 {strides = array<i32>} : memref<2x10xf32, #tpu.memory_space<vmem>>, vector<1x10xf32>,
    %604 = arith.maximumf %386, %389 : vector<1x1x10xf32>
    %605 = arith.minimumf %386, %389 : vector<1x1x10xf32>
    %606 = arith.maximumf %604, %392 : vector<1x1x10xf32>
    %607 = arith.minimumf %605, %392 : vector<1x1x10xf32>
    %608 = arith.maximumf %606, %395 : vector<1x1x10xf32>
    %609 = arith.minimumf %607, %395 : vector<1x1x10xf32>
    %610 = arith.maximumf %608, %401 : vector<1x1x10xf32>
    %611 = arith.minimumf %609, %401 : vector<1x1x10xf32>
    %612 = arith.maximumf %610, %404 : vector<1x1x10xf32>
    %613 = arith.minimumf %611, %404 : vector<1x1x10xf32>
    %614 = arith.maximumf %612, %407 : vector<1x1x10xf32>
    %615 = arith.minimumf %613, %407 : vector<1x1x10xf32>
    %616 = arith.maximumf %614, %410 : vector<1x1x10xf32>
    %617 = arith.minimumf %615, %410 : vector<1x1x10xf32>
    %618 = arith.maximumf %616, %416 : vector<1x1x10xf32>
    %619 = arith.minimumf %617, %416 : vector<1x1x10xf32>
    %620 = arith.maximumf %618, %419 : vector<1x1x10xf32>
    %621 = arith.minimumf %619, %419 : vector<1x1x10xf32>
    %622 = arith.maximumf %620, %422 : vector<1x1x10xf32>
    %623 = arith.minimumf %621, %422 : vector<1x1x10xf32>
    %624 = arith.maximumf %622, %425 : vector<1x1x10xf32>
    %625 = arith.minimumf %623, %425 : vector<1x1x10xf32>
    %626 = arith.maximumf %624, %431 : vector<1x1x10xf32>
    %627 = arith.minimumf %625, %431 : vector<1x1x10xf32>
    %628 = arith.maximumf %626, %434 : vector<1x1x10xf32>
    %629 = arith.minimumf %627, %434 : vector<1x1x10xf32>
    %630 = arith.maximumf %628, %437 : vector<1x1x10xf32>
    %631 = arith.minimumf %629, %437 : vector<1x1x10xf32>
    %632 = arith.maximumf %630, %440 : vector<1x1x10xf32>
    %633 = arith.minimumf %631, %440 : vector<1x1x10xf32>
    %634 = arith.addf %632, %633 : vector<1x1x10xf32>
    %635 = vector.shape_cast %634 : vector<1x1x10xf32> to vector<1x10xf32>
    %cst_131 = arith.constant dense<0xFF800000> : vector<1xf32>
    %636 = vector.multi_reduction <maximumf>, %635, %cst_131 [1] : vector<1x10xf32> to vector<1xf32>
    %637 = vector.shape_cast %636 : vector<1xf32> to vector<1x1xf32>
    %638 = vector.broadcast %637 : vector<1x1xf32> to vector<1x10xf32>
    %639 = arith.subf %635, %638 : vector<1x10xf32>
    %640 = math.exp %639 : vector<1x10xf32>
    %cst_132 = arith.constant dense<0.000000e+00> : vector<1xf32>
    %641 = vector.multi_reduction <add>, %640, %cst_132 [1] : vector<1x10xf32> to vector<1xf32>
    %642 = vector.shape_cast %641 : vector<1xf32> to vector<1x1xf32>
    %643 = tpu.reciprocal %642 {approx = true} : vector<1x1xf32> -> vector<1x1xf32>
    %644 = vector.broadcast %643 : vector<1x1xf32> to vector<1x10xf32>
    %645 = arith.mulf %640, %644 : vector<1x10xf32>
    %c1_133 = arith.constant 1 : index
    %c0_134 = arith.constant 0 : index
    %646 = vector.load %arg16[%c1_133, %c0_134] : memref<2x10xf32, #tpu.memory_space<vmem>>, vector<1x10xf32>
    tpu.vector_store %arg16[%c1_133, %c0_134], %645 {strides = array<i32>} : memref<2x10xf32, #tpu.memory_space<vmem>>, vector<1x10xf32>,
    %647 = arith.maximumf %446, %449 : vector<1x1x10xf32>
    %648 = arith.minimumf %446, %449 : vector<1x1x10xf32>
    %649 = arith.maximumf %647, %452 : vector<1x1x10xf32>
    %650 = arith.minimumf %648, %452 : vector<1x1x10xf32>
    %651 = arith.maximumf %649, %455 : vector<1x1x10xf32>
    %652 = arith.minimumf %650, %455 : vector<1x1x10xf32>
    %653 = arith.maximumf %651, %461 : vector<1x1x10xf32>
    %654 = arith.minimumf %652, %461 : vector<1x1x10xf32>
    %655 = arith.maximumf %653, %464 : vector<1x1x10xf32>
    %656 = arith.minimumf %654, %464 : vector<1x1x10xf32>
    %657 = arith.maximumf %655, %467 : vector<1x1x10xf32>
    %658 = arith.minimumf %656, %467 : vector<1x1x10xf32>
    %659 = arith.maximumf %657, %470 : vector<1x1x10xf32>
    %660 = arith.minimumf %658, %470 : vector<1x1x10xf32>
    %661 = arith.maximumf %659, %476 : vector<1x1x10xf32>
    %662 = arith.minimumf %660, %476 : vector<1x1x10xf32>
    %663 = arith.maximumf %661, %479 : vector<1x1x10xf32>
    %664 = arith.minimumf %662, %479 : vector<1x1x10xf32>
    %665 = arith.maximumf %663, %482 : vector<1x1x10xf32>
    %666 = arith.minimumf %664, %482 : vector<1x1x10xf32>
    %667 = arith.maximumf %665, %485 : vector<1x1x10xf32>
    %668 = arith.minimumf %666, %485 : vector<1x1x10xf32>
    %669 = arith.maximumf %667, %491 : vector<1x1x10xf32>
    %670 = arith.minimumf %668, %491 : vector<1x1x10xf32>
    %671 = arith.maximumf %669, %494 : vector<1x1x10xf32>
    %672 = arith.minimumf %670, %494 : vector<1x1x10xf32>
    %673 = arith.maximumf %671, %497 : vector<1x1x10xf32>
    %674 = arith.minimumf %672, %497 : vector<1x1x10xf32>
    %675 = arith.maximumf %673, %500 : vector<1x1x10xf32>
    %676 = arith.minimumf %674, %500 : vector<1x1x10xf32>
    %677 = arith.addf %675, %676 : vector<1x1x10xf32>
    %678 = vector.shape_cast %677 : vector<1x1x10xf32> to vector<1x10xf32>
    %cst_135 = arith.constant dense<0xFF800000> : vector<1xf32>
    %679 = vector.multi_reduction <maximumf>, %678, %cst_135 [1] : vector<1x10xf32> to vector<1xf32>
    %680 = vector.shape_cast %679 : vector<1xf32> to vector<1x1xf32>
    %681 = vector.broadcast %680 : vector<1x1xf32> to vector<1x10xf32>
    %682 = arith.subf %678, %681 : vector<1x10xf32>
    %683 = math.exp %682 : vector<1x10xf32>
    %cst_136 = arith.constant dense<0.000000e+00> : vector<1xf32>
    %684 = vector.multi_reduction <add>, %683, %cst_136 [1] : vector<1x10xf32> to vector<1xf32>
    %685 = vector.shape_cast %684 : vector<1xf32> to vector<1x1xf32>
    %686 = tpu.reciprocal %685 {approx = true} : vector<1x1xf32> -> vector<1x1xf32>
    %687 = vector.broadcast %686 : vector<1x1xf32> to vector<1x10xf32>
    %688 = arith.mulf %683, %687 : vector<1x10xf32>
    %c0_137 = arith.constant 0 : index
    %c0_138 = arith.constant 0 : index
    %689 = vector.load %arg17[%c0_137, %c0_138] : memref<2x10xf32, #tpu.memory_space<vmem>>, vector<1x10xf32>
    tpu.vector_store %arg17[%c0_137, %c0_138], %688 {strides = array<i32>} : memref<2x10xf32, #tpu.memory_space<vmem>>, vector<1x10xf32>,
    %690 = arith.maximumf %506, %509 : vector<1x1x10xf32>
    %691 = arith.minimumf %506, %509 : vector<1x1x10xf32>
    %692 = arith.maximumf %690, %512 : vector<1x1x10xf32>
    %693 = arith.minimumf %691, %512 : vector<1x1x10xf32>
    %694 = arith.maximumf %692, %515 : vector<1x1x10xf32>
    %695 = arith.minimumf %693, %515 : vector<1x1x10xf32>
    %696 = arith.maximumf %694, %521 : vector<1x1x10xf32>
    %697 = arith.minimumf %695, %521 : vector<1x1x10xf32>
    %698 = arith.maximumf %696, %524 : vector<1x1x10xf32>
    %699 = arith.minimumf %697, %524 : vector<1x1x10xf32>
    %700 = arith.maximumf %698, %527 : vector<1x1x10xf32>
    %701 = arith.minimumf %699, %527 : vector<1x1x10xf32>
    %702 = arith.maximumf %700, %530 : vector<1x1x10xf32>
    %703 = arith.minimumf %701, %530 : vector<1x1x10xf32>
    %704 = arith.maximumf %702, %536 : vector<1x1x10xf32>
    %705 = arith.minimumf %703, %536 : vector<1x1x10xf32>
    %706 = arith.maximumf %704, %539 : vector<1x1x10xf32>
    %707 = arith.minimumf %705, %539 : vector<1x1x10xf32>
    %708 = arith.maximumf %706, %542 : vector<1x1x10xf32>
    %709 = arith.minimumf %707, %542 : vector<1x1x10xf32>
    %710 = arith.maximumf %708, %545 : vector<1x1x10xf32>
    %711 = arith.minimumf %709, %545 : vector<1x1x10xf32>
    %712 = arith.maximumf %710, %551 : vector<1x1x10xf32>
    %713 = arith.minimumf %711, %551 : vector<1x1x10xf32>
    %714 = arith.maximumf %712, %554 : vector<1x1x10xf32>
    %715 = arith.minimumf %713, %554 : vector<1x1x10xf32>
    %716 = arith.maximumf %714, %557 : vector<1x1x10xf32>
    %717 = arith.minimumf %715, %557 : vector<1x1x10xf32>
    %718 = arith.maximumf %716, %560 : vector<1x1x10xf32>
    %719 = arith.minimumf %717, %560 : vector<1x1x10xf32>
    %720 = arith.addf %718, %719 : vector<1x1x10xf32>
    %721 = vector.shape_cast %720 : vector<1x1x10xf32> to vector<1x10xf32>
    %cst_139 = arith.constant dense<0xFF800000> : vector<1xf32>
    %722 = vector.multi_reduction <maximumf>, %721, %cst_139 [1] : vector<1x10xf32> to vector<1xf32>
    %723 = vector.shape_cast %722 : vector<1xf32> to vector<1x1xf32>
    %724 = vector.broadcast %723 : vector<1x1xf32> to vector<1x10xf32>
    %725 = arith.subf %721, %724 : vector<1x10xf32>
    %726 = math.exp %725 : vector<1x10xf32>
    %cst_140 = arith.constant dense<0.000000e+00> : vector<1xf32>
    %727 = vector.multi_reduction <add>, %726, %cst_140 [1] : vector<1x10xf32> to vector<1xf32>
    %728 = vector.shape_cast %727 : vector<1xf32> to vector<1x1xf32>
    %729 = tpu.reciprocal %728 {approx = true} : vector<1x1xf32> -> vector<1x1xf32>
    %730 = vector.broadcast %729 : vector<1x1xf32> to vector<1x10xf32>
    %731 = arith.mulf %726, %730 : vector<1x10xf32>
    %c1_141 = arith.constant 1 : index
    %c0_142 = arith.constant 0 : index
    %732 = vector.load %arg17[%c1_141, %c0_142] : memref<2x10xf32, #tpu.memory_space<vmem>>, vector<1x10xf32>
    tpu.vector_store %arg17[%c1_141, %c0_142], %731 {strides = array<i32>} : memref<2x10xf32, #tpu.memory_space<vmem>>, vector<1x10xf32>,
    %c0_143 = arith.constant 0 : index
    %c0_144 = arith.constant 0 : index
    %733 = vector.load %arg13[%c0_143, %c0_144] : memref<1x10xf32, #tpu.memory_space<vmem>>, vector<1x10xf32>
    %734 = vector.shape_cast %733 : vector<1x10xf32> to vector<1x1x10xf32>
    %c0_145 = arith.constant 0 : index
    %c0_146 = arith.constant 0 : index
    %735 = vector.load %arg14[%c0_145, %c0_146] : memref<1x10xf32, #tpu.memory_space<vmem>>, vector<1x10xf32>
    %736 = vector.shape_cast %735 : vector<1x10xf32> to vector<1x1x10xf32>
    %737 = arith.mulf %506, %734 : vector<1x1x10xf32>
    %738 = arith.addf %737, %736 : vector<1x1x10xf32>
    %739 = arith.mulf %386, %734 : vector<1x1x10xf32>
    %740 = arith.addf %739, %736 : vector<1x1x10xf32>
    %741 = arith.addf %738, %740 : vector<1x1x10xf32>
    %742 = arith.mulf %509, %734 : vector<1x1x10xf32>
    %743 = arith.addf %742, %736 : vector<1x1x10xf32>
    %744 = arith.mulf %389, %734 : vector<1x1x10xf32>
    %745 = arith.addf %744, %736 : vector<1x1x10xf32>
    %746 = arith.addf %743, %745 : vector<1x1x10xf32>
    %747 = arith.mulf %512, %734 : vector<1x1x10xf32>
    %748 = arith.addf %747, %736 : vector<1x1x10xf32>
    %749 = arith.mulf %392, %734 : vector<1x1x10xf32>
    %750 = arith.addf %749, %736 : vector<1x1x10xf32>
    %751 = arith.addf %748, %750 : vector<1x1x10xf32>
    %752 = arith.mulf %515, %734 : vector<1x1x10xf32>
    %753 = arith.addf %752, %736 : vector<1x1x10xf32>
    %754 = arith.mulf %395, %734 : vector<1x1x10xf32>
    %755 = arith.addf %754, %736 : vector<1x1x10xf32>
    %756 = arith.addf %753, %755 : vector<1x1x10xf32>
    %757 = arith.mulf %521, %734 : vector<1x1x10xf32>
    %758 = arith.addf %757, %736 : vector<1x1x10xf32>
    %759 = arith.mulf %401, %734 : vector<1x1x10xf32>
    %760 = arith.addf %759, %736 : vector<1x1x10xf32>
    %761 = arith.addf %758, %760 : vector<1x1x10xf32>
    %762 = arith.mulf %524, %734 : vector<1x1x10xf32>
    %763 = arith.addf %762, %736 : vector<1x1x10xf32>
    %764 = arith.mulf %404, %734 : vector<1x1x10xf32>
    %765 = arith.addf %764, %736 : vector<1x1x10xf32>
    %766 = arith.addf %763, %765 : vector<1x1x10xf32>
    %767 = arith.mulf %527, %734 : vector<1x1x10xf32>
    %768 = arith.addf %767, %736 : vector<1x1x10xf32>
    %769 = arith.mulf %407, %734 : vector<1x1x10xf32>
    %770 = arith.addf %769, %736 : vector<1x1x10xf32>
    %771 = arith.addf %768, %770 : vector<1x1x10xf32>
    %772 = arith.mulf %530, %734 : vector<1x1x10xf32>
    %773 = arith.addf %772, %736 : vector<1x1x10xf32>
    %774 = arith.mulf %410, %734 : vector<1x1x10xf32>
    %775 = arith.addf %774, %736 : vector<1x1x10xf32>
    %776 = arith.addf %773, %775 : vector<1x1x10xf32>
    %777 = arith.mulf %536, %734 : vector<1x1x10xf32>
    %778 = arith.addf %777, %736 : vector<1x1x10xf32>
    %779 = arith.mulf %416, %734 : vector<1x1x10xf32>
    %780 = arith.addf %779, %736 : vector<1x1x10xf32>
    %781 = arith.addf %778, %780 : vector<1x1x10xf32>
    %782 = arith.mulf %539, %734 : vector<1x1x10xf32>
    %783 = arith.addf %782, %736 : vector<1x1x10xf32>
    %784 = arith.mulf %419, %734 : vector<1x1x10xf32>
    %785 = arith.addf %784, %736 : vector<1x1x10xf32>
    %786 = arith.addf %783, %785 : vector<1x1x10xf32>
    %787 = arith.mulf %542, %734 : vector<1x1x10xf32>
    %788 = arith.addf %787, %736 : vector<1x1x10xf32>
    %789 = arith.mulf %422, %734 : vector<1x1x10xf32>
    %790 = arith.addf %789, %736 : vector<1x1x10xf32>
    %791 = arith.addf %788, %790 : vector<1x1x10xf32>
    %792 = arith.mulf %545, %734 : vector<1x1x10xf32>
    %793 = arith.addf %792, %736 : vector<1x1x10xf32>
    %794 = arith.mulf %425, %734 : vector<1x1x10xf32>
    %795 = arith.addf %794, %736 : vector<1x1x10xf32>
    %796 = arith.addf %793, %795 : vector<1x1x10xf32>
    %797 = arith.mulf %551, %734 : vector<1x1x10xf32>
    %798 = arith.addf %797, %736 : vector<1x1x10xf32>
    %799 = arith.mulf %431, %734 : vector<1x1x10xf32>
    %800 = arith.addf %799, %736 : vector<1x1x10xf32>
    %801 = arith.addf %798, %800 : vector<1x1x10xf32>
    %802 = arith.mulf %554, %734 : vector<1x1x10xf32>
    %803 = arith.addf %802, %736 : vector<1x1x10xf32>
    %804 = arith.mulf %434, %734 : vector<1x1x10xf32>
    %805 = arith.addf %804, %736 : vector<1x1x10xf32>
    %806 = arith.addf %803, %805 : vector<1x1x10xf32>
    %807 = arith.mulf %557, %734 : vector<1x1x10xf32>
    %808 = arith.addf %807, %736 : vector<1x1x10xf32>
    %809 = arith.mulf %437, %734 : vector<1x1x10xf32>
    %810 = arith.addf %809, %736 : vector<1x1x10xf32>
    %811 = arith.addf %808, %810 : vector<1x1x10xf32>
    %812 = arith.mulf %560, %734 : vector<1x1x10xf32>
    %813 = arith.addf %812, %736 : vector<1x1x10xf32>
    %814 = arith.mulf %440, %734 : vector<1x1x10xf32>
    %815 = arith.addf %814, %736 : vector<1x1x10xf32>
    %816 = arith.addf %813, %815 : vector<1x1x10xf32>
    %817 = arith.maximumf %741, %746 : vector<1x1x10xf32>
    %818 = arith.minimumf %741, %746 : vector<1x1x10xf32>
    %819 = arith.maximumf %817, %751 : vector<1x1x10xf32>
    %820 = arith.minimumf %818, %751 : vector<1x1x10xf32>
    %821 = arith.maximumf %819, %756 : vector<1x1x10xf32>
    %822 = arith.minimumf %820, %756 : vector<1x1x10xf32>
    %823 = arith.maximumf %821, %761 : vector<1x1x10xf32>
    %824 = arith.minimumf %822, %761 : vector<1x1x10xf32>
    %825 = arith.maximumf %823, %766 : vector<1x1x10xf32>
    %826 = arith.minimumf %824, %766 : vector<1x1x10xf32>
    %827 = arith.maximumf %825, %771 : vector<1x1x10xf32>
    %828 = arith.minimumf %826, %771 : vector<1x1x10xf32>
    %829 = arith.maximumf %827, %776 : vector<1x1x10xf32>
    %830 = arith.minimumf %828, %776 : vector<1x1x10xf32>
    %831 = arith.maximumf %829, %781 : vector<1x1x10xf32>
    %832 = arith.minimumf %830, %781 : vector<1x1x10xf32>
    %833 = arith.maximumf %831, %786 : vector<1x1x10xf32>
    %834 = arith.minimumf %832, %786 : vector<1x1x10xf32>
    %835 = arith.maximumf %833, %791 : vector<1x1x10xf32>
    %836 = arith.minimumf %834, %791 : vector<1x1x10xf32>
    %837 = arith.maximumf %835, %796 : vector<1x1x10xf32>
    %838 = arith.minimumf %836, %796 : vector<1x1x10xf32>
    %839 = arith.maximumf %837, %801 : vector<1x1x10xf32>
    %840 = arith.minimumf %838, %801 : vector<1x1x10xf32>
    %841 = arith.maximumf %839, %806 : vector<1x1x10xf32>
    %842 = arith.minimumf %840, %806 : vector<1x1x10xf32>
    %843 = arith.maximumf %841, %811 : vector<1x1x10xf32>
    %844 = arith.minimumf %842, %811 : vector<1x1x10xf32>
    %845 = arith.maximumf %843, %816 : vector<1x1x10xf32>
    %846 = arith.minimumf %844, %816 : vector<1x1x10xf32>
    %847 = arith.addf %845, %846 : vector<1x1x10xf32>
    %848 = vector.shape_cast %847 : vector<1x1x10xf32> to vector<1x10xf32>
    %cst_147 = arith.constant dense<0xFF800000> : vector<1xf32>
    %849 = vector.multi_reduction <maximumf>, %848, %cst_147 [1] : vector<1x10xf32> to vector<1xf32>
    %850 = vector.shape_cast %849 : vector<1xf32> to vector<1x1xf32>
    %851 = vector.broadcast %850 : vector<1x1xf32> to vector<1x10xf32>
    %852 = arith.subf %848, %851 : vector<1x10xf32>
    %853 = math.exp %852 : vector<1x10xf32>
    %cst_148 = arith.constant dense<0.000000e+00> : vector<1xf32>
    %854 = vector.multi_reduction <add>, %853, %cst_148 [1] : vector<1x10xf32> to vector<1xf32>
    %855 = vector.shape_cast %854 : vector<1xf32> to vector<1x1xf32>
    %856 = tpu.reciprocal %855 {approx = true} : vector<1x1xf32> -> vector<1x1xf32>
    %857 = vector.broadcast %856 : vector<1x1xf32> to vector<1x10xf32>
    %858 = arith.mulf %853, %857 : vector<1x10xf32>
    %c0_149 = arith.constant 0 : index
    %c0_150 = arith.constant 0 : index
    %859 = vector.load %arg18[%c0_149, %c0_150] : memref<1x10xf32, #tpu.memory_space<vmem>>, vector<1x10xf32>
    tpu.vector_store %arg18[%c0_149, %c0_150], %858 {strides = array<i32>} : memref<1x10xf32, #tpu.memory_space<vmem>>, vector<1x10xf32>,
    return
  }
  func.func @transform_0(%arg0: i32) -> (i32, i32, i32) {
    %c0_i32 = arith.constant 0 : i32
    %c0_i32_0 = arith.constant 0 : i32
    %c0_i32_1 = arith.constant 0 : i32
    %c0_i32_2 = arith.constant 0 : i32
    return %c0_i32, %c0_i32_0, %c0_i32_1 : i32, i32, i32
  }
  func.func @transform_1(%arg0: i32) -> (i32, i32) {
    %c0_i32 = arith.constant 0 : i32
    %c0_i32_0 = arith.constant 0 : i32
    %c0_i32_1 = arith.constant 0 : i32
    return %c0_i32, %c0_i32_0 : i32, i32
  }
  func.func @transform_2(%arg0: i32) -> (i32, i32) {
    %c0_i32 = arith.constant 0 : i32
    %c0_i32_0 = arith.constant 0 : i32
    %c0_i32_1 = arith.constant 0 : i32
    return %c0_i32, %c0_i32_0 : i32, i32
  }
  func.func @transform_3(%arg0: i32) -> (i32, i32) {
    %c0_i32 = arith.constant 0 : i32
    %c0_i32_0 = arith.constant 0 : i32
    %c0_i32_1 = arith.constant 0 : i32
    return %c0_i32, %c0_i32_0 : i32, i32
  }
  func.func @transform_4(%arg0: i32) -> (i32, i32) {
    %c0_i32 = arith.constant 0 : i32
    %c0_i32_0 = arith.constant 0 : i32
    %c0_i32_1 = arith.constant 0 : i32
    return %c0_i32, %c0_i32_0 : i32, i32
  }
  func.func @transform_5(%arg0: i32) -> (i32, i32) {
    %c0_i32 = arith.constant 0 : i32
    %c0_i32_0 = arith.constant 0 : i32
    %c0_i32_1 = arith.constant 0 : i32
    return %c0_i32, %c0_i32_0 : i32, i32
  }
  func.func @transform_6(%arg0: i32) -> (i32, i32) {
    %c0_i32 = arith.constant 0 : i32
    %c0_i32_0 = arith.constant 0 : i32
    %c0_i32_1 = arith.constant 0 : i32
    return %c0_i32, %c0_i32_0 : i32, i32
  }
  func.func @transform_7(%arg0: i32) -> (i32, i32) {
    %c0_i32 = arith.constant 0 : i32
    %c0_i32_0 = arith.constant 0 : i32
    %c0_i32_1 = arith.constant 0 : i32
    return %c0_i32, %c0_i32_0 : i32, i32
  }
  func.func @transform_8(%arg0: i32) -> (i32, i32) {
    %c0_i32 = arith.constant 0 : i32
    %c0_i32_0 = arith.constant 0 : i32
    %c0_i32_1 = arith.constant 0 : i32
    return %c0_i32, %c0_i32_0 : i32, i32
  }
  func.func @transform_9(%arg0: i32) -> (i32, i32) {
    %c0_i32 = arith.constant 0 : i32
    %c0_i32_0 = arith.constant 0 : i32
    %c0_i32_1 = arith.constant 0 : i32
    return %c0_i32, %c0_i32_0 : i32, i32
  }
  func.func @transform_10(%arg0: i32) -> (i32, i32) {
    %c0_i32 = arith.constant 0 : i32
    %c0_i32_0 = arith.constant 0 : i32
    %c0_i32_1 = arith.constant 0 : i32
    return %c0_i32, %c0_i32_0 : i32, i32
  }
  func.func @transform_11(%arg0: i32) -> (i32, i32) {
    %c0_i32 = arith.constant 0 : i32
    %c0_i32_0 = arith.constant 0 : i32
    %c0_i32_1 = arith.constant 0 : i32
    return %c0_i32, %c0_i32_0 : i32, i32
  }
  func.func @transform_12(%arg0: i32) -> (i32, i32) {
    %c0_i32 = arith.constant 0 : i32
    %c0_i32_0 = arith.constant 0 : i32
    %c0_i32_1 = arith.constant 0 : i32
    return %c0_i32, %c0_i32_0 : i32, i32
  }
  func.func @transform_13(%arg0: i32) -> (i32, i32) {
    %c0_i32 = arith.constant 0 : i32
    %c0_i32_0 = arith.constant 0 : i32
    %c0_i32_1 = arith.constant 0 : i32
    return %c0_i32, %c0_i32_0 : i32, i32
  }
  func.func @transform_14(%arg0: i32) -> (i32, i32, i32) {
    %c0_i32 = arith.constant 0 : i32
    %c0_i32_0 = arith.constant 0 : i32
    %c0_i32_1 = arith.constant 0 : i32
    %c0_i32_2 = arith.constant 0 : i32
    return %c0_i32, %c0_i32_0, %c0_i32_1 : i32, i32, i32
  }
  func.func @transform_15(%arg0: i32) -> (i32, i32) {
    %c0_i32 = arith.constant 0 : i32
    %c0_i32_0 = arith.constant 0 : i32
    %c0_i32_1 = arith.constant 0 : i32
    return %c0_i32, %c0_i32_0 : i32, i32
  }
  func.func @transform_16(%arg0: i32) -> (i32, i32) {
    %c0_i32 = arith.constant 0 : i32
    %c0_i32_0 = arith.constant 0 : i32
    %c0_i32_1 = arith.constant 0 : i32
    return %c0_i32, %c0_i32_0 : i32, i32
  }
  func.func @transform_17(%arg0: i32) -> (i32, i32) {
    %c0_i32 = arith.constant 0 : i32
    %c0_i32_0 = arith.constant 0 : i32
    %c0_i32_1 = arith.constant 0 : i32
    return %c0_i32, %c0_i32_0 : i32, i32
  }
}

</mosaic_0001>

<llo_original>
// kernel: deephar_smaller_forward.1
$region0: #{deephar_smaller_forward.1}
  #allocation0 [shape = 'u32[]', space=smem, size = 0x4, offset = 0x4, fixed_abs, tag = 'smem constant byte address 0x4 - core index']
  #allocation1 [shape = 'u32[144,128]{1,0:T(1,128)}', space=vmem, size = 0x12000, scoped, tag = 'internal scratch']
  %s0 = inlined_call_operand.vmem [shape: f32[16,3,256], index: 0, kind: input, shape index: {}]
  %s1 = inlined_call_operand.vmem [shape: f32[8,3], index: 1, kind: input, shape index: {}]
  %s2 = inlined_call_operand.vmem [shape: f32[8,1], index: 2, kind: input, shape index: {}]
  %s3 = inlined_call_operand.vmem [shape: f32[16,3], index: 3, kind: input, shape index: {}]
  %s4 = inlined_call_operand.vmem [shape: f32[2,10], index: 4, kind: input, shape index: {}]
  %s5 = inlined_call_operand.vmem [shape: f32[1,10], index: 5, kind: input, shape index: {}]
  %s6 = inlined_call_operand.vmem [shape: f32[10,10], index: 6, kind: input, shape index: {}]
  %s7 = inlined_call_operand.vmem [shape: f32[1,10], index: 7, kind: input, shape index: {}]
  %s8 = inlined_call_operand.vmem [shape: f32[8,10], index: 8, kind: input, shape index: {}]
  %s9 = inlined_call_operand.vmem [shape: f32[1,10], index: 9, kind: input, shape index: {}]
  %s10 = inlined_call_operand.vmem [shape: f32[10,10], index: 10, kind: input, shape index: {}]
  %s11 = inlined_call_operand.vmem [shape: f32[1,10], index: 11, kind: input, shape index: {}]
  %s12 = inlined_call_operand.vmem [shape: f32[1,10], index: 12, kind: input, shape index: {}]
  %s13 = inlined_call_operand.vmem [shape: f32[1,10], index: 13, kind: input, shape index: {}]
  %s14 = inlined_call_operand.vmem [shape: f32[16,16,3], index: 14, kind: output, shape index: {0}]
  %s15 = inlined_call_operand.hbm [shape: f32[2,10], index: 15, kind: output, shape index: {1}]
  %s16 = inlined_call_operand.hbm [shape: f32[2,10], index: 16, kind: output, shape index: {2}]
  %s17 = inlined_call_operand.hbm [shape: f32[1,10], index: 17, kind: output, shape index: {3}]
  %18 = xla_tuple %s14, %s15, %s16, %s17
  %s19 = sld [smem:[#allocation0]]
  $region90: #{deephar_smaller_forward.1} parent=0
    _
  %s21 = ssub.s32 1, %s19
  %s22 = scalar_select 0, %s21, %s19
  $region1: #{deephar_smaller_forward.1} parent=0
    #allocation2 [shape = 'u8[1024]{0}', space=vmem, size = 0x400, scoped, tag = 'output window, operand 1, single buffered']
    #allocation3 [shape = 's32[1]{0}', space=sflag, size = 0x4, scoped, tag = 'scoped memory for deephar_smaller_forward.1']
    #allocation4 [shape = 'u8[1024]{0}', space=vmem, size = 0x400, scoped, tag = 'output window, operand 2, single buffered']
    #allocation5 [shape = 's32[1]{0}', space=sflag, size = 0x4, scoped, tag = 'scoped memory for deephar_smaller_forward.1']
    #allocation6 [shape = 'u8[512]{0}', space=vmem, size = 0x400, scoped, tag = 'output window, operand 3, single buffered']
    %23 = vsyncpa [#allocation3], 0
    %24 = vsyncpa [#allocation5], 0
    // Predicated region
    $region2: #{deephar_smaller_forward.1} parent=1 // pred_check
      _
    $region3: #{deephar_smaller_forward.1} parent=1 // pred_check_branch
      %26 = sbr.rel (0) target = $region5
    $region4: #{deephar_smaller_forward.1} parent=1 // pred_region
      _
    $region5: #{deephar_smaller_forward.1} parent=1 // pred_fallthru
      _
    // Predicated region
    $region6: #{deephar_smaller_forward.1} parent=1 // pred_check
      _
    $region7: #{deephar_smaller_forward.1} parent=1 // pred_check_branch
      %28 = sbr.rel (0) target = $region9
    $region8: #{deephar_smaller_forward.1} parent=1 // pred_region
      _
    $region9: #{deephar_smaller_forward.1} parent=1 // pred_fallthru
      _
    // Predicated region
    $region10: #{deephar_smaller_forward.1} parent=1 // pred_check
      _
    $region11: #{deephar_smaller_forward.1} parent=1 // pred_check_branch
      %30 = sbr.rel (0) target = $region13
    $region12: #{deephar_smaller_forward.1} parent=1 // pred_region
      _
    $region13: #{deephar_smaller_forward.1} parent=1 // pred_fallthru
      _
    // Predicated region
    $region14: #{deephar_smaller_forward.1} parent=1 // pred_check
      _
    $region15: #{deephar_smaller_forward.1} parent=1 // pred_check_branch
      %32 = sbr.rel (0) target = $region17
    $region16: #{deephar_smaller_forward.1} parent=1 // pred_region
      _
    $region17: #{deephar_smaller_forward.1} parent=1 // pred_fallthru
      _
    // Predicated region
    $region18: #{deephar_smaller_forward.1} parent=1 // pred_check
      _
    $region19: #{deephar_smaller_forward.1} parent=1 // pred_check_branch
      %34 = sbr.rel (0) target = $region21
    $region20: #{deephar_smaller_forward.1} parent=1 // pred_region
      _
    $region21: #{deephar_smaller_forward.1} parent=1 // pred_fallthru
      _
    // Predicated region
    $region22: #{deephar_smaller_forward.1} parent=1 // pred_check
      _
    $region23: #{deephar_smaller_forward.1} parent=1 // pred_check_branch
      %36 = sbr.rel (0) target = $region25
    $region24: #{deephar_smaller_forward.1} parent=1 // pred_region
      _
    $region25: #{deephar_smaller_forward.1} parent=1 // pred_fallthru
      _
    // Predicated region
    $region26: #{deephar_smaller_forward.1} parent=1 // pred_check
      _
    $region27: #{deephar_smaller_forward.1} parent=1 // pred_check_branch
      %38 = sbr.rel (0) target = $region29
    $region28: #{deephar_smaller_forward.1} parent=1 // pred_region
      _
    $region29: #{deephar_smaller_forward.1} parent=1 // pred_fallthru
      _
    // Predicated region
    $region30: #{deephar_smaller_forward.1} parent=1 // pred_check
      _
    $region31: #{deephar_smaller_forward.1} parent=1 // pred_check_branch
      %40 = sbr.rel (0) target = $region33
    $region32: #{deephar_smaller_forward.1} parent=1 // pred_region
      _
    $region33: #{deephar_smaller_forward.1} parent=1 // pred_fallthru
      _
    // Predicated region
    $region34: #{deephar_smaller_forward.1} parent=1 // pred_check
      _
    $region35: #{deephar_smaller_forward.1} parent=1 // pred_check_branch
      %42 = sbr.rel (0) target = $region37
    $region36: #{deephar_smaller_forward.1} parent=1 // pred_region
      _
    $region37: #{deephar_smaller_forward.1} parent=1 // pred_fallthru
      _
    // Predicated region
    $region38: #{deephar_smaller_forward.1} parent=1 // pred_check
      _
    $region39: #{deephar_smaller_forward.1} parent=1 // pred_check_branch
      %44 = sbr.rel (0) target = $region41
    $region40: #{deephar_smaller_forward.1} parent=1 // pred_region
      _
    $region41: #{deephar_smaller_forward.1} parent=1 // pred_fallthru
      _
    // Predicated region
    $region42: #{deephar_smaller_forward.1} parent=1 // pred_check
      _
    $region43: #{deephar_smaller_forward.1} parent=1 // pred_check_branch
      %46 = sbr.rel (0) target = $region45
    $region44: #{deephar_smaller_forward.1} parent=1 // pred_region
      _
    $region45: #{deephar_smaller_forward.1} parent=1 // pred_fallthru
      _
    // Predicated region
    $region46: #{deephar_smaller_forward.1} parent=1 // pred_check
      _
    $region47: #{deephar_smaller_forward.1} parent=1 // pred_check_branch
      %48 = sbr.rel (0) target = $region49
    $region48: #{deephar_smaller_forward.1} parent=1 // pred_region
      _
    $region49: #{deephar_smaller_forward.1} parent=1 // pred_fallthru
      _
    // Predicated region
    $region50: #{deephar_smaller_forward.1} parent=1 // pred_check
      _
    $region51: #{deephar_smaller_forward.1} parent=1 // pred_check_branch
      %50 = sbr.rel (0) target = $region53
    $region52: #{deephar_smaller_forward.1} parent=1 // pred_region
      _
    $region53: #{deephar_smaller_forward.1} parent=1 // pred_fallthru
      _
    // Predicated region
    $region54: #{deephar_smaller_forward.1} parent=1 // pred_check
      _
    $region55: #{deephar_smaller_forward.1} parent=1 // pred_check_branch
      %52 = sbr.rel (0) target = $region57
    $region56: #{deephar_smaller_forward.1} parent=1 // pred_region
      _
    $region57: #{deephar_smaller_forward.1} parent=1 // pred_fallthru
      _
    %v53 = vld [vmem:[%s0] sm:$0x77]
    %v54 = vld [vmem:[%s0 + $0x8] sm:$0x77]
    %v55 = vld [vmem:[%s0 + $0x10] sm:$0x77]
    %v56 = vld [vmem:[%s0 + $0x18] sm:$0x77]
    %v57 = vld [vmem:[%s0 + $0x20] sm:$0x77]
    %v58 = vld [vmem:[%s0 + $0x28] sm:$0x77]
    %v59 = vld [vmem:[%s0 + $0x30] sm:$0x77]
    %v60 = vld [vmem:[%s0 + $0x38] sm:$0x77]
    %v61 = vld [vmem:[%s0 + $0x40] sm:$0x77]
    %v62 = vld [vmem:[%s0 + $0x48] sm:$0x77]
    %v63 = vld [vmem:[%s0 + $0x50] sm:$0x77]
    %v64 = vld [vmem:[%s0 + $0x58] sm:$0x77]
    %v65 = vld [vmem:[%s0 + $0x60] sm:$0x77]
    %v66 = vld [vmem:[%s0 + $0x68] sm:$0x77]
    %v67 = vld [vmem:[%s0 + $0x70] sm:$0x77]
    %v68 = vld [vmem:[%s0 + $0x78] sm:$0x77]
    %v69 = vld [vmem:[%s1] sm:$0xff]
    %v70 = vld [vmem:[%s2] sm:$0xff]
    %v71 = vld [vmem:[%s3] sm:$0xff]
    %v72 = vld [vmem:[%s3 + $0x8] sm:$0xff]
    %74 = vset.pattern.permute.xlu0 0
    %75 = vperm.xlu0 %74, %v69
    %v76 = vpop.permute.xlu0 %75
    %v94 = vlaneseq
    %v95 = vshrl.u32 %v94, 7
    %v96 = vsub.s32 0, %v95
    %v97 = vrot.slane %v53, %v96
    %v98 = vlaneseq
    %v99 = vshrl.u32 %v98, 7
    %v100 = vsub.s32 4, %v99
    %v101 = vrot.slane %v53, %v100
    %v102 = vlaneseq
    %v103 = vshrl.u32 %v102, 7
    %v104 = vsub.s32 0, %v103
    %v105 = vrot.slane %v54, %v104
    %v106 = vlaneseq
    %v107 = vshrl.u32 %v106, 7
    %v108 = vsub.s32 4, %v107
    %v109 = vrot.slane %v54, %v108
    %v110 = vlaneseq
    %v111 = vshrl.u32 %v110, 7
    %v112 = vsub.s32 0, %v111
    %v113 = vrot.slane %v55, %v112
    %v114 = vlaneseq
    %v115 = vshrl.u32 %v114, 7
    %v116 = vsub.s32 4, %v115
    %v117 = vrot.slane %v55, %v116
    %v118 = vlaneseq
    %v119 = vshrl.u32 %v118, 7
    %v120 = vsub.s32 0, %v119
    %v121 = vrot.slane %v56, %v120
    %v122 = vlaneseq
    %v123 = vshrl.u32 %v122, 7
    %v124 = vsub.s32 4, %v123
    %v125 = vrot.slane %v56, %v124
    %v126 = vlaneseq
    %v127 = vshrl.u32 %v126, 7
    %v128 = vsub.s32 0, %v127
    %v129 = vrot.slane %v57, %v128
    %v130 = vlaneseq
    %v131 = vshrl.u32 %v130, 7
    %v132 = vsub.s32 4, %v131
    %v133 = vrot.slane %v57, %v132
    %v134 = vlaneseq
    %v135 = vshrl.u32 %v134, 7
    %v136 = vsub.s32 0, %v135
    %v137 = vrot.slane %v58, %v136
    %v138 = vlaneseq
    %v139 = vshrl.u32 %v138, 7
    %v140 = vsub.s32 4, %v139
    %v141 = vrot.slane %v58, %v140
    %v142 = vlaneseq
    %v143 = vshrl.u32 %v142, 7
    %v144 = vsub.s32 0, %v143
    %v145 = vrot.slane %v59, %v144
    %v146 = vlaneseq
    %v147 = vshrl.u32 %v146, 7
    %v148 = vsub.s32 4, %v147
    %v149 = vrot.slane %v59, %v148
    %v150 = vlaneseq
    %v151 = vshrl.u32 %v150, 7
    %v152 = vsub.s32 0, %v151
    %v153 = vrot.slane %v60, %v152
    %v154 = vlaneseq
    %v155 = vshrl.u32 %v154, 7
    %v156 = vsub.s32 4, %v155
    %v157 = vrot.slane %v60, %v156
    %v158 = vlaneseq
    %v159 = vshrl.u32 %v158, 7
    %v160 = vsub.s32 0, %v159
    %v161 = vrot.slane %v61, %v160
    %v162 = vlaneseq
    %v163 = vshrl.u32 %v162, 7
    %v164 = vsub.s32 4, %v163
    %v165 = vrot.slane %v61, %v164
    %v166 = vlaneseq
    %v167 = vshrl.u32 %v166, 7
    %v168 = vsub.s32 0, %v167
    %v169 = vrot.slane %v62, %v168
    %v170 = vlaneseq
    %v171 = vshrl.u32 %v170, 7
    %v172 = vsub.s32 4, %v171
    %v173 = vrot.slane %v62, %v172
    %v174 = vlaneseq
    %v175 = vshrl.u32 %v174, 7
    %v176 = vsub.s32 0, %v175
    %v177 = vrot.slane %v63, %v176
    %v178 = vlaneseq
    %v179 = vshrl.u32 %v178, 7
    %v180 = vsub.s32 4, %v179
    %v181 = vrot.slane %v63, %v180
    %v182 = vlaneseq
    %v183 = vshrl.u32 %v182, 7
    %v184 = vsub.s32 0, %v183
    %v185 = vrot.slane %v64, %v184
    %v186 = vlaneseq
    %v187 = vshrl.u32 %v186, 7
    %v188 = vsub.s32 4, %v187
    %v189 = vrot.slane %v64, %v188
    %v190 = vlaneseq
    %v191 = vshrl.u32 %v190, 7
    %v192 = vsub.s32 0, %v191
    %v193 = vrot.slane %v65, %v192
    %v194 = vlaneseq
    %v195 = vshrl.u32 %v194, 7
    %v196 = vsub.s32 4, %v195
    %v197 = vrot.slane %v65, %v196
    %v198 = vlaneseq
    %v199 = vshrl.u32 %v198, 7
    %v200 = vsub.s32 0, %v199
    %v201 = vrot.slane %v66, %v200
    %v202 = vlaneseq
    %v203 = vshrl.u32 %v202, 7
    %v204 = vsub.s32 4, %v203
    %v205 = vrot.slane %v66, %v204
    %v206 = vlaneseq
    %v207 = vshrl.u32 %v206, 7
    %v208 = vsub.s32 0, %v207
    %v209 = vrot.slane %v67, %v208
    %v210 = vlaneseq
    %v211 = vshrl.u32 %v210, 7
    %v212 = vsub.s32 4, %v211
    %v213 = vrot.slane %v67, %v212
    %v214 = vlaneseq
    %v215 = vshrl.u32 %v214, 7
    %v216 = vsub.s32 0, %v215
    %v217 = vrot.slane %v68, %v216
    %v218 = vlaneseq
    %v219 = vshrl.u32 %v218, 7
    %v220 = vsub.s32 4, %v219
    %v221 = vrot.slane %v68, %v220
    %v254 = vlaneseq
    %v255 = vshrl.u32 %v254, 7
    %v256 = vsub.s32 0, %v255
    %v257 = vrot.slane %v97, %v256
    %v258 = vlaneseq
    %v259 = vshrl.u32 %v258, 7
    %v260 = vsub.s32 0, %v259
    %v261 = vrot.slane %v101, %v260
    %v262 = vlaneseq
    %v263 = vshrl.u32 %v262, 7
    %v264 = vsub.s32 0, %v263
    %v265 = vrot.slane %v105, %v264
    %v266 = vlaneseq
    %v267 = vshrl.u32 %v266, 7
    %v268 = vsub.s32 0, %v267
    %v269 = vrot.slane %v109, %v268
    %v270 = vlaneseq
    %v271 = vshrl.u32 %v270, 7
    %v272 = vsub.s32 0, %v271
    %v273 = vrot.slane %v113, %v272
    %v274 = vlaneseq
    %v275 = vshrl.u32 %v274, 7
    %v276 = vsub.s32 0, %v275
    %v277 = vrot.slane %v117, %v276
    %v278 = vlaneseq
    %v279 = vshrl.u32 %v278, 7
    %v280 = vsub.s32 0, %v279
    %v281 = vrot.slane %v121, %v280
    %v282 = vlaneseq
    %v283 = vshrl.u32 %v282, 7
    %v284 = vsub.s32 0, %v283
    %v285 = vrot.slane %v125, %v284
    %v286 = vlaneseq
    %v287 = vshrl.u32 %v286, 7
    %v288 = vsub.s32 0, %v287
    %v289 = vrot.slane %v129, %v288
    %v290 = vlaneseq
    %v291 = vshrl.u32 %v290, 7
    %v292 = vsub.s32 0, %v291
    %v293 = vrot.slane %v133, %v292
    %v294 = vlaneseq
    %v295 = vshrl.u32 %v294, 7
    %v296 = vsub.s32 0, %v295
    %v297 = vrot.slane %v137, %v296
    %v298 = vlaneseq
    %v299 = vshrl.u32 %v298, 7
    %v300 = vsub.s32 0, %v299
    %v301 = vrot.slane %v141, %v300
    %v302 = vlaneseq
    %v303 = vshrl.u32 %v302, 7
    %v304 = vsub.s32 0, %v303
    %v305 = vrot.slane %v145, %v304
    %v306 = vlaneseq
    %v307 = vshrl.u32 %v306, 7
    %v308 = vsub.s32 0, %v307
    %v309 = vrot.slane %v149, %v308
    %v310 = vlaneseq
    %v311 = vshrl.u32 %v310, 7
    %v312 = vsub.s32 0, %v311
    %v313 = vrot.slane %v153, %v312
    %v314 = vlaneseq
    %v315 = vshrl.u32 %v314, 7
    %v316 = vsub.s32 0, %v315
    %v317 = vrot.slane %v157, %v316
    %v318 = vlaneseq
    %v319 = vshrl.u32 %v318, 7
    %v320 = vsub.s32 0, %v319
    %v321 = vrot.slane %v161, %v320
    %v322 = vlaneseq
    %v323 = vshrl.u32 %v322, 7
    %v324 = vsub.s32 0, %v323
    %v325 = vrot.slane %v165, %v324
    %v326 = vlaneseq
    %v327 = vshrl.u32 %v326, 7
    %v328 = vsub.s32 0, %v327
    %v329 = vrot.slane %v169, %v328
    %v330 = vlaneseq
    %v331 = vshrl.u32 %v330, 7
    %v332 = vsub.s32 0, %v331
    %v333 = vrot.slane %v173, %v332
    %v334 = vlaneseq
    %v335 = vshrl.u32 %v334, 7
    %v336 = vsub.s32 0, %v335
    %v337 = vrot.slane %v177, %v336
    %v338 = vlaneseq
    %v339 = vshrl.u32 %v338, 7
    %v340 = vsub.s32 0, %v339
    %v341 = vrot.slane %v181, %v340
    %v342 = vlaneseq
    %v343 = vshrl.u32 %v342, 7
    %v344 = vsub.s32 0, %v343
    %v345 = vrot.slane %v185, %v344
    %v346 = vlaneseq
    %v347 = vshrl.u32 %v346, 7
    %v348 = vsub.s32 0, %v347
    %v349 = vrot.slane %v189, %v348
    %v350 = vlaneseq
    %v351 = vshrl.u32 %v350, 7
    %v352 = vsub.s32 0, %v351
    %v353 = vrot.slane %v193, %v352
    %v354 = vlaneseq
    %v355 = vshrl.u32 %v354, 7
    %v356 = vsub.s32 0, %v355
    %v357 = vrot.slane %v197, %v356
    %v358 = vlaneseq
    %v359 = vshrl.u32 %v358, 7
    %v360 = vsub.s32 0, %v359
    %v361 = vrot.slane %v201, %v360
    %v362 = vlaneseq
    %v363 = vshrl.u32 %v362, 7
    %v364 = vsub.s32 0, %v363
    %v365 = vrot.slane %v205, %v364
    %v366 = vlaneseq
    %v367 = vshrl.u32 %v366, 7
    %v368 = vsub.s32 0, %v367
    %v369 = vrot.slane %v209, %v368
    %v370 = vlaneseq
    %v371 = vshrl.u32 %v370, 7
    %v372 = vsub.s32 0, %v371
    %v373 = vrot.slane %v213, %v372
    %v374 = vlaneseq
    %v375 = vshrl.u32 %v374, 7
    %v376 = vsub.s32 0, %v375
    %v377 = vrot.slane %v217, %v376
    %v378 = vlaneseq
    %v379 = vshrl.u32 %v378, 7
    %v380 = vsub.s32 0, %v379
    %v381 = vrot.slane %v221, %v380
    %v382 = vmul.f32 %v76, %v257
    %v383 = vmul.f32 %v76, %v261
    %v384 = vmul.f32 %v76, %v265
    %v385 = vmul.f32 %v76, %v269
    %v386 = vmul.f32 %v76, %v273
    %v387 = vmul.f32 %v76, %v277
    %v388 = vmul.f32 %v76, %v281
    %v389 = vmul.f32 %v76, %v285
    %v390 = vmul.f32 %v76, %v289
    %v391 = vmul.f32 %v76, %v293
    %v392 = vmul.f32 %v76, %v297
    %v393 = vmul.f32 %v76, %v301
    %v394 = vmul.f32 %v76, %v305
    %v395 = vmul.f32 %v76, %v309
    %v396 = vmul.f32 %v76, %v313
    %v397 = vmul.f32 %v76, %v317
    %v398 = vmul.f32 %v76, %v321
    %v399 = vmul.f32 %v76, %v325
    %v400 = vmul.f32 %v76, %v329
    %v401 = vmul.f32 %v76, %v333
    %v402 = vmul.f32 %v76, %v337
    %v403 = vmul.f32 %v76, %v341
    %v404 = vmul.f32 %v76, %v345
    %v405 = vmul.f32 %v76, %v349
    %v406 = vmul.f32 %v76, %v353
    %v407 = vmul.f32 %v76, %v357
    %v408 = vmul.f32 %v76, %v361
    %v409 = vmul.f32 %v76, %v365
    %v410 = vmul.f32 %v76, %v369
    %v411 = vmul.f32 %v76, %v373
    %v412 = vmul.f32 %v76, %v377
    %v413 = vmul.f32 %v76, %v381
    %414 = vset.pattern.permute.xlu0 1
    %415 = vperm.xlu0 %414, %v69
    %v416 = vpop.permute.xlu0 %415
    %v418 = vlaneseq
    %v419 = vshrl.u32 %v418, 7
    %v420 = vsub.s32 1, %v419
    %v421 = vrot.slane %v53, %v420
    %v422 = vlaneseq
    %v423 = vshrl.u32 %v422, 7
    %v424 = vsub.s32 5, %v423
    %v425 = vrot.slane %v53, %v424
    %v426 = vlaneseq
    %v427 = vshrl.u32 %v426, 7
    %v428 = vsub.s32 1, %v427
    %v429 = vrot.slane %v54, %v428
    %v430 = vlaneseq
    %v431 = vshrl.u32 %v430, 7
    %v432 = vsub.s32 5, %v431
    %v433 = vrot.slane %v54, %v432
    %v434 = vlaneseq
    %v435 = vshrl.u32 %v434, 7
    %v436 = vsub.s32 1, %v435
    %v437 = vrot.slane %v55, %v436
    %v438 = vlaneseq
    %v439 = vshrl.u32 %v438, 7
    %v440 = vsub.s32 5, %v439
    %v441 = vrot.slane %v55, %v440
    %v442 = vlaneseq
    %v443 = vshrl.u32 %v442, 7
    %v444 = vsub.s32 1, %v443
    %v445 = vrot.slane %v56, %v444
    %v446 = vlaneseq
    %v447 = vshrl.u32 %v446, 7
    %v448 = vsub.s32 5, %v447
    %v449 = vrot.slane %v56, %v448
    %v450 = vlaneseq
    %v451 = vshrl.u32 %v450, 7
    %v452 = vsub.s32 1, %v451
    %v453 = vrot.slane %v57, %v452
    %v454 = vlaneseq
    %v455 = vshrl.u32 %v454, 7
    %v456 = vsub.s32 5, %v455
    %v457 = vrot.slane %v57, %v456
    %v458 = vlaneseq
    %v459 = vshrl.u32 %v458, 7
    %v460 = vsub.s32 1, %v459
    %v461 = vrot.slane %v58, %v460
    %v462 = vlaneseq
    %v463 = vshrl.u32 %v462, 7
    %v464 = vsub.s32 5, %v463
    %v465 = vrot.slane %v58, %v464
    %v466 = vlaneseq
    %v467 = vshrl.u32 %v466, 7
    %v468 = vsub.s32 1, %v467
    %v469 = vrot.slane %v59, %v468
    %v470 = vlaneseq
    %v471 = vshrl.u32 %v470, 7
    %v472 = vsub.s32 5, %v471
    %v473 = vrot.slane %v59, %v472
    %v474 = vlaneseq
    %v475 = vshrl.u32 %v474, 7
    %v476 = vsub.s32 1, %v475
    %v477 = vrot.slane %v60, %v476
    %v478 = vlaneseq
    %v479 = vshrl.u32 %v478, 7
    %v480 = vsub.s32 5, %v479
    %v481 = vrot.slane %v60, %v480
    %v482 = vlaneseq
    %v483 = vshrl.u32 %v482, 7
    %v484 = vsub.s32 1, %v483
    %v485 = vrot.slane %v61, %v484
    %v486 = vlaneseq
    %v487 = vshrl.u32 %v486, 7
    %v488 = vsub.s32 5, %v487
    %v489 = vrot.slane %v61, %v488
    %v490 = vlaneseq
    %v491 = vshrl.u32 %v490, 7
    %v492 = vsub.s32 1, %v491
    %v493 = vrot.slane %v62, %v492
    %v494 = vlaneseq
    %v495 = vshrl.u32 %v494, 7
    %v496 = vsub.s32 5, %v495
    %v497 = vrot.slane %v62, %v496
    %v498 = vlaneseq
    %v499 = vshrl.u32 %v498, 7
    %v500 = vsub.s32 1, %v499
    %v501 = vrot.slane %v63, %v500
    %v502 = vlaneseq
    %v503 = vshrl.u32 %v502, 7
    %v504 = vsub.s32 5, %v503
    %v505 = vrot.slane %v63, %v504
    %v506 = vlaneseq
    %v507 = vshrl.u32 %v506, 7
    %v508 = vsub.s32 1, %v507
    %v509 = vrot.slane %v64, %v508
    %v510 = vlaneseq
    %v511 = vshrl.u32 %v510, 7
    %v512 = vsub.s32 5, %v511
    %v513 = vrot.slane %v64, %v512
    %v514 = vlaneseq
    %v515 = vshrl.u32 %v514, 7
    %v516 = vsub.s32 1, %v515
    %v517 = vrot.slane %v65, %v516
    %v518 = vlaneseq
    %v519 = vshrl.u32 %v518, 7
    %v520 = vsub.s32 5, %v519
    %v521 = vrot.slane %v65, %v520
    %v522 = vlaneseq
    %v523 = vshrl.u32 %v522, 7
    %v524 = vsub.s32 1, %v523
    %v525 = vrot.slane %v66, %v524
    %v526 = vlaneseq
    %v527 = vshrl.u32 %v526, 7
    %v528 = vsub.s32 5, %v527
    %v529 = vrot.slane %v66, %v528
    %v530 = vlaneseq
    %v531 = vshrl.u32 %v530, 7
    %v532 = vsub.s32 1, %v531
    %v533 = vrot.slane %v67, %v532
    %v534 = vlaneseq
    %v535 = vshrl.u32 %v534, 7
    %v536 = vsub.s32 5, %v535
    %v537 = vrot.slane %v67, %v536
    %v538 = vlaneseq
    %v539 = vshrl.u32 %v538, 7
    %v540 = vsub.s32 1, %v539
    %v541 = vrot.slane %v68, %v540
    %v542 = vlaneseq
    %v543 = vshrl.u32 %v542, 7
    %v544 = vsub.s32 5, %v543
    %v545 = vrot.slane %v68, %v544
    %v578 = vlaneseq
    %v579 = vshrl.u32 %v578, 7
    %v580 = vsub.s32 1, %v579
    %v581 = vrot.slane %v421, %v580
    %v582 = vlaneseq
    %v583 = vshrl.u32 %v582, 7
    %v584 = vsub.s32 1, %v583
    %v585 = vrot.slane %v425, %v584
    %v586 = vlaneseq
    %v587 = vshrl.u32 %v586, 7
    %v588 = vsub.s32 1, %v587
    %v589 = vrot.slane %v429, %v588
    %v590 = vlaneseq
    %v591 = vshrl.u32 %v590, 7
    %v592 = vsub.s32 1, %v591
    %v593 = vrot.slane %v433, %v592
    %v594 = vlaneseq
    %v595 = vshrl.u32 %v594, 7
    %v596 = vsub.s32 1, %v595
    %v597 = vrot.slane %v437, %v596
    %v598 = vlaneseq
    %v599 = vshrl.u32 %v598, 7
    %v600 = vsub.s32 1, %v599
    %v601 = vrot.slane %v441, %v600
    %v602 = vlaneseq
    %v603 = vshrl.u32 %v602, 7
    %v604 = vsub.s32 1, %v603
    %v605 = vrot.slane %v445, %v604
    %v606 = vlaneseq
    %v607 = vshrl.u32 %v606, 7
    %v608 = vsub.s32 1, %v607
    %v609 = vrot.slane %v449, %v608
    %v610 = vlaneseq
    %v611 = vshrl.u32 %v610, 7
    %v612 = vsub.s32 1, %v611
    %v613 = vrot.slane %v453, %v612
    %v614 = vlaneseq
    %v615 = vshrl.u32 %v614, 7
    %v616 = vsub.s32 1, %v615
    %v617 = vrot.slane %v457, %v616
    %v618 = vlaneseq
    %v619 = vshrl.u32 %v618, 7
    %v620 = vsub.s32 1, %v619
    %v621 = vrot.slane %v461, %v620
    %v622 = vlaneseq
    %v623 = vshrl.u32 %v622, 7
    %v624 = vsub.s32 1, %v623
    %v625 = vrot.slane %v465, %v624
    %v626 = vlaneseq
    %v627 = vshrl.u32 %v626, 7
    %v628 = vsub.s32 1, %v627
    %v629 = vrot.slane %v469, %v628
    %v630 = vlaneseq
    %v631 = vshrl.u32 %v630, 7
    %v632 = vsub.s32 1, %v631
    %v633 = vrot.slane %v473, %v632
    %v634 = vlaneseq
    %v635 = vshrl.u32 %v634, 7
    %v636 = vsub.s32 1, %v635
    %v637 = vrot.slane %v477, %v636
    %v638 = vlaneseq
    %v639 = vshrl.u32 %v638, 7
    %v640 = vsub.s32 1, %v639
    %v641 = vrot.slane %v481, %v640
    %v642 = vlaneseq
    %v643 = vshrl.u32 %v642, 7
    %v644 = vsub.s32 1, %v643
    %v645 = vrot.slane %v485, %v644
    %v646 = vlaneseq
    %v647 = vshrl.u32 %v646, 7
    %v648 = vsub.s32 1, %v647
    %v649 = vrot.slane %v489, %v648
    %v650 = vlaneseq
    %v651 = vshrl.u32 %v650, 7
    %v652 = vsub.s32 1, %v651
    %v653 = vrot.slane %v493, %v652
    %v654 = vlaneseq
    %v655 = vshrl.u32 %v654, 7
    %v656 = vsub.s32 1, %v655
    %v657 = vrot.slane %v497, %v656
    %v658 = vlaneseq
    %v659 = vshrl.u32 %v658, 7
    %v660 = vsub.s32 1, %v659
    %v661 = vrot.slane %v501, %v660
    %v662 = vlaneseq
    %v663 = vshrl.u32 %v662, 7
    %v664 = vsub.s32 1, %v663
    %v665 = vrot.slane %v505, %v664
    %v666 = vlaneseq
    %v667 = vshrl.u32 %v666, 7
    %v668 = vsub.s32 1, %v667
    %v669 = vrot.slane %v509, %v668
    %v670 = vlaneseq
    %v671 = vshrl.u32 %v670, 7
    %v672 = vsub.s32 1, %v671
    %v673 = vrot.slane %v513, %v672
    %v674 = vlaneseq
    %v675 = vshrl.u32 %v674, 7
    %v676 = vsub.s32 1, %v675
    %v677 = vrot.slane %v517, %v676
    %v678 = vlaneseq
    %v679 = vshrl.u32 %v678, 7
    %v680 = vsub.s32 1, %v679
    %v681 = vrot.slane %v521, %v680
    %v682 = vlaneseq
    %v683 = vshrl.u32 %v682, 7
    %v684 = vsub.s32 1, %v683
    %v685 = vrot.slane %v525, %v684
    %v686 = vlaneseq
    %v687 = vshrl.u32 %v686, 7
    %v688 = vsub.s32 1, %v687
    %v689 = vrot.slane %v529, %v688
    %v690 = vlaneseq
    %v691 = vshrl.u32 %v690, 7
    %v692 = vsub.s32 1, %v691
    %v693 = vrot.slane %v533, %v692
    %v694 = vlaneseq
    %v695 = vshrl.u32 %v694, 7
    %v696 = vsub.s32 1, %v695
    %v697 = vrot.slane %v537, %v696
    %v698 = vlaneseq
    %v699 = vshrl.u32 %v698, 7
    %v700 = vsub.s32 1, %v699
    %v701 = vrot.slane %v541, %v700
    %v702 = vlaneseq
    %v703 = vshrl.u32 %v702, 7
    %v704 = vsub.s32 1, %v703
    %v705 = vrot.slane %v545, %v704
    %v706 = vmul.f32 %v416, %v581
    %v707 = vmul.f32 %v416, %v585
    %v708 = vmul.f32 %v416, %v589
    %v709 = vmul.f32 %v416, %v593
    %v710 = vmul.f32 %v416, %v597
    %v711 = vmul.f32 %v416, %v601
    %v712 = vmul.f32 %v416, %v605
    %v713 = vmul.f32 %v416, %v609
    %v714 = vmul.f32 %v416, %v613
    %v715 = vmul.f32 %v416, %v617
    %v716 = vmul.f32 %v416, %v621
    %v717 = vmul.f32 %v416, %v625
    %v718 = vmul.f32 %v416, %v629
    %v719 = vmul.f32 %v416, %v633
    %v720 = vmul.f32 %v416, %v637
    %v721 = vmul.f32 %v416, %v641
    %v722 = vmul.f32 %v416, %v645
    %v723 = vmul.f32 %v416, %v649
    %v724 = vmul.f32 %v416, %v653
    %v725 = vmul.f32 %v416, %v657
    %v726 = vmul.f32 %v416, %v661
    %v727 = vmul.f32 %v416, %v665
    %v728 = vmul.f32 %v416, %v669
    %v729 = vmul.f32 %v416, %v673
    %v730 = vmul.f32 %v416, %v677
    %v731 = vmul.f32 %v416, %v681
    %v732 = vmul.f32 %v416, %v685
    %v733 = vmul.f32 %v416, %v689
    %v734 = vmul.f32 %v416, %v693
    %v735 = vmul.f32 %v416, %v697
    %v736 = vmul.f32 %v416, %v701
    %v737 = vmul.f32 %v416, %v705
    %v738 = vadd.f32 %v382, %v706
    %v739 = vadd.f32 %v383, %v707
    %v740 = vadd.f32 %v384, %v708
    %v741 = vadd.f32 %v385, %v709
    %v742 = vadd.f32 %v386, %v710
    %v743 = vadd.f32 %v387, %v711
    %v744 = vadd.f32 %v388, %v712
    %v745 = vadd.f32 %v389, %v713
    %v746 = vadd.f32 %v390, %v714
    %v747 = vadd.f32 %v391, %v715
    %v748 = vadd.f32 %v392, %v716
    %v749 = vadd.f32 %v393, %v717
    %v750 = vadd.f32 %v394, %v718
    %v751 = vadd.f32 %v395, %v719
    %v752 = vadd.f32 %v396, %v720
    %v753 = vadd.f32 %v397, %v721
    %v754 = vadd.f32 %v398, %v722
    %v755 = vadd.f32 %v399, %v723
    %v756 = vadd.f32 %v400, %v724
    %v757 = vadd.f32 %v401, %v725
    %v758 = vadd.f32 %v402, %v726
    %v759 = vadd.f32 %v403, %v727
    %v760 = vadd.f32 %v404, %v728
    %v761 = vadd.f32 %v405, %v729
    %v762 = vadd.f32 %v406, %v730
    %v763 = vadd.f32 %v407, %v731
    %v764 = vadd.f32 %v408, %v732
    %v765 = vadd.f32 %v409, %v733
    %v766 = vadd.f32 %v410, %v734
    %v767 = vadd.f32 %v411, %v735
    %v768 = vadd.f32 %v412, %v736
    %v769 = vadd.f32 %v413, %v737
    %770 = vset.pattern.permute.xlu0 2
    %771 = vperm.xlu0 %770, %v69
    %v772 = vpop.permute.xlu0 %771
    %v774 = vlaneseq
    %v775 = vshrl.u32 %v774, 7
    %v776 = vsub.s32 2, %v775
    %v777 = vrot.slane %v53, %v776
    %v778 = vlaneseq
    %v779 = vshrl.u32 %v778, 7
    %v780 = vsub.s32 6, %v779
    %v781 = vrot.slane %v53, %v780
    %v782 = vlaneseq
    %v783 = vshrl.u32 %v782, 7
    %v784 = vsub.s32 2, %v783
    %v785 = vrot.slane %v54, %v784
    %v786 = vlaneseq
    %v787 = vshrl.u32 %v786, 7
    %v788 = vsub.s32 6, %v787
    %v789 = vrot.slane %v54, %v788
    %v790 = vlaneseq
    %v791 = vshrl.u32 %v790, 7
    %v792 = vsub.s32 2, %v791
    %v793 = vrot.slane %v55, %v792
    %v794 = vlaneseq
    %v795 = vshrl.u32 %v794, 7
    %v796 = vsub.s32 6, %v795
    %v797 = vrot.slane %v55, %v796
    %v798 = vlaneseq
    %v799 = vshrl.u32 %v798, 7
    %v800 = vsub.s32 2, %v799
    %v801 = vrot.slane %v56, %v800
    %v802 = vlaneseq
    %v803 = vshrl.u32 %v802, 7
    %v804 = vsub.s32 6, %v803
    %v805 = vrot.slane %v56, %v804
    %v806 = vlaneseq
    %v807 = vshrl.u32 %v806, 7
    %v808 = vsub.s32 2, %v807
    %v809 = vrot.slane %v57, %v808
    %v810 = vlaneseq
    %v811 = vshrl.u32 %v810, 7
    %v812 = vsub.s32 6, %v811
    %v813 = vrot.slane %v57, %v812
    %v814 = vlaneseq
    %v815 = vshrl.u32 %v814, 7
    %v816 = vsub.s32 2, %v815
    %v817 = vrot.slane %v58, %v816
    %v818 = vlaneseq
    %v819 = vshrl.u32 %v818, 7
    %v820 = vsub.s32 6, %v819
    %v821 = vrot.slane %v58, %v820
    %v822 = vlaneseq
    %v823 = vshrl.u32 %v822, 7
    %v824 = vsub.s32 2, %v823
    %v825 = vrot.slane %v59, %v824
    %v826 = vlaneseq
    %v827 = vshrl.u32 %v826, 7
    %v828 = vsub.s32 6, %v827
    %v829 = vrot.slane %v59, %v828
    %v830 = vlaneseq
    %v831 = vshrl.u32 %v830, 7
    %v832 = vsub.s32 2, %v831
    %v833 = vrot.slane %v60, %v832
    %v834 = vlaneseq
    %v835 = vshrl.u32 %v834, 7
    %v836 = vsub.s32 6, %v835
    %v837 = vrot.slane %v60, %v836
    %v838 = vlaneseq
    %v839 = vshrl.u32 %v838, 7
    %v840 = vsub.s32 2, %v839
    %v841 = vrot.slane %v61, %v840
    %v842 = vlaneseq
    %v843 = vshrl.u32 %v842, 7
    %v844 = vsub.s32 6, %v843
    %v845 = vrot.slane %v61, %v844
    %v846 = vlaneseq
    %v847 = vshrl.u32 %v846, 7
    %v848 = vsub.s32 2, %v847
    %v849 = vrot.slane %v62, %v848
    %v850 = vlaneseq
    %v851 = vshrl.u32 %v850, 7
    %v852 = vsub.s32 6, %v851
    %v853 = vrot.slane %v62, %v852
    %v854 = vlaneseq
    %v855 = vshrl.u32 %v854, 7
    %v856 = vsub.s32 2, %v855
    %v857 = vrot.slane %v63, %v856
    %v858 = vlaneseq
    %v859 = vshrl.u32 %v858, 7
    %v860 = vsub.s32 6, %v859
    %v861 = vrot.slane %v63, %v860
    %v862 = vlaneseq
    %v863 = vshrl.u32 %v862, 7
    %v864 = vsub.s32 2, %v863
    %v865 = vrot.slane %v64, %v864
    %v866 = vlaneseq
    %v867 = vshrl.u32 %v866, 7
    %v868 = vsub.s32 6, %v867
    %v869 = vrot.slane %v64, %v868
    %v870 = vlaneseq
    %v871 = vshrl.u32 %v870, 7
    %v872 = vsub.s32 2, %v871
    %v873 = vrot.slane %v65, %v872
    %v874 = vlaneseq
    %v875 = vshrl.u32 %v874, 7
    %v876 = vsub.s32 6, %v875
    %v877 = vrot.slane %v65, %v876
    %v878 = vlaneseq
    %v879 = vshrl.u32 %v878, 7
    %v880 = vsub.s32 2, %v879
    %v881 = vrot.slane %v66, %v880
    %v882 = vlaneseq
    %v883 = vshrl.u32 %v882, 7
    %v884 = vsub.s32 6, %v883
    %v885 = vrot.slane %v66, %v884
    %v886 = vlaneseq
    %v887 = vshrl.u32 %v886, 7
    %v888 = vsub.s32 2, %v887
    %v889 = vrot.slane %v67, %v888
    %v890 = vlaneseq
    %v891 = vshrl.u32 %v890, 7
    %v892 = vsub.s32 6, %v891
    %v893 = vrot.slane %v67, %v892
    %v894 = vlaneseq
    %v895 = vshrl.u32 %v894, 7
    %v896 = vsub.s32 2, %v895
    %v897 = vrot.slane %v68, %v896
    %v898 = vlaneseq
    %v899 = vshrl.u32 %v898, 7
    %v900 = vsub.s32 6, %v899
    %v901 = vrot.slane %v68, %v900
    %v934 = vlaneseq
    %v935 = vshrl.u32 %v934, 7
    %v936 = vsub.s32 2, %v935
    %v937 = vrot.slane %v777, %v936
    %v938 = vlaneseq
    %v939 = vshrl.u32 %v938, 7
    %v940 = vsub.s32 2, %v939
    %v941 = vrot.slane %v781, %v940
    %v942 = vlaneseq
    %v943 = vshrl.u32 %v942, 7
    %v944 = vsub.s32 2, %v943
    %v945 = vrot.slane %v785, %v944
    %v946 = vlaneseq
    %v947 = vshrl.u32 %v946, 7
    %v948 = vsub.s32 2, %v947
    %v949 = vrot.slane %v789, %v948
    %v950 = vlaneseq
    %v951 = vshrl.u32 %v950, 7
    %v952 = vsub.s32 2, %v951
    %v953 = vrot.slane %v793, %v952
    %v954 = vlaneseq
    %v955 = vshrl.u32 %v954, 7
    %v956 = vsub.s32 2, %v955
    %v957 = vrot.slane %v797, %v956
    %v958 = vlaneseq
    %v959 = vshrl.u32 %v958, 7
    %v960 = vsub.s32 2, %v959
    %v961 = vrot.slane %v801, %v960
    %v962 = vlaneseq
    %v963 = vshrl.u32 %v962, 7
    %v964 = vsub.s32 2, %v963
    %v965 = vrot.slane %v805, %v964
    %v966 = vlaneseq
    %v967 = vshrl.u32 %v966, 7
    %v968 = vsub.s32 2, %v967
    %v969 = vrot.slane %v809, %v968
    %v970 = vlaneseq
    %v971 = vshrl.u32 %v970, 7
    %v972 = vsub.s32 2, %v971
    %v973 = vrot.slane %v813, %v972
    %v974 = vlaneseq
    %v975 = vshrl.u32 %v974, 7
    %v976 = vsub.s32 2, %v975
    %v977 = vrot.slane %v817, %v976
    %v978 = vlaneseq
    %v979 = vshrl.u32 %v978, 7
    %v980 = vsub.s32 2, %v979
    %v981 = vrot.slane %v821, %v980
    %v982 = vlaneseq
    %v983 = vshrl.u32 %v982, 7
    %v984 = vsub.s32 2, %v983
    %v985 = vrot.slane %v825, %v984
    %v986 = vlaneseq
    %v987 = vshrl.u32 %v986, 7
    %v988 = vsub.s32 2, %v987
    %v989 = vrot.slane %v829, %v988
    %v990 = vlaneseq
    %v991 = vshrl.u32 %v990, 7
    %v992 = vsub.s32 2, %v991
    %v993 = vrot.slane %v833, %v992
    %v994 = vlaneseq
    %v995 = vshrl.u32 %v994, 7
    %v996 = vsub.s32 2, %v995
    %v997 = vrot.slane %v837, %v996
    %v998 = vlaneseq
    %v999 = vshrl.u32 %v998, 7
    %v1000 = vsub.s32 2, %v999
    %v1001 = vrot.slane %v841, %v1000
    %v1002 = vlaneseq
    %v1003 = vshrl.u32 %v1002, 7
    %v1004 = vsub.s32 2, %v1003
    %v1005 = vrot.slane %v845, %v1004
    %v1006 = vlaneseq
    %v1007 = vshrl.u32 %v1006, 7
    %v1008 = vsub.s32 2, %v1007
    %v1009 = vrot.slane %v849, %v1008
    %v1010 = vlaneseq
    %v1011 = vshrl.u32 %v1010, 7
    %v1012 = vsub.s32 2, %v1011
    %v1013 = vrot.slane %v853, %v1012
    %v1014 = vlaneseq
    %v1015 = vshrl.u32 %v1014, 7
    %v1016 = vsub.s32 2, %v1015
    %v1017 = vrot.slane %v857, %v1016
    %v1018 = vlaneseq
    %v1019 = vshrl.u32 %v1018, 7
    %v1020 = vsub.s32 2, %v1019
    %v1021 = vrot.slane %v861, %v1020
    %v1022 = vlaneseq
    %v1023 = vshrl.u32 %v1022, 7
    %v1024 = vsub.s32 2, %v1023
    %v1025 = vrot.slane %v865, %v1024
    %v1026 = vlaneseq
    %v1027 = vshrl.u32 %v1026, 7
    %v1028 = vsub.s32 2, %v1027
    %v1029 = vrot.slane %v869, %v1028
    %v1030 = vlaneseq
    %v1031 = vshrl.u32 %v1030, 7
    %v1032 = vsub.s32 2, %v1031
    %v1033 = vrot.slane %v873, %v1032
    %v1034 = vlaneseq
    %v1035 = vshrl.u32 %v1034, 7
    %v1036 = vsub.s32 2, %v1035
    %v1037 = vrot.slane %v877, %v1036
    %v1038 = vlaneseq
    %v1039 = vshrl.u32 %v1038, 7
    %v1040 = vsub.s32 2, %v1039
    %v1041 = vrot.slane %v881, %v1040
    %v1042 = vlaneseq
    %v1043 = vshrl.u32 %v1042, 7
    %v1044 = vsub.s32 2, %v1043
    %v1045 = vrot.slane %v885, %v1044
    %v1046 = vlaneseq
    %v1047 = vshrl.u32 %v1046, 7
    %v1048 = vsub.s32 2, %v1047
    %v1049 = vrot.slane %v889, %v1048
    %v1050 = vlaneseq
    %v1051 = vshrl.u32 %v1050, 7
    %v1052 = vsub.s32 2, %v1051
    %v1053 = vrot.slane %v893, %v1052
    %v1054 = vlaneseq
    %v1055 = vshrl.u32 %v1054, 7
    %v1056 = vsub.s32 2, %v1055
    %v1057 = vrot.slane %v897, %v1056
    %v1058 = vlaneseq
    %v1059 = vshrl.u32 %v1058, 7
    %v1060 = vsub.s32 2, %v1059
    %v1061 = vrot.slane %v901, %v1060
    %v1062 = vmul.f32 %v772, %v937
    %v1063 = vmul.f32 %v772, %v941
    %v1064 = vmul.f32 %v772, %v945
    %v1065 = vmul.f32 %v772, %v949
    %v1066 = vmul.f32 %v772, %v953
    %v1067 = vmul.f32 %v772, %v957
    %v1068 = vmul.f32 %v772, %v961
    %v1069 = vmul.f32 %v772, %v965
    %v1070 = vmul.f32 %v772, %v969
    %v1071 = vmul.f32 %v772, %v973
    %v1072 = vmul.f32 %v772, %v977
    %v1073 = vmul.f32 %v772, %v981
    %v1074 = vmul.f32 %v772, %v985
    %v1075 = vmul.f32 %v772, %v989
    %v1076 = vmul.f32 %v772, %v993
    %v1077 = vmul.f32 %v772, %v997
    %v1078 = vmul.f32 %v772, %v1001
    %v1079 = vmul.f32 %v772, %v1005
    %v1080 = vmul.f32 %v772, %v1009
    %v1081 = vmul.f32 %v772, %v1013
    %v1082 = vmul.f32 %v772, %v1017
    %v1083 = vmul.f32 %v772, %v1021
    %v1084 = vmul.f32 %v772, %v1025
    %v1085 = vmul.f32 %v772, %v1029
    %v1086 = vmul.f32 %v772, %v1033
    %v1087 = vmul.f32 %v772, %v1037
    %v1088 = vmul.f32 %v772, %v1041
    %v1089 = vmul.f32 %v772, %v1045
    %v1090 = vmul.f32 %v772, %v1049
    %v1091 = vmul.f32 %v772, %v1053
    %v1092 = vmul.f32 %v772, %v1057
    %v1093 = vmul.f32 %v772, %v1061
    %v1094 = vadd.f32 %v738, %v1062
    %v1095 = vadd.f32 %v739, %v1063
    %v1096 = vadd.f32 %v740, %v1064
    %v1097 = vadd.f32 %v741, %v1065
    %v1098 = vadd.f32 %v742, %v1066
    %v1099 = vadd.f32 %v743, %v1067
    %v1100 = vadd.f32 %v744, %v1068
    %v1101 = vadd.f32 %v745, %v1069
    %v1102 = vadd.f32 %v746, %v1070
    %v1103 = vadd.f32 %v747, %v1071
    %v1104 = vadd.f32 %v748, %v1072
    %v1105 = vadd.f32 %v749, %v1073
    %v1106 = vadd.f32 %v750, %v1074
    %v1107 = vadd.f32 %v751, %v1075
    %v1108 = vadd.f32 %v752, %v1076
    %v1109 = vadd.f32 %v753, %v1077
    %v1110 = vadd.f32 %v754, %v1078
    %v1111 = vadd.f32 %v755, %v1079
    %v1112 = vadd.f32 %v756, %v1080
    %v1113 = vadd.f32 %v757, %v1081
    %v1114 = vadd.f32 %v758, %v1082
    %v1115 = vadd.f32 %v759, %v1083
    %v1116 = vadd.f32 %v760, %v1084
    %v1117 = vadd.f32 %v761, %v1085
    %v1118 = vadd.f32 %v762, %v1086
    %v1119 = vadd.f32 %v763, %v1087
    %v1120 = vadd.f32 %v764, %v1088
    %v1121 = vadd.f32 %v765, %v1089
    %v1122 = vadd.f32 %v766, %v1090
    %v1123 = vadd.f32 %v767, %v1091
    %v1124 = vadd.f32 %v768, %v1092
    %v1125 = vadd.f32 %v769, %v1093
    %1127 = vset.pattern.permute.xlu0 0
    %1128 = vperm.xlu0 %1127, %v70
    %v1129 = vpop.permute.xlu0 %1128
    %v1131 = vadd.f32 %v1094, %v1129
    %v1132 = vadd.f32 %v1095, %v1129
    %v1133 = vadd.f32 %v1096, %v1129
    %v1134 = vadd.f32 %v1097, %v1129
    %v1135 = vadd.f32 %v1098, %v1129
    %v1136 = vadd.f32 %v1099, %v1129
    %v1137 = vadd.f32 %v1100, %v1129
    %v1138 = vadd.f32 %v1101, %v1129
    %v1139 = vadd.f32 %v1102, %v1129
    %v1140 = vadd.f32 %v1103, %v1129
    %v1141 = vadd.f32 %v1104, %v1129
    %v1142 = vadd.f32 %v1105, %v1129
    %v1143 = vadd.f32 %v1106, %v1129
    %v1144 = vadd.f32 %v1107, %v1129
    %v1145 = vadd.f32 %v1108, %v1129
    %v1146 = vadd.f32 %v1109, %v1129
    %v1147 = vadd.f32 %v1110, %v1129
    %v1148 = vadd.f32 %v1111, %v1129
    %v1149 = vadd.f32 %v1112, %v1129
    %v1150 = vadd.f32 %v1113, %v1129
    %v1151 = vadd.f32 %v1114, %v1129
    %v1152 = vadd.f32 %v1115, %v1129
    %v1153 = vadd.f32 %v1116, %v1129
    %v1154 = vadd.f32 %v1117, %v1129
    %v1155 = vadd.f32 %v1118, %v1129
    %v1156 = vadd.f32 %v1119, %v1129
    %v1157 = vadd.f32 %v1120, %v1129
    %v1158 = vadd.f32 %v1121, %v1129
    %v1159 = vadd.f32 %v1122, %v1129
    %v1160 = vadd.f32 %v1123, %v1129
    %v1161 = vadd.f32 %v1124, %v1129
    %v1162 = vadd.f32 %v1125, %v1129
    %v1163 = vmax.f32 %v1131, 0.0
    %v1164 = vmax.f32 %v1132, 0.0
    %v1165 = vmax.f32 %v1133, 0.0
    %v1166 = vmax.f32 %v1134, 0.0
    %v1167 = vmax.f32 %v1135, 0.0
    %v1168 = vmax.f32 %v1136, 0.0
    %v1169 = vmax.f32 %v1137, 0.0
    %v1170 = vmax.f32 %v1138, 0.0
    %v1171 = vmax.f32 %v1139, 0.0
    %v1172 = vmax.f32 %v1140, 0.0
    %v1173 = vmax.f32 %v1141, 0.0
    %v1174 = vmax.f32 %v1142, 0.0
    %v1175 = vmax.f32 %v1143, 0.0
    %v1176 = vmax.f32 %v1144, 0.0
    %v1177 = vmax.f32 %v1145, 0.0
    %v1178 = vmax.f32 %v1146, 0.0
    %v1179 = vmax.f32 %v1147, 0.0
    %v1180 = vmax.f32 %v1148, 0.0
    %v1181 = vmax.f32 %v1149, 0.0
    %v1182 = vmax.f32 %v1150, 0.0
    %v1183 = vmax.f32 %v1151, 0.0
    %v1184 = vmax.f32 %v1152, 0.0
    %v1185 = vmax.f32 %v1153, 0.0
    %v1186 = vmax.f32 %v1154, 0.0
    %v1187 = vmax.f32 %v1155, 0.0
    %v1188 = vmax.f32 %v1156, 0.0
    %v1189 = vmax.f32 %v1157, 0.0
    %v1190 = vmax.f32 %v1158, 0.0
    %v1191 = vmax.f32 %v1159, 0.0
    %v1192 = vmax.f32 %v1160, 0.0
    %v1193 = vmax.f32 %v1161, 0.0
    %v1194 = vmax.f32 %v1162, 0.0
    %1196 = vset.pattern.permute.xlu0 0
    %1197 = vperm.xlu0 %1196, %v71
    %v1198 = vpop.permute.xlu0 %1197
    %1201 = vset.pattern.permute.xlu0 0
    %1202 = vperm.xlu0 %1201, %v72
    %v1203 = vpop.permute.xlu0 %1202
    %v1205 = vmul.f32 %v1198, %v257
    %v1206 = vmul.f32 %v1198, %v261
    %v1207 = vmul.f32 %v1203, %v257
    %v1208 = vmul.f32 %v1203, %v261
    %v1209 = vmul.f32 %v1198, %v265
    %v1210 = vmul.f32 %v1198, %v269
    %v1211 = vmul.f32 %v1203, %v265
    %v1212 = vmul.f32 %v1203, %v269
    %v1213 = vmul.f32 %v1198, %v273
    %v1214 = vmul.f32 %v1198, %v277
    %v1215 = vmul.f32 %v1203, %v273
    %v1216 = vmul.f32 %v1203, %v277
    %v1217 = vmul.f32 %v1198, %v281
    %v1218 = vmul.f32 %v1198, %v285
    %v1219 = vmul.f32 %v1203, %v281
    %v1220 = vmul.f32 %v1203, %v285
    %v1221 = vmul.f32 %v1198, %v289
    %v1222 = vmul.f32 %v1198, %v293
    %v1223 = vmul.f32 %v1203, %v289
    %v1224 = vmul.f32 %v1203, %v293
    %v1225 = vmul.f32 %v1198, %v297
    %v1226 = vmul.f32 %v1198, %v301
    %v1227 = vmul.f32 %v1203, %v297
    %v1228 = vmul.f32 %v1203, %v301
    %v1229 = vmul.f32 %v1198, %v305
    %v1230 = vmul.f32 %v1198, %v309
    %v1231 = vmul.f32 %v1203, %v305
    %v1232 = vmul.f32 %v1203, %v309
    %v1233 = vmul.f32 %v1198, %v313
    %v1234 = vmul.f32 %v1198, %v317
    %v1235 = vmul.f32 %v1203, %v313
    %v1236 = vmul.f32 %v1203, %v317
    %v1237 = vmul.f32 %v1198, %v321
    %v1238 = vmul.f32 %v1198, %v325
    %v1239 = vmul.f32 %v1203, %v321
    %v1240 = vmul.f32 %v1203, %v325
    %v1241 = vmul.f32 %v1198, %v329
    %v1242 = vmul.f32 %v1198, %v333
    %v1243 = vmul.f32 %v1203, %v329
    %v1244 = vmul.f32 %v1203, %v333
    %v1245 = vmul.f32 %v1198, %v337
    %v1246 = vmul.f32 %v1198, %v341
    %v1247 = vmul.f32 %v1203, %v337
    %v1248 = vmul.f32 %v1203, %v341
    %v1249 = vmul.f32 %v1198, %v345
    %v1250 = vmul.f32 %v1198, %v349
    %v1251 = vmul.f32 %v1203, %v345
    %v1252 = vmul.f32 %v1203, %v349
    %v1253 = vmul.f32 %v1198, %v353
    %v1254 = vmul.f32 %v1198, %v357
    %v1255 = vmul.f32 %v1203, %v353
    %v1256 = vmul.f32 %v1203, %v357
    %v1257 = vmul.f32 %v1198, %v361
    %v1258 = vmul.f32 %v1198, %v365
    %v1259 = vmul.f32 %v1203, %v361
    %v1260 = vmul.f32 %v1203, %v365
    %v1261 = vmul.f32 %v1198, %v369
    %v1262 = vmul.f32 %v1198, %v373
    %v1263 = vmul.f32 %v1203, %v369
    %v1264 = vmul.f32 %v1203, %v373
    %v1265 = vmul.f32 %v1198, %v377
    %v1266 = vmul.f32 %v1198, %v381
    %v1267 = vmul.f32 %v1203, %v377
    %v1268 = vmul.f32 %v1203, %v381
    %1269 = vset.pattern.permute.xlu0 1
    %1270 = vperm.xlu0 %1269, %v71
    %v1271 = vpop.permute.xlu0 %1270
    %1273 = vset.pattern.permute.xlu0 1
    %1274 = vperm.xlu0 %1273, %v72
    %v1275 = vpop.permute.xlu0 %1274
    %v1277 = vmul.f32 %v1271, %v581
    %v1278 = vmul.f32 %v1271, %v585
    %v1279 = vmul.f32 %v1275, %v581
    %v1280 = vmul.f32 %v1275, %v585
    %v1281 = vmul.f32 %v1271, %v589
    %v1282 = vmul.f32 %v1271, %v593
    %v1283 = vmul.f32 %v1275, %v589
    %v1284 = vmul.f32 %v1275, %v593
    %v1285 = vmul.f32 %v1271, %v597
    %v1286 = vmul.f32 %v1271, %v601
    %v1287 = vmul.f32 %v1275, %v597
    %v1288 = vmul.f32 %v1275, %v601
    %v1289 = vmul.f32 %v1271, %v605
    %v1290 = vmul.f32 %v1271, %v609
    %v1291 = vmul.f32 %v1275, %v605
    %v1292 = vmul.f32 %v1275, %v609
    %v1293 = vmul.f32 %v1271, %v613
    %v1294 = vmul.f32 %v1271, %v617
    %v1295 = vmul.f32 %v1275, %v613
    %v1296 = vmul.f32 %v1275, %v617
    %v1297 = vmul.f32 %v1271, %v621
    %v1298 = vmul.f32 %v1271, %v625
    %v1299 = vmul.f32 %v1275, %v621
    %v1300 = vmul.f32 %v1275, %v625
    %v1301 = vmul.f32 %v1271, %v629
    %v1302 = vmul.f32 %v1271, %v633
    %v1303 = vmul.f32 %v1275, %v629
    %v1304 = vmul.f32 %v1275, %v633
    %v1305 = vmul.f32 %v1271, %v637
    %v1306 = vmul.f32 %v1271, %v641
    %v1307 = vmul.f32 %v1275, %v637
    %v1308 = vmul.f32 %v1275, %v641
    %v1309 = vmul.f32 %v1271, %v645
    %v1310 = vmul.f32 %v1271, %v649
    %v1311 = vmul.f32 %v1275, %v645
    %v1312 = vmul.f32 %v1275, %v649
    %v1313 = vmul.f32 %v1271, %v653
    %v1314 = vmul.f32 %v1271, %v657
    %v1315 = vmul.f32 %v1275, %v653
    %v1316 = vmul.f32 %v1275, %v657
    %v1317 = vmul.f32 %v1271, %v661
    %v1318 = vmul.f32 %v1271, %v665
    %v1319 = vmul.f32 %v1275, %v661
    %v1320 = vmul.f32 %v1275, %v665
    %v1321 = vmul.f32 %v1271, %v669
    %v1322 = vmul.f32 %v1271, %v673
    %v1323 = vmul.f32 %v1275, %v669
    %v1324 = vmul.f32 %v1275, %v673
    %v1325 = vmul.f32 %v1271, %v677
    %v1326 = vmul.f32 %v1271, %v681
    %v1327 = vmul.f32 %v1275, %v677
    %v1328 = vmul.f32 %v1275, %v681
    %v1329 = vmul.f32 %v1271, %v685
    %v1330 = vmul.f32 %v1271, %v689
    %v1331 = vmul.f32 %v1275, %v685
    %v1332 = vmul.f32 %v1275, %v689
    %v1333 = vmul.f32 %v1271, %v693
    %v1334 = vmul.f32 %v1271, %v697
    %v1335 = vmul.f32 %v1275, %v693
    %v1336 = vmul.f32 %v1275, %v697
    %v1337 = vmul.f32 %v1271, %v701
    %v1338 = vmul.f32 %v1271, %v705
    %v1339 = vmul.f32 %v1275, %v701
    %v1340 = vmul.f32 %v1275, %v705
    %v1341 = vadd.f32 %v1205, %v1277
    %v1342 = vadd.f32 %v1206, %v1278
    %v1343 = vadd.f32 %v1207, %v1279
    %v1344 = vadd.f32 %v1208, %v1280
    %v1345 = vadd.f32 %v1209, %v1281
    %v1346 = vadd.f32 %v1210, %v1282
    %v1347 = vadd.f32 %v1211, %v1283
    %v1348 = vadd.f32 %v1212, %v1284
    %v1349 = vadd.f32 %v1213, %v1285
    %v1350 = vadd.f32 %v1214, %v1286
    %v1351 = vadd.f32 %v1215, %v1287
    %v1352 = vadd.f32 %v1216, %v1288
    %v1353 = vadd.f32 %v1217, %v1289
    %v1354 = vadd.f32 %v1218, %v1290
    %v1355 = vadd.f32 %v1219, %v1291
    %v1356 = vadd.f32 %v1220, %v1292
    %v1357 = vadd.f32 %v1221, %v1293
    %v1358 = vadd.f32 %v1222, %v1294
    %v1359 = vadd.f32 %v1223, %v1295
    %v1360 = vadd.f32 %v1224, %v1296
    %v1361 = vadd.f32 %v1225, %v1297
    %v1362 = vadd.f32 %v1226, %v1298
    %v1363 = vadd.f32 %v1227, %v1299
    %v1364 = vadd.f32 %v1228, %v1300
    %v1365 = vadd.f32 %v1229, %v1301
    %v1366 = vadd.f32 %v1230, %v1302
    %v1367 = vadd.f32 %v1231, %v1303
    %v1368 = vadd.f32 %v1232, %v1304
    %v1369 = vadd.f32 %v1233, %v1305
    %v1370 = vadd.f32 %v1234, %v1306
    %v1371 = vadd.f32 %v1235, %v1307
    %v1372 = vadd.f32 %v1236, %v1308
    %v1373 = vadd.f32 %v1237, %v1309
    %v1374 = vadd.f32 %v1238, %v1310
    %v1375 = vadd.f32 %v1239, %v1311
    %v1376 = vadd.f32 %v1240, %v1312
    %v1377 = vadd.f32 %v1241, %v1313
    %v1378 = vadd.f32 %v1242, %v1314
    %v1379 = vadd.f32 %v1243, %v1315
    %v1380 = vadd.f32 %v1244, %v1316
    %v1381 = vadd.f32 %v1245, %v1317
    %v1382 = vadd.f32 %v1246, %v1318
    %v1383 = vadd.f32 %v1247, %v1319
    %v1384 = vadd.f32 %v1248, %v1320
    %v1385 = vadd.f32 %v1249, %v1321
    %v1386 = vadd.f32 %v1250, %v1322
    %v1387 = vadd.f32 %v1251, %v1323
    %v1388 = vadd.f32 %v1252, %v1324
    %v1389 = vadd.f32 %v1253, %v1325
    %v1390 = vadd.f32 %v1254, %v1326
    %v1391 = vadd.f32 %v1255, %v1327
    %v1392 = vadd.f32 %v1256, %v1328
    %v1393 = vadd.f32 %v1257, %v1329
    %v1394 = vadd.f32 %v1258, %v1330
    %v1395 = vadd.f32 %v1259, %v1331
    %v1396 = vadd.f32 %v1260, %v1332
    %v1397 = vadd.f32 %v1261, %v1333
    %v1398 = vadd.f32 %v1262, %v1334
    %v1399 = vadd.f32 %v1263, %v1335
    %v1400 = vadd.f32 %v1264, %v1336
    %v1401 = vadd.f32 %v1265, %v1337
    %v1402 = vadd.f32 %v1266, %v1338
    %v1403 = vadd.f32 %v1267, %v1339
    %v1404 = vadd.f32 %v1268, %v1340
    %1405 = vset.pattern.permute.xlu0 2
    %1406 = vperm.xlu0 %1405, %v71
    %v1407 = vpop.permute.xlu0 %1406
    %1409 = vset.pattern.permute.xlu0 2
    %1410 = vperm.xlu0 %1409, %v72
    %v1411 = vpop.permute.xlu0 %1410
    %v1413 = vmul.f32 %v1407, %v937
    %v1414 = vmul.f32 %v1407, %v941
    %v1415 = vmul.f32 %v1411, %v937
    %v1416 = vmul.f32 %v1411, %v941
    %v1417 = vmul.f32 %v1407, %v945
    %v1418 = vmul.f32 %v1407, %v949
    %v1419 = vmul.f32 %v1411, %v945
    %v1420 = vmul.f32 %v1411, %v949
    %v1421 = vmul.f32 %v1407, %v953
    %v1422 = vmul.f32 %v1407, %v957
    %v1423 = vmul.f32 %v1411, %v953
    %v1424 = vmul.f32 %v1411, %v957
    %v1425 = vmul.f32 %v1407, %v961
    %v1426 = vmul.f32 %v1407, %v965
    %v1427 = vmul.f32 %v1411, %v961
    %v1428 = vmul.f32 %v1411, %v965
    %v1429 = vmul.f32 %v1407, %v969
    %v1430 = vmul.f32 %v1407, %v973
    %v1431 = vmul.f32 %v1411, %v969
    %v1432 = vmul.f32 %v1411, %v973
    %v1433 = vmul.f32 %v1407, %v977
    %v1434 = vmul.f32 %v1407, %v981
    %v1435 = vmul.f32 %v1411, %v977
    %v1436 = vmul.f32 %v1411, %v981
    %v1437 = vmul.f32 %v1407, %v985
    %v1438 = vmul.f32 %v1407, %v989
    %v1439 = vmul.f32 %v1411, %v985
    %v1440 = vmul.f32 %v1411, %v989
    %v1441 = vmul.f32 %v1407, %v993
    %v1442 = vmul.f32 %v1407, %v997
    %v1443 = vmul.f32 %v1411, %v993
    %v1444 = vmul.f32 %v1411, %v997
    %v1445 = vmul.f32 %v1407, %v1001
    %v1446 = vmul.f32 %v1407, %v1005
    %v1447 = vmul.f32 %v1411, %v1001
    %v1448 = vmul.f32 %v1411, %v1005
    %v1449 = vmul.f32 %v1407, %v1009
    %v1450 = vmul.f32 %v1407, %v1013
    %v1451 = vmul.f32 %v1411, %v1009
    %v1452 = vmul.f32 %v1411, %v1013
    %v1453 = vmul.f32 %v1407, %v1017
    %v1454 = vmul.f32 %v1407, %v1021
    %v1455 = vmul.f32 %v1411, %v1017
    %v1456 = vmul.f32 %v1411, %v1021
    %v1457 = vmul.f32 %v1407, %v1025
    %v1458 = vmul.f32 %v1407, %v1029
    %v1459 = vmul.f32 %v1411, %v1025
    %v1460 = vmul.f32 %v1411, %v1029
    %v1461 = vmul.f32 %v1407, %v1033
    %v1462 = vmul.f32 %v1407, %v1037
    %v1463 = vmul.f32 %v1411, %v1033
    %v1464 = vmul.f32 %v1411, %v1037
    %v1465 = vmul.f32 %v1407, %v1041
    %v1466 = vmul.f32 %v1407, %v1045
    %v1467 = vmul.f32 %v1411, %v1041
    %v1468 = vmul.f32 %v1411, %v1045
    %v1469 = vmul.f32 %v1407, %v1049
    %v1470 = vmul.f32 %v1407, %v1053
    %v1471 = vmul.f32 %v1411, %v1049
    %v1472 = vmul.f32 %v1411, %v1053
    %v1473 = vmul.f32 %v1407, %v1057
    %v1474 = vmul.f32 %v1407, %v1061
    %v1475 = vmul.f32 %v1411, %v1057
    %v1476 = vmul.f32 %v1411, %v1061
    %v1477 = vadd.f32 %v1341, %v1413
    %v1478 = vadd.f32 %v1342, %v1414
    %v1479 = vadd.f32 %v1343, %v1415
    %v1480 = vadd.f32 %v1344, %v1416
    %v1481 = vadd.f32 %v1345, %v1417
    %v1482 = vadd.f32 %v1346, %v1418
    %v1483 = vadd.f32 %v1347, %v1419
    %v1484 = vadd.f32 %v1348, %v1420
    %v1485 = vadd.f32 %v1349, %v1421
    %v1486 = vadd.f32 %v1350, %v1422
    %v1487 = vadd.f32 %v1351, %v1423
    %v1488 = vadd.f32 %v1352, %v1424
    %v1489 = vadd.f32 %v1353, %v1425
    %v1490 = vadd.f32 %v1354, %v1426
    %v1491 = vadd.f32 %v1355, %v1427
    %v1492 = vadd.f32 %v1356, %v1428
    %v1493 = vadd.f32 %v1357, %v1429
    %v1494 = vadd.f32 %v1358, %v1430
    %v1495 = vadd.f32 %v1359, %v1431
    %v1496 = vadd.f32 %v1360, %v1432
    %v1497 = vadd.f32 %v1361, %v1433
    %v1498 = vadd.f32 %v1362, %v1434
    %v1499 = vadd.f32 %v1363, %v1435
    %v1500 = vadd.f32 %v1364, %v1436
    %v1501 = vadd.f32 %v1365, %v1437
    %v1502 = vadd.f32 %v1366, %v1438
    %v1503 = vadd.f32 %v1367, %v1439
    %v1504 = vadd.f32 %v1368, %v1440
    %v1505 = vadd.f32 %v1369, %v1441
    %v1506 = vadd.f32 %v1370, %v1442
    %v1507 = vadd.f32 %v1371, %v1443
    %v1508 = vadd.f32 %v1372, %v1444
    %v1509 = vadd.f32 %v1373, %v1445
    %v1510 = vadd.f32 %v1374, %v1446
    %v1511 = vadd.f32 %v1375, %v1447
    %v1512 = vadd.f32 %v1376, %v1448
    %v1513 = vadd.f32 %v1377, %v1449
    %v1514 = vadd.f32 %v1378, %v1450
    %v1515 = vadd.f32 %v1379, %v1451
    %v1516 = vadd.f32 %v1380, %v1452
    %v1517 = vadd.f32 %v1381, %v1453
    %v1518 = vadd.f32 %v1382, %v1454
    %v1519 = vadd.f32 %v1383, %v1455
    %v1520 = vadd.f32 %v1384, %v1456
    %v1521 = vadd.f32 %v1385, %v1457
    %v1522 = vadd.f32 %v1386, %v1458
    %v1523 = vadd.f32 %v1387, %v1459
    %v1524 = vadd.f32 %v1388, %v1460
    %v1525 = vadd.f32 %v1389, %v1461
    %v1526 = vadd.f32 %v1390, %v1462
    %v1527 = vadd.f32 %v1391, %v1463
    %v1528 = vadd.f32 %v1392, %v1464
    %v1529 = vadd.f32 %v1393, %v1465
    %v1530 = vadd.f32 %v1394, %v1466
    %v1531 = vadd.f32 %v1395, %v1467
    %v1532 = vadd.f32 %v1396, %v1468
    %v1533 = vadd.f32 %v1397, %v1469
    %v1534 = vadd.f32 %v1398, %v1470
    %v1535 = vadd.f32 %v1399, %v1471
    %v1536 = vadd.f32 %v1400, %v1472
    %v1537 = vadd.f32 %v1401, %v1473
    %v1538 = vadd.f32 %v1402, %v1474
    %v1539 = vadd.f32 %v1403, %v1475
    %v1540 = vadd.f32 %v1404, %v1476
    %v1541 = vmax.f32 %v1477, %v1478
    %1542 = vmax.xlane.f32.xlu0 %v1541
    %v1543 = vpop.xlane.xlu0 %1542
    %v1544 = vmax.f32 %v1479, %v1480
    %1545 = vmax.xlane.f32.xlu0 %v1544
    %v1546 = vpop.xlane.xlu0 %1545
    %v1547 = vmax.f32 %v1481, %v1482
    %1548 = vmax.xlane.f32.xlu0 %v1547
    %v1549 = vpop.xlane.xlu0 %1548
    %v1550 = vmax.f32 %v1483, %v1484
    %1551 = vmax.xlane.f32.xlu0 %v1550
    %v1552 = vpop.xlane.xlu0 %1551
    %v1553 = vmax.f32 %v1485, %v1486
    %1554 = vmax.xlane.f32.xlu0 %v1553
    %v1555 = vpop.xlane.xlu0 %1554
    %v1556 = vmax.f32 %v1487, %v1488
    %1557 = vmax.xlane.f32.xlu0 %v1556
    %v1558 = vpop.xlane.xlu0 %1557
    %v1559 = vmax.f32 %v1489, %v1490
    %1560 = vmax.xlane.f32.xlu0 %v1559
    %v1561 = vpop.xlane.xlu0 %1560
    %v1562 = vmax.f32 %v1491, %v1492
    %1563 = vmax.xlane.f32.xlu0 %v1562
    %v1564 = vpop.xlane.xlu0 %1563
    %v1565 = vmax.f32 %v1493, %v1494
    %1566 = vmax.xlane.f32.xlu0 %v1565
    %v1567 = vpop.xlane.xlu0 %1566
    %v1568 = vmax.f32 %v1495, %v1496
    %1569 = vmax.xlane.f32.xlu0 %v1568
    %v1570 = vpop.xlane.xlu0 %1569
    %v1571 = vmax.f32 %v1497, %v1498
    %1572 = vmax.xlane.f32.xlu0 %v1571
    %v1573 = vpop.xlane.xlu0 %1572
    %v1574 = vmax.f32 %v1499, %v1500
    %1575 = vmax.xlane.f32.xlu0 %v1574
    %v1576 = vpop.xlane.xlu0 %1575
    %v1577 = vmax.f32 %v1501, %v1502
    %1578 = vmax.xlane.f32.xlu0 %v1577
    %v1579 = vpop.xlane.xlu0 %1578
    %v1580 = vmax.f32 %v1503, %v1504
    %1581 = vmax.xlane.f32.xlu0 %v1580
    %v1582 = vpop.xlane.xlu0 %1581
    %v1583 = vmax.f32 %v1505, %v1506
    %1584 = vmax.xlane.f32.xlu0 %v1583
    %v1585 = vpop.xlane.xlu0 %1584
    %v1586 = vmax.f32 %v1507, %v1508
    %1587 = vmax.xlane.f32.xlu0 %v1586
    %v1588 = vpop.xlane.xlu0 %1587
    %v1589 = vmax.f32 %v1509, %v1510
    %1590 = vmax.xlane.f32.xlu0 %v1589
    %v1591 = vpop.xlane.xlu0 %1590
    %v1592 = vmax.f32 %v1511, %v1512
    %1593 = vmax.xlane.f32.xlu0 %v1592
    %v1594 = vpop.xlane.xlu0 %1593
    %v1595 = vmax.f32 %v1513, %v1514
    %1596 = vmax.xlane.f32.xlu0 %v1595
    %v1597 = vpop.xlane.xlu0 %1596
    %v1598 = vmax.f32 %v1515, %v1516
    %1599 = vmax.xlane.f32.xlu0 %v1598
    %v1600 = vpop.xlane.xlu0 %1599
    %v1601 = vmax.f32 %v1517, %v1518
    %1602 = vmax.xlane.f32.xlu0 %v1601
    %v1603 = vpop.xlane.xlu0 %1602
    %v1604 = vmax.f32 %v1519, %v1520
    %1605 = vmax.xlane.f32.xlu0 %v1604
    %v1606 = vpop.xlane.xlu0 %1605
    %v1607 = vmax.f32 %v1521, %v1522
    %1608 = vmax.xlane.f32.xlu0 %v1607
    %v1609 = vpop.xlane.xlu0 %1608
    %v1610 = vmax.f32 %v1523, %v1524
    %1611 = vmax.xlane.f32.xlu0 %v1610
    %v1612 = vpop.xlane.xlu0 %1611
    %v1613 = vmax.f32 %v1525, %v1526
    %1614 = vmax.xlane.f32.xlu0 %v1613
    %v1615 = vpop.xlane.xlu0 %1614
    %v1616 = vmax.f32 %v1527, %v1528
    %1617 = vmax.xlane.f32.xlu0 %v1616
    %v1618 = vpop.xlane.xlu0 %1617
    %v1619 = vmax.f32 %v1529, %v1530
    %1620 = vmax.xlane.f32.xlu0 %v1619
    %v1621 = vpop.xlane.xlu0 %1620
    %v1622 = vmax.f32 %v1531, %v1532
    %1623 = vmax.xlane.f32.xlu0 %v1622
    %v1624 = vpop.xlane.xlu0 %1623
    %v1625 = vmax.f32 %v1533, %v1534
    %1626 = vmax.xlane.f32.xlu0 %v1625
    %v1627 = vpop.xlane.xlu0 %1626
    %v1628 = vmax.f32 %v1535, %v1536
    %1629 = vmax.xlane.f32.xlu0 %v1628
    %v1630 = vpop.xlane.xlu0 %1629
    %v1631 = vmax.f32 %v1537, %v1538
    %1632 = vmax.xlane.f32.xlu0 %v1631
    %v1633 = vpop.xlane.xlu0 %1632
    %v1634 = vmax.f32 %v1539, %v1540
    %1635 = vmax.xlane.f32.xlu0 %v1634
    %v1636 = vpop.xlane.xlu0 %1635
    %v1637 = vsub.f32 %v1477, %v1543
    %v1638 = vsub.f32 %v1478, %v1543
    %v1639 = vsub.f32 %v1479, %v1546
    %v1640 = vsub.f32 %v1480, %v1546
    %v1641 = vsub.f32 %v1481, %v1549
    %v1642 = vsub.f32 %v1482, %v1549
    %v1643 = vsub.f32 %v1483, %v1552
    %v1644 = vsub.f32 %v1484, %v1552
    %v1645 = vsub.f32 %v1485, %v1555
    %v1646 = vsub.f32 %v1486, %v1555
    %v1647 = vsub.f32 %v1487, %v1558
    %v1648 = vsub.f32 %v1488, %v1558
    %v1649 = vsub.f32 %v1489, %v1561
    %v1650 = vsub.f32 %v1490, %v1561
    %v1651 = vsub.f32 %v1491, %v1564
    %v1652 = vsub.f32 %v1492, %v1564
    %v1653 = vsub.f32 %v1493, %v1567
    %v1654 = vsub.f32 %v1494, %v1567
    %v1655 = vsub.f32 %v1495, %v1570
    %v1656 = vsub.f32 %v1496, %v1570
    %v1657 = vsub.f32 %v1497, %v1573
    %v1658 = vsub.f32 %v1498, %v1573
    %v1659 = vsub.f32 %v1499, %v1576
    %v1660 = vsub.f32 %v1500, %v1576
    %v1661 = vsub.f32 %v1501, %v1579
    %v1662 = vsub.f32 %v1502, %v1579
    %v1663 = vsub.f32 %v1503, %v1582
    %v1664 = vsub.f32 %v1504, %v1582
    %v1665 = vsub.f32 %v1505, %v1585
    %v1666 = vsub.f32 %v1506, %v1585
    %v1667 = vsub.f32 %v1507, %v1588
    %v1668 = vsub.f32 %v1508, %v1588
    %v1669 = vsub.f32 %v1509, %v1591
    %v1670 = vsub.f32 %v1510, %v1591
    %v1671 = vsub.f32 %v1511, %v1594
    %v1672 = vsub.f32 %v1512, %v1594
    %v1673 = vsub.f32 %v1513, %v1597
    %v1674 = vsub.f32 %v1514, %v1597
    %v1675 = vsub.f32 %v1515, %v1600
    %v1676 = vsub.f32 %v1516, %v1600
    %v1677 = vsub.f32 %v1517, %v1603
    %v1678 = vsub.f32 %v1518, %v1603
    %v1679 = vsub.f32 %v1519, %v1606
    %v1680 = vsub.f32 %v1520, %v1606
    %v1681 = vsub.f32 %v1521, %v1609
    %v1682 = vsub.f32 %v1522, %v1609
    %v1683 = vsub.f32 %v1523, %v1612
    %v1684 = vsub.f32 %v1524, %v1612
    %v1685 = vsub.f32 %v1525, %v1615
    %v1686 = vsub.f32 %v1526, %v1615
    %v1687 = vsub.f32 %v1527, %v1618
    %v1688 = vsub.f32 %v1528, %v1618
    %v1689 = vsub.f32 %v1529, %v1621
    %v1690 = vsub.f32 %v1530, %v1621
    %v1691 = vsub.f32 %v1531, %v1624
    %v1692 = vsub.f32 %v1532, %v1624
    %v1693 = vsub.f32 %v1533, %v1627
    %v1694 = vsub.f32 %v1534, %v1627
    %v1695 = vsub.f32 %v1535, %v1630
    %v1696 = vsub.f32 %v1536, %v1630
    %v1697 = vsub.f32 %v1537, %v1633
    %v1698 = vsub.f32 %v1538, %v1633
    %v1699 = vsub.f32 %v1539, %v1636
    %v1700 = vsub.f32 %v1540, %v1636
    %v1701 = vmul.f32 %v1637, 1.442695
    %v1702 = vpow.pop %v1701
    %v1703 = vmul.f32 %v1638, 1.442695
    %v1704 = vpow.pop %v1703
    %v1705 = vmul.f32 %v1639, 1.442695
    %v1706 = vpow.pop %v1705
    %v1707 = vmul.f32 %v1640, 1.442695
    %v1708 = vpow.pop %v1707
    %v1709 = vmul.f32 %v1641, 1.442695
    %v1710 = vpow.pop %v1709
    %v1711 = vmul.f32 %v1642, 1.442695
    %v1712 = vpow.pop %v1711
    %v1713 = vmul.f32 %v1643, 1.442695
    %v1714 = vpow.pop %v1713
    %v1715 = vmul.f32 %v1644, 1.442695
    %v1716 = vpow.pop %v1715
    %v1717 = vmul.f32 %v1645, 1.442695
    %v1718 = vpow.pop %v1717
    %v1719 = vmul.f32 %v1646, 1.442695
    %v1720 = vpow.pop %v1719
    %v1721 = vmul.f32 %v1647, 1.442695
    %v1722 = vpow.pop %v1721
    %v1723 = vmul.f32 %v1648, 1.442695
    %v1724 = vpow.pop %v1723
    %v1725 = vmul.f32 %v1649, 1.442695
    %v1726 = vpow.pop %v1725
    %v1727 = vmul.f32 %v1650, 1.442695
    %v1728 = vpow.pop %v1727
    %v1729 = vmul.f32 %v1651, 1.442695
    %v1730 = vpow.pop %v1729
    %v1731 = vmul.f32 %v1652, 1.442695
    %v1732 = vpow.pop %v1731
    %v1733 = vmul.f32 %v1653, 1.442695
    %v1734 = vpow.pop %v1733
    %v1735 = vmul.f32 %v1654, 1.442695
    %v1736 = vpow.pop %v1735
    %v1737 = vmul.f32 %v1655, 1.442695
    %v1738 = vpow.pop %v1737
    %v1739 = vmul.f32 %v1656, 1.442695
    %v1740 = vpow.pop %v1739
    %v1741 = vmul.f32 %v1657, 1.442695
    %v1742 = vpow.pop %v1741
    %v1743 = vmul.f32 %v1658, 1.442695
    %v1744 = vpow.pop %v1743
    %v1745 = vmul.f32 %v1659, 1.442695
    %v1746 = vpow.pop %v1745
    %v1747 = vmul.f32 %v1660, 1.442695
    %v1748 = vpow.pop %v1747
    %v1749 = vmul.f32 %v1661, 1.442695
    %v1750 = vpow.pop %v1749
    %v1751 = vmul.f32 %v1662, 1.442695
    %v1752 = vpow.pop %v1751
    %v1753 = vmul.f32 %v1663, 1.442695
    %v1754 = vpow.pop %v1753
    %v1755 = vmul.f32 %v1664, 1.442695
    %v1756 = vpow.pop %v1755
    %v1757 = vmul.f32 %v1665, 1.442695
    %v1758 = vpow.pop %v1757
    %v1759 = vmul.f32 %v1666, 1.442695
    %v1760 = vpow.pop %v1759
    %v1761 = vmul.f32 %v1667, 1.442695
    %v1762 = vpow.pop %v1761
    %v1763 = vmul.f32 %v1668, 1.442695
    %v1764 = vpow.pop %v1763
    %v1765 = vmul.f32 %v1669, 1.442695
    %v1766 = vpow.pop %v1765
    %v1767 = vmul.f32 %v1670, 1.442695
    %v1768 = vpow.pop %v1767
    %v1769 = vmul.f32 %v1671, 1.442695
    %v1770 = vpow.pop %v1769
    %v1771 = vmul.f32 %v1672, 1.442695
    %v1772 = vpow.pop %v1771
    %v1773 = vmul.f32 %v1673, 1.442695
    %v1774 = vpow.pop %v1773
    %v1775 = vmul.f32 %v1674, 1.442695
    %v1776 = vpow.pop %v1775
    %v1777 = vmul.f32 %v1675, 1.442695
    %v1778 = vpow.pop %v1777
    %v1779 = vmul.f32 %v1676, 1.442695
    %v1780 = vpow.pop %v1779
    %v1781 = vmul.f32 %v1677, 1.442695
    %v1782 = vpow.pop %v1781
    %v1783 = vmul.f32 %v1678, 1.442695
    %v1784 = vpow.pop %v1783
    %v1785 = vmul.f32 %v1679, 1.442695
    %v1786 = vpow.pop %v1785
    %v1787 = vmul.f32 %v1680, 1.442695
    %v1788 = vpow.pop %v1787
    %v1789 = vmul.f32 %v1681, 1.442695
    %v1790 = vpow.pop %v1789
    %v1791 = vmul.f32 %v1682, 1.442695
    %v1792 = vpow.pop %v1791
    %v1793 = vmul.f32 %v1683, 1.442695
    %v1794 = vpow.pop %v1793
    %v1795 = vmul.f32 %v1684, 1.442695
    %v1796 = vpow.pop %v1795
    %v1797 = vmul.f32 %v1685, 1.442695
    %v1798 = vpow.pop %v1797
    %v1799 = vmul.f32 %v1686, 1.442695
    %v1800 = vpow.pop %v1799
    %v1801 = vmul.f32 %v1687, 1.442695
    %v1802 = vpow.pop %v1801
    %v1803 = vmul.f32 %v1688, 1.442695
    %v1804 = vpow.pop %v1803
    %v1805 = vmul.f32 %v1689, 1.442695
    %v1806 = vpow.pop %v1805
    %v1807 = vmul.f32 %v1690, 1.442695
    %v1808 = vpow.pop %v1807
    %v1809 = vmul.f32 %v1691, 1.442695
    %v1810 = vpow.pop %v1809
    %v1811 = vmul.f32 %v1692, 1.442695
    %v1812 = vpow.pop %v1811
    %v1813 = vmul.f32 %v1693, 1.442695
    %v1814 = vpow.pop %v1813
    %v1815 = vmul.f32 %v1694, 1.442695
    %v1816 = vpow.pop %v1815
    %v1817 = vmul.f32 %v1695, 1.442695
    %v1818 = vpow.pop %v1817
    %v1819 = vmul.f32 %v1696, 1.442695
    %v1820 = vpow.pop %v1819
    %v1821 = vmul.f32 %v1697, 1.442695
    %v1822 = vpow.pop %v1821
    %v1823 = vmul.f32 %v1698, 1.442695
    %v1824 = vpow.pop %v1823
    %v1825 = vmul.f32 %v1699, 1.442695
    %v1826 = vpow.pop %v1825
    %v1827 = vmul.f32 %v1700, 1.442695
    %v1828 = vpow.pop %v1827
    %v1829 = vadd.f32 %v1702, %v1704
    %1830 = vadd.xlane.f32.xlu0 %v1829
    %v1831 = vpop.xlane.xlu0 %1830
    %v1832 = vadd.f32 %v1706, %v1708
    %1833 = vadd.xlane.f32.xlu0 %v1832
    %v1834 = vpop.xlane.xlu0 %1833
    %v1835 = vadd.f32 %v1710, %v1712
    %1836 = vadd.xlane.f32.xlu0 %v1835
    %v1837 = vpop.xlane.xlu0 %1836
    %v1838 = vadd.f32 %v1714, %v1716
    %1839 = vadd.xlane.f32.xlu0 %v1838
    %v1840 = vpop.xlane.xlu0 %1839
    %v1841 = vadd.f32 %v1718, %v1720
    %1842 = vadd.xlane.f32.xlu0 %v1841
    %v1843 = vpop.xlane.xlu0 %1842
    %v1844 = vadd.f32 %v1722, %v1724
    %1845 = vadd.xlane.f32.xlu0 %v1844
    %v1846 = vpop.xlane.xlu0 %1845
    %v1847 = vadd.f32 %v1726, %v1728
    %1848 = vadd.xlane.f32.xlu0 %v1847
    %v1849 = vpop.xlane.xlu0 %1848
    %v1850 = vadd.f32 %v1730, %v1732
    %1851 = vadd.xlane.f32.xlu0 %v1850
    %v1852 = vpop.xlane.xlu0 %1851
    %v1853 = vadd.f32 %v1734, %v1736
    %1854 = vadd.xlane.f32.xlu0 %v1853
    %v1855 = vpop.xlane.xlu0 %1854
    %v1856 = vadd.f32 %v1738, %v1740
    %1857 = vadd.xlane.f32.xlu0 %v1856
    %v1858 = vpop.xlane.xlu0 %1857
    %v1859 = vadd.f32 %v1742, %v1744
    %1860 = vadd.xlane.f32.xlu0 %v1859
    %v1861 = vpop.xlane.xlu0 %1860
    %v1862 = vadd.f32 %v1746, %v1748
    %1863 = vadd.xlane.f32.xlu0 %v1862
    %v1864 = vpop.xlane.xlu0 %1863
    %v1865 = vadd.f32 %v1750, %v1752
    %1866 = vadd.xlane.f32.xlu0 %v1865
    %v1867 = vpop.xlane.xlu0 %1866
    %v1868 = vadd.f32 %v1754, %v1756
    %1869 = vadd.xlane.f32.xlu0 %v1868
    %v1870 = vpop.xlane.xlu0 %1869
    %v1871 = vadd.f32 %v1758, %v1760
    %1872 = vadd.xlane.f32.xlu0 %v1871
    %v1873 = vpop.xlane.xlu0 %1872
    %v1874 = vadd.f32 %v1762, %v1764
    %1875 = vadd.xlane.f32.xlu0 %v1874
    %v1876 = vpop.xlane.xlu0 %1875
    %v1877 = vadd.f32 %v1766, %v1768
    %1878 = vadd.xlane.f32.xlu0 %v1877
    %v1879 = vpop.xlane.xlu0 %1878
    %v1880 = vadd.f32 %v1770, %v1772
    %1881 = vadd.xlane.f32.xlu0 %v1880
    %v1882 = vpop.xlane.xlu0 %1881
    %v1883 = vadd.f32 %v1774, %v1776
    %1884 = vadd.xlane.f32.xlu0 %v1883
    %v1885 = vpop.xlane.xlu0 %1884
    %v1886 = vadd.f32 %v1778, %v1780
    %1887 = vadd.xlane.f32.xlu0 %v1886
    %v1888 = vpop.xlane.xlu0 %1887
    %v1889 = vadd.f32 %v1782, %v1784
    %1890 = vadd.xlane.f32.xlu0 %v1889
    %v1891 = vpop.xlane.xlu0 %1890
    %v1892 = vadd.f32 %v1786, %v1788
    %1893 = vadd.xlane.f32.xlu0 %v1892
    %v1894 = vpop.xlane.xlu0 %1893
    %v1895 = vadd.f32 %v1790, %v1792
    %1896 = vadd.xlane.f32.xlu0 %v1895
    %v1897 = vpop.xlane.xlu0 %1896
    %v1898 = vadd.f32 %v1794, %v1796
    %1899 = vadd.xlane.f32.xlu0 %v1898
    %v1900 = vpop.xlane.xlu0 %1899
    %v1901 = vadd.f32 %v1798, %v1800
    %1902 = vadd.xlane.f32.xlu0 %v1901
    %v1903 = vpop.xlane.xlu0 %1902
    %v1904 = vadd.f32 %v1802, %v1804
    %1905 = vadd.xlane.f32.xlu0 %v1904
    %v1906 = vpop.xlane.xlu0 %1905
    %v1907 = vadd.f32 %v1806, %v1808
    %1908 = vadd.xlane.f32.xlu0 %v1907
    %v1909 = vpop.xlane.xlu0 %1908
    %v1910 = vadd.f32 %v1810, %v1812
    %1911 = vadd.xlane.f32.xlu0 %v1910
    %v1912 = vpop.xlane.xlu0 %1911
    %v1913 = vadd.f32 %v1814, %v1816
    %1914 = vadd.xlane.f32.xlu0 %v1913
    %v1915 = vpop.xlane.xlu0 %1914
    %v1916 = vadd.f32 %v1818, %v1820
    %1917 = vadd.xlane.f32.xlu0 %v1916
    %v1918 = vpop.xlane.xlu0 %1917
    %v1919 = vadd.f32 %v1822, %v1824
    %1920 = vadd.xlane.f32.xlu0 %v1919
    %v1921 = vpop.xlane.xlu0 %1920
    %v1922 = vadd.f32 %v1826, %v1828
    %1923 = vadd.xlane.f32.xlu0 %v1922
    %v1924 = vpop.xlane.xlu0 %1923
    %v1925 = vrcp.pop %v1831
    %v1926 = vrcp.pop %v1834
    %v1927 = vrcp.pop %v1837
    %v1928 = vrcp.pop %v1840
    %v1929 = vrcp.pop %v1843
    %v1930 = vrcp.pop %v1846
    %v1931 = vrcp.pop %v1849
    %v1932 = vrcp.pop %v1852
    %v1933 = vrcp.pop %v1855
    %v1934 = vrcp.pop %v1858
    %v1935 = vrcp.pop %v1861
    %v1936 = vrcp.pop %v1864
    %v1937 = vrcp.pop %v1867
    %v1938 = vrcp.pop %v1870
    %v1939 = vrcp.pop %v1873
    %v1940 = vrcp.pop %v1876
    %v1941 = vrcp.pop %v1879
    %v1942 = vrcp.pop %v1882
    %v1943 = vrcp.pop %v1885
    %v1944 = vrcp.pop %v1888
    %v1945 = vrcp.pop %v1891
    %v1946 = vrcp.pop %v1894
    %v1947 = vrcp.pop %v1897
    %v1948 = vrcp.pop %v1900
    %v1949 = vrcp.pop %v1903
    %v1950 = vrcp.pop %v1906
    %v1951 = vrcp.pop %v1909
    %v1952 = vrcp.pop %v1912
    %v1953 = vrcp.pop %v1915
    %v1954 = vrcp.pop %v1918
    %v1955 = vrcp.pop %v1921
    %v1956 = vrcp.pop %v1924
    %v1957 = vmul.f32 %v1702, %v1925
    %v1958 = vmul.f32 %v1704, %v1925
    %v1959 = vmul.f32 %v1706, %v1926
    %v1960 = vmul.f32 %v1708, %v1926
    %v1961 = vmul.f32 %v1710, %v1927
    %v1962 = vmul.f32 %v1712, %v1927
    %v1963 = vmul.f32 %v1714, %v1928
    %v1964 = vmul.f32 %v1716, %v1928
    %v1965 = vmul.f32 %v1718, %v1929
    %v1966 = vmul.f32 %v1720, %v1929
    %v1967 = vmul.f32 %v1722, %v1930
    %v1968 = vmul.f32 %v1724, %v1930
    %v1969 = vmul.f32 %v1726, %v1931
    %v1970 = vmul.f32 %v1728, %v1931
    %v1971 = vmul.f32 %v1730, %v1932
    %v1972 = vmul.f32 %v1732, %v1932
    %v1973 = vmul.f32 %v1734, %v1933
    %v1974 = vmul.f32 %v1736, %v1933
    %v1975 = vmul.f32 %v1738, %v1934
    %v1976 = vmul.f32 %v1740, %v1934
    %v1977 = vmul.f32 %v1742, %v1935
    %v1978 = vmul.f32 %v1744, %v1935
    %v1979 = vmul.f32 %v1746, %v1936
    %v1980 = vmul.f32 %v1748, %v1936
    %v1981 = vmul.f32 %v1750, %v1937
    %v1982 = vmul.f32 %v1752, %v1937
    %v1983 = vmul.f32 %v1754, %v1938
    %v1984 = vmul.f32 %v1756, %v1938
    %v1985 = vmul.f32 %v1758, %v1939
    %v1986 = vmul.f32 %v1760, %v1939
    %v1987 = vmul.f32 %v1762, %v1940
    %v1988 = vmul.f32 %v1764, %v1940
    %v1989 = vmul.f32 %v1766, %v1941
    %v1990 = vmul.f32 %v1768, %v1941
    %v1991 = vmul.f32 %v1770, %v1942
    %v1992 = vmul.f32 %v1772, %v1942
    %v1993 = vmul.f32 %v1774, %v1943
    %v1994 = vmul.f32 %v1776, %v1943
    %v1995 = vmul.f32 %v1778, %v1944
    %v1996 = vmul.f32 %v1780, %v1944
    %v1997 = vmul.f32 %v1782, %v1945
    %v1998 = vmul.f32 %v1784, %v1945
    %v1999 = vmul.f32 %v1786, %v1946
    %v2000 = vmul.f32 %v1788, %v1946
    %v2001 = vmul.f32 %v1790, %v1947
    %v2002 = vmul.f32 %v1792, %v1947
    %v2003 = vmul.f32 %v1794, %v1948
    %v2004 = vmul.f32 %v1796, %v1948
    %v2005 = vmul.f32 %v1798, %v1949
    %v2006 = vmul.f32 %v1800, %v1949
    %v2007 = vmul.f32 %v1802, %v1950
    %v2008 = vmul.f32 %v1804, %v1950
    %v2009 = vmul.f32 %v1806, %v1951
    %v2010 = vmul.f32 %v1808, %v1951
    %v2011 = vmul.f32 %v1810, %v1952
    %v2012 = vmul.f32 %v1812, %v1952
    %v2013 = vmul.f32 %v1814, %v1953
    %v2014 = vmul.f32 %v1816, %v1953
    %v2015 = vmul.f32 %v1818, %v1954
    %v2016 = vmul.f32 %v1820, %v1954
    %v2017 = vmul.f32 %v1822, %v1955
    %v2018 = vmul.f32 %v1824, %v1955
    %v2019 = vmul.f32 %v1826, %v1956
    %v2020 = vmul.f32 %v1828, %v1956
    %v2021 = vlaneseq
    %v2022 = vand.u32 %v2021, 127
    %v2023 = vadd.s32 %v2022, 128
    %v2024 = vcvt.s32.f32 %v2022
    %v2025 = vcvt.s32.f32 %v2023
    %v2026 = vmul.f32 %v2024, 0.0625
    %v2027 = vmul.f32 %v2025, 0.0625
    %v2028 = vfloor.f32 %v2026
    %v2029 = vfloor.f32 %v2027
    %v2030 = vmul.f32 %v2028, 16.0
    %v2031 = vmul.f32 %v2029, 16.0
    %v2032 = vsub.f32 %v2024, %v2030
    %v2033 = vsub.f32 %v2025, %v2031
    %v2034 = vadd.f32 %v2032, 0.5
    %v2035 = vadd.f32 %v2033, 0.5
    %v2036 = vmul.f32 %v2034, 0.0625
    %v2037 = vmul.f32 %v2035, 0.0625
    %v2038 = vadd.f32 %v2028, 0.5
    %v2039 = vadd.f32 %v2029, 0.5
    %v2040 = vmul.f32 %v2038, 0.0625
    %v2041 = vmul.f32 %v2039, 0.0625
    %v2042 = vmul.f32 %v1957, %v2036
    %v2043 = vmul.f32 %v1958, %v2037
    %v2044 = vmul.f32 %v1959, %v2036
    %v2045 = vmul.f32 %v1960, %v2037
    %v2046 = vmul.f32 %v1961, %v2036
    %v2047 = vmul.f32 %v1962, %v2037
    %v2048 = vmul.f32 %v1963, %v2036
    %v2049 = vmul.f32 %v1964, %v2037
    %v2050 = vmul.f32 %v1965, %v2036
    %v2051 = vmul.f32 %v1966, %v2037
    %v2052 = vmul.f32 %v1967, %v2036
    %v2053 = vmul.f32 %v1968, %v2037
    %v2054 = vmul.f32 %v1969, %v2036
    %v2055 = vmul.f32 %v1970, %v2037
    %v2056 = vmul.f32 %v1971, %v2036
    %v2057 = vmul.f32 %v1972, %v2037
    %v2058 = vmul.f32 %v1973, %v2036
    %v2059 = vmul.f32 %v1974, %v2037
    %v2060 = vmul.f32 %v1975, %v2036
    %v2061 = vmul.f32 %v1976, %v2037
    %v2062 = vmul.f32 %v1977, %v2036
    %v2063 = vmul.f32 %v1978, %v2037
    %v2064 = vmul.f32 %v1979, %v2036
    %v2065 = vmul.f32 %v1980, %v2037
    %v2066 = vmul.f32 %v1981, %v2036
    %v2067 = vmul.f32 %v1982, %v2037
    %v2068 = vmul.f32 %v1983, %v2036
    %v2069 = vmul.f32 %v1984, %v2037
    %v2070 = vmul.f32 %v1985, %v2036
    %v2071 = vmul.f32 %v1986, %v2037
    %v2072 = vmul.f32 %v1987, %v2036
    %v2073 = vmul.f32 %v1988, %v2037
    %v2074 = vmul.f32 %v1989, %v2036
    %v2075 = vmul.f32 %v1990, %v2037
    %v2076 = vmul.f32 %v1991, %v2036
    %v2077 = vmul.f32 %v1992, %v2037
    %v2078 = vmul.f32 %v1993, %v2036
    %v2079 = vmul.f32 %v1994, %v2037
    %v2080 = vmul.f32 %v1995, %v2036
    %v2081 = vmul.f32 %v1996, %v2037
    %v2082 = vmul.f32 %v1997, %v2036
    %v2083 = vmul.f32 %v1998, %v2037
    %v2084 = vmul.f32 %v1999, %v2036
    %v2085 = vmul.f32 %v2000, %v2037
    %v2086 = vmul.f32 %v2001, %v2036
    %v2087 = vmul.f32 %v2002, %v2037
    %v2088 = vmul.f32 %v2003, %v2036
    %v2089 = vmul.f32 %v2004, %v2037
    %v2090 = vmul.f32 %v2005, %v2036
    %v2091 = vmul.f32 %v2006, %v2037
    %v2092 = vmul.f32 %v2007, %v2036
    %v2093 = vmul.f32 %v2008, %v2037
    %v2094 = vmul.f32 %v2009, %v2036
    %v2095 = vmul.f32 %v2010, %v2037
    %v2096 = vmul.f32 %v2011, %v2036
    %v2097 = vmul.f32 %v2012, %v2037
    %v2098 = vmul.f32 %v2013, %v2036
    %v2099 = vmul.f32 %v2014, %v2037
    %v2100 = vmul.f32 %v2015, %v2036
    %v2101 = vmul.f32 %v2016, %v2037
    %v2102 = vmul.f32 %v2017, %v2036
    %v2103 = vmul.f32 %v2018, %v2037
    %v2104 = vmul.f32 %v2019, %v2036
    %v2105 = vmul.f32 %v2020, %v2037
    %v2106 = vadd.f32 %v2042, %v2043
    %2107 = vadd.xlane.f32.xlu0 %v2106
    %v2108 = vpop.xlane.xlu0 %2107
    %v2109 = vadd.f32 %v2044, %v2045
    %2110 = vadd.xlane.f32.xlu0 %v2109
    %v2111 = vpop.xlane.xlu0 %2110
    %v2112 = vadd.f32 %v2046, %v2047
    %2113 = vadd.xlane.f32.xlu0 %v2112
    %v2114 = vpop.xlane.xlu0 %2113
    %v2115 = vadd.f32 %v2048, %v2049
    %2116 = vadd.xlane.f32.xlu0 %v2115
    %v2117 = vpop.xlane.xlu0 %2116
    %v2118 = vadd.f32 %v2050, %v2051
    %2119 = vadd.xlane.f32.xlu0 %v2118
    %v2120 = vpop.xlane.xlu0 %2119
    %v2121 = vadd.f32 %v2052, %v2053
    %2122 = vadd.xlane.f32.xlu0 %v2121
    %v2123 = vpop.xlane.xlu0 %2122
    %v2124 = vadd.f32 %v2054, %v2055
    %2125 = vadd.xlane.f32.xlu0 %v2124
    %v2126 = vpop.xlane.xlu0 %2125
    %v2127 = vadd.f32 %v2056, %v2057
    %2128 = vadd.xlane.f32.xlu0 %v2127
    %v2129 = vpop.xlane.xlu0 %2128
    %v2130 = vadd.f32 %v2058, %v2059
    %2131 = vadd.xlane.f32.xlu0 %v2130
    %v2132 = vpop.xlane.xlu0 %2131
    %v2133 = vadd.f32 %v2060, %v2061
    %2134 = vadd.xlane.f32.xlu0 %v2133
    %v2135 = vpop.xlane.xlu0 %2134
    %v2136 = vadd.f32 %v2062, %v2063
    %2137 = vadd.xlane.f32.xlu0 %v2136
    %v2138 = vpop.xlane.xlu0 %2137
    %v2139 = vadd.f32 %v2064, %v2065
    %2140 = vadd.xlane.f32.xlu0 %v2139
    %v2141 = vpop.xlane.xlu0 %2140
    %v2142 = vadd.f32 %v2066, %v2067
    %2143 = vadd.xlane.f32.xlu0 %v2142
    %v2144 = vpop.xlane.xlu0 %2143
    %v2145 = vadd.f32 %v2068, %v2069
    %2146 = vadd.xlane.f32.xlu0 %v2145
    %v2147 = vpop.xlane.xlu0 %2146
    %v2148 = vadd.f32 %v2070, %v2071
    %2149 = vadd.xlane.f32.xlu0 %v2148
    %v2150 = vpop.xlane.xlu0 %2149
    %v2151 = vadd.f32 %v2072, %v2073
    %2152 = vadd.xlane.f32.xlu0 %v2151
    %v2153 = vpop.xlane.xlu0 %2152
    %v2154 = vadd.f32 %v2074, %v2075
    %2155 = vadd.xlane.f32.xlu0 %v2154
    %v2156 = vpop.xlane.xlu0 %2155
    %v2157 = vadd.f32 %v2076, %v2077
    %2158 = vadd.xlane.f32.xlu0 %v2157
    %v2159 = vpop.xlane.xlu0 %2158
    %v2160 = vadd.f32 %v2078, %v2079
    %2161 = vadd.xlane.f32.xlu0 %v2160
    %v2162 = vpop.xlane.xlu0 %2161
    %v2163 = vadd.f32 %v2080, %v2081
    %2164 = vadd.xlane.f32.xlu0 %v2163
    %v2165 = vpop.xlane.xlu0 %2164
    %v2166 = vadd.f32 %v2082, %v2083
    %2167 = vadd.xlane.f32.xlu0 %v2166
    %v2168 = vpop.xlane.xlu0 %2167
    %v2169 = vadd.f32 %v2084, %v2085
    %2170 = vadd.xlane.f32.xlu0 %v2169
    %v2171 = vpop.xlane.xlu0 %2170
    %v2172 = vadd.f32 %v2086, %v2087
    %2173 = vadd.xlane.f32.xlu0 %v2172
    %v2174 = vpop.xlane.xlu0 %2173
    %v2175 = vadd.f32 %v2088, %v2089
    %2176 = vadd.xlane.f32.xlu0 %v2175
    %v2177 = vpop.xlane.xlu0 %2176
    %v2178 = vadd.f32 %v2090, %v2091
    %2179 = vadd.xlane.f32.xlu0 %v2178
    %v2180 = vpop.xlane.xlu0 %2179
    %v2181 = vadd.f32 %v2092, %v2093
    %2182 = vadd.xlane.f32.xlu0 %v2181
    %v2183 = vpop.xlane.xlu0 %2182
    %v2184 = vadd.f32 %v2094, %v2095
    %2185 = vadd.xlane.f32.xlu0 %v2184
    %v2186 = vpop.xlane.xlu0 %2185
    %v2187 = vadd.f32 %v2096, %v2097
    %2188 = vadd.xlane.f32.xlu0 %v2187
    %v2189 = vpop.xlane.xlu0 %2188
    %v2190 = vadd.f32 %v2098, %v2099
    %2191 = vadd.xlane.f32.xlu0 %v2190
    %v2192 = vpop.xlane.xlu0 %2191
    %v2193 = vadd.f32 %v2100, %v2101
    %2194 = vadd.xlane.f32.xlu0 %v2193
    %v2195 = vpop.xlane.xlu0 %2194
    %v2196 = vadd.f32 %v2102, %v2103
    %2197 = vadd.xlane.f32.xlu0 %v2196
    %v2198 = vpop.xlane.xlu0 %2197
    %v2199 = vadd.f32 %v2104, %v2105
    %2200 = vadd.xlane.f32.xlu0 %v2199
    %v2201 = vpop.xlane.xlu0 %2200
    %v2202 = vmul.f32 %v1957, %v2040
    %v2203 = vmul.f32 %v1958, %v2041
    %v2204 = vmul.f32 %v1959, %v2040
    %v2205 = vmul.f32 %v1960, %v2041
    %v2206 = vmul.f32 %v1961, %v2040
    %v2207 = vmul.f32 %v1962, %v2041
    %v2208 = vmul.f32 %v1963, %v2040
    %v2209 = vmul.f32 %v1964, %v2041
    %v2210 = vmul.f32 %v1965, %v2040
    %v2211 = vmul.f32 %v1966, %v2041
    %v2212 = vmul.f32 %v1967, %v2040
    %v2213 = vmul.f32 %v1968, %v2041
    %v2214 = vmul.f32 %v1969, %v2040
    %v2215 = vmul.f32 %v1970, %v2041
    %v2216 = vmul.f32 %v1971, %v2040
    %v2217 = vmul.f32 %v1972, %v2041
    %v2218 = vmul.f32 %v1973, %v2040
    %v2219 = vmul.f32 %v1974, %v2041
    %v2220 = vmul.f32 %v1975, %v2040
    %v2221 = vmul.f32 %v1976, %v2041
    %v2222 = vmul.f32 %v1977, %v2040
    %v2223 = vmul.f32 %v1978, %v2041
    %v2224 = vmul.f32 %v1979, %v2040
    %v2225 = vmul.f32 %v1980, %v2041
    %v2226 = vmul.f32 %v1981, %v2040
    %v2227 = vmul.f32 %v1982, %v2041
    %v2228 = vmul.f32 %v1983, %v2040
    %v2229 = vmul.f32 %v1984, %v2041
    %v2230 = vmul.f32 %v1985, %v2040
    %v2231 = vmul.f32 %v1986, %v2041
    %v2232 = vmul.f32 %v1987, %v2040
    %v2233 = vmul.f32 %v1988, %v2041
    %v2234 = vmul.f32 %v1989, %v2040
    %v2235 = vmul.f32 %v1990, %v2041
    %v2236 = vmul.f32 %v1991, %v2040
    %v2237 = vmul.f32 %v1992, %v2041
    %v2238 = vmul.f32 %v1993, %v2040
    %v2239 = vmul.f32 %v1994, %v2041
    %v2240 = vmul.f32 %v1995, %v2040
    %v2241 = vmul.f32 %v1996, %v2041
    %v2242 = vmul.f32 %v1997, %v2040
    %v2243 = vmul.f32 %v1998, %v2041
    %v2244 = vmul.f32 %v1999, %v2040
    %v2245 = vmul.f32 %v2000, %v2041
    %v2246 = vmul.f32 %v2001, %v2040
    %v2247 = vmul.f32 %v2002, %v2041
    %v2248 = vmul.f32 %v2003, %v2040
    %v2249 = vmul.f32 %v2004, %v2041
    %v2250 = vmul.f32 %v2005, %v2040
    %v2251 = vmul.f32 %v2006, %v2041
    %v2252 = vmul.f32 %v2007, %v2040
    %v2253 = vmul.f32 %v2008, %v2041
    %v2254 = vmul.f32 %v2009, %v2040
    %v2255 = vmul.f32 %v2010, %v2041
    %v2256 = vmul.f32 %v2011, %v2040
    %v2257 = vmul.f32 %v2012, %v2041
    %v2258 = vmul.f32 %v2013, %v2040
    %v2259 = vmul.f32 %v2014, %v2041
    %v2260 = vmul.f32 %v2015, %v2040
    %v2261 = vmul.f32 %v2016, %v2041
    %v2262 = vmul.f32 %v2017, %v2040
    %v2263 = vmul.f32 %v2018, %v2041
    %v2264 = vmul.f32 %v2019, %v2040
    %v2265 = vmul.f32 %v2020, %v2041
    %v2266 = vadd.f32 %v2202, %v2203
    %2267 = vadd.xlane.f32.xlu0 %v2266
    %v2268 = vpop.xlane.xlu0 %2267
    %v2269 = vadd.f32 %v2204, %v2205
    %2270 = vadd.xlane.f32.xlu0 %v2269
    %v2271 = vpop.xlane.xlu0 %2270
    %v2272 = vadd.f32 %v2206, %v2207
    %2273 = vadd.xlane.f32.xlu0 %v2272
    %v2274 = vpop.xlane.xlu0 %2273
    %v2275 = vadd.f32 %v2208, %v2209
    %2276 = vadd.xlane.f32.xlu0 %v2275
    %v2277 = vpop.xlane.xlu0 %2276
    %v2278 = vadd.f32 %v2210, %v2211
    %2279 = vadd.xlane.f32.xlu0 %v2278
    %v2280 = vpop.xlane.xlu0 %2279
    %v2281 = vadd.f32 %v2212, %v2213
    %2282 = vadd.xlane.f32.xlu0 %v2281
    %v2283 = vpop.xlane.xlu0 %2282
    %v2284 = vadd.f32 %v2214, %v2215
    %2285 = vadd.xlane.f32.xlu0 %v2284
    %v2286 = vpop.xlane.xlu0 %2285
    %v2287 = vadd.f32 %v2216, %v2217
    %2288 = vadd.xlane.f32.xlu0 %v2287
    %v2289 = vpop.xlane.xlu0 %2288
    %v2290 = vadd.f32 %v2218, %v2219
    %2291 = vadd.xlane.f32.xlu0 %v2290
    %v2292 = vpop.xlane.xlu0 %2291
    %v2293 = vadd.f32 %v2220, %v2221
    %2294 = vadd.xlane.f32.xlu0 %v2293
    %v2295 = vpop.xlane.xlu0 %2294
    %v2296 = vadd.f32 %v2222, %v2223
    %2297 = vadd.xlane.f32.xlu0 %v2296
    %v2298 = vpop.xlane.xlu0 %2297
    %v2299 = vadd.f32 %v2224, %v2225
    %2300 = vadd.xlane.f32.xlu0 %v2299
    %v2301 = vpop.xlane.xlu0 %2300
    %v2302 = vadd.f32 %v2226, %v2227
    %2303 = vadd.xlane.f32.xlu0 %v2302
    %v2304 = vpop.xlane.xlu0 %2303
    %v2305 = vadd.f32 %v2228, %v2229
    %2306 = vadd.xlane.f32.xlu0 %v2305
    %v2307 = vpop.xlane.xlu0 %2306
    %v2308 = vadd.f32 %v2230, %v2231
    %2309 = vadd.xlane.f32.xlu0 %v2308
    %v2310 = vpop.xlane.xlu0 %2309
    %v2311 = vadd.f32 %v2232, %v2233
    %2312 = vadd.xlane.f32.xlu0 %v2311
    %v2313 = vpop.xlane.xlu0 %2312
    %v2314 = vadd.f32 %v2234, %v2235
    %2315 = vadd.xlane.f32.xlu0 %v2314
    %v2316 = vpop.xlane.xlu0 %2315
    %v2317 = vadd.f32 %v2236, %v2237
    %2318 = vadd.xlane.f32.xlu0 %v2317
    %v2319 = vpop.xlane.xlu0 %2318
    %v2320 = vadd.f32 %v2238, %v2239
    %2321 = vadd.xlane.f32.xlu0 %v2320
    %v2322 = vpop.xlane.xlu0 %2321
    %v2323 = vadd.f32 %v2240, %v2241
    %2324 = vadd.xlane.f32.xlu0 %v2323
    %v2325 = vpop.xlane.xlu0 %2324
    %v2326 = vadd.f32 %v2242, %v2243
    %2327 = vadd.xlane.f32.xlu0 %v2326
    %v2328 = vpop.xlane.xlu0 %2327
    %v2329 = vadd.f32 %v2244, %v2245
    %2330 = vadd.xlane.f32.xlu0 %v2329
    %v2331 = vpop.xlane.xlu0 %2330
    %v2332 = vadd.f32 %v2246, %v2247
    %2333 = vadd.xlane.f32.xlu0 %v2332
    %v2334 = vpop.xlane.xlu0 %2333
    %v2335 = vadd.f32 %v2248, %v2249
    %2336 = vadd.xlane.f32.xlu0 %v2335
    %v2337 = vpop.xlane.xlu0 %2336
    %v2338 = vadd.f32 %v2250, %v2251
    %2339 = vadd.xlane.f32.xlu0 %v2338
    %v2340 = vpop.xlane.xlu0 %2339
    %v2341 = vadd.f32 %v2252, %v2253
    %2342 = vadd.xlane.f32.xlu0 %v2341
    %v2343 = vpop.xlane.xlu0 %2342
    %v2344 = vadd.f32 %v2254, %v2255
    %2345 = vadd.xlane.f32.xlu0 %v2344
    %v2346 = vpop.xlane.xlu0 %2345
    %v2347 = vadd.f32 %v2256, %v2257
    %2348 = vadd.xlane.f32.xlu0 %v2347
    %v2349 = vpop.xlane.xlu0 %2348
    %v2350 = vadd.f32 %v2258, %v2259
    %2351 = vadd.xlane.f32.xlu0 %v2350
    %v2352 = vpop.xlane.xlu0 %2351
    %v2353 = vadd.f32 %v2260, %v2261
    %2354 = vadd.xlane.f32.xlu0 %v2353
    %v2355 = vpop.xlane.xlu0 %2354
    %v2356 = vadd.f32 %v2262, %v2263
    %2357 = vadd.xlane.f32.xlu0 %v2356
    %v2358 = vpop.xlane.xlu0 %2357
    %v2359 = vadd.f32 %v2264, %v2265
    %2360 = vadd.xlane.f32.xlu0 %v2359
    %v2361 = vpop.xlane.xlu0 %2360
    %v2362 = vmax.f32 %v1957, %v1958
    %2363 = vmax.xlane.f32.xlu0 %v2362
    %v2364 = vpop.xlane.xlu0 %2363
    %v2365 = vmax.f32 %v1959, %v1960
    %2366 = vmax.xlane.f32.xlu0 %v2365
    %v2367 = vpop.xlane.xlu0 %2366
    %v2368 = vmax.f32 %v1961, %v1962
    %2369 = vmax.xlane.f32.xlu0 %v2368
    %v2370 = vpop.xlane.xlu0 %2369
    %v2371 = vmax.f32 %v1963, %v1964
    %2372 = vmax.xlane.f32.xlu0 %v2371
    %v2373 = vpop.xlane.xlu0 %2372
    %v2374 = vmax.f32 %v1965, %v1966
    %2375 = vmax.xlane.f32.xlu0 %v2374
    %v2376 = vpop.xlane.xlu0 %2375
    %v2377 = vmax.f32 %v1967, %v1968
    %2378 = vmax.xlane.f32.xlu0 %v2377
    %v2379 = vpop.xlane.xlu0 %2378
    %v2380 = vmax.f32 %v1969, %v1970
    %2381 = vmax.xlane.f32.xlu0 %v2380
    %v2382 = vpop.xlane.xlu0 %2381
    %v2383 = vmax.f32 %v1971, %v1972
    %2384 = vmax.xlane.f32.xlu0 %v2383
    %v2385 = vpop.xlane.xlu0 %2384
    %v2386 = vmax.f32 %v1973, %v1974
    %2387 = vmax.xlane.f32.xlu0 %v2386
    %v2388 = vpop.xlane.xlu0 %2387
    %v2389 = vmax.f32 %v1975, %v1976
    %2390 = vmax.xlane.f32.xlu0 %v2389
    %v2391 = vpop.xlane.xlu0 %2390
    %v2392 = vmax.f32 %v1977, %v1978
    %2393 = vmax.xlane.f32.xlu0 %v2392
    %v2394 = vpop.xlane.xlu0 %2393
    %v2395 = vmax.f32 %v1979, %v1980
    %2396 = vmax.xlane.f32.xlu0 %v2395
    %v2397 = vpop.xlane.xlu0 %2396
    %v2398 = vmax.f32 %v1981, %v1982
    %2399 = vmax.xlane.f32.xlu0 %v2398
    %v2400 = vpop.xlane.xlu0 %2399
    %v2401 = vmax.f32 %v1983, %v1984
    %2402 = vmax.xlane.f32.xlu0 %v2401
    %v2403 = vpop.xlane.xlu0 %2402
    %v2404 = vmax.f32 %v1985, %v1986
    %2405 = vmax.xlane.f32.xlu0 %v2404
    %v2406 = vpop.xlane.xlu0 %2405
    %v2407 = vmax.f32 %v1987, %v1988
    %2408 = vmax.xlane.f32.xlu0 %v2407
    %v2409 = vpop.xlane.xlu0 %2408
    %v2410 = vmax.f32 %v1989, %v1990
    %2411 = vmax.xlane.f32.xlu0 %v2410
    %v2412 = vpop.xlane.xlu0 %2411
    %v2413 = vmax.f32 %v1991, %v1992
    %2414 = vmax.xlane.f32.xlu0 %v2413
    %v2415 = vpop.xlane.xlu0 %2414
    %v2416 = vmax.f32 %v1993, %v1994
    %2417 = vmax.xlane.f32.xlu0 %v2416
    %v2418 = vpop.xlane.xlu0 %2417
    %v2419 = vmax.f32 %v1995, %v1996
    %2420 = vmax.xlane.f32.xlu0 %v2419
    %v2421 = vpop.xlane.xlu0 %2420
    %v2422 = vmax.f32 %v1997, %v1998
    %2423 = vmax.xlane.f32.xlu0 %v2422
    %v2424 = vpop.xlane.xlu0 %2423
    %v2425 = vmax.f32 %v1999, %v2000
    %2426 = vmax.xlane.f32.xlu0 %v2425
    %v2427 = vpop.xlane.xlu0 %2426
    %v2428 = vmax.f32 %v2001, %v2002
    %2429 = vmax.xlane.f32.xlu0 %v2428
    %v2430 = vpop.xlane.xlu0 %2429
    %v2431 = vmax.f32 %v2003, %v2004
    %2432 = vmax.xlane.f32.xlu0 %v2431
    %v2433 = vpop.xlane.xlu0 %2432
    %v2434 = vmax.f32 %v2005, %v2006
    %2435 = vmax.xlane.f32.xlu0 %v2434
    %v2436 = vpop.xlane.xlu0 %2435
    %v2437 = vmax.f32 %v2007, %v2008
    %2438 = vmax.xlane.f32.xlu0 %v2437
    %v2439 = vpop.xlane.xlu0 %2438
    %v2440 = vmax.f32 %v2009, %v2010
    %2441 = vmax.xlane.f32.xlu0 %v2440
    %v2442 = vpop.xlane.xlu0 %2441
    %v2443 = vmax.f32 %v2011, %v2012
    %2444 = vmax.xlane.f32.xlu0 %v2443
    %v2445 = vpop.xlane.xlu0 %2444
    %v2446 = vmax.f32 %v2013, %v2014
    %2447 = vmax.xlane.f32.xlu0 %v2446
    %v2448 = vpop.xlane.xlu0 %2447
    %v2449 = vmax.f32 %v2015, %v2016
    %2450 = vmax.xlane.f32.xlu0 %v2449
    %v2451 = vpop.xlane.xlu0 %2450
    %v2452 = vmax.f32 %v2017, %v2018
    %2453 = vmax.xlane.f32.xlu0 %v2452
    %v2454 = vpop.xlane.xlu0 %2453
    %v2455 = vmax.f32 %v2019, %v2020
    %2456 = vmax.xlane.f32.xlu0 %v2455
    %v2457 = vpop.xlane.xlu0 %2456
    %vm2458 = vcmask 7168
    %2459 = vst.msk [vmem:[%s14] sm:$0xff] %vm2458, %v2108
    %2460 = vst.msk [vmem:[%s14 + $0x8] sm:$0xff] %vm2458, %v2111
    %2461 = vst.msk [vmem:[%s14 + $0x10] sm:$0xff] %vm2458, %v2114
    %2462 = vst.msk [vmem:[%s14 + $0x18] sm:$0xff] %vm2458, %v2117
    %2463 = vst.msk [vmem:[%s14 + $0x20] sm:$0xff] %vm2458, %v2120
    %2464 = vst.msk [vmem:[%s14 + $0x28] sm:$0xff] %vm2458, %v2123
    %2465 = vst.msk [vmem:[%s14 + $0x30] sm:$0xff] %vm2458, %v2126
    %2466 = vst.msk [vmem:[%s14 + $0x38] sm:$0xff] %vm2458, %v2129
    %2467 = vst.msk [vmem:[%s14 + $0x40] sm:$0xff] %vm2458, %v2132
    %2468 = vst.msk [vmem:[%s14 + $0x48] sm:$0xff] %vm2458, %v2135
    %2469 = vst.msk [vmem:[%s14 + $0x50] sm:$0xff] %vm2458, %v2138
    %2470 = vst.msk [vmem:[%s14 + $0x58] sm:$0xff] %vm2458, %v2141
    %2471 = vst.msk [vmem:[%s14 + $0x60] sm:$0xff] %vm2458, %v2144
    %2472 = vst.msk [vmem:[%s14 + $0x68] sm:$0xff] %vm2458, %v2147
    %2473 = vst.msk [vmem:[%s14 + $0x70] sm:$0xff] %vm2458, %v2150
    %2474 = vst.msk [vmem:[%s14 + $0x78] sm:$0xff] %vm2458, %v2153
    %2475 = vst.msk [vmem:[%s14 + $0x80] sm:$0xff] %vm2458, %v2156
    %2476 = vst.msk [vmem:[%s14 + $0x88] sm:$0xff] %vm2458, %v2159
    %2477 = vst.msk [vmem:[%s14 + $0x90] sm:$0xff] %vm2458, %v2162
    %2478 = vst.msk [vmem:[%s14 + $0x98] sm:$0xff] %vm2458, %v2165
    %2479 = vst.msk [vmem:[%s14 + $0xa0] sm:$0xff] %vm2458, %v2168
    %2480 = vst.msk [vmem:[%s14 + $0xa8] sm:$0xff] %vm2458, %v2171
    %2481 = vst.msk [vmem:[%s14 + $0xb0] sm:$0xff] %vm2458, %v2174
    %2482 = vst.msk [vmem:[%s14 + $0xb8] sm:$0xff] %vm2458, %v2177
    %2483 = vst.msk [vmem:[%s14 + $0xc0] sm:$0xff] %vm2458, %v2180
    %2484 = vst.msk [vmem:[%s14 + $0xc8] sm:$0xff] %vm2458, %v2183
    %2485 = vst.msk [vmem:[%s14 + $0xd0] sm:$0xff] %vm2458, %v2186
    %2486 = vst.msk [vmem:[%s14 + $0xd8] sm:$0xff] %vm2458, %v2189
    %2487 = vst.msk [vmem:[%s14 + $0xe0] sm:$0xff] %vm2458, %v2192
    %2488 = vst.msk [vmem:[%s14 + $0xe8] sm:$0xff] %vm2458, %v2195
    %2489 = vst.msk [vmem:[%s14 + $0xf0] sm:$0xff] %vm2458, %v2198
    %2490 = vst.msk [vmem:[%s14 + $0xf8] sm:$0xff] %vm2458, %v2201
    %vm2491 = vcmask 15368
    %2492 = vst.msk [vmem:[%s14] sm:$0xff] %vm2491, %v2268
    %2493 = vst.msk [vmem:[%s14 + $0x8] sm:$0xff] %vm2491, %v2271
    %2494 = vst.msk [vmem:[%s14 + $0x10] sm:$0xff] %vm2491, %v2274
    %2495 = vst.msk [vmem:[%s14 + $0x18] sm:$0xff] %vm2491, %v2277
    %2496 = vst.msk [vmem:[%s14 + $0x20] sm:$0xff] %vm2491, %v2280
    %2497 = vst.msk [vmem:[%s14 + $0x28] sm:$0xff] %vm2491, %v2283
    %2498 = vst.msk [vmem:[%s14 + $0x30] sm:$0xff] %vm2491, %v2286
    %2499 = vst.msk [vmem:[%s14 + $0x38] sm:$0xff] %vm2491, %v2289
    %2500 = vst.msk [vmem:[%s14 + $0x40] sm:$0xff] %vm2491, %v2292
    %2501 = vst.msk [vmem:[%s14 + $0x48] sm:$0xff] %vm2491, %v2295
    %2502 = vst.msk [vmem:[%s14 + $0x50] sm:$0xff] %vm2491, %v2298
    %2503 = vst.msk [vmem:[%s14 + $0x58] sm:$0xff] %vm2491, %v2301
    %2504 = vst.msk [vmem:[%s14 + $0x60] sm:$0xff] %vm2491, %v2304
    %2505 = vst.msk [vmem:[%s14 + $0x68] sm:$0xff] %vm2491, %v2307
    %2506 = vst.msk [vmem:[%s14 + $0x70] sm:$0xff] %vm2491, %v2310
    %2507 = vst.msk [vmem:[%s14 + $0x78] sm:$0xff] %vm2491, %v2313
    %2508 = vst.msk [vmem:[%s14 + $0x80] sm:$0xff] %vm2491, %v2316
    %2509 = vst.msk [vmem:[%s14 + $0x88] sm:$0xff] %vm2491, %v2319
    %2510 = vst.msk [vmem:[%s14 + $0x90] sm:$0xff] %vm2491, %v2322
    %2511 = vst.msk [vmem:[%s14 + $0x98] sm:$0xff] %vm2491, %v2325
    %2512 = vst.msk [vmem:[%s14 + $0xa0] sm:$0xff] %vm2491, %v2328
    %2513 = vst.msk [vmem:[%s14 + $0xa8] sm:$0xff] %vm2491, %v2331
    %2514 = vst.msk [vmem:[%s14 + $0xb0] sm:$0xff] %vm2491, %v2334
    %2515 = vst.msk [vmem:[%s14 + $0xb8] sm:$0xff] %vm2491, %v2337
    %2516 = vst.msk [vmem:[%s14 + $0xc0] sm:$0xff] %vm2491, %v2340
    %2517 = vst.msk [vmem:[%s14 + $0xc8] sm:$0xff] %vm2491, %v2343
    %2518 = vst.msk [vmem:[%s14 + $0xd0] sm:$0xff] %vm2491, %v2346
    %2519 = vst.msk [vmem:[%s14 + $0xd8] sm:$0xff] %vm2491, %v2349
    %2520 = vst.msk [vmem:[%s14 + $0xe0] sm:$0xff] %vm2491, %v2352
    %2521 = vst.msk [vmem:[%s14 + $0xe8] sm:$0xff] %vm2491, %v2355
    %2522 = vst.msk [vmem:[%s14 + $0xf0] sm:$0xff] %vm2491, %v2358
    %2523 = vst.msk [vmem:[%s14 + $0xf8] sm:$0xff] %vm2491, %v2361
    %vm2524 = vcmask 23568
    %2525 = vst.msk [vmem:[%s14] sm:$0xff] %vm2524, %v2364
    %2526 = vst.msk [vmem:[%s14 + $0x8] sm:$0xff] %vm2524, %v2367
    %2527 = vst.msk [vmem:[%s14 + $0x10] sm:$0xff] %vm2524, %v2370
    %2528 = vst.msk [vmem:[%s14 + $0x18] sm:$0xff] %vm2524, %v2373
    %2529 = vst.msk [vmem:[%s14 + $0x20] sm:$0xff] %vm2524, %v2376
    %2530 = vst.msk [vmem:[%s14 + $0x28] sm:$0xff] %vm2524, %v2379
    %2531 = vst.msk [vmem:[%s14 + $0x30] sm:$0xff] %vm2524, %v2382
    %2532 = vst.msk [vmem:[%s14 + $0x38] sm:$0xff] %vm2524, %v2385
    %2533 = vst.msk [vmem:[%s14 + $0x40] sm:$0xff] %vm2524, %v2388
    %2534 = vst.msk [vmem:[%s14 + $0x48] sm:$0xff] %vm2524, %v2391
    %2535 = vst.msk [vmem:[%s14 + $0x50] sm:$0xff] %vm2524, %v2394
    %2536 = vst.msk [vmem:[%s14 + $0x58] sm:$0xff] %vm2524, %v2397
    %2537 = vst.msk [vmem:[%s14 + $0x60] sm:$0xff] %vm2524, %v2400
    %2538 = vst.msk [vmem:[%s14 + $0x68] sm:$0xff] %vm2524, %v2403
    %2539 = vst.msk [vmem:[%s14 + $0x70] sm:$0xff] %vm2524, %v2406
    %2540 = vst.msk [vmem:[%s14 + $0x78] sm:$0xff] %vm2524, %v2409
    %2541 = vst.msk [vmem:[%s14 + $0x80] sm:$0xff] %vm2524, %v2412
    %2542 = vst.msk [vmem:[%s14 + $0x88] sm:$0xff] %vm2524, %v2415
    %2543 = vst.msk [vmem:[%s14 + $0x90] sm:$0xff] %vm2524, %v2418
    %2544 = vst.msk [vmem:[%s14 + $0x98] sm:$0xff] %vm2524, %v2421
    %2545 = vst.msk [vmem:[%s14 + $0xa0] sm:$0xff] %vm2524, %v2424
    %2546 = vst.msk [vmem:[%s14 + $0xa8] sm:$0xff] %vm2524, %v2427
    %2547 = vst.msk [vmem:[%s14 + $0xb0] sm:$0xff] %vm2524, %v2430
    %2548 = vst.msk [vmem:[%s14 + $0xb8] sm:$0xff] %vm2524, %v2433
    %2549 = vst.msk [vmem:[%s14 + $0xc0] sm:$0xff] %vm2524, %v2436
    %2550 = vst.msk [vmem:[%s14 + $0xc8] sm:$0xff] %vm2524, %v2439
    %2551 = vst.msk [vmem:[%s14 + $0xd0] sm:$0xff] %vm2524, %v2442
    %2552 = vst.msk [vmem:[%s14 + $0xd8] sm:$0xff] %vm2524, %v2445
    %2553 = vst.msk [vmem:[%s14 + $0xe0] sm:$0xff] %vm2524, %v2448
    %2554 = vst.msk [vmem:[%s14 + $0xe8] sm:$0xff] %vm2524, %v2451
    %2555 = vst.msk [vmem:[%s14 + $0xf0] sm:$0xff] %vm2524, %v2454
    %2556 = vst.msk [vmem:[%s14 + $0xf8] sm:$0xff] %vm2524, %v2457
    %2557 = vmatprep.subr.mxu0 %v1164
    %2558 = vmatpush1.xpose.msra.mxu0 %v1163
    %2559 = vmatprep.subr.mxu0 0.0
    %2560 = vmatpush1.xpose.msra.mxu0 0.0
    %2561 = vmatprep.subr.mxu0 0.0
    %2562 = vmatpush1.xpose.msra.mxu0 0.0
    %2563 = vmatprep.subr.mxu0 0.0
    %2564 = vmatpush1.xpose.msra.mxu0 0.0
    %2565 = vmatprep.subr.mxu0 0.0
    %2566 = vmatpush1.xpose.msra.mxu0 0.0
    %2567 = vmatprep.subr.mxu0 0.0
    %2568 = vmatpush1.xpose.msra.mxu0 0.0
    %2569 = vmatprep.subr.mxu0 0.0
    %2570 = vmatpush1.xpose.msra.mxu0 0.0
    %2571 = vmatprep.subr.mxu0 0.0
    %2572 = vmatpush1.xpose.msra.mxu0 0.0
    %2573 = vmatprep.subr.mxu0 0.0
    %2574 = vmatpush1.xpose.msra.mxu0 0.0
    %2575 = vmatprep.subr.mxu0 0.0
    %2576 = vmatpush1.xpose.msra.mxu0 0.0
    %2577 = vmatprep.subr.mxu0 0.0
    %2578 = vmatpush1.xpose.msra.mxu0 0.0
    %2579 = vmatprep.subr.mxu0 0.0
    %2580 = vmatpush1.xpose.msra.mxu0 0.0
    %2581 = vmatprep.subr.mxu0 0.0
    %2582 = vmatpush1.xpose.msra.mxu0 0.0
    %2583 = vmatprep.subr.mxu0 0.0
    %2584 = vmatpush1.xpose.msra.mxu0 0.0
    %2585 = vmatprep.subr.mxu0 0.0
    %2586 = vmatpush1.xpose.msra.mxu0 0.0
    %2587 = vmatprep.subr.mxu0 0.0
    %2588 = vmatpush1.xpose.msra.mxu0 0.0
    %2589 = vmatprep.subr.mxu0 0.0
    %2590 = vmatpush1.xpose.msra.mxu0 0.0
    %2591 = vmatprep.subr.mxu0 0.0
    %2592 = vmatpush1.xpose.msra.mxu0 0.0
    %2593 = vmatprep.subr.mxu0 0.0
    %2594 = vmatpush1.xpose.msra.mxu0 0.0
    %2595 = vmatprep.subr.mxu0 0.0
    %2596 = vmatpush1.xpose.msra.mxu0 0.0
    %2597 = vmatprep.subr.mxu0 0.0
    %2598 = vmatpush1.xpose.msra.mxu0 0.0
    %2599 = vmatprep.subr.mxu0 0.0
    %2600 = vmatpush1.xpose.msra.mxu0 0.0
    %2601 = vmatprep.subr.mxu0 0.0
    %2602 = vmatpush1.xpose.msra.mxu0 0.0
    %2603 = vmatprep.subr.mxu0 0.0
    %2604 = vmatpush1.xpose.msra.mxu0 0.0
    %2605 = vmatprep.subr.mxu0 0.0
    %2606 = vmatpush1.xpose.msra.mxu0 0.0
    %2607 = vmatprep.subr.mxu0 0.0
    %2608 = vmatpush1.xpose.msra.mxu0 0.0
    %2609 = vmatprep.subr.mxu0 0.0
    %2610 = vmatpush1.xpose.msra.mxu0 0.0
    %2611 = vmatprep.subr.mxu0 0.0
    %2612 = vmatpush1.xpose.msra.mxu0 0.0
    %2613 = vmatprep.subr.mxu0 0.0
    %2614 = vmatpush1.xpose.msra.mxu0 0.0
    %2615 = vmatprep.subr.mxu0 0.0
    %2616 = vmatpush1.xpose.msra.mxu0 0.0
    %2617 = vmatprep.subr.mxu0 0.0
    %2618 = vmatpush1.xpose.msra.mxu0 0.0
    %2619 = vmatprep.subr.mxu0 0.0
    %2620 = vmatpush1.xpose.msra.mxu0 0.0
    %2621 = vmatprep.mubr.f32.mxu0 %v1958
    %2622 = vmatmul.mubr.f32.gmra.mrb[0].mxu0 %v1957
    %v2623 = vpop.f32.mrb[0].mxu0
    %v2624 = vadd.f32 0.0, %v2623
    %v2625 = vpop.f32.mrb[0].mxu0
    %2626 = vmatprep.mubr.f32.mxu0 %v1960
    %2627 = vmatmul.mubr.f32.gmra.mrb[0].mxu0 %v1959
    %v2628 = vpop.f32.mrb[0].mxu0
    %v2629 = vadd.f32 0.0, %v2628
    %v2630 = vpop.f32.mrb[0].mxu0
    %2631 = vdwg.mxu0
    %2632 = vmatprep.subr.mxu0 %v1166
    %2633 = vmatpush1.xpose.msra.mxu0 %v1165
    %2634 = vmatprep.subr.mxu0 0.0
    %2635 = vmatpush1.xpose.msra.mxu0 0.0
    %2636 = vmatprep.subr.mxu0 0.0
    %2637 = vmatpush1.xpose.msra.mxu0 0.0
    %2638 = vmatprep.subr.mxu0 0.0
    %2639 = vmatpush1.xpose.msra.mxu0 0.0
    %2640 = vmatprep.subr.mxu0 0.0
    %2641 = vmatpush1.xpose.msra.mxu0 0.0
    %2642 = vmatprep.subr.mxu0 0.0
    %2643 = vmatpush1.xpose.msra.mxu0 0.0
    %2644 = vmatprep.subr.mxu0 0.0
    %2645 = vmatpush1.xpose.msra.mxu0 0.0
    %2646 = vmatprep.subr.mxu0 0.0
    %2647 = vmatpush1.xpose.msra.mxu0 0.0
    %2648 = vmatprep.subr.mxu0 0.0
    %2649 = vmatpush1.xpose.msra.mxu0 0.0
    %2650 = vmatprep.subr.mxu0 0.0
    %2651 = vmatpush1.xpose.msra.mxu0 0.0
    %2652 = vmatprep.subr.mxu0 0.0
    %2653 = vmatpush1.xpose.msra.mxu0 0.0
    %2654 = vmatprep.subr.mxu0 0.0
    %2655 = vmatpush1.xpose.msra.mxu0 0.0
    %2656 = vmatprep.subr.mxu0 0.0
    %2657 = vmatpush1.xpose.msra.mxu0 0.0
    %2658 = vmatprep.subr.mxu0 0.0
    %2659 = vmatpush1.xpose.msra.mxu0 0.0
    %2660 = vmatprep.subr.mxu0 0.0
    %2661 = vmatpush1.xpose.msra.mxu0 0.0
    %2662 = vmatprep.subr.mxu0 0.0
    %2663 = vmatpush1.xpose.msra.mxu0 0.0
    %2664 = vmatprep.subr.mxu0 0.0
    %2665 = vmatpush1.xpose.msra.mxu0 0.0
    %2666 = vmatprep.subr.mxu0 0.0
    %2667 = vmatpush1.xpose.msra.mxu0 0.0
    %2668 = vmatprep.subr.mxu0 0.0
    %2669 = vmatpush1.xpose.msra.mxu0 0.0
    %2670 = vmatprep.subr.mxu0 0.0
    %2671 = vmatpush1.xpose.msra.mxu0 0.0
    %2672 = vmatprep.subr.mxu0 0.0
    %2673 = vmatpush1.xpose.msra.mxu0 0.0
    %2674 = vmatprep.subr.mxu0 0.0
    %2675 = vmatpush1.xpose.msra.mxu0 0.0
    %2676 = vmatprep.subr.mxu0 0.0
    %2677 = vmatpush1.xpose.msra.mxu0 0.0
    %2678 = vmatprep.subr.mxu0 0.0
    %2679 = vmatpush1.xpose.msra.mxu0 0.0
    %2680 = vmatprep.subr.mxu0 0.0
    %2681 = vmatpush1.xpose.msra.mxu0 0.0
    %2682 = vmatprep.subr.mxu0 0.0
    %2683 = vmatpush1.xpose.msra.mxu0 0.0
    %2684 = vmatprep.subr.mxu0 0.0
    %2685 = vmatpush1.xpose.msra.mxu0 0.0
    %2686 = vmatprep.subr.mxu0 0.0
    %2687 = vmatpush1.xpose.msra.mxu0 0.0
    %2688 = vmatprep.subr.mxu0 0.0
    %2689 = vmatpush1.xpose.msra.mxu0 0.0
    %2690 = vmatprep.subr.mxu0 0.0
    %2691 = vmatpush1.xpose.msra.mxu0 0.0
    %2692 = vmatprep.subr.mxu0 0.0
    %2693 = vmatpush1.xpose.msra.mxu0 0.0
    %2694 = vmatprep.subr.mxu0 0.0
    %2695 = vmatpush1.xpose.msra.mxu0 0.0
    %2696 = vmatprep.mubr.f32.mxu0 %v1962
    %2697 = vmatmul.mubr.f32.gmra.mrb[0].mxu0 %v1961
    %v2698 = vpop.f32.mrb[0].mxu0
    %v2699 = vadd.f32 0.0, %v2698
    %v2700 = vpop.f32.mrb[0].mxu0
    %2701 = vmatprep.mubr.f32.mxu0 %v1964
    %2702 = vmatmul.mubr.f32.gmra.mrb[0].mxu0 %v1963
    %v2703 = vpop.f32.mrb[0].mxu0
    %v2704 = vadd.f32 0.0, %v2703
    %v2705 = vpop.f32.mrb[0].mxu0
    %2706 = vdwg.mxu0
    %2707 = vmatprep.subr.mxu0 %v1168
    %2708 = vmatpush1.xpose.msra.mxu0 %v1167
    %2709 = vmatprep.subr.mxu0 0.0
    %2710 = vmatpush1.xpose.msra.mxu0 0.0
    %2711 = vmatprep.subr.mxu0 0.0
    %2712 = vmatpush1.xpose.msra.mxu0 0.0
    %2713 = vmatprep.subr.mxu0 0.0
    %2714 = vmatpush1.xpose.msra.mxu0 0.0
    %2715 = vmatprep.subr.mxu0 0.0
    %2716 = vmatpush1.xpose.msra.mxu0 0.0
    %2717 = vmatprep.subr.mxu0 0.0
    %2718 = vmatpush1.xpose.msra.mxu0 0.0
    %2719 = vmatprep.subr.mxu0 0.0
    %2720 = vmatpush1.xpose.msra.mxu0 0.0
    %2721 = vmatprep.subr.mxu0 0.0
    %2722 = vmatpush1.xpose.msra.mxu0 0.0
    %2723 = vmatprep.subr.mxu0 0.0
    %2724 = vmatpush1.xpose.msra.mxu0 0.0
    %2725 = vmatprep.subr.mxu0 0.0
    %2726 = vmatpush1.xpose.msra.mxu0 0.0
    %2727 = vmatprep.subr.mxu0 0.0
    %2728 = vmatpush1.xpose.msra.mxu0 0.0
    %2729 = vmatprep.subr.mxu0 0.0
    %2730 = vmatpush1.xpose.msra.mxu0 0.0
    %2731 = vmatprep.subr.mxu0 0.0
    %2732 = vmatpush1.xpose.msra.mxu0 0.0
    %2733 = vmatprep.subr.mxu0 0.0
    %2734 = vmatpush1.xpose.msra.mxu0 0.0
    %2735 = vmatprep.subr.mxu0 0.0
    %2736 = vmatpush1.xpose.msra.mxu0 0.0
    %2737 = vmatprep.subr.mxu0 0.0
    %2738 = vmatpush1.xpose.msra.mxu0 0.0
    %2739 = vmatprep.subr.mxu0 0.0
    %2740 = vmatpush1.xpose.msra.mxu0 0.0
    %2741 = vmatprep.subr.mxu0 0.0
    %2742 = vmatpush1.xpose.msra.mxu0 0.0
    %2743 = vmatprep.subr.mxu0 0.0
    %2744 = vmatpush1.xpose.msra.mxu0 0.0
    %2745 = vmatprep.subr.mxu0 0.0
    %2746 = vmatpush1.xpose.msra.mxu0 0.0
    %2747 = vmatprep.subr.mxu0 0.0
    %2748 = vmatpush1.xpose.msra.mxu0 0.0
    %2749 = vmatprep.subr.mxu0 0.0
    %2750 = vmatpush1.xpose.msra.mxu0 0.0
    %2751 = vmatprep.subr.mxu0 0.0
    %2752 = vmatpush1.xpose.msra.mxu0 0.0
    %2753 = vmatprep.subr.mxu0 0.0
    %2754 = vmatpush1.xpose.msra.mxu0 0.0
    %2755 = vmatprep.subr.mxu0 0.0
    %2756 = vmatpush1.xpose.msra.mxu0 0.0
    %2757 = vmatprep.subr.mxu0 0.0
    %2758 = vmatpush1.xpose.msra.mxu0 0.0
    %2759 = vmatprep.subr.mxu0 0.0
    %2760 = vmatpush1.xpose.msra.mxu0 0.0
    %2761 = vmatprep.subr.mxu0 0.0
    %2762 = vmatpush1.xpose.msra.mxu0 0.0
    %2763 = vmatprep.subr.mxu0 0.0
    %2764 = vmatpush1.xpose.msra.mxu0 0.0
    %2765 = vmatprep.subr.mxu0 0.0
    %2766 = vmatpush1.xpose.msra.mxu0 0.0
    %2767 = vmatprep.subr.mxu0 0.0
    %2768 = vmatpush1.xpose.msra.mxu0 0.0
    %2769 = vmatprep.subr.mxu0 0.0
    %2770 = vmatpush1.xpose.msra.mxu0 0.0
    %2771 = vmatprep.mubr.f32.mxu0 %v1966
    %2772 = vmatmul.mubr.f32.gmra.mrb[0].mxu0 %v1965
    %v2773 = vpop.f32.mrb[0].mxu0
    %v2774 = vadd.f32 0.0, %v2773
    %v2775 = vpop.f32.mrb[0].mxu0
    %2776 = vmatprep.mubr.f32.mxu0 %v1968
    %2777 = vmatmul.mubr.f32.gmra.mrb[0].mxu0 %v1967
    %v2778 = vpop.f32.mrb[0].mxu0
    %v2779 = vadd.f32 0.0, %v2778
    %v2780 = vpop.f32.mrb[0].mxu0
    %2781 = vdwg.mxu0
    %2782 = vmatprep.subr.mxu0 %v1170
    %2783 = vmatpush1.xpose.msra.mxu0 %v1169
    %2784 = vmatprep.subr.mxu0 0.0
    %2785 = vmatpush1.xpose.msra.mxu0 0.0
    %2786 = vmatprep.subr.mxu0 0.0
    %2787 = vmatpush1.xpose.msra.mxu0 0.0
    %2788 = vmatprep.subr.mxu0 0.0
    %2789 = vmatpush1.xpose.msra.mxu0 0.0
    %2790 = vmatprep.subr.mxu0 0.0
    %2791 = vmatpush1.xpose.msra.mxu0 0.0
    %2792 = vmatprep.subr.mxu0 0.0
    %2793 = vmatpush1.xpose.msra.mxu0 0.0
    %2794 = vmatprep.subr.mxu0 0.0
    %2795 = vmatpush1.xpose.msra.mxu0 0.0
    %2796 = vmatprep.subr.mxu0 0.0
    %2797 = vmatpush1.xpose.msra.mxu0 0.0
    %2798 = vmatprep.subr.mxu0 0.0
    %2799 = vmatpush1.xpose.msra.mxu0 0.0
    %2800 = vmatprep.subr.mxu0 0.0
    %2801 = vmatpush1.xpose.msra.mxu0 0.0
    %2802 = vmatprep.subr.mxu0 0.0
    %2803 = vmatpush1.xpose.msra.mxu0 0.0
    %2804 = vmatprep.subr.mxu0 0.0
    %2805 = vmatpush1.xpose.msra.mxu0 0.0
    %2806 = vmatprep.subr.mxu0 0.0
    %2807 = vmatpush1.xpose.msra.mxu0 0.0
    %2808 = vmatprep.subr.mxu0 0.0
    %2809 = vmatpush1.xpose.msra.mxu0 0.0
    %2810 = vmatprep.subr.mxu0 0.0
    %2811 = vmatpush1.xpose.msra.mxu0 0.0
    %2812 = vmatprep.subr.mxu0 0.0
    %2813 = vmatpush1.xpose.msra.mxu0 0.0
    %2814 = vmatprep.subr.mxu0 0.0
    %2815 = vmatpush1.xpose.msra.mxu0 0.0
    %2816 = vmatprep.subr.mxu0 0.0
    %2817 = vmatpush1.xpose.msra.mxu0 0.0
    %2818 = vmatprep.subr.mxu0 0.0
    %2819 = vmatpush1.xpose.msra.mxu0 0.0
    %2820 = vmatprep.subr.mxu0 0.0
    %2821 = vmatpush1.xpose.msra.mxu0 0.0
    %2822 = vmatprep.subr.mxu0 0.0
    %2823 = vmatpush1.xpose.msra.mxu0 0.0
    %2824 = vmatprep.subr.mxu0 0.0
    %2825 = vmatpush1.xpose.msra.mxu0 0.0
    %2826 = vmatprep.subr.mxu0 0.0
    %2827 = vmatpush1.xpose.msra.mxu0 0.0
    %2828 = vmatprep.subr.mxu0 0.0
    %2829 = vmatpush1.xpose.msra.mxu0 0.0
    %2830 = vmatprep.subr.mxu0 0.0
    %2831 = vmatpush1.xpose.msra.mxu0 0.0
    %2832 = vmatprep.subr.mxu0 0.0
    %2833 = vmatpush1.xpose.msra.mxu0 0.0
    %2834 = vmatprep.subr.mxu0 0.0
    %2835 = vmatpush1.xpose.msra.mxu0 0.0
    %2836 = vmatprep.subr.mxu0 0.0
    %2837 = vmatpush1.xpose.msra.mxu0 0.0
    %2838 = vmatprep.subr.mxu0 0.0
    %2839 = vmatpush1.xpose.msra.mxu0 0.0
    %2840 = vmatprep.subr.mxu0 0.0
    %2841 = vmatpush1.xpose.msra.mxu0 0.0
    %2842 = vmatprep.subr.mxu0 0.0
    %2843 = vmatpush1.xpose.msra.mxu0 0.0
    %2844 = vmatprep.subr.mxu0 0.0
    %2845 = vmatpush1.xpose.msra.mxu0 0.0
    %2846 = vmatprep.mubr.f32.mxu0 %v1970
    %2847 = vmatmul.mubr.f32.gmra.mrb[0].mxu0 %v1969
    %v2848 = vpop.f32.mrb[0].mxu0
    %v2849 = vadd.f32 0.0, %v2848
    %v2850 = vpop.f32.mrb[0].mxu0
    %2851 = vmatprep.mubr.f32.mxu0 %v1972
    %2852 = vmatmul.mubr.f32.gmra.mrb[0].mxu0 %v1971
    %v2853 = vpop.f32.mrb[0].mxu0
    %v2854 = vadd.f32 0.0, %v2853
    %v2855 = vpop.f32.mrb[0].mxu0
    %2856 = vdwg.mxu0
    %2857 = vmatprep.subr.mxu0 %v1172
    %2858 = vmatpush1.xpose.msra.mxu0 %v1171
    %2859 = vmatprep.subr.mxu0 0.0
    %2860 = vmatpush1.xpose.msra.mxu0 0.0
    %2861 = vmatprep.subr.mxu0 0.0
    %2862 = vmatpush1.xpose.msra.mxu0 0.0
    %2863 = vmatprep.subr.mxu0 0.0
    %2864 = vmatpush1.xpose.msra.mxu0 0.0
    %2865 = vmatprep.subr.mxu0 0.0
    %2866 = vmatpush1.xpose.msra.mxu0 0.0
    %2867 = vmatprep.subr.mxu0 0.0
    %2868 = vmatpush1.xpose.msra.mxu0 0.0
    %2869 = vmatprep.subr.mxu0 0.0
    %2870 = vmatpush1.xpose.msra.mxu0 0.0
    %2871 = vmatprep.subr.mxu0 0.0
    %2872 = vmatpush1.xpose.msra.mxu0 0.0
    %2873 = vmatprep.subr.mxu0 0.0
    %2874 = vmatpush1.xpose.msra.mxu0 0.0
    %2875 = vmatprep.subr.mxu0 0.0
    %2876 = vmatpush1.xpose.msra.mxu0 0.0
    %2877 = vmatprep.subr.mxu0 0.0
    %2878 = vmatpush1.xpose.msra.mxu0 0.0
    %2879 = vmatprep.subr.mxu0 0.0
    %2880 = vmatpush1.xpose.msra.mxu0 0.0
    %2881 = vmatprep.subr.mxu0 0.0
    %2882 = vmatpush1.xpose.msra.mxu0 0.0
    %2883 = vmatprep.subr.mxu0 0.0
    %2884 = vmatpush1.xpose.msra.mxu0 0.0
    %2885 = vmatprep.subr.mxu0 0.0
    %2886 = vmatpush1.xpose.msra.mxu0 0.0
    %2887 = vmatprep.subr.mxu0 0.0
    %2888 = vmatpush1.xpose.msra.mxu0 0.0
    %2889 = vmatprep.subr.mxu0 0.0
    %2890 = vmatpush1.xpose.msra.mxu0 0.0
    %2891 = vmatprep.subr.mxu0 0.0
    %2892 = vmatpush1.xpose.msra.mxu0 0.0
    %2893 = vmatprep.subr.mxu0 0.0
    %2894 = vmatpush1.xpose.msra.mxu0 0.0
    %2895 = vmatprep.subr.mxu0 0.0
    %2896 = vmatpush1.xpose.msra.mxu0 0.0
    %2897 = vmatprep.subr.mxu0 0.0
    %2898 = vmatpush1.xpose.msra.mxu0 0.0
    %2899 = vmatprep.subr.mxu0 0.0
    %2900 = vmatpush1.xpose.msra.mxu0 0.0
    %2901 = vmatprep.subr.mxu0 0.0
    %2902 = vmatpush1.xpose.msra.mxu0 0.0
    %2903 = vmatprep.subr.mxu0 0.0
    %2904 = vmatpush1.xpose.msra.mxu0 0.0
    %2905 = vmatprep.subr.mxu0 0.0
    %2906 = vmatpush1.xpose.msra.mxu0 0.0
    %2907 = vmatprep.subr.mxu0 0.0
    %2908 = vmatpush1.xpose.msra.mxu0 0.0
    %2909 = vmatprep.subr.mxu0 0.0
    %2910 = vmatpush1.xpose.msra.mxu0 0.0
    %2911 = vmatprep.subr.mxu0 0.0
    %2912 = vmatpush1.xpose.msra.mxu0 0.0
    %2913 = vmatprep.subr.mxu0 0.0
    %2914 = vmatpush1.xpose.msra.mxu0 0.0
    %2915 = vmatprep.subr.mxu0 0.0
    %2916 = vmatpush1.xpose.msra.mxu0 0.0
    %2917 = vmatprep.subr.mxu0 0.0
    %2918 = vmatpush1.xpose.msra.mxu0 0.0
    %2919 = vmatprep.subr.mxu0 0.0
    %2920 = vmatpush1.xpose.msra.mxu0 0.0
    %2921 = vmatprep.mubr.f32.mxu0 %v1974
    %2922 = vmatmul.mubr.f32.gmra.mrb[0].mxu0 %v1973
    %v2923 = vpop.f32.mrb[0].mxu0
    %v2924 = vadd.f32 0.0, %v2923
    %v2925 = vpop.f32.mrb[0].mxu0
    %2926 = vmatprep.mubr.f32.mxu0 %v1976
    %2927 = vmatmul.mubr.f32.gmra.mrb[0].mxu0 %v1975
    %v2928 = vpop.f32.mrb[0].mxu0
    %v2929 = vadd.f32 0.0, %v2928
    %v2930 = vpop.f32.mrb[0].mxu0
    %2931 = vdwg.mxu0
    %2932 = vmatprep.subr.mxu0 %v1174
    %2933 = vmatpush1.xpose.msra.mxu0 %v1173
    %2934 = vmatprep.subr.mxu0 0.0
    %2935 = vmatpush1.xpose.msra.mxu0 0.0
    %2936 = vmatprep.subr.mxu0 0.0
    %2937 = vmatpush1.xpose.msra.mxu0 0.0
    %2938 = vmatprep.subr.mxu0 0.0
    %2939 = vmatpush1.xpose.msra.mxu0 0.0
    %2940 = vmatprep.subr.mxu0 0.0
    %2941 = vmatpush1.xpose.msra.mxu0 0.0
    %2942 = vmatprep.subr.mxu0 0.0
    %2943 = vmatpush1.xpose.msra.mxu0 0.0
    %2944 = vmatprep.subr.mxu0 0.0
    %2945 = vmatpush1.xpose.msra.mxu0 0.0
    %2946 = vmatprep.subr.mxu0 0.0
    %2947 = vmatpush1.xpose.msra.mxu0 0.0
    %2948 = vmatprep.subr.mxu0 0.0
    %2949 = vmatpush1.xpose.msra.mxu0 0.0
    %2950 = vmatprep.subr.mxu0 0.0
    %2951 = vmatpush1.xpose.msra.mxu0 0.0
    %2952 = vmatprep.subr.mxu0 0.0
    %2953 = vmatpush1.xpose.msra.mxu0 0.0
    %2954 = vmatprep.subr.mxu0 0.0
    %2955 = vmatpush1.xpose.msra.mxu0 0.0
    %2956 = vmatprep.subr.mxu0 0.0
    %2957 = vmatpush1.xpose.msra.mxu0 0.0
    %2958 = vmatprep.subr.mxu0 0.0
    %2959 = vmatpush1.xpose.msra.mxu0 0.0
    %2960 = vmatprep.subr.mxu0 0.0
    %2961 = vmatpush1.xpose.msra.mxu0 0.0
    %2962 = vmatprep.subr.mxu0 0.0
    %2963 = vmatpush1.xpose.msra.mxu0 0.0
    %2964 = vmatprep.subr.mxu0 0.0
    %2965 = vmatpush1.xpose.msra.mxu0 0.0
    %2966 = vmatprep.subr.mxu0 0.0
    %2967 = vmatpush1.xpose.msra.mxu0 0.0
    %2968 = vmatprep.subr.mxu0 0.0
    %2969 = vmatpush1.xpose.msra.mxu0 0.0
    %2970 = vmatprep.subr.mxu0 0.0
    %2971 = vmatpush1.xpose.msra.mxu0 0.0
    %2972 = vmatprep.subr.mxu0 0.0
    %2973 = vmatpush1.xpose.msra.mxu0 0.0
    %2974 = vmatprep.subr.mxu0 0.0
    %2975 = vmatpush1.xpose.msra.mxu0 0.0
    %2976 = vmatprep.subr.mxu0 0.0
    %2977 = vmatpush1.xpose.msra.mxu0 0.0
    %2978 = vmatprep.subr.mxu0 0.0
    %2979 = vmatpush1.xpose.msra.mxu0 0.0
    %2980 = vmatprep.subr.mxu0 0.0
    %2981 = vmatpush1.xpose.msra.mxu0 0.0
    %2982 = vmatprep.subr.mxu0 0.0
    %2983 = vmatpush1.xpose.msra.mxu0 0.0
    %2984 = vmatprep.subr.mxu0 0.0
    %2985 = vmatpush1.xpose.msra.mxu0 0.0
    %2986 = vmatprep.subr.mxu0 0.0
    %2987 = vmatpush1.xpose.msra.mxu0 0.0
    %2988 = vmatprep.subr.mxu0 0.0
    %2989 = vmatpush1.xpose.msra.mxu0 0.0
    %2990 = vmatprep.subr.mxu0 0.0
    %2991 = vmatpush1.xpose.msra.mxu0 0.0
    %2992 = vmatprep.subr.mxu0 0.0
    %2993 = vmatpush1.xpose.msra.mxu0 0.0
    %2994 = vmatprep.subr.mxu0 0.0
    %2995 = vmatpush1.xpose.msra.mxu0 0.0
    %2996 = vmatprep.mubr.f32.mxu0 %v1978
    %2997 = vmatmul.mubr.f32.gmra.mrb[0].mxu0 %v1977
    %v2998 = vpop.f32.mrb[0].mxu0
    %v2999 = vadd.f32 0.0, %v2998
    %v3000 = vpop.f32.mrb[0].mxu0
    %3001 = vmatprep.mubr.f32.mxu0 %v1980
    %3002 = vmatmul.mubr.f32.gmra.mrb[0].mxu0 %v1979
    %v3003 = vpop.f32.mrb[0].mxu0
    %v3004 = vadd.f32 0.0, %v3003
    %v3005 = vpop.f32.mrb[0].mxu0
    %3006 = vdwg.mxu0
    %3007 = vmatprep.subr.mxu0 %v1176
    %3008 = vmatpush1.xpose.msra.mxu0 %v1175
    %3009 = vmatprep.subr.mxu0 0.0
    %3010 = vmatpush1.xpose.msra.mxu0 0.0
    %3011 = vmatprep.subr.mxu0 0.0
    %3012 = vmatpush1.xpose.msra.mxu0 0.0
    %3013 = vmatprep.subr.mxu0 0.0
    %3014 = vmatpush1.xpose.msra.mxu0 0.0
    %3015 = vmatprep.subr.mxu0 0.0
    %3016 = vmatpush1.xpose.msra.mxu0 0.0
    %3017 = vmatprep.subr.mxu0 0.0
    %3018 = vmatpush1.xpose.msra.mxu0 0.0
    %3019 = vmatprep.subr.mxu0 0.0
    %3020 = vmatpush1.xpose.msra.mxu0 0.0
    %3021 = vmatprep.subr.mxu0 0.0
    %3022 = vmatpush1.xpose.msra.mxu0 0.0
    %3023 = vmatprep.subr.mxu0 0.0
    %3024 = vmatpush1.xpose.msra.mxu0 0.0
    %3025 = vmatprep.subr.mxu0 0.0
    %3026 = vmatpush1.xpose.msra.mxu0 0.0
    %3027 = vmatprep.subr.mxu0 0.0
    %3028 = vmatpush1.xpose.msra.mxu0 0.0
    %3029 = vmatprep.subr.mxu0 0.0
    %3030 = vmatpush1.xpose.msra.mxu0 0.0
    %3031 = vmatprep.subr.mxu0 0.0
    %3032 = vmatpush1.xpose.msra.mxu0 0.0
    %3033 = vmatprep.subr.mxu0 0.0
    %3034 = vmatpush1.xpose.msra.mxu0 0.0
    %3035 = vmatprep.subr.mxu0 0.0
    %3036 = vmatpush1.xpose.msra.mxu0 0.0
    %3037 = vmatprep.subr.mxu0 0.0
    %3038 = vmatpush1.xpose.msra.mxu0 0.0
    %3039 = vmatprep.subr.mxu0 0.0
    %3040 = vmatpush1.xpose.msra.mxu0 0.0
    %3041 = vmatprep.subr.mxu0 0.0
    %3042 = vmatpush1.xpose.msra.mxu0 0.0
    %3043 = vmatprep.subr.mxu0 0.0
    %3044 = vmatpush1.xpose.msra.mxu0 0.0
    %3045 = vmatprep.subr.mxu0 0.0
    %3046 = vmatpush1.xpose.msra.mxu0 0.0
    %3047 = vmatprep.subr.mxu0 0.0
    %3048 = vmatpush1.xpose.msra.mxu0 0.0
    %3049 = vmatprep.subr.mxu0 0.0
    %3050 = vmatpush1.xpose.msra.mxu0 0.0
    %3051 = vmatprep.subr.mxu0 0.0
    %3052 = vmatpush1.xpose.msra.mxu0 0.0
    %3053 = vmatprep.subr.mxu0 0.0
    %3054 = vmatpush1.xpose.msra.mxu0 0.0
    %3055 = vmatprep.subr.mxu0 0.0
    %3056 = vmatpush1.xpose.msra.mxu0 0.0
    %3057 = vmatprep.subr.mxu0 0.0
    %3058 = vmatpush1.xpose.msra.mxu0 0.0
    %3059 = vmatprep.subr.mxu0 0.0
    %3060 = vmatpush1.xpose.msra.mxu0 0.0
    %3061 = vmatprep.subr.mxu0 0.0
    %3062 = vmatpush1.xpose.msra.mxu0 0.0
    %3063 = vmatprep.subr.mxu0 0.0
    %3064 = vmatpush1.xpose.msra.mxu0 0.0
    %3065 = vmatprep.subr.mxu0 0.0
    %3066 = vmatpush1.xpose.msra.mxu0 0.0
    %3067 = vmatprep.subr.mxu0 0.0
    %3068 = vmatpush1.xpose.msra.mxu0 0.0
    %3069 = vmatprep.subr.mxu0 0.0
    %3070 = vmatpush1.xpose.msra.mxu0 0.0
    %3071 = vmatprep.mubr.f32.mxu0 %v1982
    %3072 = vmatmul.mubr.f32.gmra.mrb[0].mxu0 %v1981
    %v3073 = vpop.f32.mrb[0].mxu0
    %v3074 = vadd.f32 0.0, %v3073
    %v3075 = vpop.f32.mrb[0].mxu0
    %3076 = vmatprep.mubr.f32.mxu0 %v1984
    %3077 = vmatmul.mubr.f32.gmra.mrb[0].mxu0 %v1983
    %v3078 = vpop.f32.mrb[0].mxu0
    %v3079 = vadd.f32 0.0, %v3078
    %v3080 = vpop.f32.mrb[0].mxu0
    %3081 = vdwg.mxu0
    %3082 = vmatprep.subr.mxu0 %v1178
    %3083 = vmatpush1.xpose.msra.mxu0 %v1177
    %3084 = vmatprep.subr.mxu0 0.0
    %3085 = vmatpush1.xpose.msra.mxu0 0.0
    %3086 = vmatprep.subr.mxu0 0.0
    %3087 = vmatpush1.xpose.msra.mxu0 0.0
    %3088 = vmatprep.subr.mxu0 0.0
    %3089 = vmatpush1.xpose.msra.mxu0 0.0
    %3090 = vmatprep.subr.mxu0 0.0
    %3091 = vmatpush1.xpose.msra.mxu0 0.0
    %3092 = vmatprep.subr.mxu0 0.0
    %3093 = vmatpush1.xpose.msra.mxu0 0.0
    %3094 = vmatprep.subr.mxu0 0.0
    %3095 = vmatpush1.xpose.msra.mxu0 0.0
    %3096 = vmatprep.subr.mxu0 0.0
    %3097 = vmatpush1.xpose.msra.mxu0 0.0
    %3098 = vmatprep.subr.mxu0 0.0
    %3099 = vmatpush1.xpose.msra.mxu0 0.0
    %3100 = vmatprep.subr.mxu0 0.0
    %3101 = vmatpush1.xpose.msra.mxu0 0.0
    %3102 = vmatprep.subr.mxu0 0.0
    %3103 = vmatpush1.xpose.msra.mxu0 0.0
    %3104 = vmatprep.subr.mxu0 0.0
    %3105 = vmatpush1.xpose.msra.mxu0 0.0
    %3106 = vmatprep.subr.mxu0 0.0
    %3107 = vmatpush1.xpose.msra.mxu0 0.0
    %3108 = vmatprep.subr.mxu0 0.0
    %3109 = vmatpush1.xpose.msra.mxu0 0.0
    %3110 = vmatprep.subr.mxu0 0.0
    %3111 = vmatpush1.xpose.msra.mxu0 0.0
    %3112 = vmatprep.subr.mxu0 0.0
    %3113 = vmatpush1.xpose.msra.mxu0 0.0
    %3114 = vmatprep.subr.mxu0 0.0
    %3115 = vmatpush1.xpose.msra.mxu0 0.0
    %3116 = vmatprep.subr.mxu0 0.0
    %3117 = vmatpush1.xpose.msra.mxu0 0.0
    %3118 = vmatprep.subr.mxu0 0.0
    %3119 = vmatpush1.xpose.msra.mxu0 0.0
    %3120 = vmatprep.subr.mxu0 0.0
    %3121 = vmatpush1.xpose.msra.mxu0 0.0
    %3122 = vmatprep.subr.mxu0 0.0
    %3123 = vmatpush1.xpose.msra.mxu0 0.0
    %3124 = vmatprep.subr.mxu0 0.0
    %3125 = vmatpush1.xpose.msra.mxu0 0.0
    %3126 = vmatprep.subr.mxu0 0.0
    %3127 = vmatpush1.xpose.msra.mxu0 0.0
    %3128 = vmatprep.subr.mxu0 0.0
    %3129 = vmatpush1.xpose.msra.mxu0 0.0
    %3130 = vmatprep.subr.mxu0 0.0
    %3131 = vmatpush1.xpose.msra.mxu0 0.0
    %3132 = vmatprep.subr.mxu0 0.0
    %3133 = vmatpush1.xpose.msra.mxu0 0.0
    %3134 = vmatprep.subr.mxu0 0.0
    %3135 = vmatpush1.xpose.msra.mxu0 0.0
    %3136 = vmatprep.subr.mxu0 0.0
    %3137 = vmatpush1.xpose.msra.mxu0 0.0
    %3138 = vmatprep.subr.mxu0 0.0
    %3139 = vmatpush1.xpose.msra.mxu0 0.0
    %3140 = vmatprep.subr.mxu0 0.0
    %3141 = vmatpush1.xpose.msra.mxu0 0.0
    %3142 = vmatprep.subr.mxu0 0.0
    %3143 = vmatpush1.xpose.msra.mxu0 0.0
    %3144 = vmatprep.subr.mxu0 0.0
    %3145 = vmatpush1.xpose.msra.mxu0 0.0
    %3146 = vmatprep.mubr.f32.mxu0 %v1986
    %3147 = vmatmul.mubr.f32.gmra.mrb[0].mxu0 %v1985
    %v3148 = vpop.f32.mrb[0].mxu0
    %v3149 = vadd.f32 0.0, %v3148
    %v3150 = vpop.f32.mrb[0].mxu0
    %3151 = vmatprep.mubr.f32.mxu0 %v1988
    %3152 = vmatmul.mubr.f32.gmra.mrb[0].mxu0 %v1987
    %v3153 = vpop.f32.mrb[0].mxu0
    %v3154 = vadd.f32 0.0, %v3153
    %v3155 = vpop.f32.mrb[0].mxu0
    %3156 = vdwg.mxu0
    %3157 = vmatprep.subr.mxu0 %v1180
    %3158 = vmatpush1.xpose.msra.mxu0 %v1179
    %3159 = vmatprep.subr.mxu0 0.0
    %3160 = vmatpush1.xpose.msra.mxu0 0.0
    %3161 = vmatprep.subr.mxu0 0.0
    %3162 = vmatpush1.xpose.msra.mxu0 0.0
    %3163 = vmatprep.subr.mxu0 0.0
    %3164 = vmatpush1.xpose.msra.mxu0 0.0
    %3165 = vmatprep.subr.mxu0 0.0
    %3166 = vmatpush1.xpose.msra.mxu0 0.0
    %3167 = vmatprep.subr.mxu0 0.0
    %3168 = vmatpush1.xpose.msra.mxu0 0.0
    %3169 = vmatprep.subr.mxu0 0.0
    %3170 = vmatpush1.xpose.msra.mxu0 0.0
    %3171 = vmatprep.subr.mxu0 0.0
    %3172 = vmatpush1.xpose.msra.mxu0 0.0
    %3173 = vmatprep.subr.mxu0 0.0
    %3174 = vmatpush1.xpose.msra.mxu0 0.0
    %3175 = vmatprep.subr.mxu0 0.0
    %3176 = vmatpush1.xpose.msra.mxu0 0.0
    %3177 = vmatprep.subr.mxu0 0.0
    %3178 = vmatpush1.xpose.msra.mxu0 0.0
    %3179 = vmatprep.subr.mxu0 0.0
    %3180 = vmatpush1.xpose.msra.mxu0 0.0
    %3181 = vmatprep.subr.mxu0 0.0
    %3182 = vmatpush1.xpose.msra.mxu0 0.0
    %3183 = vmatprep.subr.mxu0 0.0
    %3184 = vmatpush1.xpose.msra.mxu0 0.0
    %3185 = vmatprep.subr.mxu0 0.0
    %3186 = vmatpush1.xpose.msra.mxu0 0.0
    %3187 = vmatprep.subr.mxu0 0.0
    %3188 = vmatpush1.xpose.msra.mxu0 0.0
    %3189 = vmatprep.subr.mxu0 0.0
    %3190 = vmatpush1.xpose.msra.mxu0 0.0
    %3191 = vmatprep.subr.mxu0 0.0
    %3192 = vmatpush1.xpose.msra.mxu0 0.0
    %3193 = vmatprep.subr.mxu0 0.0
    %3194 = vmatpush1.xpose.msra.mxu0 0.0
    %3195 = vmatprep.subr.mxu0 0.0
    %3196 = vmatpush1.xpose.msra.mxu0 0.0
    %3197 = vmatprep.subr.mxu0 0.0
    %3198 = vmatpush1.xpose.msra.mxu0 0.0
    %3199 = vmatprep.subr.mxu0 0.0
    %3200 = vmatpush1.xpose.msra.mxu0 0.0
    %3201 = vmatprep.subr.mxu0 0.0
    %3202 = vmatpush1.xpose.msra.mxu0 0.0
    %3203 = vmatprep.subr.mxu0 0.0
    %3204 = vmatpush1.xpose.msra.mxu0 0.0
    %3205 = vmatprep.subr.mxu0 0.0
    %3206 = vmatpush1.xpose.msra.mxu0 0.0
    %3207 = vmatprep.subr.mxu0 0.0
    %3208 = vmatpush1.xpose.msra.mxu0 0.0
    %3209 = vmatprep.subr.mxu0 0.0
    %3210 = vmatpush1.xpose.msra.mxu0 0.0
    %3211 = vmatprep.subr.mxu0 0.0
    %3212 = vmatpush1.xpose.msra.mxu0 0.0
    %3213 = vmatprep.subr.mxu0 0.0
    %3214 = vmatpush1.xpose.msra.mxu0 0.0
    %3215 = vmatprep.subr.mxu0 0.0
    %3216 = vmatpush1.xpose.msra.mxu0 0.0
    %3217 = vmatprep.subr.mxu0 0.0
    %3218 = vmatpush1.xpose.msra.mxu0 0.0
    %3219 = vmatprep.subr.mxu0 0.0
    %3220 = vmatpush1.xpose.msra.mxu0 0.0
    %3221 = vmatprep.mubr.f32.mxu0 %v1990
    %3222 = vmatmul.mubr.f32.gmra.mrb[0].mxu0 %v1989
    %v3223 = vpop.f32.mrb[0].mxu0
    %v3224 = vadd.f32 0.0, %v3223
    %v3225 = vpop.f32.mrb[0].mxu0
    %3226 = vmatprep.mubr.f32.mxu0 %v1992
    %3227 = vmatmul.mubr.f32.gmra.mrb[0].mxu0 %v1991
    %v3228 = vpop.f32.mrb[0].mxu0
    %v3229 = vadd.f32 0.0, %v3228
    %v3230 = vpop.f32.mrb[0].mxu0
    %3231 = vdwg.mxu0
    %3232 = vmatprep.subr.mxu0 %v1182
    %3233 = vmatpush1.xpose.msra.mxu0 %v1181
    %3234 = vmatprep.subr.mxu0 0.0
    %3235 = vmatpush1.xpose.msra.mxu0 0.0
    %3236 = vmatprep.subr.mxu0 0.0
    %3237 = vmatpush1.xpose.msra.mxu0 0.0
    %3238 = vmatprep.subr.mxu0 0.0
    %3239 = vmatpush1.xpose.msra.mxu0 0.0
    %3240 = vmatprep.subr.mxu0 0.0
    %3241 = vmatpush1.xpose.msra.mxu0 0.0
    %3242 = vmatprep.subr.mxu0 0.0
    %3243 = vmatpush1.xpose.msra.mxu0 0.0
    %3244 = vmatprep.subr.mxu0 0.0
    %3245 = vmatpush1.xpose.msra.mxu0 0.0
    %3246 = vmatprep.subr.mxu0 0.0
    %3247 = vmatpush1.xpose.msra.mxu0 0.0
    %3248 = vmatprep.subr.mxu0 0.0
    %3249 = vmatpush1.xpose.msra.mxu0 0.0
    %3250 = vmatprep.subr.mxu0 0.0
    %3251 = vmatpush1.xpose.msra.mxu0 0.0
    %3252 = vmatprep.subr.mxu0 0.0
    %3253 = vmatpush1.xpose.msra.mxu0 0.0
    %3254 = vmatprep.subr.mxu0 0.0
    %3255 = vmatpush1.xpose.msra.mxu0 0.0
    %3256 = vmatprep.subr.mxu0 0.0
    %3257 = vmatpush1.xpose.msra.mxu0 0.0
    %3258 = vmatprep.subr.mxu0 0.0
    %3259 = vmatpush1.xpose.msra.mxu0 0.0
    %3260 = vmatprep.subr.mxu0 0.0
    %3261 = vmatpush1.xpose.msra.mxu0 0.0
    %3262 = vmatprep.subr.mxu0 0.0
    %3263 = vmatpush1.xpose.msra.mxu0 0.0
    %3264 = vmatprep.subr.mxu0 0.0
    %3265 = vmatpush1.xpose.msra.mxu0 0.0
    %3266 = vmatprep.subr.mxu0 0.0
    %3267 = vmatpush1.xpose.msra.mxu0 0.0
    %3268 = vmatprep.subr.mxu0 0.0
    %3269 = vmatpush1.xpose.msra.mxu0 0.0
    %3270 = vmatprep.subr.mxu0 0.0
    %3271 = vmatpush1.xpose.msra.mxu0 0.0
    %3272 = vmatprep.subr.mxu0 0.0
    %3273 = vmatpush1.xpose.msra.mxu0 0.0
    %3274 = vmatprep.subr.mxu0 0.0
    %3275 = vmatpush1.xpose.msra.mxu0 0.0
    %3276 = vmatprep.subr.mxu0 0.0
    %3277 = vmatpush1.xpose.msra.mxu0 0.0
    %3278 = vmatprep.subr.mxu0 0.0
    %3279 = vmatpush1.xpose.msra.mxu0 0.0
    %3280 = vmatprep.subr.mxu0 0.0
    %3281 = vmatpush1.xpose.msra.mxu0 0.0
    %3282 = vmatprep.subr.mxu0 0.0
    %3283 = vmatpush1.xpose.msra.mxu0 0.0
    %3284 = vmatprep.subr.mxu0 0.0
    %3285 = vmatpush1.xpose.msra.mxu0 0.0
    %3286 = vmatprep.subr.mxu0 0.0
    %3287 = vmatpush1.xpose.msra.mxu0 0.0
    %3288 = vmatprep.subr.mxu0 0.0
    %3289 = vmatpush1.xpose.msra.mxu0 0.0
    %3290 = vmatprep.subr.mxu0 0.0
    %3291 = vmatpush1.xpose.msra.mxu0 0.0
    %3292 = vmatprep.subr.mxu0 0.0
    %3293 = vmatpush1.xpose.msra.mxu0 0.0
    %3294 = vmatprep.subr.mxu0 0.0
    %3295 = vmatpush1.xpose.msra.mxu0 0.0
    %3296 = vmatprep.mubr.f32.mxu0 %v1994
    %3297 = vmatmul.mubr.f32.gmra.mrb[0].mxu0 %v1993
    %v3298 = vpop.f32.mrb[0].mxu0
    %v3299 = vadd.f32 0.0, %v3298
    %v3300 = vpop.f32.mrb[0].mxu0
    %3301 = vmatprep.mubr.f32.mxu0 %v1996
    %3302 = vmatmul.mubr.f32.gmra.mrb[0].mxu0 %v1995
    %v3303 = vpop.f32.mrb[0].mxu0
    %v3304 = vadd.f32 0.0, %v3303
    %v3305 = vpop.f32.mrb[0].mxu0
    %3306 = vdwg.mxu0
    %3307 = vmatprep.subr.mxu0 %v1184
    %3308 = vmatpush1.xpose.msra.mxu0 %v1183
    %3309 = vmatprep.subr.mxu0 0.0
    %3310 = vmatpush1.xpose.msra.mxu0 0.0
    %3311 = vmatprep.subr.mxu0 0.0
    %3312 = vmatpush1.xpose.msra.mxu0 0.0
    %3313 = vmatprep.subr.mxu0 0.0
    %3314 = vmatpush1.xpose.msra.mxu0 0.0
    %3315 = vmatprep.subr.mxu0 0.0
    %3316 = vmatpush1.xpose.msra.mxu0 0.0
    %3317 = vmatprep.subr.mxu0 0.0
    %3318 = vmatpush1.xpose.msra.mxu0 0.0
    %3319 = vmatprep.subr.mxu0 0.0
    %3320 = vmatpush1.xpose.msra.mxu0 0.0
    %3321 = vmatprep.subr.mxu0 0.0
    %3322 = vmatpush1.xpose.msra.mxu0 0.0
    %3323 = vmatprep.subr.mxu0 0.0
    %3324 = vmatpush1.xpose.msra.mxu0 0.0
    %3325 = vmatprep.subr.mxu0 0.0
    %3326 = vmatpush1.xpose.msra.mxu0 0.0
    %3327 = vmatprep.subr.mxu0 0.0
    %3328 = vmatpush1.xpose.msra.mxu0 0.0
    %3329 = vmatprep.subr.mxu0 0.0
    %3330 = vmatpush1.xpose.msra.mxu0 0.0
    %3331 = vmatprep.subr.mxu0 0.0
    %3332 = vmatpush1.xpose.msra.mxu0 0.0
    %3333 = vmatprep.subr.mxu0 0.0
    %3334 = vmatpush1.xpose.msra.mxu0 0.0
    %3335 = vmatprep.subr.mxu0 0.0
    %3336 = vmatpush1.xpose.msra.mxu0 0.0
    %3337 = vmatprep.subr.mxu0 0.0
    %3338 = vmatpush1.xpose.msra.mxu0 0.0
    %3339 = vmatprep.subr.mxu0 0.0
    %3340 = vmatpush1.xpose.msra.mxu0 0.0
    %3341 = vmatprep.subr.mxu0 0.0
    %3342 = vmatpush1.xpose.msra.mxu0 0.0
    %3343 = vmatprep.subr.mxu0 0.0
    %3344 = vmatpush1.xpose.msra.mxu0 0.0
    %3345 = vmatprep.subr.mxu0 0.0
    %3346 = vmatpush1.xpose.msra.mxu0 0.0
    %3347 = vmatprep.subr.mxu0 0.0
    %3348 = vmatpush1.xpose.msra.mxu0 0.0
    %3349 = vmatprep.subr.mxu0 0.0
    %3350 = vmatpush1.xpose.msra.mxu0 0.0
    %3351 = vmatprep.subr.mxu0 0.0
    %3352 = vmatpush1.xpose.msra.mxu0 0.0
    %3353 = vmatprep.subr.mxu0 0.0
    %3354 = vmatpush1.xpose.msra.mxu0 0.0
    %3355 = vmatprep.subr.mxu0 0.0
    %3356 = vmatpush1.xpose.msra.mxu0 0.0
    %3357 = vmatprep.subr.mxu0 0.0
    %3358 = vmatpush1.xpose.msra.mxu0 0.0
    %3359 = vmatprep.subr.mxu0 0.0
    %3360 = vmatpush1.xpose.msra.mxu0 0.0
    %3361 = vmatprep.subr.mxu0 0.0
    %3362 = vmatpush1.xpose.msra.mxu0 0.0
    %3363 = vmatprep.subr.mxu0 0.0
    %3364 = vmatpush1.xpose.msra.mxu0 0.0
    %3365 = vmatprep.subr.mxu0 0.0
    %3366 = vmatpush1.xpose.msra.mxu0 0.0
    %3367 = vmatprep.subr.mxu0 0.0
    %3368 = vmatpush1.xpose.msra.mxu0 0.0
    %3369 = vmatprep.subr.mxu0 0.0
    %3370 = vmatpush1.xpose.msra.mxu0 0.0
    %3371 = vmatprep.mubr.f32.mxu0 %v1998
    %3372 = vmatmul.mubr.f32.gmra.mrb[0].mxu0 %v1997
    %v3373 = vpop.f32.mrb[0].mxu0
    %v3374 = vadd.f32 0.0, %v3373
    %v3375 = vpop.f32.mrb[0].mxu0
    %3376 = vmatprep.mubr.f32.mxu0 %v2000
    %3377 = vmatmul.mubr.f32.gmra.mrb[0].mxu0 %v1999
    %v3378 = vpop.f32.mrb[0].mxu0
    %v3379 = vadd.f32 0.0, %v3378
    %v3380 = vpop.f32.mrb[0].mxu0
    %3381 = vdwg.mxu0
    %3382 = vmatprep.subr.mxu0 %v1186
    %3383 = vmatpush1.xpose.msra.mxu0 %v1185
    %3384 = vmatprep.subr.mxu0 0.0
    %3385 = vmatpush1.xpose.msra.mxu0 0.0
    %3386 = vmatprep.subr.mxu0 0.0
    %3387 = vmatpush1.xpose.msra.mxu0 0.0
    %3388 = vmatprep.subr.mxu0 0.0
    %3389 = vmatpush1.xpose.msra.mxu0 0.0
    %3390 = vmatprep.subr.mxu0 0.0
    %3391 = vmatpush1.xpose.msra.mxu0 0.0
    %3392 = vmatprep.subr.mxu0 0.0
    %3393 = vmatpush1.xpose.msra.mxu0 0.0
    %3394 = vmatprep.subr.mxu0 0.0
    %3395 = vmatpush1.xpose.msra.mxu0 0.0
    %3396 = vmatprep.subr.mxu0 0.0
    %3397 = vmatpush1.xpose.msra.mxu0 0.0
    %3398 = vmatprep.subr.mxu0 0.0
    %3399 = vmatpush1.xpose.msra.mxu0 0.0
    %3400 = vmatprep.subr.mxu0 0.0
    %3401 = vmatpush1.xpose.msra.mxu0 0.0
    %3402 = vmatprep.subr.mxu0 0.0
    %3403 = vmatpush1.xpose.msra.mxu0 0.0
    %3404 = vmatprep.subr.mxu0 0.0
    %3405 = vmatpush1.xpose.msra.mxu0 0.0
    %3406 = vmatprep.subr.mxu0 0.0
    %3407 = vmatpush1.xpose.msra.mxu0 0.0
    %3408 = vmatprep.subr.mxu0 0.0
    %3409 = vmatpush1.xpose.msra.mxu0 0.0
    %3410 = vmatprep.subr.mxu0 0.0
    %3411 = vmatpush1.xpose.msra.mxu0 0.0
    %3412 = vmatprep.subr.mxu0 0.0
    %3413 = vmatpush1.xpose.msra.mxu0 0.0
    %3414 = vmatprep.subr.mxu0 0.0
    %3415 = vmatpush1.xpose.msra.mxu0 0.0
    %3416 = vmatprep.subr.mxu0 0.0
    %3417 = vmatpush1.xpose.msra.mxu0 0.0
    %3418 = vmatprep.subr.mxu0 0.0
    %3419 = vmatpush1.xpose.msra.mxu0 0.0
    %3420 = vmatprep.subr.mxu0 0.0
    %3421 = vmatpush1.xpose.msra.mxu0 0.0
    %3422 = vmatprep.subr.mxu0 0.0
    %3423 = vmatpush1.xpose.msra.mxu0 0.0
    %3424 = vmatprep.subr.mxu0 0.0
    %3425 = vmatpush1.xpose.msra.mxu0 0.0
    %3426 = vmatprep.subr.mxu0 0.0
    %3427 = vmatpush1.xpose.msra.mxu0 0.0
    %3428 = vmatprep.subr.mxu0 0.0
    %3429 = vmatpush1.xpose.msra.mxu0 0.0
    %3430 = vmatprep.subr.mxu0 0.0
    %3431 = vmatpush1.xpose.msra.mxu0 0.0
    %3432 = vmatprep.subr.mxu0 0.0
    %3433 = vmatpush1.xpose.msra.mxu0 0.0
    %3434 = vmatprep.subr.mxu0 0.0
    %3435 = vmatpush1.xpose.msra.mxu0 0.0
    %3436 = vmatprep.subr.mxu0 0.0
    %3437 = vmatpush1.xpose.msra.mxu0 0.0
    %3438 = vmatprep.subr.mxu0 0.0
    %3439 = vmatpush1.xpose.msra.mxu0 0.0
    %3440 = vmatprep.subr.mxu0 0.0
    %3441 = vmatpush1.xpose.msra.mxu0 0.0
    %3442 = vmatprep.subr.mxu0 0.0
    %3443 = vmatpush1.xpose.msra.mxu0 0.0
    %3444 = vmatprep.subr.mxu0 0.0
    %3445 = vmatpush1.xpose.msra.mxu0 0.0
    %3446 = vmatprep.mubr.f32.mxu0 %v2002
    %3447 = vmatmul.mubr.f32.gmra.mrb[0].mxu0 %v2001
    %v3448 = vpop.f32.mrb[0].mxu0
    %v3449 = vadd.f32 0.0, %v3448
    %v3450 = vpop.f32.mrb[0].mxu0
    %3451 = vmatprep.mubr.f32.mxu0 %v2004
    %3452 = vmatmul.mubr.f32.gmra.mrb[0].mxu0 %v2003
    %v3453 = vpop.f32.mrb[0].mxu0
    %v3454 = vadd.f32 0.0, %v3453
    %v3455 = vpop.f32.mrb[0].mxu0
    %3456 = vdwg.mxu0
    %3457 = vmatprep.subr.mxu0 %v1188
    %3458 = vmatpush1.xpose.msra.mxu0 %v1187
    %3459 = vmatprep.subr.mxu0 0.0
    %3460 = vmatpush1.xpose.msra.mxu0 0.0
    %3461 = vmatprep.subr.mxu0 0.0
    %3462 = vmatpush1.xpose.msra.mxu0 0.0
    %3463 = vmatprep.subr.mxu0 0.0
    %3464 = vmatpush1.xpose.msra.mxu0 0.0
    %3465 = vmatprep.subr.mxu0 0.0
    %3466 = vmatpush1.xpose.msra.mxu0 0.0
    %3467 = vmatprep.subr.mxu0 0.0
    %3468 = vmatpush1.xpose.msra.mxu0 0.0
    %3469 = vmatprep.subr.mxu0 0.0
    %3470 = vmatpush1.xpose.msra.mxu0 0.0
    %3471 = vmatprep.subr.mxu0 0.0
    %3472 = vmatpush1.xpose.msra.mxu0 0.0
    %3473 = vmatprep.subr.mxu0 0.0
    %3474 = vmatpush1.xpose.msra.mxu0 0.0
    %3475 = vmatprep.subr.mxu0 0.0
    %3476 = vmatpush1.xpose.msra.mxu0 0.0
    %3477 = vmatprep.subr.mxu0 0.0
    %3478 = vmatpush1.xpose.msra.mxu0 0.0
    %3479 = vmatprep.subr.mxu0 0.0
    %3480 = vmatpush1.xpose.msra.mxu0 0.0
    %3481 = vmatprep.subr.mxu0 0.0
    %3482 = vmatpush1.xpose.msra.mxu0 0.0
    %3483 = vmatprep.subr.mxu0 0.0
    %3484 = vmatpush1.xpose.msra.mxu0 0.0
    %3485 = vmatprep.subr.mxu0 0.0
    %3486 = vmatpush1.xpose.msra.mxu0 0.0
    %3487 = vmatprep.subr.mxu0 0.0
    %3488 = vmatpush1.xpose.msra.mxu0 0.0
    %3489 = vmatprep.subr.mxu0 0.0
    %3490 = vmatpush1.xpose.msra.mxu0 0.0
    %3491 = vmatprep.subr.mxu0 0.0
    %3492 = vmatpush1.xpose.msra.mxu0 0.0
    %3493 = vmatprep.subr.mxu0 0.0
    %3494 = vmatpush1.xpose.msra.mxu0 0.0
    %3495 = vmatprep.subr.mxu0 0.0
    %3496 = vmatpush1.xpose.msra.mxu0 0.0
    %3497 = vmatprep.subr.mxu0 0.0
    %3498 = vmatpush1.xpose.msra.mxu0 0.0
    %3499 = vmatprep.subr.mxu0 0.0
    %3500 = vmatpush1.xpose.msra.mxu0 0.0
    %3501 = vmatprep.subr.mxu0 0.0
    %3502 = vmatpush1.xpose.msra.mxu0 0.0
    %3503 = vmatprep.subr.mxu0 0.0
    %3504 = vmatpush1.xpose.msra.mxu0 0.0
    %3505 = vmatprep.subr.mxu0 0.0
    %3506 = vmatpush1.xpose.msra.mxu0 0.0
    %3507 = vmatprep.subr.mxu0 0.0
    %3508 = vmatpush1.xpose.msra.mxu0 0.0
    %3509 = vmatprep.subr.mxu0 0.0
    %3510 = vmatpush1.xpose.msra.mxu0 0.0
    %3511 = vmatprep.subr.mxu0 0.0
    %3512 = vmatpush1.xpose.msra.mxu0 0.0
    %3513 = vmatprep.subr.mxu0 0.0
    %3514 = vmatpush1.xpose.msra.mxu0 0.0
    %3515 = vmatprep.subr.mxu0 0.0
    %3516 = vmatpush1.xpose.msra.mxu0 0.0
    %3517 = vmatprep.subr.mxu0 0.0
    %3518 = vmatpush1.xpose.msra.mxu0 0.0
    %3519 = vmatprep.subr.mxu0 0.0
    %3520 = vmatpush1.xpose.msra.mxu0 0.0
    %3521 = vmatprep.mubr.f32.mxu0 %v2006
    %3522 = vmatmul.mubr.f32.gmra.mrb[0].mxu0 %v2005
    %v3523 = vpop.f32.mrb[0].mxu0
    %v3524 = vadd.f32 0.0, %v3523
    %v3525 = vpop.f32.mrb[0].mxu0
    %3526 = vmatprep.mubr.f32.mxu0 %v2008
    %3527 = vmatmul.mubr.f32.gmra.mrb[0].mxu0 %v2007
    %v3528 = vpop.f32.mrb[0].mxu0
    %v3529 = vadd.f32 0.0, %v3528
    %v3530 = vpop.f32.mrb[0].mxu0
    %3531 = vdwg.mxu0
    %3532 = vmatprep.subr.mxu0 %v1190
    %3533 = vmatpush1.xpose.msra.mxu0 %v1189
    %3534 = vmatprep.subr.mxu0 0.0
    %3535 = vmatpush1.xpose.msra.mxu0 0.0
    %3536 = vmatprep.subr.mxu0 0.0
    %3537 = vmatpush1.xpose.msra.mxu0 0.0
    %3538 = vmatprep.subr.mxu0 0.0
    %3539 = vmatpush1.xpose.msra.mxu0 0.0
    %3540 = vmatprep.subr.mxu0 0.0
    %3541 = vmatpush1.xpose.msra.mxu0 0.0
    %3542 = vmatprep.subr.mxu0 0.0
    %3543 = vmatpush1.xpose.msra.mxu0 0.0
    %3544 = vmatprep.subr.mxu0 0.0
    %3545 = vmatpush1.xpose.msra.mxu0 0.0
    %3546 = vmatprep.subr.mxu0 0.0
    %3547 = vmatpush1.xpose.msra.mxu0 0.0
    %3548 = vmatprep.subr.mxu0 0.0
    %3549 = vmatpush1.xpose.msra.mxu0 0.0
    %3550 = vmatprep.subr.mxu0 0.0
    %3551 = vmatpush1.xpose.msra.mxu0 0.0
    %3552 = vmatprep.subr.mxu0 0.0
    %3553 = vmatpush1.xpose.msra.mxu0 0.0
    %3554 = vmatprep.subr.mxu0 0.0
    %3555 = vmatpush1.xpose.msra.mxu0 0.0
    %3556 = vmatprep.subr.mxu0 0.0
    %3557 = vmatpush1.xpose.msra.mxu0 0.0
    %3558 = vmatprep.subr.mxu0 0.0
    %3559 = vmatpush1.xpose.msra.mxu0 0.0
    %3560 = vmatprep.subr.mxu0 0.0
    %3561 = vmatpush1.xpose.msra.mxu0 0.0
    %3562 = vmatprep.subr.mxu0 0.0
    %3563 = vmatpush1.xpose.msra.mxu0 0.0
    %3564 = vmatprep.subr.mxu0 0.0
    %3565 = vmatpush1.xpose.msra.mxu0 0.0
    %3566 = vmatprep.subr.mxu0 0.0
    %3567 = vmatpush1.xpose.msra.mxu0 0.0
    %3568 = vmatprep.subr.mxu0 0.0
    %3569 = vmatpush1.xpose.msra.mxu0 0.0
    %3570 = vmatprep.subr.mxu0 0.0
    %3571 = vmatpush1.xpose.msra.mxu0 0.0
    %3572 = vmatprep.subr.mxu0 0.0
    %3573 = vmatpush1.xpose.msra.mxu0 0.0
    %3574 = vmatprep.subr.mxu0 0.0
    %3575 = vmatpush1.xpose.msra.mxu0 0.0
    %3576 = vmatprep.subr.mxu0 0.0
    %3577 = vmatpush1.xpose.msra.mxu0 0.0
    %3578 = vmatprep.subr.mxu0 0.0
    %3579 = vmatpush1.xpose.msra.mxu0 0.0
    %3580 = vmatprep.subr.mxu0 0.0
    %3581 = vmatpush1.xpose.msra.mxu0 0.0
    %3582 = vmatprep.subr.mxu0 0.0
    %3583 = vmatpush1.xpose.msra.mxu0 0.0
    %3584 = vmatprep.subr.mxu0 0.0
    %3585 = vmatpush1.xpose.msra.mxu0 0.0
    %3586 = vmatprep.subr.mxu0 0.0
    %3587 = vmatpush1.xpose.msra.mxu0 0.0
    %3588 = vmatprep.subr.mxu0 0.0
    %3589 = vmatpush1.xpose.msra.mxu0 0.0
    %3590 = vmatprep.subr.mxu0 0.0
    %3591 = vmatpush1.xpose.msra.mxu0 0.0
    %3592 = vmatprep.subr.mxu0 0.0
    %3593 = vmatpush1.xpose.msra.mxu0 0.0
    %3594 = vmatprep.subr.mxu0 0.0
    %3595 = vmatpush1.xpose.msra.mxu0 0.0
    %3596 = vmatprep.mubr.f32.mxu0 %v2010
    %3597 = vmatmul.mubr.f32.gmra.mrb[0].mxu0 %v2009
    %v3598 = vpop.f32.mrb[0].mxu0
    %v3599 = vadd.f32 0.0, %v3598
    %v3600 = vpop.f32.mrb[0].mxu0
    %3601 = vmatprep.mubr.f32.mxu0 %v2012
    %3602 = vmatmul.mubr.f32.gmra.mrb[0].mxu0 %v2011
    %v3603 = vpop.f32.mrb[0].mxu0
    %v3604 = vadd.f32 0.0, %v3603
    %v3605 = vpop.f32.mrb[0].mxu0
    %3606 = vdwg.mxu0
    %3607 = vmatprep.subr.mxu0 %v1192
    %3608 = vmatpush1.xpose.msra.mxu0 %v1191
    %3609 = vmatprep.subr.mxu0 0.0
    %3610 = vmatpush1.xpose.msra.mxu0 0.0
    %3611 = vmatprep.subr.mxu0 0.0
    %3612 = vmatpush1.xpose.msra.mxu0 0.0
    %3613 = vmatprep.subr.mxu0 0.0
    %3614 = vmatpush1.xpose.msra.mxu0 0.0
    %3615 = vmatprep.subr.mxu0 0.0
    %3616 = vmatpush1.xpose.msra.mxu0 0.0
    %3617 = vmatprep.subr.mxu0 0.0
    %3618 = vmatpush1.xpose.msra.mxu0 0.0
    %3619 = vmatprep.subr.mxu0 0.0
    %3620 = vmatpush1.xpose.msra.mxu0 0.0
    %3621 = vmatprep.subr.mxu0 0.0
    %3622 = vmatpush1.xpose.msra.mxu0 0.0
    %3623 = vmatprep.subr.mxu0 0.0
    %3624 = vmatpush1.xpose.msra.mxu0 0.0
    %3625 = vmatprep.subr.mxu0 0.0
    %3626 = vmatpush1.xpose.msra.mxu0 0.0
    %3627 = vmatprep.subr.mxu0 0.0
    %3628 = vmatpush1.xpose.msra.mxu0 0.0
    %3629 = vmatprep.subr.mxu0 0.0
    %3630 = vmatpush1.xpose.msra.mxu0 0.0
    %3631 = vmatprep.subr.mxu0 0.0
    %3632 = vmatpush1.xpose.msra.mxu0 0.0
    %3633 = vmatprep.subr.mxu0 0.0
    %3634 = vmatpush1.xpose.msra.mxu0 0.0
    %3635 = vmatprep.subr.mxu0 0.0
    %3636 = vmatpush1.xpose.msra.mxu0 0.0
    %3637 = vmatprep.subr.mxu0 0.0
    %3638 = vmatpush1.xpose.msra.mxu0 0.0
    %3639 = vmatprep.subr.mxu0 0.0
    %3640 = vmatpush1.xpose.msra.mxu0 0.0
    %3641 = vmatprep.subr.mxu0 0.0
    %3642 = vmatpush1.xpose.msra.mxu0 0.0
    %3643 = vmatprep.subr.mxu0 0.0
    %3644 = vmatpush1.xpose.msra.mxu0 0.0
    %3645 = vmatprep.subr.mxu0 0.0
    %3646 = vmatpush1.xpose.msra.mxu0 0.0
    %3647 = vmatprep.subr.mxu0 0.0
    %3648 = vmatpush1.xpose.msra.mxu0 0.0
    %3649 = vmatprep.subr.mxu0 0.0
    %3650 = vmatpush1.xpose.msra.mxu0 0.0
    %3651 = vmatprep.subr.mxu0 0.0
    %3652 = vmatpush1.xpose.msra.mxu0 0.0
    %3653 = vmatprep.subr.mxu0 0.0
    %3654 = vmatpush1.xpose.msra.mxu0 0.0
    %3655 = vmatprep.subr.mxu0 0.0
    %3656 = vmatpush1.xpose.msra.mxu0 0.0
    %3657 = vmatprep.subr.mxu0 0.0
    %3658 = vmatpush1.xpose.msra.mxu0 0.0
    %3659 = vmatprep.subr.mxu0 0.0
    %3660 = vmatpush1.xpose.msra.mxu0 0.0
    %3661 = vmatprep.subr.mxu0 0.0
    %3662 = vmatpush1.xpose.msra.mxu0 0.0
    %3663 = vmatprep.subr.mxu0 0.0
    %3664 = vmatpush1.xpose.msra.mxu0 0.0
    %3665 = vmatprep.subr.mxu0 0.0
    %3666 = vmatpush1.xpose.msra.mxu0 0.0
    %3667 = vmatprep.subr.mxu0 0.0
    %3668 = vmatpush1.xpose.msra.mxu0 0.0
    %3669 = vmatprep.subr.mxu0 0.0
    %3670 = vmatpush1.xpose.msra.mxu0 0.0
    %3671 = vmatprep.mubr.f32.mxu0 %v2014
    %3672 = vmatmul.mubr.f32.gmra.mrb[0].mxu0 %v2013
    %v3673 = vpop.f32.mrb[0].mxu0
    %v3674 = vadd.f32 0.0, %v3673
    %v3675 = vpop.f32.mrb[0].mxu0
    %3676 = vmatprep.mubr.f32.mxu0 %v2016
    %3677 = vmatmul.mubr.f32.gmra.mrb[0].mxu0 %v2015
    %v3678 = vpop.f32.mrb[0].mxu0
    %v3679 = vadd.f32 0.0, %v3678
    %v3680 = vpop.f32.mrb[0].mxu0
    %3681 = vdwg.mxu0
    %3682 = vmatprep.subr.mxu0 %v1194
    %3683 = vmatpush1.xpose.msra.mxu0 %v1193
    %3684 = vmatprep.subr.mxu0 0.0
    %3685 = vmatpush1.xpose.msra.mxu0 0.0
    %3686 = vmatprep.subr.mxu0 0.0
    %3687 = vmatpush1.xpose.msra.mxu0 0.0
    %3688 = vmatprep.subr.mxu0 0.0
    %3689 = vmatpush1.xpose.msra.mxu0 0.0
    %3690 = vmatprep.subr.mxu0 0.0
    %3691 = vmatpush1.xpose.msra.mxu0 0.0
    %3692 = vmatprep.subr.mxu0 0.0
    %3693 = vmatpush1.xpose.msra.mxu0 0.0
    %3694 = vmatprep.subr.mxu0 0.0
    %3695 = vmatpush1.xpose.msra.mxu0 0.0
    %3696 = vmatprep.subr.mxu0 0.0
    %3697 = vmatpush1.xpose.msra.mxu0 0.0
    %3698 = vmatprep.subr.mxu0 0.0
    %3699 = vmatpush1.xpose.msra.mxu0 0.0
    %3700 = vmatprep.subr.mxu0 0.0
    %3701 = vmatpush1.xpose.msra.mxu0 0.0
    %3702 = vmatprep.subr.mxu0 0.0
    %3703 = vmatpush1.xpose.msra.mxu0 0.0
    %3704 = vmatprep.subr.mxu0 0.0
    %3705 = vmatpush1.xpose.msra.mxu0 0.0
    %3706 = vmatprep.subr.mxu0 0.0
    %3707 = vmatpush1.xpose.msra.mxu0 0.0
    %3708 = vmatprep.subr.mxu0 0.0
    %3709 = vmatpush1.xpose.msra.mxu0 0.0
    %3710 = vmatprep.subr.mxu0 0.0
    %3711 = vmatpush1.xpose.msra.mxu0 0.0
    %3712 = vmatprep.subr.mxu0 0.0
    %3713 = vmatpush1.xpose.msra.mxu0 0.0
    %3714 = vmatprep.subr.mxu0 0.0
    %3715 = vmatpush1.xpose.msra.mxu0 0.0
    %3716 = vmatprep.subr.mxu0 0.0
    %3717 = vmatpush1.xpose.msra.mxu0 0.0
    %3718 = vmatprep.subr.mxu0 0.0
    %3719 = vmatpush1.xpose.msra.mxu0 0.0
    %3720 = vmatprep.subr.mxu0 0.0
    %3721 = vmatpush1.xpose.msra.mxu0 0.0
    %3722 = vmatprep.subr.mxu0 0.0
    %3723 = vmatpush1.xpose.msra.mxu0 0.0
    %3724 = vmatprep.subr.mxu0 0.0
    %3725 = vmatpush1.xpose.msra.mxu0 0.0
    %3726 = vmatprep.subr.mxu0 0.0
    %3727 = vmatpush1.xpose.msra.mxu0 0.0
    %3728 = vmatprep.subr.mxu0 0.0
    %3729 = vmatpush1.xpose.msra.mxu0 0.0
    %3730 = vmatprep.subr.mxu0 0.0
    %3731 = vmatpush1.xpose.msra.mxu0 0.0
    %3732 = vmatprep.subr.mxu0 0.0
    %3733 = vmatpush1.xpose.msra.mxu0 0.0
    %3734 = vmatprep.subr.mxu0 0.0
    %3735 = vmatpush1.xpose.msra.mxu0 0.0
    %3736 = vmatprep.subr.mxu0 0.0
    %3737 = vmatpush1.xpose.msra.mxu0 0.0
    %3738 = vmatprep.subr.mxu0 0.0
    %3739 = vmatpush1.xpose.msra.mxu0 0.0
    %3740 = vmatprep.subr.mxu0 0.0
    %3741 = vmatpush1.xpose.msra.mxu0 0.0
    %3742 = vmatprep.subr.mxu0 0.0
    %3743 = vmatpush1.xpose.msra.mxu0 0.0
    %3744 = vmatprep.subr.mxu0 0.0
    %3745 = vmatpush1.xpose.msra.mxu0 0.0
    %3746 = vmatprep.mubr.f32.mxu0 %v2018
    %3747 = vmatmul.mubr.f32.gmra.mrb[0].mxu0 %v2017
    %v3748 = vpop.f32.mrb[0].mxu0
    %v3749 = vadd.f32 0.0, %v3748
    %v3750 = vpop.f32.mrb[0].mxu0
    %3751 = vmatprep.mubr.f32.mxu0 %v2020
    %3752 = vmatmul.mubr.f32.gmra.mrb[0].mxu0 %v2019
    %v3753 = vpop.f32.mrb[0].mxu0
    %v3754 = vadd.f32 0.0, %v3753
    %v3755 = vpop.f32.mrb[0].mxu0
    %3756 = vdwg.mxu0
    %v3757 = vld [vmem:[%s4] sm:$0x3]
    %v3758 = vld [vmem:[%s5] sm:$0x1]
    %v3759 = vld [vmem:[%s6] sm:$0xff]
    %v3760 = vld [vmem:[%s6 + $0x8] sm:$0x3]
    %v3761 = vld [vmem:[%s7] sm:$0x1]
    %v3762 = vld [vmem:[%s8] sm:$0xff]
    %v3763 = vld [vmem:[%s9] sm:$0x1]
    %v3764 = vld [vmem:[%s10] sm:$0xff]
    %v3765 = vld [vmem:[%s10 + $0x8] sm:$0x3]
    %v3766 = vld [vmem:[%s11] sm:$0x1]
    %v3767 = vlaneseq
    %v3768 = vshrl.u32 %v3767, 7
    %v3769 = vsub.s32 0, %v3768
    %v3770 = vrot.slane %v3757, %v3769
    %v3771 = vmul.f32 %v2108, %v3770
    %v3772 = vmul.f32 %v2111, %v3770
    %v3773 = vmul.f32 %v2114, %v3770
    %v3774 = vmul.f32 %v2117, %v3770
    %v3775 = vmul.f32 %v2120, %v3770
    %v3776 = vmul.f32 %v2123, %v3770
    %v3777 = vmul.f32 %v2126, %v3770
    %v3778 = vmul.f32 %v2129, %v3770
    %v3779 = vmul.f32 %v2132, %v3770
    %v3780 = vmul.f32 %v2135, %v3770
    %v3781 = vmul.f32 %v2138, %v3770
    %v3782 = vmul.f32 %v2141, %v3770
    %v3783 = vmul.f32 %v2144, %v3770
    %v3784 = vmul.f32 %v2147, %v3770
    %v3785 = vmul.f32 %v2150, %v3770
    %v3786 = vmul.f32 %v2153, %v3770
    %v3787 = vmul.f32 %v2156, %v3770
    %v3788 = vmul.f32 %v2159, %v3770
    %v3789 = vmul.f32 %v2162, %v3770
    %v3790 = vmul.f32 %v2165, %v3770
    %v3791 = vmul.f32 %v2168, %v3770
    %v3792 = vmul.f32 %v2171, %v3770
    %v3793 = vmul.f32 %v2174, %v3770
    %v3794 = vmul.f32 %v2177, %v3770
    %v3795 = vmul.f32 %v2180, %v3770
    %v3796 = vmul.f32 %v2183, %v3770
    %v3797 = vmul.f32 %v2186, %v3770
    %v3798 = vmul.f32 %v2189, %v3770
    %v3799 = vmul.f32 %v2192, %v3770
    %v3800 = vmul.f32 %v2195, %v3770
    %v3801 = vmul.f32 %v2198, %v3770
    %v3802 = vmul.f32 %v2201, %v3770
    %v3803 = vlaneseq
    %v3804 = vshrl.u32 %v3803, 7
    %v3805 = vsub.s32 1, %v3804
    %v3806 = vrot.slane %v3757, %v3805
    %v3807 = vmul.f32 %v2268, %v3806
    %v3808 = vmul.f32 %v2271, %v3806
    %v3809 = vmul.f32 %v2274, %v3806
    %v3810 = vmul.f32 %v2277, %v3806
    %v3811 = vmul.f32 %v2280, %v3806
    %v3812 = vmul.f32 %v2283, %v3806
    %v3813 = vmul.f32 %v2286, %v3806
    %v3814 = vmul.f32 %v2289, %v3806
    %v3815 = vmul.f32 %v2292, %v3806
    %v3816 = vmul.f32 %v2295, %v3806
    %v3817 = vmul.f32 %v2298, %v3806
    %v3818 = vmul.f32 %v2301, %v3806
    %v3819 = vmul.f32 %v2304, %v3806
    %v3820 = vmul.f32 %v2307, %v3806
    %v3821 = vmul.f32 %v2310, %v3806
    %v3822 = vmul.f32 %v2313, %v3806
    %v3823 = vmul.f32 %v2316, %v3806
    %v3824 = vmul.f32 %v2319, %v3806
    %v3825 = vmul.f32 %v2322, %v3806
    %v3826 = vmul.f32 %v2325, %v3806
    %v3827 = vmul.f32 %v2328, %v3806
    %v3828 = vmul.f32 %v2331, %v3806
    %v3829 = vmul.f32 %v2334, %v3806
    %v3830 = vmul.f32 %v2337, %v3806
    %v3831 = vmul.f32 %v2340, %v3806
    %v3832 = vmul.f32 %v2343, %v3806
    %v3833 = vmul.f32 %v2346, %v3806
    %v3834 = vmul.f32 %v2349, %v3806
    %v3835 = vmul.f32 %v2352, %v3806
    %v3836 = vmul.f32 %v2355, %v3806
    %v3837 = vmul.f32 %v2358, %v3806
    %v3838 = vmul.f32 %v2361, %v3806
    %v3839 = vadd.f32 %v3771, %v3807
    %v3840 = vadd.f32 %v3772, %v3808
    %v3841 = vadd.f32 %v3773, %v3809
    %v3842 = vadd.f32 %v3774, %v3810
    %v3843 = vadd.f32 %v3775, %v3811
    %v3844 = vadd.f32 %v3776, %v3812
    %v3845 = vadd.f32 %v3777, %v3813
    %v3846 = vadd.f32 %v3778, %v3814
    %v3847 = vadd.f32 %v3779, %v3815
    %v3848 = vadd.f32 %v3780, %v3816
    %v3849 = vadd.f32 %v3781, %v3817
    %v3850 = vadd.f32 %v3782, %v3818
    %v3851 = vadd.f32 %v3783, %v3819
    %v3852 = vadd.f32 %v3784, %v3820
    %v3853 = vadd.f32 %v3785, %v3821
    %v3854 = vadd.f32 %v3786, %v3822
    %v3855 = vadd.f32 %v3787, %v3823
    %v3856 = vadd.f32 %v3788, %v3824
    %v3857 = vadd.f32 %v3789, %v3825
    %v3858 = vadd.f32 %v3790, %v3826
    %v3859 = vadd.f32 %v3791, %v3827
    %v3860 = vadd.f32 %v3792, %v3828
    %v3861 = vadd.f32 %v3793, %v3829
    %v3862 = vadd.f32 %v3794, %v3830
    %v3863 = vadd.f32 %v3795, %v3831
    %v3864 = vadd.f32 %v3796, %v3832
    %v3865 = vadd.f32 %v3797, %v3833
    %v3866 = vadd.f32 %v3798, %v3834
    %v3867 = vadd.f32 %v3799, %v3835
    %v3868 = vadd.f32 %v3800, %v3836
    %v3869 = vadd.f32 %v3801, %v3837
    %v3870 = vadd.f32 %v3802, %v3838
    %v3872 = vlaneseq
    %v3873 = vshrl.u32 %v3872, 7
    %v3874 = vsub.s32 0, %v3873
    %v3875 = vrot.slane %v3758, %v3874
    %v3877 = vadd.f32 %v3839, %v3875
    %v3878 = vadd.f32 %v3840, %v3875
    %v3879 = vadd.f32 %v3841, %v3875
    %v3880 = vadd.f32 %v3842, %v3875
    %v3881 = vadd.f32 %v3843, %v3875
    %v3882 = vadd.f32 %v3844, %v3875
    %v3883 = vadd.f32 %v3845, %v3875
    %v3884 = vadd.f32 %v3846, %v3875
    %v3885 = vadd.f32 %v3847, %v3875
    %v3886 = vadd.f32 %v3848, %v3875
    %v3887 = vadd.f32 %v3849, %v3875
    %v3888 = vadd.f32 %v3850, %v3875
    %v3889 = vadd.f32 %v3851, %v3875
    %v3890 = vadd.f32 %v3852, %v3875
    %v3891 = vadd.f32 %v3853, %v3875
    %v3892 = vadd.f32 %v3854, %v3875
    %v3893 = vadd.f32 %v3855, %v3875
    %v3894 = vadd.f32 %v3856, %v3875
    %v3895 = vadd.f32 %v3857, %v3875
    %v3896 = vadd.f32 %v3858, %v3875
    %v3897 = vadd.f32 %v3859, %v3875
    %v3898 = vadd.f32 %v3860, %v3875
    %v3899 = vadd.f32 %v3861, %v3875
    %v3900 = vadd.f32 %v3862, %v3875
    %v3901 = vadd.f32 %v3863, %v3875
    %v3902 = vadd.f32 %v3864, %v3875
    %v3903 = vadd.f32 %v3865, %v3875
    %v3904 = vadd.f32 %v3866, %v3875
    %v3905 = vadd.f32 %v3867, %v3875
    %v3906 = vadd.f32 %v3868, %v3875
    %v3907 = vadd.f32 %v3869, %v3875
    %v3908 = vadd.f32 %v3870, %v3875
    %v3909 = vmax.f32 %v3877, 0.0
    %v3910 = vmax.f32 %v3878, 0.0
    %v3911 = vmax.f32 %v3879, 0.0
    %v3912 = vmax.f32 %v3880, 0.0
    %v3913 = vmax.f32 %v3881, 0.0
    %v3914 = vmax.f32 %v3882, 0.0
    %v3915 = vmax.f32 %v3883, 0.0
    %v3916 = vmax.f32 %v3884, 0.0
    %v3917 = vmax.f32 %v3885, 0.0
    %v3918 = vmax.f32 %v3886, 0.0
    %v3919 = vmax.f32 %v3887, 0.0
    %v3920 = vmax.f32 %v3888, 0.0
    %v3921 = vmax.f32 %v3889, 0.0
    %v3922 = vmax.f32 %v3890, 0.0
    %v3923 = vmax.f32 %v3891, 0.0
    %v3924 = vmax.f32 %v3892, 0.0
    %v3925 = vmax.f32 %v3893, 0.0
    %v3926 = vmax.f32 %v3894, 0.0
    %v3927 = vmax.f32 %v3895, 0.0
    %v3928 = vmax.f32 %v3896, 0.0
    %v3929 = vmax.f32 %v3897, 0.0
    %v3930 = vmax.f32 %v3898, 0.0
    %v3931 = vmax.f32 %v3899, 0.0
    %v3932 = vmax.f32 %v3900, 0.0
    %v3933 = vmax.f32 %v3901, 0.0
    %v3934 = vmax.f32 %v3902, 0.0
    %v3935 = vmax.f32 %v3903, 0.0
    %v3936 = vmax.f32 %v3904, 0.0
    %v3937 = vmax.f32 %v3905, 0.0
    %v3938 = vmax.f32 %v3906, 0.0
    %v3939 = vmax.f32 %v3907, 0.0
    %v3940 = vmax.f32 %v3908, 0.0
    %3942 = vset.pattern.permute.xlu0 0
    %3943 = vperm.xlu0 %3942, %v2624
    %v3944 = vpop.permute.xlu0 %3943
    %3947 = vset.pattern.permute.xlu0 0
    %3948 = vperm.xlu0 %3947, %v2629
    %v3949 = vpop.permute.xlu0 %3948
    %3952 = vset.pattern.permute.xlu0 0
    %3953 = vperm.xlu0 %3952, %v2699
    %v3954 = vpop.permute.xlu0 %3953
    %3957 = vset.pattern.permute.xlu0 0
    %3958 = vperm.xlu0 %3957, %v2704
    %v3959 = vpop.permute.xlu0 %3958
    %3962 = vset.pattern.permute.xlu0 0
    %3963 = vperm.xlu0 %3962, %v2774
    %v3964 = vpop.permute.xlu0 %3963
    %3967 = vset.pattern.permute.xlu0 0
    %3968 = vperm.xlu0 %3967, %v2779
    %v3969 = vpop.permute.xlu0 %3968
    %3972 = vset.pattern.permute.xlu0 0
    %3973 = vperm.xlu0 %3972, %v2849
    %v3974 = vpop.permute.xlu0 %3973
    %3977 = vset.pattern.permute.xlu0 0
    %3978 = vperm.xlu0 %3977, %v2854
    %v3979 = vpop.permute.xlu0 %3978
    %3982 = vset.pattern.permute.xlu0 0
    %3983 = vperm.xlu0 %3982, %v2924
    %v3984 = vpop.permute.xlu0 %3983
    %3987 = vset.pattern.permute.xlu0 0
    %3988 = vperm.xlu0 %3987, %v2929
    %v3989 = vpop.permute.xlu0 %3988
    %3992 = vset.pattern.permute.xlu0 0
    %3993 = vperm.xlu0 %3992, %v2999
    %v3994 = vpop.permute.xlu0 %3993
    %3997 = vset.pattern.permute.xlu0 0
    %3998 = vperm.xlu0 %3997, %v3004
    %v3999 = vpop.permute.xlu0 %3998
    %4002 = vset.pattern.permute.xlu0 0
    %4003 = vperm.xlu0 %4002, %v3074
    %v4004 = vpop.permute.xlu0 %4003
    %4007 = vset.pattern.permute.xlu0 0
    %4008 = vperm.xlu0 %4007, %v3079
    %v4009 = vpop.permute.xlu0 %4008
    %4012 = vset.pattern.permute.xlu0 0
    %4013 = vperm.xlu0 %4012, %v3149
    %v4014 = vpop.permute.xlu0 %4013
    %4017 = vset.pattern.permute.xlu0 0
    %4018 = vperm.xlu0 %4017, %v3154
    %v4019 = vpop.permute.xlu0 %4018
    %4022 = vset.pattern.permute.xlu0 0
    %4023 = vperm.xlu0 %4022, %v3224
    %v4024 = vpop.permute.xlu0 %4023
    %4027 = vset.pattern.permute.xlu0 0
    %4028 = vperm.xlu0 %4027, %v3229
    %v4029 = vpop.permute.xlu0 %4028
    %4032 = vset.pattern.permute.xlu0 0
    %4033 = vperm.xlu0 %4032, %v3299
    %v4034 = vpop.permute.xlu0 %4033
    %4037 = vset.pattern.permute.xlu0 0
    %4038 = vperm.xlu0 %4037, %v3304
    %v4039 = vpop.permute.xlu0 %4038
    %4042 = vset.pattern.permute.xlu0 0
    %4043 = vperm.xlu0 %4042, %v3374
    %v4044 = vpop.permute.xlu0 %4043
    %4047 = vset.pattern.permute.xlu0 0
    %4048 = vperm.xlu0 %4047, %v3379
    %v4049 = vpop.permute.xlu0 %4048
    %4052 = vset.pattern.permute.xlu0 0
    %4053 = vperm.xlu0 %4052, %v3449
    %v4054 = vpop.permute.xlu0 %4053
    %4057 = vset.pattern.permute.xlu0 0
    %4058 = vperm.xlu0 %4057, %v3454
    %v4059 = vpop.permute.xlu0 %4058
    %4062 = vset.pattern.permute.xlu0 0
    %4063 = vperm.xlu0 %4062, %v3524
    %v4064 = vpop.permute.xlu0 %4063
    %4067 = vset.pattern.permute.xlu0 0
    %4068 = vperm.xlu0 %4067, %v3529
    %v4069 = vpop.permute.xlu0 %4068
    %4072 = vset.pattern.permute.xlu0 0
    %4073 = vperm.xlu0 %4072, %v3599
    %v4074 = vpop.permute.xlu0 %4073
    %4077 = vset.pattern.permute.xlu0 0
    %4078 = vperm.xlu0 %4077, %v3604
    %v4079 = vpop.permute.xlu0 %4078
    %4082 = vset.pattern.permute.xlu0 0
    %4083 = vperm.xlu0 %4082, %v3674
    %v4084 = vpop.permute.xlu0 %4083
    %4087 = vset.pattern.permute.xlu0 0
    %4088 = vperm.xlu0 %4087, %v3679
    %v4089 = vpop.permute.xlu0 %4088
    %4092 = vset.pattern.permute.xlu0 0
    %4093 = vperm.xlu0 %4092, %v3749
    %v4094 = vpop.permute.xlu0 %4093
    %4097 = vset.pattern.permute.xlu0 0
    %4098 = vperm.xlu0 %4097, %v3754
    %v4099 = vpop.permute.xlu0 %4098
    %v4101 = vlaneseq
    %v4102 = vshrl.u32 %v4101, 7
    %v4103 = vsub.s32 0, %v4102
    %v4104 = vrot.slane %v3762, %v4103
    %v4105 = vmul.f32 %v3944, %v4104
    %v4106 = vmul.f32 %v3949, %v4104
    %v4107 = vmul.f32 %v3954, %v4104
    %v4108 = vmul.f32 %v3959, %v4104
    %v4109 = vmul.f32 %v3964, %v4104
    %v4110 = vmul.f32 %v3969, %v4104
    %v4111 = vmul.f32 %v3974, %v4104
    %v4112 = vmul.f32 %v3979, %v4104
    %v4113 = vmul.f32 %v3984, %v4104
    %v4114 = vmul.f32 %v3989, %v4104
    %v4115 = vmul.f32 %v3994, %v4104
    %v4116 = vmul.f32 %v3999, %v4104
    %v4117 = vmul.f32 %v4004, %v4104
    %v4118 = vmul.f32 %v4009, %v4104
    %v4119 = vmul.f32 %v4014, %v4104
    %v4120 = vmul.f32 %v4019, %v4104
    %v4121 = vmul.f32 %v4024, %v4104
    %v4122 = vmul.f32 %v4029, %v4104
    %v4123 = vmul.f32 %v4034, %v4104
    %v4124 = vmul.f32 %v4039, %v4104
    %v4125 = vmul.f32 %v4044, %v4104
    %v4126 = vmul.f32 %v4049, %v4104
    %v4127 = vmul.f32 %v4054, %v4104
    %v4128 = vmul.f32 %v4059, %v4104
    %v4129 = vmul.f32 %v4064, %v4104
    %v4130 = vmul.f32 %v4069, %v4104
    %v4131 = vmul.f32 %v4074, %v4104
    %v4132 = vmul.f32 %v4079, %v4104
    %v4133 = vmul.f32 %v4084, %v4104
    %v4134 = vmul.f32 %v4089, %v4104
    %v4135 = vmul.f32 %v4094, %v4104
    %v4136 = vmul.f32 %v4099, %v4104
    %4137 = vset.pattern.permute.xlu0 1
    %4138 = vperm.xlu0 %4137, %v2624
    %v4139 = vpop.permute.xlu0 %4138
    %4141 = vset.pattern.permute.xlu0 1
    %4142 = vperm.xlu0 %4141, %v2629
    %v4143 = vpop.permute.xlu0 %4142
    %4145 = vset.pattern.permute.xlu0 1
    %4146 = vperm.xlu0 %4145, %v2699
    %v4147 = vpop.permute.xlu0 %4146
    %4149 = vset.pattern.permute.xlu0 1
    %4150 = vperm.xlu0 %4149, %v2704
    %v4151 = vpop.permute.xlu0 %4150
    %4153 = vset.pattern.permute.xlu0 1
    %4154 = vperm.xlu0 %4153, %v2774
    %v4155 = vpop.permute.xlu0 %4154
    %4157 = vset.pattern.permute.xlu0 1
    %4158 = vperm.xlu0 %4157, %v2779
    %v4159 = vpop.permute.xlu0 %4158
    %4161 = vset.pattern.permute.xlu0 1
    %4162 = vperm.xlu0 %4161, %v2849
    %v4163 = vpop.permute.xlu0 %4162
    %4165 = vset.pattern.permute.xlu0 1
    %4166 = vperm.xlu0 %4165, %v2854
    %v4167 = vpop.permute.xlu0 %4166
    %4169 = vset.pattern.permute.xlu0 1
    %4170 = vperm.xlu0 %4169, %v2924
    %v4171 = vpop.permute.xlu0 %4170
    %4173 = vset.pattern.permute.xlu0 1
    %4174 = vperm.xlu0 %4173, %v2929
    %v4175 = vpop.permute.xlu0 %4174
    %4177 = vset.pattern.permute.xlu0 1
    %4178 = vperm.xlu0 %4177, %v2999
    %v4179 = vpop.permute.xlu0 %4178
    %4181 = vset.pattern.permute.xlu0 1
    %4182 = vperm.xlu0 %4181, %v3004
    %v4183 = vpop.permute.xlu0 %4182
    %4185 = vset.pattern.permute.xlu0 1
    %4186 = vperm.xlu0 %4185, %v3074
    %v4187 = vpop.permute.xlu0 %4186
    %4189 = vset.pattern.permute.xlu0 1
    %4190 = vperm.xlu0 %4189, %v3079
    %v4191 = vpop.permute.xlu0 %4190
    %4193 = vset.pattern.permute.xlu0 1
    %4194 = vperm.xlu0 %4193, %v3149
    %v4195 = vpop.permute.xlu0 %4194
    %4197 = vset.pattern.permute.xlu0 1
    %4198 = vperm.xlu0 %4197, %v3154
    %v4199 = vpop.permute.xlu0 %4198
    %4201 = vset.pattern.permute.xlu0 1
    %4202 = vperm.xlu0 %4201, %v3224
    %v4203 = vpop.permute.xlu0 %4202
    %4205 = vset.pattern.permute.xlu0 1
    %4206 = vperm.xlu0 %4205, %v3229
    %v4207 = vpop.permute.xlu0 %4206
    %4209 = vset.pattern.permute.xlu0 1
    %4210 = vperm.xlu0 %4209, %v3299
    %v4211 = vpop.permute.xlu0 %4210
    %4213 = vset.pattern.permute.xlu0 1
    %4214 = vperm.xlu0 %4213, %v3304
    %v4215 = vpop.permute.xlu0 %4214
    %4217 = vset.pattern.permute.xlu0 1
    %4218 = vperm.xlu0 %4217, %v3374
    %v4219 = vpop.permute.xlu0 %4218
    %4221 = vset.pattern.permute.xlu0 1
    %4222 = vperm.xlu0 %4221, %v3379
    %v4223 = vpop.permute.xlu0 %4222
    %4225 = vset.pattern.permute.xlu0 1
    %4226 = vperm.xlu0 %4225, %v3449
    %v4227 = vpop.permute.xlu0 %4226
    %4229 = vset.pattern.permute.xlu0 1
    %4230 = vperm.xlu0 %4229, %v3454
    %v4231 = vpop.permute.xlu0 %4230
    %4233 = vset.pattern.permute.xlu0 1
    %4234 = vperm.xlu0 %4233, %v3524
    %v4235 = vpop.permute.xlu0 %4234
    %4237 = vset.pattern.permute.xlu0 1
    %4238 = vperm.xlu0 %4237, %v3529
    %v4239 = vpop.permute.xlu0 %4238
    %4241 = vset.pattern.permute.xlu0 1
    %4242 = vperm.xlu0 %4241, %v3599
    %v4243 = vpop.permute.xlu0 %4242
    %4245 = vset.pattern.permute.xlu0 1
    %4246 = vperm.xlu0 %4245, %v3604
    %v4247 = vpop.permute.xlu0 %4246
    %4249 = vset.pattern.permute.xlu0 1
    %4250 = vperm.xlu0 %4249, %v3674
    %v4251 = vpop.permute.xlu0 %4250
    %4253 = vset.pattern.permute.xlu0 1
    %4254 = vperm.xlu0 %4253, %v3679
    %v4255 = vpop.permute.xlu0 %4254
    %4257 = vset.pattern.permute.xlu0 1
    %4258 = vperm.xlu0 %4257, %v3749
    %v4259 = vpop.permute.xlu0 %4258
    %4261 = vset.pattern.permute.xlu0 1
    %4262 = vperm.xlu0 %4261, %v3754
    %v4263 = vpop.permute.xlu0 %4262
    %v4265 = vlaneseq
    %v4266 = vshrl.u32 %v4265, 7
    %v4267 = vsub.s32 1, %v4266
    %v4268 = vrot.slane %v3762, %v4267
    %v4269 = vmul.f32 %v4139, %v4268
    %v4270 = vmul.f32 %v4143, %v4268
    %v4271 = vmul.f32 %v4147, %v4268
    %v4272 = vmul.f32 %v4151, %v4268
    %v4273 = vmul.f32 %v4155, %v4268
    %v4274 = vmul.f32 %v4159, %v4268
    %v4275 = vmul.f32 %v4163, %v4268
    %v4276 = vmul.f32 %v4167, %v4268
    %v4277 = vmul.f32 %v4171, %v4268
    %v4278 = vmul.f32 %v4175, %v4268
    %v4279 = vmul.f32 %v4179, %v4268
    %v4280 = vmul.f32 %v4183, %v4268
    %v4281 = vmul.f32 %v4187, %v4268
    %v4282 = vmul.f32 %v4191, %v4268
    %v4283 = vmul.f32 %v4195, %v4268
    %v4284 = vmul.f32 %v4199, %v4268
    %v4285 = vmul.f32 %v4203, %v4268
    %v4286 = vmul.f32 %v4207, %v4268
    %v4287 = vmul.f32 %v4211, %v4268
    %v4288 = vmul.f32 %v4215, %v4268
    %v4289 = vmul.f32 %v4219, %v4268
    %v4290 = vmul.f32 %v4223, %v4268
    %v4291 = vmul.f32 %v4227, %v4268
    %v4292 = vmul.f32 %v4231, %v4268
    %v4293 = vmul.f32 %v4235, %v4268
    %v4294 = vmul.f32 %v4239, %v4268
    %v4295 = vmul.f32 %v4243, %v4268
    %v4296 = vmul.f32 %v4247, %v4268
    %v4297 = vmul.f32 %v4251, %v4268
    %v4298 = vmul.f32 %v4255, %v4268
    %v4299 = vmul.f32 %v4259, %v4268
    %v4300 = vmul.f32 %v4263, %v4268
    %v4301 = vadd.f32 %v4105, %v4269
    %v4302 = vadd.f32 %v4106, %v4270
    %v4303 = vadd.f32 %v4107, %v4271
    %v4304 = vadd.f32 %v4108, %v4272
    %v4305 = vadd.f32 %v4109, %v4273
    %v4306 = vadd.f32 %v4110, %v4274
    %v4307 = vadd.f32 %v4111, %v4275
    %v4308 = vadd.f32 %v4112, %v4276
    %v4309 = vadd.f32 %v4113, %v4277
    %v4310 = vadd.f32 %v4114, %v4278
    %v4311 = vadd.f32 %v4115, %v4279
    %v4312 = vadd.f32 %v4116, %v4280
    %v4313 = vadd.f32 %v4117, %v4281
    %v4314 = vadd.f32 %v4118, %v4282
    %v4315 = vadd.f32 %v4119, %v4283
    %v4316 = vadd.f32 %v4120, %v4284
    %v4317 = vadd.f32 %v4121, %v4285
    %v4318 = vadd.f32 %v4122, %v4286
    %v4319 = vadd.f32 %v4123, %v4287
    %v4320 = vadd.f32 %v4124, %v4288
    %v4321 = vadd.f32 %v4125, %v4289
    %v4322 = vadd.f32 %v4126, %v4290
    %v4323 = vadd.f32 %v4127, %v4291
    %v4324 = vadd.f32 %v4128, %v4292
    %v4325 = vadd.f32 %v4129, %v4293
    %v4326 = vadd.f32 %v4130, %v4294
    %v4327 = vadd.f32 %v4131, %v4295
    %v4328 = vadd.f32 %v4132, %v4296
    %v4329 = vadd.f32 %v4133, %v4297
    %v4330 = vadd.f32 %v4134, %v4298
    %v4331 = vadd.f32 %v4135, %v4299
    %v4332 = vadd.f32 %v4136, %v4300
    %4333 = vset.pattern.permute.xlu0 2
    %4334 = vperm.xlu0 %4333, %v2624
    %v4335 = vpop.permute.xlu0 %4334
    %4337 = vset.pattern.permute.xlu0 2
    %4338 = vperm.xlu0 %4337, %v2629
    %v4339 = vpop.permute.xlu0 %4338
    %4341 = vset.pattern.permute.xlu0 2
    %4342 = vperm.xlu0 %4341, %v2699
    %v4343 = vpop.permute.xlu0 %4342
    %4345 = vset.pattern.permute.xlu0 2
    %4346 = vperm.xlu0 %4345, %v2704
    %v4347 = vpop.permute.xlu0 %4346
    %4349 = vset.pattern.permute.xlu0 2
    %4350 = vperm.xlu0 %4349, %v2774
    %v4351 = vpop.permute.xlu0 %4350
    %4353 = vset.pattern.permute.xlu0 2
    %4354 = vperm.xlu0 %4353, %v2779
    %v4355 = vpop.permute.xlu0 %4354
    %4357 = vset.pattern.permute.xlu0 2
    %4358 = vperm.xlu0 %4357, %v2849
    %v4359 = vpop.permute.xlu0 %4358
    %4361 = vset.pattern.permute.xlu0 2
    %4362 = vperm.xlu0 %4361, %v2854
    %v4363 = vpop.permute.xlu0 %4362
    %4365 = vset.pattern.permute.xlu0 2
    %4366 = vperm.xlu0 %4365, %v2924
    %v4367 = vpop.permute.xlu0 %4366
    %4369 = vset.pattern.permute.xlu0 2
    %4370 = vperm.xlu0 %4369, %v2929
    %v4371 = vpop.permute.xlu0 %4370
    %4373 = vset.pattern.permute.xlu0 2
    %4374 = vperm.xlu0 %4373, %v2999
    %v4375 = vpop.permute.xlu0 %4374
    %4377 = vset.pattern.permute.xlu0 2
    %4378 = vperm.xlu0 %4377, %v3004
    %v4379 = vpop.permute.xlu0 %4378
    %4381 = vset.pattern.permute.xlu0 2
    %4382 = vperm.xlu0 %4381, %v3074
    %v4383 = vpop.permute.xlu0 %4382
    %4385 = vset.pattern.permute.xlu0 2
    %4386 = vperm.xlu0 %4385, %v3079
    %v4387 = vpop.permute.xlu0 %4386
    %4389 = vset.pattern.permute.xlu0 2
    %4390 = vperm.xlu0 %4389, %v3149
    %v4391 = vpop.permute.xlu0 %4390
    %4393 = vset.pattern.permute.xlu0 2
    %4394 = vperm.xlu0 %4393, %v3154
    %v4395 = vpop.permute.xlu0 %4394
    %4397 = vset.pattern.permute.xlu0 2
    %4398 = vperm.xlu0 %4397, %v3224
    %v4399 = vpop.permute.xlu0 %4398
    %4401 = vset.pattern.permute.xlu0 2
    %4402 = vperm.xlu0 %4401, %v3229
    %v4403 = vpop.permute.xlu0 %4402
    %4405 = vset.pattern.permute.xlu0 2
    %4406 = vperm.xlu0 %4405, %v3299
    %v4407 = vpop.permute.xlu0 %4406
    %4409 = vset.pattern.permute.xlu0 2
    %4410 = vperm.xlu0 %4409, %v3304
    %v4411 = vpop.permute.xlu0 %4410
    %4413 = vset.pattern.permute.xlu0 2
    %4414 = vperm.xlu0 %4413, %v3374
    %v4415 = vpop.permute.xlu0 %4414
    %4417 = vset.pattern.permute.xlu0 2
    %4418 = vperm.xlu0 %4417, %v3379
    %v4419 = vpop.permute.xlu0 %4418
    %4421 = vset.pattern.permute.xlu0 2
    %4422 = vperm.xlu0 %4421, %v3449
    %v4423 = vpop.permute.xlu0 %4422
    %4425 = vset.pattern.permute.xlu0 2
    %4426 = vperm.xlu0 %4425, %v3454
    %v4427 = vpop.permute.xlu0 %4426
    %4429 = vset.pattern.permute.xlu0 2
    %4430 = vperm.xlu0 %4429, %v3524
    %v4431 = vpop.permute.xlu0 %4430
    %4433 = vset.pattern.permute.xlu0 2
    %4434 = vperm.xlu0 %4433, %v3529
    %v4435 = vpop.permute.xlu0 %4434
    %4437 = vset.pattern.permute.xlu0 2
    %4438 = vperm.xlu0 %4437, %v3599
    %v4439 = vpop.permute.xlu0 %4438
    %4441 = vset.pattern.permute.xlu0 2
    %4442 = vperm.xlu0 %4441, %v3604
    %v4443 = vpop.permute.xlu0 %4442
    %4445 = vset.pattern.permute.xlu0 2
    %4446 = vperm.xlu0 %4445, %v3674
    %v4447 = vpop.permute.xlu0 %4446
    %4449 = vset.pattern.permute.xlu0 2
    %4450 = vperm.xlu0 %4449, %v3679
    %v4451 = vpop.permute.xlu0 %4450
    %4453 = vset.pattern.permute.xlu0 2
    %4454 = vperm.xlu0 %4453, %v3749
    %v4455 = vpop.permute.xlu0 %4454
    %4457 = vset.pattern.permute.xlu0 2
    %4458 = vperm.xlu0 %4457, %v3754
    %v4459 = vpop.permute.xlu0 %4458
    %v4461 = vlaneseq
    %v4462 = vshrl.u32 %v4461, 7
    %v4463 = vsub.s32 2, %v4462
    %v4464 = vrot.slane %v3762, %v4463
    %v4465 = vmul.f32 %v4335, %v4464
    %v4466 = vmul.f32 %v4339, %v4464
    %v4467 = vmul.f32 %v4343, %v4464
    %v4468 = vmul.f32 %v4347, %v4464
    %v4469 = vmul.f32 %v4351, %v4464
    %v4470 = vmul.f32 %v4355, %v4464
    %v4471 = vmul.f32 %v4359, %v4464
    %v4472 = vmul.f32 %v4363, %v4464
    %v4473 = vmul.f32 %v4367, %v4464
    %v4474 = vmul.f32 %v4371, %v4464
    %v4475 = vmul.f32 %v4375, %v4464
    %v4476 = vmul.f32 %v4379, %v4464
    %v4477 = vmul.f32 %v4383, %v4464
    %v4478 = vmul.f32 %v4387, %v4464
    %v4479 = vmul.f32 %v4391, %v4464
    %v4480 = vmul.f32 %v4395, %v4464
    %v4481 = vmul.f32 %v4399, %v4464
    %v4482 = vmul.f32 %v4403, %v4464
    %v4483 = vmul.f32 %v4407, %v4464
    %v4484 = vmul.f32 %v4411, %v4464
    %v4485 = vmul.f32 %v4415, %v4464
    %v4486 = vmul.f32 %v4419, %v4464
    %v4487 = vmul.f32 %v4423, %v4464
    %v4488 = vmul.f32 %v4427, %v4464
    %v4489 = vmul.f32 %v4431, %v4464
    %v4490 = vmul.f32 %v4435, %v4464
    %v4491 = vmul.f32 %v4439, %v4464
    %v4492 = vmul.f32 %v4443, %v4464
    %v4493 = vmul.f32 %v4447, %v4464
    %v4494 = vmul.f32 %v4451, %v4464
    %v4495 = vmul.f32 %v4455, %v4464
    %v4496 = vmul.f32 %v4459, %v4464
    %v4497 = vadd.f32 %v4301, %v4465
    %v4498 = vadd.f32 %v4302, %v4466
    %v4499 = vadd.f32 %v4303, %v4467
    %v4500 = vadd.f32 %v4304, %v4468
    %v4501 = vadd.f32 %v4305, %v4469
    %v4502 = vadd.f32 %v4306, %v4470
    %v4503 = vadd.f32 %v4307, %v4471
    %v4504 = vadd.f32 %v4308, %v4472
    %v4505 = vadd.f32 %v4309, %v4473
    %v4506 = vadd.f32 %v4310, %v4474
    %v4507 = vadd.f32 %v4311, %v4475
    %v4508 = vadd.f32 %v4312, %v4476
    %v4509 = vadd.f32 %v4313, %v4477
    %v4510 = vadd.f32 %v4314, %v4478
    %v4511 = vadd.f32 %v4315, %v4479
    %v4512 = vadd.f32 %v4316, %v4480
    %v4513 = vadd.f32 %v4317, %v4481
    %v4514 = vadd.f32 %v4318, %v4482
    %v4515 = vadd.f32 %v4319, %v4483
    %v4516 = vadd.f32 %v4320, %v4484
    %v4517 = vadd.f32 %v4321, %v4485
    %v4518 = vadd.f32 %v4322, %v4486
    %v4519 = vadd.f32 %v4323, %v4487
    %v4520 = vadd.f32 %v4324, %v4488
    %v4521 = vadd.f32 %v4325, %v4489
    %v4522 = vadd.f32 %v4326, %v4490
    %v4523 = vadd.f32 %v4327, %v4491
    %v4524 = vadd.f32 %v4328, %v4492
    %v4525 = vadd.f32 %v4329, %v4493
    %v4526 = vadd.f32 %v4330, %v4494
    %v4527 = vadd.f32 %v4331, %v4495
    %v4528 = vadd.f32 %v4332, %v4496
    %4529 = vset.pattern.permute.xlu0 3
    %4530 = vperm.xlu0 %4529, %v2624
    %v4531 = vpop.permute.xlu0 %4530
    %4533 = vset.pattern.permute.xlu0 3
    %4534 = vperm.xlu0 %4533, %v2629
    %v4535 = vpop.permute.xlu0 %4534
    %4537 = vset.pattern.permute.xlu0 3
    %4538 = vperm.xlu0 %4537, %v2699
    %v4539 = vpop.permute.xlu0 %4538
    %4541 = vset.pattern.permute.xlu0 3
    %4542 = vperm.xlu0 %4541, %v2704
    %v4543 = vpop.permute.xlu0 %4542
    %4545 = vset.pattern.permute.xlu0 3
    %4546 = vperm.xlu0 %4545, %v2774
    %v4547 = vpop.permute.xlu0 %4546
    %4549 = vset.pattern.permute.xlu0 3
    %4550 = vperm.xlu0 %4549, %v2779
    %v4551 = vpop.permute.xlu0 %4550
    %4553 = vset.pattern.permute.xlu0 3
    %4554 = vperm.xlu0 %4553, %v2849
    %v4555 = vpop.permute.xlu0 %4554
    %4557 = vset.pattern.permute.xlu0 3
    %4558 = vperm.xlu0 %4557, %v2854
    %v4559 = vpop.permute.xlu0 %4558
    %4561 = vset.pattern.permute.xlu0 3
    %4562 = vperm.xlu0 %4561, %v2924
    %v4563 = vpop.permute.xlu0 %4562
    %4565 = vset.pattern.permute.xlu0 3
    %4566 = vperm.xlu0 %4565, %v2929
    %v4567 = vpop.permute.xlu0 %4566
    %4569 = vset.pattern.permute.xlu0 3
    %4570 = vperm.xlu0 %4569, %v2999
    %v4571 = vpop.permute.xlu0 %4570
    %4573 = vset.pattern.permute.xlu0 3
    %4574 = vperm.xlu0 %4573, %v3004
    %v4575 = vpop.permute.xlu0 %4574
    %4577 = vset.pattern.permute.xlu0 3
    %4578 = vperm.xlu0 %4577, %v3074
    %v4579 = vpop.permute.xlu0 %4578
    %4581 = vset.pattern.permute.xlu0 3
    %4582 = vperm.xlu0 %4581, %v3079
    %v4583 = vpop.permute.xlu0 %4582
    %4585 = vset.pattern.permute.xlu0 3
    %4586 = vperm.xlu0 %4585, %v3149
    %v4587 = vpop.permute.xlu0 %4586
    %4589 = vset.pattern.permute.xlu0 3
    %4590 = vperm.xlu0 %4589, %v3154
    %v4591 = vpop.permute.xlu0 %4590
    %4593 = vset.pattern.permute.xlu0 3
    %4594 = vperm.xlu0 %4593, %v3224
    %v4595 = vpop.permute.xlu0 %4594
    %4597 = vset.pattern.permute.xlu0 3
    %4598 = vperm.xlu0 %4597, %v3229
    %v4599 = vpop.permute.xlu0 %4598
    %4601 = vset.pattern.permute.xlu0 3
    %4602 = vperm.xlu0 %4601, %v3299
    %v4603 = vpop.permute.xlu0 %4602
    %4605 = vset.pattern.permute.xlu0 3
    %4606 = vperm.xlu0 %4605, %v3304
    %v4607 = vpop.permute.xlu0 %4606
    %4609 = vset.pattern.permute.xlu0 3
    %4610 = vperm.xlu0 %4609, %v3374
    %v4611 = vpop.permute.xlu0 %4610
    %4613 = vset.pattern.permute.xlu0 3
    %4614 = vperm.xlu0 %4613, %v3379
    %v4615 = vpop.permute.xlu0 %4614
    %4617 = vset.pattern.permute.xlu0 3
    %4618 = vperm.xlu0 %4617, %v3449
    %v4619 = vpop.permute.xlu0 %4618
    %4621 = vset.pattern.permute.xlu0 3
    %4622 = vperm.xlu0 %4621, %v3454
    %v4623 = vpop.permute.xlu0 %4622
    %4625 = vset.pattern.permute.xlu0 3
    %4626 = vperm.xlu0 %4625, %v3524
    %v4627 = vpop.permute.xlu0 %4626
    %4629 = vset.pattern.permute.xlu0 3
    %4630 = vperm.xlu0 %4629, %v3529
    %v4631 = vpop.permute.xlu0 %4630
    %4633 = vset.pattern.permute.xlu0 3
    %4634 = vperm.xlu0 %4633, %v3599
    %v4635 = vpop.permute.xlu0 %4634
    %4637 = vset.pattern.permute.xlu0 3
    %4638 = vperm.xlu0 %4637, %v3604
    %v4639 = vpop.permute.xlu0 %4638
    %4641 = vset.pattern.permute.xlu0 3
    %4642 = vperm.xlu0 %4641, %v3674
    %v4643 = vpop.permute.xlu0 %4642
    %4645 = vset.pattern.permute.xlu0 3
    %4646 = vperm.xlu0 %4645, %v3679
    %v4647 = vpop.permute.xlu0 %4646
    %4649 = vset.pattern.permute.xlu0 3
    %4650 = vperm.xlu0 %4649, %v3749
    %v4651 = vpop.permute.xlu0 %4650
    %4653 = vset.pattern.permute.xlu0 3
    %4654 = vperm.xlu0 %4653, %v3754
    %v4655 = vpop.permute.xlu0 %4654
    %v4657 = vlaneseq
    %v4658 = vshrl.u32 %v4657, 7
    %v4659 = vsub.s32 3, %v4658
    %v4660 = vrot.slane %v3762, %v4659
    %v4661 = vmul.f32 %v4531, %v4660
    %v4662 = vmul.f32 %v4535, %v4660
    %v4663 = vmul.f32 %v4539, %v4660
    %v4664 = vmul.f32 %v4543, %v4660
    %v4665 = vmul.f32 %v4547, %v4660
    %v4666 = vmul.f32 %v4551, %v4660
    %v4667 = vmul.f32 %v4555, %v4660
    %v4668 = vmul.f32 %v4559, %v4660
    %v4669 = vmul.f32 %v4563, %v4660
    %v4670 = vmul.f32 %v4567, %v4660
    %v4671 = vmul.f32 %v4571, %v4660
    %v4672 = vmul.f32 %v4575, %v4660
    %v4673 = vmul.f32 %v4579, %v4660
    %v4674 = vmul.f32 %v4583, %v4660
    %v4675 = vmul.f32 %v4587, %v4660
    %v4676 = vmul.f32 %v4591, %v4660
    %v4677 = vmul.f32 %v4595, %v4660
    %v4678 = vmul.f32 %v4599, %v4660
    %v4679 = vmul.f32 %v4603, %v4660
    %v4680 = vmul.f32 %v4607, %v4660
    %v4681 = vmul.f32 %v4611, %v4660
    %v4682 = vmul.f32 %v4615, %v4660
    %v4683 = vmul.f32 %v4619, %v4660
    %v4684 = vmul.f32 %v4623, %v4660
    %v4685 = vmul.f32 %v4627, %v4660
    %v4686 = vmul.f32 %v4631, %v4660
    %v4687 = vmul.f32 %v4635, %v4660
    %v4688 = vmul.f32 %v4639, %v4660
    %v4689 = vmul.f32 %v4643, %v4660
    %v4690 = vmul.f32 %v4647, %v4660
    %v4691 = vmul.f32 %v4651, %v4660
    %v4692 = vmul.f32 %v4655, %v4660
    %v4693 = vadd.f32 %v4497, %v4661
    %v4694 = vadd.f32 %v4498, %v4662
    %v4695 = vadd.f32 %v4499, %v4663
    %v4696 = vadd.f32 %v4500, %v4664
    %v4697 = vadd.f32 %v4501, %v4665
    %v4698 = vadd.f32 %v4502, %v4666
    %v4699 = vadd.f32 %v4503, %v4667
    %v4700 = vadd.f32 %v4504, %v4668
    %v4701 = vadd.f32 %v4505, %v4669
    %v4702 = vadd.f32 %v4506, %v4670
    %v4703 = vadd.f32 %v4507, %v4671
    %v4704 = vadd.f32 %v4508, %v4672
    %v4705 = vadd.f32 %v4509, %v4673
    %v4706 = vadd.f32 %v4510, %v4674
    %v4707 = vadd.f32 %v4511, %v4675
    %v4708 = vadd.f32 %v4512, %v4676
    %v4709 = vadd.f32 %v4513, %v4677
    %v4710 = vadd.f32 %v4514, %v4678
    %v4711 = vadd.f32 %v4515, %v4679
    %v4712 = vadd.f32 %v4516, %v4680
    %v4713 = vadd.f32 %v4517, %v4681
    %v4714 = vadd.f32 %v4518, %v4682
    %v4715 = vadd.f32 %v4519, %v4683
    %v4716 = vadd.f32 %v4520, %v4684
    %v4717 = vadd.f32 %v4521, %v4685
    %v4718 = vadd.f32 %v4522, %v4686
    %v4719 = vadd.f32 %v4523, %v4687
    %v4720 = vadd.f32 %v4524, %v4688
    %v4721 = vadd.f32 %v4525, %v4689
    %v4722 = vadd.f32 %v4526, %v4690
    %v4723 = vadd.f32 %v4527, %v4691
    %v4724 = vadd.f32 %v4528, %v4692
    %4725 = vset.pattern.permute.xlu0 4
    %4726 = vperm.xlu0 %4725, %v2624
    %v4727 = vpop.permute.xlu0 %4726
    %4729 = vset.pattern.permute.xlu0 4
    %4730 = vperm.xlu0 %4729, %v2629
    %v4731 = vpop.permute.xlu0 %4730
    %4733 = vset.pattern.permute.xlu0 4
    %4734 = vperm.xlu0 %4733, %v2699
    %v4735 = vpop.permute.xlu0 %4734
    %4737 = vset.pattern.permute.xlu0 4
    %4738 = vperm.xlu0 %4737, %v2704
    %v4739 = vpop.permute.xlu0 %4738
    %4741 = vset.pattern.permute.xlu0 4
    %4742 = vperm.xlu0 %4741, %v2774
    %v4743 = vpop.permute.xlu0 %4742
    %4745 = vset.pattern.permute.xlu0 4
    %4746 = vperm.xlu0 %4745, %v2779
    %v4747 = vpop.permute.xlu0 %4746
    %4749 = vset.pattern.permute.xlu0 4
    %4750 = vperm.xlu0 %4749, %v2849
    %v4751 = vpop.permute.xlu0 %4750
    %4753 = vset.pattern.permute.xlu0 4
    %4754 = vperm.xlu0 %4753, %v2854
    %v4755 = vpop.permute.xlu0 %4754
    %4757 = vset.pattern.permute.xlu0 4
    %4758 = vperm.xlu0 %4757, %v2924
    %v4759 = vpop.permute.xlu0 %4758
    %4761 = vset.pattern.permute.xlu0 4
    %4762 = vperm.xlu0 %4761, %v2929
    %v4763 = vpop.permute.xlu0 %4762
    %4765 = vset.pattern.permute.xlu0 4
    %4766 = vperm.xlu0 %4765, %v2999
    %v4767 = vpop.permute.xlu0 %4766
    %4769 = vset.pattern.permute.xlu0 4
    %4770 = vperm.xlu0 %4769, %v3004
    %v4771 = vpop.permute.xlu0 %4770
    %4773 = vset.pattern.permute.xlu0 4
    %4774 = vperm.xlu0 %4773, %v3074
    %v4775 = vpop.permute.xlu0 %4774
    %4777 = vset.pattern.permute.xlu0 4
    %4778 = vperm.xlu0 %4777, %v3079
    %v4779 = vpop.permute.xlu0 %4778
    %4781 = vset.pattern.permute.xlu0 4
    %4782 = vperm.xlu0 %4781, %v3149
    %v4783 = vpop.permute.xlu0 %4782
    %4785 = vset.pattern.permute.xlu0 4
    %4786 = vperm.xlu0 %4785, %v3154
    %v4787 = vpop.permute.xlu0 %4786
    %4789 = vset.pattern.permute.xlu0 4
    %4790 = vperm.xlu0 %4789, %v3224
    %v4791 = vpop.permute.xlu0 %4790
    %4793 = vset.pattern.permute.xlu0 4
    %4794 = vperm.xlu0 %4793, %v3229
    %v4795 = vpop.permute.xlu0 %4794
    %4797 = vset.pattern.permute.xlu0 4
    %4798 = vperm.xlu0 %4797, %v3299
    %v4799 = vpop.permute.xlu0 %4798
    %4801 = vset.pattern.permute.xlu0 4
    %4802 = vperm.xlu0 %4801, %v3304
    %v4803 = vpop.permute.xlu0 %4802
    %4805 = vset.pattern.permute.xlu0 4
    %4806 = vperm.xlu0 %4805, %v3374
    %v4807 = vpop.permute.xlu0 %4806
    %4809 = vset.pattern.permute.xlu0 4
    %4810 = vperm.xlu0 %4809, %v3379
    %v4811 = vpop.permute.xlu0 %4810
    %4813 = vset.pattern.permute.xlu0 4
    %4814 = vperm.xlu0 %4813, %v3449
    %v4815 = vpop.permute.xlu0 %4814
    %4817 = vset.pattern.permute.xlu0 4
    %4818 = vperm.xlu0 %4817, %v3454
    %v4819 = vpop.permute.xlu0 %4818
    %4821 = vset.pattern.permute.xlu0 4
    %4822 = vperm.xlu0 %4821, %v3524
    %v4823 = vpop.permute.xlu0 %4822
    %4825 = vset.pattern.permute.xlu0 4
    %4826 = vperm.xlu0 %4825, %v3529
    %v4827 = vpop.permute.xlu0 %4826
    %4829 = vset.pattern.permute.xlu0 4
    %4830 = vperm.xlu0 %4829, %v3599
    %v4831 = vpop.permute.xlu0 %4830
    %4833 = vset.pattern.permute.xlu0 4
    %4834 = vperm.xlu0 %4833, %v3604
    %v4835 = vpop.permute.xlu0 %4834
    %4837 = vset.pattern.permute.xlu0 4
    %4838 = vperm.xlu0 %4837, %v3674
    %v4839 = vpop.permute.xlu0 %4838
    %4841 = vset.pattern.permute.xlu0 4
    %4842 = vperm.xlu0 %4841, %v3679
    %v4843 = vpop.permute.xlu0 %4842
    %4845 = vset.pattern.permute.xlu0 4
    %4846 = vperm.xlu0 %4845, %v3749
    %v4847 = vpop.permute.xlu0 %4846
    %4849 = vset.pattern.permute.xlu0 4
    %4850 = vperm.xlu0 %4849, %v3754
    %v4851 = vpop.permute.xlu0 %4850
    %v4853 = vlaneseq
    %v4854 = vshrl.u32 %v4853, 7
    %v4855 = vsub.s32 4, %v4854
    %v4856 = vrot.slane %v3762, %v4855
    %v4857 = vmul.f32 %v4727, %v4856
    %v4858 = vmul.f32 %v4731, %v4856
    %v4859 = vmul.f32 %v4735, %v4856
    %v4860 = vmul.f32 %v4739, %v4856
    %v4861 = vmul.f32 %v4743, %v4856
    %v4862 = vmul.f32 %v4747, %v4856
    %v4863 = vmul.f32 %v4751, %v4856
    %v4864 = vmul.f32 %v4755, %v4856
    %v4865 = vmul.f32 %v4759, %v4856
    %v4866 = vmul.f32 %v4763, %v4856
    %v4867 = vmul.f32 %v4767, %v4856
    %v4868 = vmul.f32 %v4771, %v4856
    %v4869 = vmul.f32 %v4775, %v4856
    %v4870 = vmul.f32 %v4779, %v4856
    %v4871 = vmul.f32 %v4783, %v4856
    %v4872 = vmul.f32 %v4787, %v4856
    %v4873 = vmul.f32 %v4791, %v4856
    %v4874 = vmul.f32 %v4795, %v4856
    %v4875 = vmul.f32 %v4799, %v4856
    %v4876 = vmul.f32 %v4803, %v4856
    %v4877 = vmul.f32 %v4807, %v4856
    %v4878 = vmul.f32 %v4811, %v4856
    %v4879 = vmul.f32 %v4815, %v4856
    %v4880 = vmul.f32 %v4819, %v4856
    %v4881 = vmul.f32 %v4823, %v4856
    %v4882 = vmul.f32 %v4827, %v4856
    %v4883 = vmul.f32 %v4831, %v4856
    %v4884 = vmul.f32 %v4835, %v4856
    %v4885 = vmul.f32 %v4839, %v4856
    %v4886 = vmul.f32 %v4843, %v4856
    %v4887 = vmul.f32 %v4847, %v4856
    %v4888 = vmul.f32 %v4851, %v4856
    %v4889 = vadd.f32 %v4693, %v4857
    %v4890 = vadd.f32 %v4694, %v4858
    %v4891 = vadd.f32 %v4695, %v4859
    %v4892 = vadd.f32 %v4696, %v4860
    %v4893 = vadd.f32 %v4697, %v4861
    %v4894 = vadd.f32 %v4698, %v4862
    %v4895 = vadd.f32 %v4699, %v4863
    %v4896 = vadd.f32 %v4700, %v4864
    %v4897 = vadd.f32 %v4701, %v4865
    %v4898 = vadd.f32 %v4702, %v4866
    %v4899 = vadd.f32 %v4703, %v4867
    %v4900 = vadd.f32 %v4704, %v4868
    %v4901 = vadd.f32 %v4705, %v4869
    %v4902 = vadd.f32 %v4706, %v4870
    %v4903 = vadd.f32 %v4707, %v4871
    %v4904 = vadd.f32 %v4708, %v4872
    %v4905 = vadd.f32 %v4709, %v4873
    %v4906 = vadd.f32 %v4710, %v4874
    %v4907 = vadd.f32 %v4711, %v4875
    %v4908 = vadd.f32 %v4712, %v4876
    %v4909 = vadd.f32 %v4713, %v4877
    %v4910 = vadd.f32 %v4714, %v4878
    %v4911 = vadd.f32 %v4715, %v4879
    %v4912 = vadd.f32 %v4716, %v4880
    %v4913 = vadd.f32 %v4717, %v4881
    %v4914 = vadd.f32 %v4718, %v4882
    %v4915 = vadd.f32 %v4719, %v4883
    %v4916 = vadd.f32 %v4720, %v4884
    %v4917 = vadd.f32 %v4721, %v4885
    %v4918 = vadd.f32 %v4722, %v4886
    %v4919 = vadd.f32 %v4723, %v4887
    %v4920 = vadd.f32 %v4724, %v4888
    %4921 = vset.pattern.permute.xlu0 5
    %4922 = vperm.xlu0 %4921, %v2624
    %v4923 = vpop.permute.xlu0 %4922
    %4925 = vset.pattern.permute.xlu0 5
    %4926 = vperm.xlu0 %4925, %v2629
    %v4927 = vpop.permute.xlu0 %4926
    %4929 = vset.pattern.permute.xlu0 5
    %4930 = vperm.xlu0 %4929, %v2699
    %v4931 = vpop.permute.xlu0 %4930
    %4933 = vset.pattern.permute.xlu0 5
    %4934 = vperm.xlu0 %4933, %v2704
    %v4935 = vpop.permute.xlu0 %4934
    %4937 = vset.pattern.permute.xlu0 5
    %4938 = vperm.xlu0 %4937, %v2774
    %v4939 = vpop.permute.xlu0 %4938
    %4941 = vset.pattern.permute.xlu0 5
    %4942 = vperm.xlu0 %4941, %v2779
    %v4943 = vpop.permute.xlu0 %4942
    %4945 = vset.pattern.permute.xlu0 5
    %4946 = vperm.xlu0 %4945, %v2849
    %v4947 = vpop.permute.xlu0 %4946
    %4949 = vset.pattern.permute.xlu0 5
    %4950 = vperm.xlu0 %4949, %v2854
    %v4951 = vpop.permute.xlu0 %4950
    %4953 = vset.pattern.permute.xlu0 5
    %4954 = vperm.xlu0 %4953, %v2924
    %v4955 = vpop.permute.xlu0 %4954
    %4957 = vset.pattern.permute.xlu0 5
    %4958 = vperm.xlu0 %4957, %v2929
    %v4959 = vpop.permute.xlu0 %4958
    %4961 = vset.pattern.permute.xlu0 5
    %4962 = vperm.xlu0 %4961, %v2999
    %v4963 = vpop.permute.xlu0 %4962
    %4965 = vset.pattern.permute.xlu0 5
    %4966 = vperm.xlu0 %4965, %v3004
    %v4967 = vpop.permute.xlu0 %4966
    %4969 = vset.pattern.permute.xlu0 5
    %4970 = vperm.xlu0 %4969, %v3074
    %v4971 = vpop.permute.xlu0 %4970
    %4973 = vset.pattern.permute.xlu0 5
    %4974 = vperm.xlu0 %4973, %v3079
    %v4975 = vpop.permute.xlu0 %4974
    %4977 = vset.pattern.permute.xlu0 5
    %4978 = vperm.xlu0 %4977, %v3149
    %v4979 = vpop.permute.xlu0 %4978
    %4981 = vset.pattern.permute.xlu0 5
    %4982 = vperm.xlu0 %4981, %v3154
    %v4983 = vpop.permute.xlu0 %4982
    %4985 = vset.pattern.permute.xlu0 5
    %4986 = vperm.xlu0 %4985, %v3224
    %v4987 = vpop.permute.xlu0 %4986
    %4989 = vset.pattern.permute.xlu0 5
    %4990 = vperm.xlu0 %4989, %v3229
    %v4991 = vpop.permute.xlu0 %4990
    %4993 = vset.pattern.permute.xlu0 5
    %4994 = vperm.xlu0 %4993, %v3299
    %v4995 = vpop.permute.xlu0 %4994
    %4997 = vset.pattern.permute.xlu0 5
    %4998 = vperm.xlu0 %4997, %v3304
    %v4999 = vpop.permute.xlu0 %4998
    %5001 = vset.pattern.permute.xlu0 5
    %5002 = vperm.xlu0 %5001, %v3374
    %v5003 = vpop.permute.xlu0 %5002
    %5005 = vset.pattern.permute.xlu0 5
    %5006 = vperm.xlu0 %5005, %v3379
    %v5007 = vpop.permute.xlu0 %5006
    %5009 = vset.pattern.permute.xlu0 5
    %5010 = vperm.xlu0 %5009, %v3449
    %v5011 = vpop.permute.xlu0 %5010
    %5013 = vset.pattern.permute.xlu0 5
    %5014 = vperm.xlu0 %5013, %v3454
    %v5015 = vpop.permute.xlu0 %5014
    %5017 = vset.pattern.permute.xlu0 5
    %5018 = vperm.xlu0 %5017, %v3524
    %v5019 = vpop.permute.xlu0 %5018
    %5021 = vset.pattern.permute.xlu0 5
    %5022 = vperm.xlu0 %5021, %v3529
    %v5023 = vpop.permute.xlu0 %5022
    %5025 = vset.pattern.permute.xlu0 5
    %5026 = vperm.xlu0 %5025, %v3599
    %v5027 = vpop.permute.xlu0 %5026
    %5029 = vset.pattern.permute.xlu0 5
    %5030 = vperm.xlu0 %5029, %v3604
    %v5031 = vpop.permute.xlu0 %5030
    %5033 = vset.pattern.permute.xlu0 5
    %5034 = vperm.xlu0 %5033, %v3674
    %v5035 = vpop.permute.xlu0 %5034
    %5037 = vset.pattern.permute.xlu0 5
    %5038 = vperm.xlu0 %5037, %v3679
    %v5039 = vpop.permute.xlu0 %5038
    %5041 = vset.pattern.permute.xlu0 5
    %5042 = vperm.xlu0 %5041, %v3749
    %v5043 = vpop.permute.xlu0 %5042
    %5045 = vset.pattern.permute.xlu0 5
    %5046 = vperm.xlu0 %5045, %v3754
    %v5047 = vpop.permute.xlu0 %5046
    %v5049 = vlaneseq
    %v5050 = vshrl.u32 %v5049, 7
    %v5051 = vsub.s32 5, %v5050
    %v5052 = vrot.slane %v3762, %v5051
    %v5053 = vmul.f32 %v4923, %v5052
    %v5054 = vmul.f32 %v4927, %v5052
    %v5055 = vmul.f32 %v4931, %v5052
    %v5056 = vmul.f32 %v4935, %v5052
    %v5057 = vmul.f32 %v4939, %v5052
    %v5058 = vmul.f32 %v4943, %v5052
    %v5059 = vmul.f32 %v4947, %v5052
    %v5060 = vmul.f32 %v4951, %v5052
    %v5061 = vmul.f32 %v4955, %v5052
    %v5062 = vmul.f32 %v4959, %v5052
    %v5063 = vmul.f32 %v4963, %v5052
    %v5064 = vmul.f32 %v4967, %v5052
    %v5065 = vmul.f32 %v4971, %v5052
    %v5066 = vmul.f32 %v4975, %v5052
    %v5067 = vmul.f32 %v4979, %v5052
    %v5068 = vmul.f32 %v4983, %v5052
    %v5069 = vmul.f32 %v4987, %v5052
    %v5070 = vmul.f32 %v4991, %v5052
    %v5071 = vmul.f32 %v4995, %v5052
    %v5072 = vmul.f32 %v4999, %v5052
    %v5073 = vmul.f32 %v5003, %v5052
    %v5074 = vmul.f32 %v5007, %v5052
    %v5075 = vmul.f32 %v5011, %v5052
    %v5076 = vmul.f32 %v5015, %v5052
    %v5077 = vmul.f32 %v5019, %v5052
    %v5078 = vmul.f32 %v5023, %v5052
    %v5079 = vmul.f32 %v5027, %v5052
    %v5080 = vmul.f32 %v5031, %v5052
    %v5081 = vmul.f32 %v5035, %v5052
    %v5082 = vmul.f32 %v5039, %v5052
    %v5083 = vmul.f32 %v5043, %v5052
    %v5084 = vmul.f32 %v5047, %v5052
    %v5085 = vadd.f32 %v4889, %v5053
    %v5086 = vadd.f32 %v4890, %v5054
    %v5087 = vadd.f32 %v4891, %v5055
    %v5088 = vadd.f32 %v4892, %v5056
    %v5089 = vadd.f32 %v4893, %v5057
    %v5090 = vadd.f32 %v4894, %v5058
    %v5091 = vadd.f32 %v4895, %v5059
    %v5092 = vadd.f32 %v4896, %v5060
    %v5093 = vadd.f32 %v4897, %v5061
    %v5094 = vadd.f32 %v4898, %v5062
    %v5095 = vadd.f32 %v4899, %v5063
    %v5096 = vadd.f32 %v4900, %v5064
    %v5097 = vadd.f32 %v4901, %v5065
    %v5098 = vadd.f32 %v4902, %v5066
    %v5099 = vadd.f32 %v4903, %v5067
    %v5100 = vadd.f32 %v4904, %v5068
    %v5101 = vadd.f32 %v4905, %v5069
    %v5102 = vadd.f32 %v4906, %v5070
    %v5103 = vadd.f32 %v4907, %v5071
    %v5104 = vadd.f32 %v4908, %v5072
    %v5105 = vadd.f32 %v4909, %v5073
    %v5106 = vadd.f32 %v4910, %v5074
    %v5107 = vadd.f32 %v4911, %v5075
    %v5108 = vadd.f32 %v4912, %v5076
    %v5109 = vadd.f32 %v4913, %v5077
    %v5110 = vadd.f32 %v4914, %v5078
    %v5111 = vadd.f32 %v4915, %v5079
    %v5112 = vadd.f32 %v4916, %v5080
    %v5113 = vadd.f32 %v4917, %v5081
    %v5114 = vadd.f32 %v4918, %v5082
    %v5115 = vadd.f32 %v4919, %v5083
    %v5116 = vadd.f32 %v4920, %v5084
    %5117 = vset.pattern.permute.xlu0 6
    %5118 = vperm.xlu0 %5117, %v2624
    %v5119 = vpop.permute.xlu0 %5118
    %5121 = vset.pattern.permute.xlu0 6
    %5122 = vperm.xlu0 %5121, %v2629
    %v5123 = vpop.permute.xlu0 %5122
    %5125 = vset.pattern.permute.xlu0 6
    %5126 = vperm.xlu0 %5125, %v2699
    %v5127 = vpop.permute.xlu0 %5126
    %5129 = vset.pattern.permute.xlu0 6
    %5130 = vperm.xlu0 %5129, %v2704
    %v5131 = vpop.permute.xlu0 %5130
    %5133 = vset.pattern.permute.xlu0 6
    %5134 = vperm.xlu0 %5133, %v2774
    %v5135 = vpop.permute.xlu0 %5134
    %5137 = vset.pattern.permute.xlu0 6
    %5138 = vperm.xlu0 %5137, %v2779
    %v5139 = vpop.permute.xlu0 %5138
    %5141 = vset.pattern.permute.xlu0 6
    %5142 = vperm.xlu0 %5141, %v2849
    %v5143 = vpop.permute.xlu0 %5142
    %5145 = vset.pattern.permute.xlu0 6
    %5146 = vperm.xlu0 %5145, %v2854
    %v5147 = vpop.permute.xlu0 %5146
    %5149 = vset.pattern.permute.xlu0 6
    %5150 = vperm.xlu0 %5149, %v2924
    %v5151 = vpop.permute.xlu0 %5150
    %5153 = vset.pattern.permute.xlu0 6
    %5154 = vperm.xlu0 %5153, %v2929
    %v5155 = vpop.permute.xlu0 %5154
    %5157 = vset.pattern.permute.xlu0 6
    %5158 = vperm.xlu0 %5157, %v2999
    %v5159 = vpop.permute.xlu0 %5158
    %5161 = vset.pattern.permute.xlu0 6
    %5162 = vperm.xlu0 %5161, %v3004
    %v5163 = vpop.permute.xlu0 %5162
    %5165 = vset.pattern.permute.xlu0 6
    %5166 = vperm.xlu0 %5165, %v3074
    %v5167 = vpop.permute.xlu0 %5166
    %5169 = vset.pattern.permute.xlu0 6
    %5170 = vperm.xlu0 %5169, %v3079
    %v5171 = vpop.permute.xlu0 %5170
    %5173 = vset.pattern.permute.xlu0 6
    %5174 = vperm.xlu0 %5173, %v3149
    %v5175 = vpop.permute.xlu0 %5174
    %5177 = vset.pattern.permute.xlu0 6
    %5178 = vperm.xlu0 %5177, %v3154
    %v5179 = vpop.permute.xlu0 %5178
    %5181 = vset.pattern.permute.xlu0 6
    %5182 = vperm.xlu0 %5181, %v3224
    %v5183 = vpop.permute.xlu0 %5182
    %5185 = vset.pattern.permute.xlu0 6
    %5186 = vperm.xlu0 %5185, %v3229
    %v5187 = vpop.permute.xlu0 %5186
    %5189 = vset.pattern.permute.xlu0 6
    %5190 = vperm.xlu0 %5189, %v3299
    %v5191 = vpop.permute.xlu0 %5190
    %5193 = vset.pattern.permute.xlu0 6
    %5194 = vperm.xlu0 %5193, %v3304
    %v5195 = vpop.permute.xlu0 %5194
    %5197 = vset.pattern.permute.xlu0 6
    %5198 = vperm.xlu0 %5197, %v3374
    %v5199 = vpop.permute.xlu0 %5198
    %5201 = vset.pattern.permute.xlu0 6
    %5202 = vperm.xlu0 %5201, %v3379
    %v5203 = vpop.permute.xlu0 %5202
    %5205 = vset.pattern.permute.xlu0 6
    %5206 = vperm.xlu0 %5205, %v3449
    %v5207 = vpop.permute.xlu0 %5206
    %5209 = vset.pattern.permute.xlu0 6
    %5210 = vperm.xlu0 %5209, %v3454
    %v5211 = vpop.permute.xlu0 %5210
    %5213 = vset.pattern.permute.xlu0 6
    %5214 = vperm.xlu0 %5213, %v3524
    %v5215 = vpop.permute.xlu0 %5214
    %5217 = vset.pattern.permute.xlu0 6
    %5218 = vperm.xlu0 %5217, %v3529
    %v5219 = vpop.permute.xlu0 %5218
    %5221 = vset.pattern.permute.xlu0 6
    %5222 = vperm.xlu0 %5221, %v3599
    %v5223 = vpop.permute.xlu0 %5222
    %5225 = vset.pattern.permute.xlu0 6
    %5226 = vperm.xlu0 %5225, %v3604
    %v5227 = vpop.permute.xlu0 %5226
    %5229 = vset.pattern.permute.xlu0 6
    %5230 = vperm.xlu0 %5229, %v3674
    %v5231 = vpop.permute.xlu0 %5230
    %5233 = vset.pattern.permute.xlu0 6
    %5234 = vperm.xlu0 %5233, %v3679
    %v5235 = vpop.permute.xlu0 %5234
    %5237 = vset.pattern.permute.xlu0 6
    %5238 = vperm.xlu0 %5237, %v3749
    %v5239 = vpop.permute.xlu0 %5238
    %5241 = vset.pattern.permute.xlu0 6
    %5242 = vperm.xlu0 %5241, %v3754
    %v5243 = vpop.permute.xlu0 %5242
    %v5245 = vlaneseq
    %v5246 = vshrl.u32 %v5245, 7
    %v5247 = vsub.s32 6, %v5246
    %v5248 = vrot.slane %v3762, %v5247
    %v5249 = vmul.f32 %v5119, %v5248
    %v5250 = vmul.f32 %v5123, %v5248
    %v5251 = vmul.f32 %v5127, %v5248
    %v5252 = vmul.f32 %v5131, %v5248
    %v5253 = vmul.f32 %v5135, %v5248
    %v5254 = vmul.f32 %v5139, %v5248
    %v5255 = vmul.f32 %v5143, %v5248
    %v5256 = vmul.f32 %v5147, %v5248
    %v5257 = vmul.f32 %v5151, %v5248
    %v5258 = vmul.f32 %v5155, %v5248
    %v5259 = vmul.f32 %v5159, %v5248
    %v5260 = vmul.f32 %v5163, %v5248
    %v5261 = vmul.f32 %v5167, %v5248
    %v5262 = vmul.f32 %v5171, %v5248
    %v5263 = vmul.f32 %v5175, %v5248
    %v5264 = vmul.f32 %v5179, %v5248
    %v5265 = vmul.f32 %v5183, %v5248
    %v5266 = vmul.f32 %v5187, %v5248
    %v5267 = vmul.f32 %v5191, %v5248
    %v5268 = vmul.f32 %v5195, %v5248
    %v5269 = vmul.f32 %v5199, %v5248
    %v5270 = vmul.f32 %v5203, %v5248
    %v5271 = vmul.f32 %v5207, %v5248
    %v5272 = vmul.f32 %v5211, %v5248
    %v5273 = vmul.f32 %v5215, %v5248
    %v5274 = vmul.f32 %v5219, %v5248
    %v5275 = vmul.f32 %v5223, %v5248
    %v5276 = vmul.f32 %v5227, %v5248
    %v5277 = vmul.f32 %v5231, %v5248
    %v5278 = vmul.f32 %v5235, %v5248
    %v5279 = vmul.f32 %v5239, %v5248
    %v5280 = vmul.f32 %v5243, %v5248
    %v5281 = vadd.f32 %v5085, %v5249
    %v5282 = vadd.f32 %v5086, %v5250
    %v5283 = vadd.f32 %v5087, %v5251
    %v5284 = vadd.f32 %v5088, %v5252
    %v5285 = vadd.f32 %v5089, %v5253
    %v5286 = vadd.f32 %v5090, %v5254
    %v5287 = vadd.f32 %v5091, %v5255
    %v5288 = vadd.f32 %v5092, %v5256
    %v5289 = vadd.f32 %v5093, %v5257
    %v5290 = vadd.f32 %v5094, %v5258
    %v5291 = vadd.f32 %v5095, %v5259
    %v5292 = vadd.f32 %v5096, %v5260
    %v5293 = vadd.f32 %v5097, %v5261
    %v5294 = vadd.f32 %v5098, %v5262
    %v5295 = vadd.f32 %v5099, %v5263
    %v5296 = vadd.f32 %v5100, %v5264
    %v5297 = vadd.f32 %v5101, %v5265
    %v5298 = vadd.f32 %v5102, %v5266
    %v5299 = vadd.f32 %v5103, %v5267
    %v5300 = vadd.f32 %v5104, %v5268
    %v5301 = vadd.f32 %v5105, %v5269
    %v5302 = vadd.f32 %v5106, %v5270
    %v5303 = vadd.f32 %v5107, %v5271
    %v5304 = vadd.f32 %v5108, %v5272
    %v5305 = vadd.f32 %v5109, %v5273
    %v5306 = vadd.f32 %v5110, %v5274
    %v5307 = vadd.f32 %v5111, %v5275
    %v5308 = vadd.f32 %v5112, %v5276
    %v5309 = vadd.f32 %v5113, %v5277
    %v5310 = vadd.f32 %v5114, %v5278
    %v5311 = vadd.f32 %v5115, %v5279
    %v5312 = vadd.f32 %v5116, %v5280
    %5313 = vset.pattern.permute.xlu0 7
    %5314 = vperm.xlu0 %5313, %v2624
    %v5315 = vpop.permute.xlu0 %5314
    %5317 = vset.pattern.permute.xlu0 7
    %5318 = vperm.xlu0 %5317, %v2629
    %v5319 = vpop.permute.xlu0 %5318
    %5321 = vset.pattern.permute.xlu0 7
    %5322 = vperm.xlu0 %5321, %v2699
    %v5323 = vpop.permute.xlu0 %5322
    %5325 = vset.pattern.permute.xlu0 7
    %5326 = vperm.xlu0 %5325, %v2704
    %v5327 = vpop.permute.xlu0 %5326
    %5329 = vset.pattern.permute.xlu0 7
    %5330 = vperm.xlu0 %5329, %v2774
    %v5331 = vpop.permute.xlu0 %5330
    %5333 = vset.pattern.permute.xlu0 7
    %5334 = vperm.xlu0 %5333, %v2779
    %v5335 = vpop.permute.xlu0 %5334
    %5337 = vset.pattern.permute.xlu0 7
    %5338 = vperm.xlu0 %5337, %v2849
    %v5339 = vpop.permute.xlu0 %5338
    %5341 = vset.pattern.permute.xlu0 7
    %5342 = vperm.xlu0 %5341, %v2854
    %v5343 = vpop.permute.xlu0 %5342
    %5345 = vset.pattern.permute.xlu0 7
    %5346 = vperm.xlu0 %5345, %v2924
    %v5347 = vpop.permute.xlu0 %5346
    %5349 = vset.pattern.permute.xlu0 7
    %5350 = vperm.xlu0 %5349, %v2929
    %v5351 = vpop.permute.xlu0 %5350
    %5353 = vset.pattern.permute.xlu0 7
    %5354 = vperm.xlu0 %5353, %v2999
    %v5355 = vpop.permute.xlu0 %5354
    %5357 = vset.pattern.permute.xlu0 7
    %5358 = vperm.xlu0 %5357, %v3004
    %v5359 = vpop.permute.xlu0 %5358
    %5361 = vset.pattern.permute.xlu0 7
    %5362 = vperm.xlu0 %5361, %v3074
    %v5363 = vpop.permute.xlu0 %5362
    %5365 = vset.pattern.permute.xlu0 7
    %5366 = vperm.xlu0 %5365, %v3079
    %v5367 = vpop.permute.xlu0 %5366
    %5369 = vset.pattern.permute.xlu0 7
    %5370 = vperm.xlu0 %5369, %v3149
    %v5371 = vpop.permute.xlu0 %5370
    %5373 = vset.pattern.permute.xlu0 7
    %5374 = vperm.xlu0 %5373, %v3154
    %v5375 = vpop.permute.xlu0 %5374
    %5377 = vset.pattern.permute.xlu0 7
    %5378 = vperm.xlu0 %5377, %v3224
    %v5379 = vpop.permute.xlu0 %5378
    %5381 = vset.pattern.permute.xlu0 7
    %5382 = vperm.xlu0 %5381, %v3229
    %v5383 = vpop.permute.xlu0 %5382
    %5385 = vset.pattern.permute.xlu0 7
    %5386 = vperm.xlu0 %5385, %v3299
    %v5387 = vpop.permute.xlu0 %5386
    %5389 = vset.pattern.permute.xlu0 7
    %5390 = vperm.xlu0 %5389, %v3304
    %v5391 = vpop.permute.xlu0 %5390
    %5393 = vset.pattern.permute.xlu0 7
    %5394 = vperm.xlu0 %5393, %v3374
    %v5395 = vpop.permute.xlu0 %5394
    %5397 = vset.pattern.permute.xlu0 7
    %5398 = vperm.xlu0 %5397, %v3379
    %v5399 = vpop.permute.xlu0 %5398
    %5401 = vset.pattern.permute.xlu0 7
    %5402 = vperm.xlu0 %5401, %v3449
    %v5403 = vpop.permute.xlu0 %5402
    %5405 = vset.pattern.permute.xlu0 7
    %5406 = vperm.xlu0 %5405, %v3454
    %v5407 = vpop.permute.xlu0 %5406
    %5409 = vset.pattern.permute.xlu0 7
    %5410 = vperm.xlu0 %5409, %v3524
    %v5411 = vpop.permute.xlu0 %5410
    %5413 = vset.pattern.permute.xlu0 7
    %5414 = vperm.xlu0 %5413, %v3529
    %v5415 = vpop.permute.xlu0 %5414
    %5417 = vset.pattern.permute.xlu0 7
    %5418 = vperm.xlu0 %5417, %v3599
    %v5419 = vpop.permute.xlu0 %5418
    %5421 = vset.pattern.permute.xlu0 7
    %5422 = vperm.xlu0 %5421, %v3604
    %v5423 = vpop.permute.xlu0 %5422
    %5425 = vset.pattern.permute.xlu0 7
    %5426 = vperm.xlu0 %5425, %v3674
    %v5427 = vpop.permute.xlu0 %5426
    %5429 = vset.pattern.permute.xlu0 7
    %5430 = vperm.xlu0 %5429, %v3679
    %v5431 = vpop.permute.xlu0 %5430
    %5433 = vset.pattern.permute.xlu0 7
    %5434 = vperm.xlu0 %5433, %v3749
    %v5435 = vpop.permute.xlu0 %5434
    %5437 = vset.pattern.permute.xlu0 7
    %5438 = vperm.xlu0 %5437, %v3754
    %v5439 = vpop.permute.xlu0 %5438
    %v5441 = vlaneseq
    %v5442 = vshrl.u32 %v5441, 7
    %v5443 = vsub.s32 7, %v5442
    %v5444 = vrot.slane %v3762, %v5443
    %v5445 = vmul.f32 %v5315, %v5444
    %v5446 = vmul.f32 %v5319, %v5444
    %v5447 = vmul.f32 %v5323, %v5444
    %v5448 = vmul.f32 %v5327, %v5444
    %v5449 = vmul.f32 %v5331, %v5444
    %v5450 = vmul.f32 %v5335, %v5444
    %v5451 = vmul.f32 %v5339, %v5444
    %v5452 = vmul.f32 %v5343, %v5444
    %v5453 = vmul.f32 %v5347, %v5444
    %v5454 = vmul.f32 %v5351, %v5444
    %v5455 = vmul.f32 %v5355, %v5444
    %v5456 = vmul.f32 %v5359, %v5444
    %v5457 = vmul.f32 %v5363, %v5444
    %v5458 = vmul.f32 %v5367, %v5444
    %v5459 = vmul.f32 %v5371, %v5444
    %v5460 = vmul.f32 %v5375, %v5444
    %v5461 = vmul.f32 %v5379, %v5444
    %v5462 = vmul.f32 %v5383, %v5444
    %v5463 = vmul.f32 %v5387, %v5444
    %v5464 = vmul.f32 %v5391, %v5444
    %v5465 = vmul.f32 %v5395, %v5444
    %v5466 = vmul.f32 %v5399, %v5444
    %v5467 = vmul.f32 %v5403, %v5444
    %v5468 = vmul.f32 %v5407, %v5444
    %v5469 = vmul.f32 %v5411, %v5444
    %v5470 = vmul.f32 %v5415, %v5444
    %v5471 = vmul.f32 %v5419, %v5444
    %v5472 = vmul.f32 %v5423, %v5444
    %v5473 = vmul.f32 %v5427, %v5444
    %v5474 = vmul.f32 %v5431, %v5444
    %v5475 = vmul.f32 %v5435, %v5444
    %v5476 = vmul.f32 %v5439, %v5444
    %v5477 = vadd.f32 %v5281, %v5445
    %v5478 = vadd.f32 %v5282, %v5446
    %v5479 = vadd.f32 %v5283, %v5447
    %v5480 = vadd.f32 %v5284, %v5448
    %v5481 = vadd.f32 %v5285, %v5449
    %v5482 = vadd.f32 %v5286, %v5450
    %v5483 = vadd.f32 %v5287, %v5451
    %v5484 = vadd.f32 %v5288, %v5452
    %v5485 = vadd.f32 %v5289, %v5453
    %v5486 = vadd.f32 %v5290, %v5454
    %v5487 = vadd.f32 %v5291, %v5455
    %v5488 = vadd.f32 %v5292, %v5456
    %v5489 = vadd.f32 %v5293, %v5457
    %v5490 = vadd.f32 %v5294, %v5458
    %v5491 = vadd.f32 %v5295, %v5459
    %v5492 = vadd.f32 %v5296, %v5460
    %v5493 = vadd.f32 %v5297, %v5461
    %v5494 = vadd.f32 %v5298, %v5462
    %v5495 = vadd.f32 %v5299, %v5463
    %v5496 = vadd.f32 %v5300, %v5464
    %v5497 = vadd.f32 %v5301, %v5465
    %v5498 = vadd.f32 %v5302, %v5466
    %v5499 = vadd.f32 %v5303, %v5467
    %v5500 = vadd.f32 %v5304, %v5468
    %v5501 = vadd.f32 %v5305, %v5469
    %v5502 = vadd.f32 %v5306, %v5470
    %v5503 = vadd.f32 %v5307, %v5471
    %v5504 = vadd.f32 %v5308, %v5472
    %v5505 = vadd.f32 %v5309, %v5473
    %v5506 = vadd.f32 %v5310, %v5474
    %v5507 = vadd.f32 %v5311, %v5475
    %v5508 = vadd.f32 %v5312, %v5476
    %v5510 = vlaneseq
    %v5511 = vshrl.u32 %v5510, 7
    %v5512 = vsub.s32 0, %v5511
    %v5513 = vrot.slane %v3763, %v5512
    %v5515 = vadd.f32 %v5477, %v5513
    %v5516 = vadd.f32 %v5478, %v5513
    %v5517 = vadd.f32 %v5479, %v5513
    %v5518 = vadd.f32 %v5480, %v5513
    %v5519 = vadd.f32 %v5481, %v5513
    %v5520 = vadd.f32 %v5482, %v5513
    %v5521 = vadd.f32 %v5483, %v5513
    %v5522 = vadd.f32 %v5484, %v5513
    %v5523 = vadd.f32 %v5485, %v5513
    %v5524 = vadd.f32 %v5486, %v5513
    %v5525 = vadd.f32 %v5487, %v5513
    %v5526 = vadd.f32 %v5488, %v5513
    %v5527 = vadd.f32 %v5489, %v5513
    %v5528 = vadd.f32 %v5490, %v5513
    %v5529 = vadd.f32 %v5491, %v5513
    %v5530 = vadd.f32 %v5492, %v5513
    %v5531 = vadd.f32 %v5493, %v5513
    %v5532 = vadd.f32 %v5494, %v5513
    %v5533 = vadd.f32 %v5495, %v5513
    %v5534 = vadd.f32 %v5496, %v5513
    %v5535 = vadd.f32 %v5497, %v5513
    %v5536 = vadd.f32 %v5498, %v5513
    %v5537 = vadd.f32 %v5499, %v5513
    %v5538 = vadd.f32 %v5500, %v5513
    %v5539 = vadd.f32 %v5501, %v5513
    %v5540 = vadd.f32 %v5502, %v5513
    %v5541 = vadd.f32 %v5503, %v5513
    %v5542 = vadd.f32 %v5504, %v5513
    %v5543 = vadd.f32 %v5505, %v5513
    %v5544 = vadd.f32 %v5506, %v5513
    %v5545 = vadd.f32 %v5507, %v5513
    %v5546 = vadd.f32 %v5508, %v5513
    %v5547 = vmax.f32 %v5515, 0.0
    %v5548 = vmax.f32 %v5516, 0.0
    %v5549 = vmax.f32 %v5517, 0.0
    %v5550 = vmax.f32 %v5518, 0.0
    %v5551 = vmax.f32 %v5519, 0.0
    %v5552 = vmax.f32 %v5520, 0.0
    %v5553 = vmax.f32 %v5521, 0.0
    %v5554 = vmax.f32 %v5522, 0.0
    %v5555 = vmax.f32 %v5523, 0.0
    %v5556 = vmax.f32 %v5524, 0.0
    %v5557 = vmax.f32 %v5525, 0.0
    %v5558 = vmax.f32 %v5526, 0.0
    %v5559 = vmax.f32 %v5527, 0.0
    %v5560 = vmax.f32 %v5528, 0.0
    %v5561 = vmax.f32 %v5529, 0.0
    %v5562 = vmax.f32 %v5530, 0.0
    %v5563 = vmax.f32 %v5531, 0.0
    %v5564 = vmax.f32 %v5532, 0.0
    %v5565 = vmax.f32 %v5533, 0.0
    %v5566 = vmax.f32 %v5534, 0.0
    %v5567 = vmax.f32 %v5535, 0.0
    %v5568 = vmax.f32 %v5536, 0.0
    %v5569 = vmax.f32 %v5537, 0.0
    %v5570 = vmax.f32 %v5538, 0.0
    %v5571 = vmax.f32 %v5539, 0.0
    %v5572 = vmax.f32 %v5540, 0.0
    %v5573 = vmax.f32 %v5541, 0.0
    %v5574 = vmax.f32 %v5542, 0.0
    %v5575 = vmax.f32 %v5543, 0.0
    %v5576 = vmax.f32 %v5544, 0.0
    %v5577 = vmax.f32 %v5545, 0.0
    %v5578 = vmax.f32 %v5546, 0.0
    %5580 = vset.pattern.permute.xlu0 0
    %5581 = vperm.xlu0 %5580, %v3909
    %v5582 = vpop.permute.xlu0 %5581
    %5585 = vset.pattern.permute.xlu0 0
    %5586 = vperm.xlu0 %5585, %v3910
    %v5587 = vpop.permute.xlu0 %5586
    %5590 = vset.pattern.permute.xlu0 0
    %5591 = vperm.xlu0 %5590, %v3911
    %v5592 = vpop.permute.xlu0 %5591
    %5595 = vset.pattern.permute.xlu0 0
    %5596 = vperm.xlu0 %5595, %v3912
    %v5597 = vpop.permute.xlu0 %5596
    %5600 = vset.pattern.permute.xlu0 0
    %5601 = vperm.xlu0 %5600, %v3913
    %v5602 = vpop.permute.xlu0 %5601
    %5605 = vset.pattern.permute.xlu0 0
    %5606 = vperm.xlu0 %5605, %v3914
    %v5607 = vpop.permute.xlu0 %5606
    %5610 = vset.pattern.permute.xlu0 0
    %5611 = vperm.xlu0 %5610, %v3915
    %v5612 = vpop.permute.xlu0 %5611
    %5615 = vset.pattern.permute.xlu0 0
    %5616 = vperm.xlu0 %5615, %v3916
    %v5617 = vpop.permute.xlu0 %5616
    %5620 = vset.pattern.permute.xlu0 0
    %5621 = vperm.xlu0 %5620, %v3917
    %v5622 = vpop.permute.xlu0 %5621
    %5625 = vset.pattern.permute.xlu0 0
    %5626 = vperm.xlu0 %5625, %v3918
    %v5627 = vpop.permute.xlu0 %5626
    %5630 = vset.pattern.permute.xlu0 0
    %5631 = vperm.xlu0 %5630, %v3919
    %v5632 = vpop.permute.xlu0 %5631
    %5635 = vset.pattern.permute.xlu0 0
    %5636 = vperm.xlu0 %5635, %v3920
    %v5637 = vpop.permute.xlu0 %5636
    %5640 = vset.pattern.permute.xlu0 0
    %5641 = vperm.xlu0 %5640, %v3921
    %v5642 = vpop.permute.xlu0 %5641
    %5645 = vset.pattern.permute.xlu0 0
    %5646 = vperm.xlu0 %5645, %v3922
    %v5647 = vpop.permute.xlu0 %5646
    %5650 = vset.pattern.permute.xlu0 0
    %5651 = vperm.xlu0 %5650, %v3923
    %v5652 = vpop.permute.xlu0 %5651
    %5655 = vset.pattern.permute.xlu0 0
    %5656 = vperm.xlu0 %5655, %v3924
    %v5657 = vpop.permute.xlu0 %5656
    %5660 = vset.pattern.permute.xlu0 0
    %5661 = vperm.xlu0 %5660, %v3925
    %v5662 = vpop.permute.xlu0 %5661
    %5665 = vset.pattern.permute.xlu0 0
    %5666 = vperm.xlu0 %5665, %v3926
    %v5667 = vpop.permute.xlu0 %5666
    %5670 = vset.pattern.permute.xlu0 0
    %5671 = vperm.xlu0 %5670, %v3927
    %v5672 = vpop.permute.xlu0 %5671
    %5675 = vset.pattern.permute.xlu0 0
    %5676 = vperm.xlu0 %5675, %v3928
    %v5677 = vpop.permute.xlu0 %5676
    %5680 = vset.pattern.permute.xlu0 0
    %5681 = vperm.xlu0 %5680, %v3929
    %v5682 = vpop.permute.xlu0 %5681
    %5685 = vset.pattern.permute.xlu0 0
    %5686 = vperm.xlu0 %5685, %v3930
    %v5687 = vpop.permute.xlu0 %5686
    %5690 = vset.pattern.permute.xlu0 0
    %5691 = vperm.xlu0 %5690, %v3931
    %v5692 = vpop.permute.xlu0 %5691
    %5695 = vset.pattern.permute.xlu0 0
    %5696 = vperm.xlu0 %5695, %v3932
    %v5697 = vpop.permute.xlu0 %5696
    %5700 = vset.pattern.permute.xlu0 0
    %5701 = vperm.xlu0 %5700, %v3933
    %v5702 = vpop.permute.xlu0 %5701
    %5705 = vset.pattern.permute.xlu0 0
    %5706 = vperm.xlu0 %5705, %v3934
    %v5707 = vpop.permute.xlu0 %5706
    %5710 = vset.pattern.permute.xlu0 0
    %5711 = vperm.xlu0 %5710, %v3935
    %v5712 = vpop.permute.xlu0 %5711
    %5715 = vset.pattern.permute.xlu0 0
    %5716 = vperm.xlu0 %5715, %v3936
    %v5717 = vpop.permute.xlu0 %5716
    %5720 = vset.pattern.permute.xlu0 0
    %5721 = vperm.xlu0 %5720, %v3937
    %v5722 = vpop.permute.xlu0 %5721
    %5725 = vset.pattern.permute.xlu0 0
    %5726 = vperm.xlu0 %5725, %v3938
    %v5727 = vpop.permute.xlu0 %5726
    %5730 = vset.pattern.permute.xlu0 0
    %5731 = vperm.xlu0 %5730, %v3939
    %v5732 = vpop.permute.xlu0 %5731
    %5735 = vset.pattern.permute.xlu0 0
    %5736 = vperm.xlu0 %5735, %v3940
    %v5737 = vpop.permute.xlu0 %5736
    %v5739 = vlaneseq
    %v5740 = vshrl.u32 %v5739, 7
    %v5741 = vsub.s32 0, %v5740
    %v5742 = vrot.slane %v3759, %v5741
    %v5743 = vmul.f32 %v5582, %v5742
    %v5744 = vmul.f32 %v5587, %v5742
    %v5745 = vmul.f32 %v5592, %v5742
    %v5746 = vmul.f32 %v5597, %v5742
    %v5747 = vmul.f32 %v5602, %v5742
    %v5748 = vmul.f32 %v5607, %v5742
    %v5749 = vmul.f32 %v5612, %v5742
    %v5750 = vmul.f32 %v5617, %v5742
    %v5751 = vmul.f32 %v5622, %v5742
    %v5752 = vmul.f32 %v5627, %v5742
    %v5753 = vmul.f32 %v5632, %v5742
    %v5754 = vmul.f32 %v5637, %v5742
    %v5755 = vmul.f32 %v5642, %v5742
    %v5756 = vmul.f32 %v5647, %v5742
    %v5757 = vmul.f32 %v5652, %v5742
    %v5758 = vmul.f32 %v5657, %v5742
    %v5759 = vmul.f32 %v5662, %v5742
    %v5760 = vmul.f32 %v5667, %v5742
    %v5761 = vmul.f32 %v5672, %v5742
    %v5762 = vmul.f32 %v5677, %v5742
    %v5763 = vmul.f32 %v5682, %v5742
    %v5764 = vmul.f32 %v5687, %v5742
    %v5765 = vmul.f32 %v5692, %v5742
    %v5766 = vmul.f32 %v5697, %v5742
    %v5767 = vmul.f32 %v5702, %v5742
    %v5768 = vmul.f32 %v5707, %v5742
    %v5769 = vmul.f32 %v5712, %v5742
    %v5770 = vmul.f32 %v5717, %v5742
    %v5771 = vmul.f32 %v5722, %v5742
    %v5772 = vmul.f32 %v5727, %v5742
    %v5773 = vmul.f32 %v5732, %v5742
    %v5774 = vmul.f32 %v5737, %v5742
    %5776 = vset.pattern.permute.xlu0 0
    %5777 = vperm.xlu0 %5776, %v5547
    %v5778 = vpop.permute.xlu0 %5777
    %5781 = vset.pattern.permute.xlu0 0
    %5782 = vperm.xlu0 %5781, %v5548
    %v5783 = vpop.permute.xlu0 %5782
    %5786 = vset.pattern.permute.xlu0 0
    %5787 = vperm.xlu0 %5786, %v5549
    %v5788 = vpop.permute.xlu0 %5787
    %5791 = vset.pattern.permute.xlu0 0
    %5792 = vperm.xlu0 %5791, %v5550
    %v5793 = vpop.permute.xlu0 %5792
    %5796 = vset.pattern.permute.xlu0 0
    %5797 = vperm.xlu0 %5796, %v5551
    %v5798 = vpop.permute.xlu0 %5797
    %5801 = vset.pattern.permute.xlu0 0
    %5802 = vperm.xlu0 %5801, %v5552
    %v5803 = vpop.permute.xlu0 %5802
    %5806 = vset.pattern.permute.xlu0 0
    %5807 = vperm.xlu0 %5806, %v5553
    %v5808 = vpop.permute.xlu0 %5807
    %5811 = vset.pattern.permute.xlu0 0
    %5812 = vperm.xlu0 %5811, %v5554
    %v5813 = vpop.permute.xlu0 %5812
    %5816 = vset.pattern.permute.xlu0 0
    %5817 = vperm.xlu0 %5816, %v5555
    %v5818 = vpop.permute.xlu0 %5817
    %5821 = vset.pattern.permute.xlu0 0
    %5822 = vperm.xlu0 %5821, %v5556
    %v5823 = vpop.permute.xlu0 %5822
    %5826 = vset.pattern.permute.xlu0 0
    %5827 = vperm.xlu0 %5826, %v5557
    %v5828 = vpop.permute.xlu0 %5827
    %5831 = vset.pattern.permute.xlu0 0
    %5832 = vperm.xlu0 %5831, %v5558
    %v5833 = vpop.permute.xlu0 %5832
    %5836 = vset.pattern.permute.xlu0 0
    %5837 = vperm.xlu0 %5836, %v5559
    %v5838 = vpop.permute.xlu0 %5837
    %5841 = vset.pattern.permute.xlu0 0
    %5842 = vperm.xlu0 %5841, %v5560
    %v5843 = vpop.permute.xlu0 %5842
    %5846 = vset.pattern.permute.xlu0 0
    %5847 = vperm.xlu0 %5846, %v5561
    %v5848 = vpop.permute.xlu0 %5847
    %5851 = vset.pattern.permute.xlu0 0
    %5852 = vperm.xlu0 %5851, %v5562
    %v5853 = vpop.permute.xlu0 %5852
    %5856 = vset.pattern.permute.xlu0 0
    %5857 = vperm.xlu0 %5856, %v5563
    %v5858 = vpop.permute.xlu0 %5857
    %5861 = vset.pattern.permute.xlu0 0
    %5862 = vperm.xlu0 %5861, %v5564
    %v5863 = vpop.permute.xlu0 %5862
    %5866 = vset.pattern.permute.xlu0 0
    %5867 = vperm.xlu0 %5866, %v5565
    %v5868 = vpop.permute.xlu0 %5867
    %5871 = vset.pattern.permute.xlu0 0
    %5872 = vperm.xlu0 %5871, %v5566
    %v5873 = vpop.permute.xlu0 %5872
    %5876 = vset.pattern.permute.xlu0 0
    %5877 = vperm.xlu0 %5876, %v5567
    %v5878 = vpop.permute.xlu0 %5877
    %5881 = vset.pattern.permute.xlu0 0
    %5882 = vperm.xlu0 %5881, %v5568
    %v5883 = vpop.permute.xlu0 %5882
    %5886 = vset.pattern.permute.xlu0 0
    %5887 = vperm.xlu0 %5886, %v5569
    %v5888 = vpop.permute.xlu0 %5887
    %5891 = vset.pattern.permute.xlu0 0
    %5892 = vperm.xlu0 %5891, %v5570
    %v5893 = vpop.permute.xlu0 %5892
    %5896 = vset.pattern.permute.xlu0 0
    %5897 = vperm.xlu0 %5896, %v5571
    %v5898 = vpop.permute.xlu0 %5897
    %5901 = vset.pattern.permute.xlu0 0
    %5902 = vperm.xlu0 %5901, %v5572
    %v5903 = vpop.permute.xlu0 %5902
    %5906 = vset.pattern.permute.xlu0 0
    %5907 = vperm.xlu0 %5906, %v5573
    %v5908 = vpop.permute.xlu0 %5907
    %5911 = vset.pattern.permute.xlu0 0
    %5912 = vperm.xlu0 %5911, %v5574
    %v5913 = vpop.permute.xlu0 %5912
    %5916 = vset.pattern.permute.xlu0 0
    %5917 = vperm.xlu0 %5916, %v5575
    %v5918 = vpop.permute.xlu0 %5917
    %5921 = vset.pattern.permute.xlu0 0
    %5922 = vperm.xlu0 %5921, %v5576
    %v5923 = vpop.permute.xlu0 %5922
    %5926 = vset.pattern.permute.xlu0 0
    %5927 = vperm.xlu0 %5926, %v5577
    %v5928 = vpop.permute.xlu0 %5927
    %5931 = vset.pattern.permute.xlu0 0
    %5932 = vperm.xlu0 %5931, %v5578
    %v5933 = vpop.permute.xlu0 %5932
    %v5935 = vlaneseq
    %v5936 = vshrl.u32 %v5935, 7
    %v5937 = vsub.s32 0, %v5936
    %v5938 = vrot.slane %v3764, %v5937
    %v5939 = vmul.f32 %v5778, %v5938
    %v5940 = vmul.f32 %v5783, %v5938
    %v5941 = vmul.f32 %v5788, %v5938
    %v5942 = vmul.f32 %v5793, %v5938
    %v5943 = vmul.f32 %v5798, %v5938
    %v5944 = vmul.f32 %v5803, %v5938
    %v5945 = vmul.f32 %v5808, %v5938
    %v5946 = vmul.f32 %v5813, %v5938
    %v5947 = vmul.f32 %v5818, %v5938
    %v5948 = vmul.f32 %v5823, %v5938
    %v5949 = vmul.f32 %v5828, %v5938
    %v5950 = vmul.f32 %v5833, %v5938
    %v5951 = vmul.f32 %v5838, %v5938
    %v5952 = vmul.f32 %v5843, %v5938
    %v5953 = vmul.f32 %v5848, %v5938
    %v5954 = vmul.f32 %v5853, %v5938
    %v5955 = vmul.f32 %v5858, %v5938
    %v5956 = vmul.f32 %v5863, %v5938
    %v5957 = vmul.f32 %v5868, %v5938
    %v5958 = vmul.f32 %v5873, %v5938
    %v5959 = vmul.f32 %v5878, %v5938
    %v5960 = vmul.f32 %v5883, %v5938
    %v5961 = vmul.f32 %v5888, %v5938
    %v5962 = vmul.f32 %v5893, %v5938
    %v5963 = vmul.f32 %v5898, %v5938
    %v5964 = vmul.f32 %v5903, %v5938
    %v5965 = vmul.f32 %v5908, %v5938
    %v5966 = vmul.f32 %v5913, %v5938
    %v5967 = vmul.f32 %v5918, %v5938
    %v5968 = vmul.f32 %v5923, %v5938
    %v5969 = vmul.f32 %v5928, %v5938
    %v5970 = vmul.f32 %v5933, %v5938
    %5971 = vset.pattern.permute.xlu0 1
    %5972 = vperm.xlu0 %5971, %v3909
    %v5973 = vpop.permute.xlu0 %5972
    %5975 = vset.pattern.permute.xlu0 1
    %5976 = vperm.xlu0 %5975, %v3910
    %v5977 = vpop.permute.xlu0 %5976
    %5979 = vset.pattern.permute.xlu0 1
    %5980 = vperm.xlu0 %5979, %v3911
    %v5981 = vpop.permute.xlu0 %5980
    %5983 = vset.pattern.permute.xlu0 1
    %5984 = vperm.xlu0 %5983, %v3912
    %v5985 = vpop.permute.xlu0 %5984
    %5987 = vset.pattern.permute.xlu0 1
    %5988 = vperm.xlu0 %5987, %v3913
    %v5989 = vpop.permute.xlu0 %5988
    %5991 = vset.pattern.permute.xlu0 1
    %5992 = vperm.xlu0 %5991, %v3914
    %v5993 = vpop.permute.xlu0 %5992
    %5995 = vset.pattern.permute.xlu0 1
    %5996 = vperm.xlu0 %5995, %v3915
    %v5997 = vpop.permute.xlu0 %5996
    %5999 = vset.pattern.permute.xlu0 1
    %6000 = vperm.xlu0 %5999, %v3916
    %v6001 = vpop.permute.xlu0 %6000
    %6003 = vset.pattern.permute.xlu0 1
    %6004 = vperm.xlu0 %6003, %v3917
    %v6005 = vpop.permute.xlu0 %6004
    %6007 = vset.pattern.permute.xlu0 1
    %6008 = vperm.xlu0 %6007, %v3918
    %v6009 = vpop.permute.xlu0 %6008
    %6011 = vset.pattern.permute.xlu0 1
    %6012 = vperm.xlu0 %6011, %v3919
    %v6013 = vpop.permute.xlu0 %6012
    %6015 = vset.pattern.permute.xlu0 1
    %6016 = vperm.xlu0 %6015, %v3920
    %v6017 = vpop.permute.xlu0 %6016
    %6019 = vset.pattern.permute.xlu0 1
    %6020 = vperm.xlu0 %6019, %v3921
    %v6021 = vpop.permute.xlu0 %6020
    %6023 = vset.pattern.permute.xlu0 1
    %6024 = vperm.xlu0 %6023, %v3922
    %v6025 = vpop.permute.xlu0 %6024
    %6027 = vset.pattern.permute.xlu0 1
    %6028 = vperm.xlu0 %6027, %v3923
    %v6029 = vpop.permute.xlu0 %6028
    %6031 = vset.pattern.permute.xlu0 1
    %6032 = vperm.xlu0 %6031, %v3924
    %v6033 = vpop.permute.xlu0 %6032
    %6035 = vset.pattern.permute.xlu0 1
    %6036 = vperm.xlu0 %6035, %v3925
    %v6037 = vpop.permute.xlu0 %6036
    %6039 = vset.pattern.permute.xlu0 1
    %6040 = vperm.xlu0 %6039, %v3926
    %v6041 = vpop.permute.xlu0 %6040
    %6043 = vset.pattern.permute.xlu0 1
    %6044 = vperm.xlu0 %6043, %v3927
    %v6045 = vpop.permute.xlu0 %6044
    %6047 = vset.pattern.permute.xlu0 1
    %6048 = vperm.xlu0 %6047, %v3928
    %v6049 = vpop.permute.xlu0 %6048
    %6051 = vset.pattern.permute.xlu0 1
    %6052 = vperm.xlu0 %6051, %v3929
    %v6053 = vpop.permute.xlu0 %6052
    %6055 = vset.pattern.permute.xlu0 1
    %6056 = vperm.xlu0 %6055, %v3930
    %v6057 = vpop.permute.xlu0 %6056
    %6059 = vset.pattern.permute.xlu0 1
    %6060 = vperm.xlu0 %6059, %v3931
    %v6061 = vpop.permute.xlu0 %6060
    %6063 = vset.pattern.permute.xlu0 1
    %6064 = vperm.xlu0 %6063, %v3932
    %v6065 = vpop.permute.xlu0 %6064
    %6067 = vset.pattern.permute.xlu0 1
    %6068 = vperm.xlu0 %6067, %v3933
    %v6069 = vpop.permute.xlu0 %6068
    %6071 = vset.pattern.permute.xlu0 1
    %6072 = vperm.xlu0 %6071, %v3934
    %v6073 = vpop.permute.xlu0 %6072
    %6075 = vset.pattern.permute.xlu0 1
    %6076 = vperm.xlu0 %6075, %v3935
    %v6077 = vpop.permute.xlu0 %6076
    %6079 = vset.pattern.permute.xlu0 1
    %6080 = vperm.xlu0 %6079, %v3936
    %v6081 = vpop.permute.xlu0 %6080
    %6083 = vset.pattern.permute.xlu0 1
    %6084 = vperm.xlu0 %6083, %v3937
    %v6085 = vpop.permute.xlu0 %6084
    %6087 = vset.pattern.permute.xlu0 1
    %6088 = vperm.xlu0 %6087, %v3938
    %v6089 = vpop.permute.xlu0 %6088
    %6091 = vset.pattern.permute.xlu0 1
    %6092 = vperm.xlu0 %6091, %v3939
    %v6093 = vpop.permute.xlu0 %6092
    %6095 = vset.pattern.permute.xlu0 1
    %6096 = vperm.xlu0 %6095, %v3940
    %v6097 = vpop.permute.xlu0 %6096
    %v6099 = vlaneseq
    %v6100 = vshrl.u32 %v6099, 7
    %v6101 = vsub.s32 1, %v6100
    %v6102 = vrot.slane %v3759, %v6101
    %v6103 = vmul.f32 %v5973, %v6102
    %v6104 = vmul.f32 %v5977, %v6102
    %v6105 = vmul.f32 %v5981, %v6102
    %v6106 = vmul.f32 %v5985, %v6102
    %v6107 = vmul.f32 %v5989, %v6102
    %v6108 = vmul.f32 %v5993, %v6102
    %v6109 = vmul.f32 %v5997, %v6102
    %v6110 = vmul.f32 %v6001, %v6102
    %v6111 = vmul.f32 %v6005, %v6102
    %v6112 = vmul.f32 %v6009, %v6102
    %v6113 = vmul.f32 %v6013, %v6102
    %v6114 = vmul.f32 %v6017, %v6102
    %v6115 = vmul.f32 %v6021, %v6102
    %v6116 = vmul.f32 %v6025, %v6102
    %v6117 = vmul.f32 %v6029, %v6102
    %v6118 = vmul.f32 %v6033, %v6102
    %v6119 = vmul.f32 %v6037, %v6102
    %v6120 = vmul.f32 %v6041, %v6102
    %v6121 = vmul.f32 %v6045, %v6102
    %v6122 = vmul.f32 %v6049, %v6102
    %v6123 = vmul.f32 %v6053, %v6102
    %v6124 = vmul.f32 %v6057, %v6102
    %v6125 = vmul.f32 %v6061, %v6102
    %v6126 = vmul.f32 %v6065, %v6102
    %v6127 = vmul.f32 %v6069, %v6102
    %v6128 = vmul.f32 %v6073, %v6102
    %v6129 = vmul.f32 %v6077, %v6102
    %v6130 = vmul.f32 %v6081, %v6102
    %v6131 = vmul.f32 %v6085, %v6102
    %v6132 = vmul.f32 %v6089, %v6102
    %v6133 = vmul.f32 %v6093, %v6102
    %v6134 = vmul.f32 %v6097, %v6102
    %v6135 = vadd.f32 %v5743, %v6103
    %v6136 = vadd.f32 %v5744, %v6104
    %v6137 = vadd.f32 %v5745, %v6105
    %v6138 = vadd.f32 %v5746, %v6106
    %v6139 = vadd.f32 %v5747, %v6107
    %v6140 = vadd.f32 %v5748, %v6108
    %v6141 = vadd.f32 %v5749, %v6109
    %v6142 = vadd.f32 %v5750, %v6110
    %v6143 = vadd.f32 %v5751, %v6111
    %v6144 = vadd.f32 %v5752, %v6112
    %v6145 = vadd.f32 %v5753, %v6113
    %v6146 = vadd.f32 %v5754, %v6114
    %v6147 = vadd.f32 %v5755, %v6115
    %v6148 = vadd.f32 %v5756, %v6116
    %v6149 = vadd.f32 %v5757, %v6117
    %v6150 = vadd.f32 %v5758, %v6118
    %v6151 = vadd.f32 %v5759, %v6119
    %v6152 = vadd.f32 %v5760, %v6120
    %v6153 = vadd.f32 %v5761, %v6121
    %v6154 = vadd.f32 %v5762, %v6122
    %v6155 = vadd.f32 %v5763, %v6123
    %v6156 = vadd.f32 %v5764, %v6124
    %v6157 = vadd.f32 %v5765, %v6125
    %v6158 = vadd.f32 %v5766, %v6126
    %v6159 = vadd.f32 %v5767, %v6127
    %v6160 = vadd.f32 %v5768, %v6128
    %v6161 = vadd.f32 %v5769, %v6129
    %v6162 = vadd.f32 %v5770, %v6130
    %v6163 = vadd.f32 %v5771, %v6131
    %v6164 = vadd.f32 %v5772, %v6132
    %v6165 = vadd.f32 %v5773, %v6133
    %v6166 = vadd.f32 %v5774, %v6134
    %6167 = vset.pattern.permute.xlu0 1
    %6168 = vperm.xlu0 %6167, %v5547
    %v6169 = vpop.permute.xlu0 %6168
    %6171 = vset.pattern.permute.xlu0 1
    %6172 = vperm.xlu0 %6171, %v5548
    %v6173 = vpop.permute.xlu0 %6172
    %6175 = vset.pattern.permute.xlu0 1
    %6176 = vperm.xlu0 %6175, %v5549
    %v6177 = vpop.permute.xlu0 %6176
    %6179 = vset.pattern.permute.xlu0 1
    %6180 = vperm.xlu0 %6179, %v5550
    %v6181 = vpop.permute.xlu0 %6180
    %6183 = vset.pattern.permute.xlu0 1
    %6184 = vperm.xlu0 %6183, %v5551
    %v6185 = vpop.permute.xlu0 %6184
    %6187 = vset.pattern.permute.xlu0 1
    %6188 = vperm.xlu0 %6187, %v5552
    %v6189 = vpop.permute.xlu0 %6188
    %6191 = vset.pattern.permute.xlu0 1
    %6192 = vperm.xlu0 %6191, %v5553
    %v6193 = vpop.permute.xlu0 %6192
    %6195 = vset.pattern.permute.xlu0 1
    %6196 = vperm.xlu0 %6195, %v5554
    %v6197 = vpop.permute.xlu0 %6196
    %6199 = vset.pattern.permute.xlu0 1
    %6200 = vperm.xlu0 %6199, %v5555
    %v6201 = vpop.permute.xlu0 %6200
    %6203 = vset.pattern.permute.xlu0 1
    %6204 = vperm.xlu0 %6203, %v5556
    %v6205 = vpop.permute.xlu0 %6204
    %6207 = vset.pattern.permute.xlu0 1
    %6208 = vperm.xlu0 %6207, %v5557
    %v6209 = vpop.permute.xlu0 %6208
    %6211 = vset.pattern.permute.xlu0 1
    %6212 = vperm.xlu0 %6211, %v5558
    %v6213 = vpop.permute.xlu0 %6212
    %6215 = vset.pattern.permute.xlu0 1
    %6216 = vperm.xlu0 %6215, %v5559
    %v6217 = vpop.permute.xlu0 %6216
    %6219 = vset.pattern.permute.xlu0 1
    %6220 = vperm.xlu0 %6219, %v5560
    %v6221 = vpop.permute.xlu0 %6220
    %6223 = vset.pattern.permute.xlu0 1
    %6224 = vperm.xlu0 %6223, %v5561
    %v6225 = vpop.permute.xlu0 %6224
    %6227 = vset.pattern.permute.xlu0 1
    %6228 = vperm.xlu0 %6227, %v5562
    %v6229 = vpop.permute.xlu0 %6228
    %6231 = vset.pattern.permute.xlu0 1
    %6232 = vperm.xlu0 %6231, %v5563
    %v6233 = vpop.permute.xlu0 %6232
    %6235 = vset.pattern.permute.xlu0 1
    %6236 = vperm.xlu0 %6235, %v5564
    %v6237 = vpop.permute.xlu0 %6236
    %6239 = vset.pattern.permute.xlu0 1
    %6240 = vperm.xlu0 %6239, %v5565
    %v6241 = vpop.permute.xlu0 %6240
    %6243 = vset.pattern.permute.xlu0 1
    %6244 = vperm.xlu0 %6243, %v5566
    %v6245 = vpop.permute.xlu0 %6244
    %6247 = vset.pattern.permute.xlu0 1
    %6248 = vperm.xlu0 %6247, %v5567
    %v6249 = vpop.permute.xlu0 %6248
    %6251 = vset.pattern.permute.xlu0 1
    %6252 = vperm.xlu0 %6251, %v5568
    %v6253 = vpop.permute.xlu0 %6252
    %6255 = vset.pattern.permute.xlu0 1
    %6256 = vperm.xlu0 %6255, %v5569
    %v6257 = vpop.permute.xlu0 %6256
    %6259 = vset.pattern.permute.xlu0 1
    %6260 = vperm.xlu0 %6259, %v5570
    %v6261 = vpop.permute.xlu0 %6260
    %6263 = vset.pattern.permute.xlu0 1
    %6264 = vperm.xlu0 %6263, %v5571
    %v6265 = vpop.permute.xlu0 %6264
    %6267 = vset.pattern.permute.xlu0 1
    %6268 = vperm.xlu0 %6267, %v5572
    %v6269 = vpop.permute.xlu0 %6268
    %6271 = vset.pattern.permute.xlu0 1
    %6272 = vperm.xlu0 %6271, %v5573
    %v6273 = vpop.permute.xlu0 %6272
    %6275 = vset.pattern.permute.xlu0 1
    %6276 = vperm.xlu0 %6275, %v5574
    %v6277 = vpop.permute.xlu0 %6276
    %6279 = vset.pattern.permute.xlu0 1
    %6280 = vperm.xlu0 %6279, %v5575
    %v6281 = vpop.permute.xlu0 %6280
    %6283 = vset.pattern.permute.xlu0 1
    %6284 = vperm.xlu0 %6283, %v5576
    %v6285 = vpop.permute.xlu0 %6284
    %6287 = vset.pattern.permute.xlu0 1
    %6288 = vperm.xlu0 %6287, %v5577
    %v6289 = vpop.permute.xlu0 %6288
    %6291 = vset.pattern.permute.xlu0 1
    %6292 = vperm.xlu0 %6291, %v5578
    %v6293 = vpop.permute.xlu0 %6292
    %v6295 = vlaneseq
    %v6296 = vshrl.u32 %v6295, 7
    %v6297 = vsub.s32 1, %v6296
    %v6298 = vrot.slane %v3764, %v6297
    %v6299 = vmul.f32 %v6169, %v6298
    %v6300 = vmul.f32 %v6173, %v6298
    %v6301 = vmul.f32 %v6177, %v6298
    %v6302 = vmul.f32 %v6181, %v6298
    %v6303 = vmul.f32 %v6185, %v6298
    %v6304 = vmul.f32 %v6189, %v6298
    %v6305 = vmul.f32 %v6193, %v6298
    %v6306 = vmul.f32 %v6197, %v6298
    %v6307 = vmul.f32 %v6201, %v6298
    %v6308 = vmul.f32 %v6205, %v6298
    %v6309 = vmul.f32 %v6209, %v6298
    %v6310 = vmul.f32 %v6213, %v6298
    %v6311 = vmul.f32 %v6217, %v6298
    %v6312 = vmul.f32 %v6221, %v6298
    %v6313 = vmul.f32 %v6225, %v6298
    %v6314 = vmul.f32 %v6229, %v6298
    %v6315 = vmul.f32 %v6233, %v6298
    %v6316 = vmul.f32 %v6237, %v6298
    %v6317 = vmul.f32 %v6241, %v6298
    %v6318 = vmul.f32 %v6245, %v6298
    %v6319 = vmul.f32 %v6249, %v6298
    %v6320 = vmul.f32 %v6253, %v6298
    %v6321 = vmul.f32 %v6257, %v6298
    %v6322 = vmul.f32 %v6261, %v6298
    %v6323 = vmul.f32 %v6265, %v6298
    %v6324 = vmul.f32 %v6269, %v6298
    %v6325 = vmul.f32 %v6273, %v6298
    %v6326 = vmul.f32 %v6277, %v6298
    %v6327 = vmul.f32 %v6281, %v6298
    %v6328 = vmul.f32 %v6285, %v6298
    %v6329 = vmul.f32 %v6289, %v6298
    %v6330 = vmul.f32 %v6293, %v6298
    %v6331 = vadd.f32 %v5939, %v6299
    %v6332 = vadd.f32 %v5940, %v6300
    %v6333 = vadd.f32 %v5941, %v6301
    %v6334 = vadd.f32 %v5942, %v6302
    %v6335 = vadd.f32 %v5943, %v6303
    %v6336 = vadd.f32 %v5944, %v6304
    %v6337 = vadd.f32 %v5945, %v6305
    %v6338 = vadd.f32 %v5946, %v6306
    %v6339 = vadd.f32 %v5947, %v6307
    %v6340 = vadd.f32 %v5948, %v6308
    %v6341 = vadd.f32 %v5949, %v6309
    %v6342 = vadd.f32 %v5950, %v6310
    %v6343 = vadd.f32 %v5951, %v6311
    %v6344 = vadd.f32 %v5952, %v6312
    %v6345 = vadd.f32 %v5953, %v6313
    %v6346 = vadd.f32 %v5954, %v6314
    %v6347 = vadd.f32 %v5955, %v6315
    %v6348 = vadd.f32 %v5956, %v6316
    %v6349 = vadd.f32 %v5957, %v6317
    %v6350 = vadd.f32 %v5958, %v6318
    %v6351 = vadd.f32 %v5959, %v6319
    %v6352 = vadd.f32 %v5960, %v6320
    %v6353 = vadd.f32 %v5961, %v6321
    %v6354 = vadd.f32 %v5962, %v6322
    %v6355 = vadd.f32 %v5963, %v6323
    %v6356 = vadd.f32 %v5964, %v6324
    %v6357 = vadd.f32 %v5965, %v6325
    %v6358 = vadd.f32 %v5966, %v6326
    %v6359 = vadd.f32 %v5967, %v6327
    %v6360 = vadd.f32 %v5968, %v6328
    %v6361 = vadd.f32 %v5969, %v6329
    %v6362 = vadd.f32 %v5970, %v6330
    %6363 = vset.pattern.permute.xlu0 2
    %6364 = vperm.xlu0 %6363, %v3909
    %v6365 = vpop.permute.xlu0 %6364
    %6367 = vset.pattern.permute.xlu0 2
    %6368 = vperm.xlu0 %6367, %v3910
    %v6369 = vpop.permute.xlu0 %6368
    %6371 = vset.pattern.permute.xlu0 2
    %6372 = vperm.xlu0 %6371, %v3911
    %v6373 = vpop.permute.xlu0 %6372
    %6375 = vset.pattern.permute.xlu0 2
    %6376 = vperm.xlu0 %6375, %v3912
    %v6377 = vpop.permute.xlu0 %6376
    %6379 = vset.pattern.permute.xlu0 2
    %6380 = vperm.xlu0 %6379, %v3913
    %v6381 = vpop.permute.xlu0 %6380
    %6383 = vset.pattern.permute.xlu0 2
    %6384 = vperm.xlu0 %6383, %v3914
    %v6385 = vpop.permute.xlu0 %6384
    %6387 = vset.pattern.permute.xlu0 2
    %6388 = vperm.xlu0 %6387, %v3915
    %v6389 = vpop.permute.xlu0 %6388
    %6391 = vset.pattern.permute.xlu0 2
    %6392 = vperm.xlu0 %6391, %v3916
    %v6393 = vpop.permute.xlu0 %6392
    %6395 = vset.pattern.permute.xlu0 2
    %6396 = vperm.xlu0 %6395, %v3917
    %v6397 = vpop.permute.xlu0 %6396
    %6399 = vset.pattern.permute.xlu0 2
    %6400 = vperm.xlu0 %6399, %v3918
    %v6401 = vpop.permute.xlu0 %6400
    %6403 = vset.pattern.permute.xlu0 2
    %6404 = vperm.xlu0 %6403, %v3919
    %v6405 = vpop.permute.xlu0 %6404
    %6407 = vset.pattern.permute.xlu0 2
    %6408 = vperm.xlu0 %6407, %v3920
    %v6409 = vpop.permute.xlu0 %6408
    %6411 = vset.pattern.permute.xlu0 2
    %6412 = vperm.xlu0 %6411, %v3921
    %v6413 = vpop.permute.xlu0 %6412
    %6415 = vset.pattern.permute.xlu0 2
    %6416 = vperm.xlu0 %6415, %v3922
    %v6417 = vpop.permute.xlu0 %6416
    %6419 = vset.pattern.permute.xlu0 2
    %6420 = vperm.xlu0 %6419, %v3923
    %v6421 = vpop.permute.xlu0 %6420
    %6423 = vset.pattern.permute.xlu0 2
    %6424 = vperm.xlu0 %6423, %v3924
    %v6425 = vpop.permute.xlu0 %6424
    %6427 = vset.pattern.permute.xlu0 2
    %6428 = vperm.xlu0 %6427, %v3925
    %v6429 = vpop.permute.xlu0 %6428
    %6431 = vset.pattern.permute.xlu0 2
    %6432 = vperm.xlu0 %6431, %v3926
    %v6433 = vpop.permute.xlu0 %6432
    %6435 = vset.pattern.permute.xlu0 2
    %6436 = vperm.xlu0 %6435, %v3927
    %v6437 = vpop.permute.xlu0 %6436
    %6439 = vset.pattern.permute.xlu0 2
    %6440 = vperm.xlu0 %6439, %v3928
    %v6441 = vpop.permute.xlu0 %6440
    %6443 = vset.pattern.permute.xlu0 2
    %6444 = vperm.xlu0 %6443, %v3929
    %v6445 = vpop.permute.xlu0 %6444
    %6447 = vset.pattern.permute.xlu0 2
    %6448 = vperm.xlu0 %6447, %v3930
    %v6449 = vpop.permute.xlu0 %6448
    %6451 = vset.pattern.permute.xlu0 2
    %6452 = vperm.xlu0 %6451, %v3931
    %v6453 = vpop.permute.xlu0 %6452
    %6455 = vset.pattern.permute.xlu0 2
    %6456 = vperm.xlu0 %6455, %v3932
    %v6457 = vpop.permute.xlu0 %6456
    %6459 = vset.pattern.permute.xlu0 2
    %6460 = vperm.xlu0 %6459, %v3933
    %v6461 = vpop.permute.xlu0 %6460
    %6463 = vset.pattern.permute.xlu0 2
    %6464 = vperm.xlu0 %6463, %v3934
    %v6465 = vpop.permute.xlu0 %6464
    %6467 = vset.pattern.permute.xlu0 2
    %6468 = vperm.xlu0 %6467, %v3935
    %v6469 = vpop.permute.xlu0 %6468
    %6471 = vset.pattern.permute.xlu0 2
    %6472 = vperm.xlu0 %6471, %v3936
    %v6473 = vpop.permute.xlu0 %6472
    %6475 = vset.pattern.permute.xlu0 2
    %6476 = vperm.xlu0 %6475, %v3937
    %v6477 = vpop.permute.xlu0 %6476
    %6479 = vset.pattern.permute.xlu0 2
    %6480 = vperm.xlu0 %6479, %v3938
    %v6481 = vpop.permute.xlu0 %6480
    %6483 = vset.pattern.permute.xlu0 2
    %6484 = vperm.xlu0 %6483, %v3939
    %v6485 = vpop.permute.xlu0 %6484
    %6487 = vset.pattern.permute.xlu0 2
    %6488 = vperm.xlu0 %6487, %v3940
    %v6489 = vpop.permute.xlu0 %6488
    %v6491 = vlaneseq
    %v6492 = vshrl.u32 %v6491, 7
    %v6493 = vsub.s32 2, %v6492
    %v6494 = vrot.slane %v3759, %v6493
    %v6495 = vmul.f32 %v6365, %v6494
    %v6496 = vmul.f32 %v6369, %v6494
    %v6497 = vmul.f32 %v6373, %v6494
    %v6498 = vmul.f32 %v6377, %v6494
    %v6499 = vmul.f32 %v6381, %v6494
    %v6500 = vmul.f32 %v6385, %v6494
    %v6501 = vmul.f32 %v6389, %v6494
    %v6502 = vmul.f32 %v6393, %v6494
    %v6503 = vmul.f32 %v6397, %v6494
    %v6504 = vmul.f32 %v6401, %v6494
    %v6505 = vmul.f32 %v6405, %v6494
    %v6506 = vmul.f32 %v6409, %v6494
    %v6507 = vmul.f32 %v6413, %v6494
    %v6508 = vmul.f32 %v6417, %v6494
    %v6509 = vmul.f32 %v6421, %v6494
    %v6510 = vmul.f32 %v6425, %v6494
    %v6511 = vmul.f32 %v6429, %v6494
    %v6512 = vmul.f32 %v6433, %v6494
    %v6513 = vmul.f32 %v6437, %v6494
    %v6514 = vmul.f32 %v6441, %v6494
    %v6515 = vmul.f32 %v6445, %v6494
    %v6516 = vmul.f32 %v6449, %v6494
    %v6517 = vmul.f32 %v6453, %v6494
    %v6518 = vmul.f32 %v6457, %v6494
    %v6519 = vmul.f32 %v6461, %v6494
    %v6520 = vmul.f32 %v6465, %v6494
    %v6521 = vmul.f32 %v6469, %v6494
    %v6522 = vmul.f32 %v6473, %v6494
    %v6523 = vmul.f32 %v6477, %v6494
    %v6524 = vmul.f32 %v6481, %v6494
    %v6525 = vmul.f32 %v6485, %v6494
    %v6526 = vmul.f32 %v6489, %v6494
    %v6527 = vadd.f32 %v6135, %v6495
    %v6528 = vadd.f32 %v6136, %v6496
    %v6529 = vadd.f32 %v6137, %v6497
    %v6530 = vadd.f32 %v6138, %v6498
    %v6531 = vadd.f32 %v6139, %v6499
    %v6532 = vadd.f32 %v6140, %v6500
    %v6533 = vadd.f32 %v6141, %v6501
    %v6534 = vadd.f32 %v6142, %v6502
    %v6535 = vadd.f32 %v6143, %v6503
    %v6536 = vadd.f32 %v6144, %v6504
    %v6537 = vadd.f32 %v6145, %v6505
    %v6538 = vadd.f32 %v6146, %v6506
    %v6539 = vadd.f32 %v6147, %v6507
    %v6540 = vadd.f32 %v6148, %v6508
    %v6541 = vadd.f32 %v6149, %v6509
    %v6542 = vadd.f32 %v6150, %v6510
    %v6543 = vadd.f32 %v6151, %v6511
    %v6544 = vadd.f32 %v6152, %v6512
    %v6545 = vadd.f32 %v6153, %v6513
    %v6546 = vadd.f32 %v6154, %v6514
    %v6547 = vadd.f32 %v6155, %v6515
    %v6548 = vadd.f32 %v6156, %v6516
    %v6549 = vadd.f32 %v6157, %v6517
    %v6550 = vadd.f32 %v6158, %v6518
    %v6551 = vadd.f32 %v6159, %v6519
    %v6552 = vadd.f32 %v6160, %v6520
    %v6553 = vadd.f32 %v6161, %v6521
    %v6554 = vadd.f32 %v6162, %v6522
    %v6555 = vadd.f32 %v6163, %v6523
    %v6556 = vadd.f32 %v6164, %v6524
    %v6557 = vadd.f32 %v6165, %v6525
    %v6558 = vadd.f32 %v6166, %v6526
    %6559 = vset.pattern.permute.xlu0 2
    %6560 = vperm.xlu0 %6559, %v5547
    %v6561 = vpop.permute.xlu0 %6560
    %6563 = vset.pattern.permute.xlu0 2
    %6564 = vperm.xlu0 %6563, %v5548
    %v6565 = vpop.permute.xlu0 %6564
    %6567 = vset.pattern.permute.xlu0 2
    %6568 = vperm.xlu0 %6567, %v5549
    %v6569 = vpop.permute.xlu0 %6568
    %6571 = vset.pattern.permute.xlu0 2
    %6572 = vperm.xlu0 %6571, %v5550
    %v6573 = vpop.permute.xlu0 %6572
    %6575 = vset.pattern.permute.xlu0 2
    %6576 = vperm.xlu0 %6575, %v5551
    %v6577 = vpop.permute.xlu0 %6576
    %6579 = vset.pattern.permute.xlu0 2
    %6580 = vperm.xlu0 %6579, %v5552
    %v6581 = vpop.permute.xlu0 %6580
    %6583 = vset.pattern.permute.xlu0 2
    %6584 = vperm.xlu0 %6583, %v5553
    %v6585 = vpop.permute.xlu0 %6584
    %6587 = vset.pattern.permute.xlu0 2
    %6588 = vperm.xlu0 %6587, %v5554
    %v6589 = vpop.permute.xlu0 %6588
    %6591 = vset.pattern.permute.xlu0 2
    %6592 = vperm.xlu0 %6591, %v5555
    %v6593 = vpop.permute.xlu0 %6592
    %6595 = vset.pattern.permute.xlu0 2
    %6596 = vperm.xlu0 %6595, %v5556
    %v6597 = vpop.permute.xlu0 %6596
    %6599 = vset.pattern.permute.xlu0 2
    %6600 = vperm.xlu0 %6599, %v5557
    %v6601 = vpop.permute.xlu0 %6600
    %6603 = vset.pattern.permute.xlu0 2
    %6604 = vperm.xlu0 %6603, %v5558
    %v6605 = vpop.permute.xlu0 %6604
    %6607 = vset.pattern.permute.xlu0 2
    %6608 = vperm.xlu0 %6607, %v5559
    %v6609 = vpop.permute.xlu0 %6608
    %6611 = vset.pattern.permute.xlu0 2
    %6612 = vperm.xlu0 %6611, %v5560
    %v6613 = vpop.permute.xlu0 %6612
    %6615 = vset.pattern.permute.xlu0 2
    %6616 = vperm.xlu0 %6615, %v5561
    %v6617 = vpop.permute.xlu0 %6616
    %6619 = vset.pattern.permute.xlu0 2
    %6620 = vperm.xlu0 %6619, %v5562
    %v6621 = vpop.permute.xlu0 %6620
    %6623 = vset.pattern.permute.xlu0 2
    %6624 = vperm.xlu0 %6623, %v5563
    %v6625 = vpop.permute.xlu0 %6624
    %6627 = vset.pattern.permute.xlu0 2
    %6628 = vperm.xlu0 %6627, %v5564
    %v6629 = vpop.permute.xlu0 %6628
    %6631 = vset.pattern.permute.xlu0 2
    %6632 = vperm.xlu0 %6631, %v5565
    %v6633 = vpop.permute.xlu0 %6632
    %6635 = vset.pattern.permute.xlu0 2
    %6636 = vperm.xlu0 %6635, %v5566
    %v6637 = vpop.permute.xlu0 %6636
    %6639 = vset.pattern.permute.xlu0 2
    %6640 = vperm.xlu0 %6639, %v5567
    %v6641 = vpop.permute.xlu0 %6640
    %6643 = vset.pattern.permute.xlu0 2
    %6644 = vperm.xlu0 %6643, %v5568
    %v6645 = vpop.permute.xlu0 %6644
    %6647 = vset.pattern.permute.xlu0 2
    %6648 = vperm.xlu0 %6647, %v5569
    %v6649 = vpop.permute.xlu0 %6648
    %6651 = vset.pattern.permute.xlu0 2
    %6652 = vperm.xlu0 %6651, %v5570
    %v6653 = vpop.permute.xlu0 %6652
    %6655 = vset.pattern.permute.xlu0 2
    %6656 = vperm.xlu0 %6655, %v5571
    %v6657 = vpop.permute.xlu0 %6656
    %6659 = vset.pattern.permute.xlu0 2
    %6660 = vperm.xlu0 %6659, %v5572
    %v6661 = vpop.permute.xlu0 %6660
    %6663 = vset.pattern.permute.xlu0 2
    %6664 = vperm.xlu0 %6663, %v5573
    %v6665 = vpop.permute.xlu0 %6664
    %6667 = vset.pattern.permute.xlu0 2
    %6668 = vperm.xlu0 %6667, %v5574
    %v6669 = vpop.permute.xlu0 %6668
    %6671 = vset.pattern.permute.xlu0 2
    %6672 = vperm.xlu0 %6671, %v5575
    %v6673 = vpop.permute.xlu0 %6672
    %6675 = vset.pattern.permute.xlu0 2
    %6676 = vperm.xlu0 %6675, %v5576
    %v6677 = vpop.permute.xlu0 %6676
    %6679 = vset.pattern.permute.xlu0 2
    %6680 = vperm.xlu0 %6679, %v5577
    %v6681 = vpop.permute.xlu0 %6680
    %6683 = vset.pattern.permute.xlu0 2
    %6684 = vperm.xlu0 %6683, %v5578
    %v6685 = vpop.permute.xlu0 %6684
    %v6687 = vlaneseq
    %v6688 = vshrl.u32 %v6687, 7
    %v6689 = vsub.s32 2, %v6688
    %v6690 = vrot.slane %v3764, %v6689
    %v6691 = vmul.f32 %v6561, %v6690
    %v6692 = vmul.f32 %v6565, %v6690
    %v6693 = vmul.f32 %v6569, %v6690
    %v6694 = vmul.f32 %v6573, %v6690
    %v6695 = vmul.f32 %v6577, %v6690
    %v6696 = vmul.f32 %v6581, %v6690
    %v6697 = vmul.f32 %v6585, %v6690
    %v6698 = vmul.f32 %v6589, %v6690
    %v6699 = vmul.f32 %v6593, %v6690
    %v6700 = vmul.f32 %v6597, %v6690
    %v6701 = vmul.f32 %v6601, %v6690
    %v6702 = vmul.f32 %v6605, %v6690
    %v6703 = vmul.f32 %v6609, %v6690
    %v6704 = vmul.f32 %v6613, %v6690
    %v6705 = vmul.f32 %v6617, %v6690
    %v6706 = vmul.f32 %v6621, %v6690
    %v6707 = vmul.f32 %v6625, %v6690
    %v6708 = vmul.f32 %v6629, %v6690
    %v6709 = vmul.f32 %v6633, %v6690
    %v6710 = vmul.f32 %v6637, %v6690
    %v6711 = vmul.f32 %v6641, %v6690
    %v6712 = vmul.f32 %v6645, %v6690
    %v6713 = vmul.f32 %v6649, %v6690
    %v6714 = vmul.f32 %v6653, %v6690
    %v6715 = vmul.f32 %v6657, %v6690
    %v6716 = vmul.f32 %v6661, %v6690
    %v6717 = vmul.f32 %v6665, %v6690
    %v6718 = vmul.f32 %v6669, %v6690
    %v6719 = vmul.f32 %v6673, %v6690
    %v6720 = vmul.f32 %v6677, %v6690
    %v6721 = vmul.f32 %v6681, %v6690
    %v6722 = vmul.f32 %v6685, %v6690
    %v6723 = vadd.f32 %v6331, %v6691
    %v6724 = vadd.f32 %v6332, %v6692
    %v6725 = vadd.f32 %v6333, %v6693
    %v6726 = vadd.f32 %v6334, %v6694
    %v6727 = vadd.f32 %v6335, %v6695
    %v6728 = vadd.f32 %v6336, %v6696
    %v6729 = vadd.f32 %v6337, %v6697
    %v6730 = vadd.f32 %v6338, %v6698
    %v6731 = vadd.f32 %v6339, %v6699
    %v6732 = vadd.f32 %v6340, %v6700
    %v6733 = vadd.f32 %v6341, %v6701
    %v6734 = vadd.f32 %v6342, %v6702
    %v6735 = vadd.f32 %v6343, %v6703
    %v6736 = vadd.f32 %v6344, %v6704
    %v6737 = vadd.f32 %v6345, %v6705
    %v6738 = vadd.f32 %v6346, %v6706
    %v6739 = vadd.f32 %v6347, %v6707
    %v6740 = vadd.f32 %v6348, %v6708
    %v6741 = vadd.f32 %v6349, %v6709
    %v6742 = vadd.f32 %v6350, %v6710
    %v6743 = vadd.f32 %v6351, %v6711
    %v6744 = vadd.f32 %v6352, %v6712
    %v6745 = vadd.f32 %v6353, %v6713
    %v6746 = vadd.f32 %v6354, %v6714
    %v6747 = vadd.f32 %v6355, %v6715
    %v6748 = vadd.f32 %v6356, %v6716
    %v6749 = vadd.f32 %v6357, %v6717
    %v6750 = vadd.f32 %v6358, %v6718
    %v6751 = vadd.f32 %v6359, %v6719
    %v6752 = vadd.f32 %v6360, %v6720
    %v6753 = vadd.f32 %v6361, %v6721
    %v6754 = vadd.f32 %v6362, %v6722
    %6755 = vset.pattern.permute.xlu0 3
    %6756 = vperm.xlu0 %6755, %v3909
    %v6757 = vpop.permute.xlu0 %6756
    %6759 = vset.pattern.permute.xlu0 3
    %6760 = vperm.xlu0 %6759, %v3910
    %v6761 = vpop.permute.xlu0 %6760
    %6763 = vset.pattern.permute.xlu0 3
    %6764 = vperm.xlu0 %6763, %v3911
    %v6765 = vpop.permute.xlu0 %6764
    %6767 = vset.pattern.permute.xlu0 3
    %6768 = vperm.xlu0 %6767, %v3912
    %v6769 = vpop.permute.xlu0 %6768
    %6771 = vset.pattern.permute.xlu0 3
    %6772 = vperm.xlu0 %6771, %v3913
    %v6773 = vpop.permute.xlu0 %6772
    %6775 = vset.pattern.permute.xlu0 3
    %6776 = vperm.xlu0 %6775, %v3914
    %v6777 = vpop.permute.xlu0 %6776
    %6779 = vset.pattern.permute.xlu0 3
    %6780 = vperm.xlu0 %6779, %v3915
    %v6781 = vpop.permute.xlu0 %6780
    %6783 = vset.pattern.permute.xlu0 3
    %6784 = vperm.xlu0 %6783, %v3916
    %v6785 = vpop.permute.xlu0 %6784
    %6787 = vset.pattern.permute.xlu0 3
    %6788 = vperm.xlu0 %6787, %v3917
    %v6789 = vpop.permute.xlu0 %6788
    %6791 = vset.pattern.permute.xlu0 3
    %6792 = vperm.xlu0 %6791, %v3918
    %v6793 = vpop.permute.xlu0 %6792
    %6795 = vset.pattern.permute.xlu0 3
    %6796 = vperm.xlu0 %6795, %v3919
    %v6797 = vpop.permute.xlu0 %6796
    %6799 = vset.pattern.permute.xlu0 3
    %6800 = vperm.xlu0 %6799, %v3920
    %v6801 = vpop.permute.xlu0 %6800
    %6803 = vset.pattern.permute.xlu0 3
    %6804 = vperm.xlu0 %6803, %v3921
    %v6805 = vpop.permute.xlu0 %6804
    %6807 = vset.pattern.permute.xlu0 3
    %6808 = vperm.xlu0 %6807, %v3922
    %v6809 = vpop.permute.xlu0 %6808
    %6811 = vset.pattern.permute.xlu0 3
    %6812 = vperm.xlu0 %6811, %v3923
    %v6813 = vpop.permute.xlu0 %6812
    %6815 = vset.pattern.permute.xlu0 3
    %6816 = vperm.xlu0 %6815, %v3924
    %v6817 = vpop.permute.xlu0 %6816
    %6819 = vset.pattern.permute.xlu0 3
    %6820 = vperm.xlu0 %6819, %v3925
    %v6821 = vpop.permute.xlu0 %6820
    %6823 = vset.pattern.permute.xlu0 3
    %6824 = vperm.xlu0 %6823, %v3926
    %v6825 = vpop.permute.xlu0 %6824
    %6827 = vset.pattern.permute.xlu0 3
    %6828 = vperm.xlu0 %6827, %v3927
    %v6829 = vpop.permute.xlu0 %6828
    %6831 = vset.pattern.permute.xlu0 3
    %6832 = vperm.xlu0 %6831, %v3928
    %v6833 = vpop.permute.xlu0 %6832
    %6835 = vset.pattern.permute.xlu0 3
    %6836 = vperm.xlu0 %6835, %v3929
    %v6837 = vpop.permute.xlu0 %6836
    %6839 = vset.pattern.permute.xlu0 3
    %6840 = vperm.xlu0 %6839, %v3930
    %v6841 = vpop.permute.xlu0 %6840
    %6843 = vset.pattern.permute.xlu0 3
    %6844 = vperm.xlu0 %6843, %v3931
    %v6845 = vpop.permute.xlu0 %6844
    %6847 = vset.pattern.permute.xlu0 3
    %6848 = vperm.xlu0 %6847, %v3932
    %v6849 = vpop.permute.xlu0 %6848
    %6851 = vset.pattern.permute.xlu0 3
    %6852 = vperm.xlu0 %6851, %v3933
    %v6853 = vpop.permute.xlu0 %6852
    %6855 = vset.pattern.permute.xlu0 3
    %6856 = vperm.xlu0 %6855, %v3934
    %v6857 = vpop.permute.xlu0 %6856
    %6859 = vset.pattern.permute.xlu0 3
    %6860 = vperm.xlu0 %6859, %v3935
    %v6861 = vpop.permute.xlu0 %6860
    %6863 = vset.pattern.permute.xlu0 3
    %6864 = vperm.xlu0 %6863, %v3936
    %v6865 = vpop.permute.xlu0 %6864
    %6867 = vset.pattern.permute.xlu0 3
    %6868 = vperm.xlu0 %6867, %v3937
    %v6869 = vpop.permute.xlu0 %6868
    %6871 = vset.pattern.permute.xlu0 3
    %6872 = vperm.xlu0 %6871, %v3938
    %v6873 = vpop.permute.xlu0 %6872
    %6875 = vset.pattern.permute.xlu0 3
    %6876 = vperm.xlu0 %6875, %v3939
    %v6877 = vpop.permute.xlu0 %6876
    %6879 = vset.pattern.permute.xlu0 3
    %6880 = vperm.xlu0 %6879, %v3940
    %v6881 = vpop.permute.xlu0 %6880
    %v6883 = vlaneseq
    %v6884 = vshrl.u32 %v6883, 7
    %v6885 = vsub.s32 3, %v6884
    %v6886 = vrot.slane %v3759, %v6885
    %v6887 = vmul.f32 %v6757, %v6886
    %v6888 = vmul.f32 %v6761, %v6886
    %v6889 = vmul.f32 %v6765, %v6886
    %v6890 = vmul.f32 %v6769, %v6886
    %v6891 = vmul.f32 %v6773, %v6886
    %v6892 = vmul.f32 %v6777, %v6886
    %v6893 = vmul.f32 %v6781, %v6886
    %v6894 = vmul.f32 %v6785, %v6886
    %v6895 = vmul.f32 %v6789, %v6886
    %v6896 = vmul.f32 %v6793, %v6886
    %v6897 = vmul.f32 %v6797, %v6886
    %v6898 = vmul.f32 %v6801, %v6886
    %v6899 = vmul.f32 %v6805, %v6886
    %v6900 = vmul.f32 %v6809, %v6886
    %v6901 = vmul.f32 %v6813, %v6886
    %v6902 = vmul.f32 %v6817, %v6886
    %v6903 = vmul.f32 %v6821, %v6886
    %v6904 = vmul.f32 %v6825, %v6886
    %v6905 = vmul.f32 %v6829, %v6886
    %v6906 = vmul.f32 %v6833, %v6886
    %v6907 = vmul.f32 %v6837, %v6886
    %v6908 = vmul.f32 %v6841, %v6886
    %v6909 = vmul.f32 %v6845, %v6886
    %v6910 = vmul.f32 %v6849, %v6886
    %v6911 = vmul.f32 %v6853, %v6886
    %v6912 = vmul.f32 %v6857, %v6886
    %v6913 = vmul.f32 %v6861, %v6886
    %v6914 = vmul.f32 %v6865, %v6886
    %v6915 = vmul.f32 %v6869, %v6886
    %v6916 = vmul.f32 %v6873, %v6886
    %v6917 = vmul.f32 %v6877, %v6886
    %v6918 = vmul.f32 %v6881, %v6886
    %v6919 = vadd.f32 %v6527, %v6887
    %v6920 = vadd.f32 %v6528, %v6888
    %v6921 = vadd.f32 %v6529, %v6889
    %v6922 = vadd.f32 %v6530, %v6890
    %v6923 = vadd.f32 %v6531, %v6891
    %v6924 = vadd.f32 %v6532, %v6892
    %v6925 = vadd.f32 %v6533, %v6893
    %v6926 = vadd.f32 %v6534, %v6894
    %v6927 = vadd.f32 %v6535, %v6895
    %v6928 = vadd.f32 %v6536, %v6896
    %v6929 = vadd.f32 %v6537, %v6897
    %v6930 = vadd.f32 %v6538, %v6898
    %v6931 = vadd.f32 %v6539, %v6899
    %v6932 = vadd.f32 %v6540, %v6900
    %v6933 = vadd.f32 %v6541, %v6901
    %v6934 = vadd.f32 %v6542, %v6902
    %v6935 = vadd.f32 %v6543, %v6903
    %v6936 = vadd.f32 %v6544, %v6904
    %v6937 = vadd.f32 %v6545, %v6905
    %v6938 = vadd.f32 %v6546, %v6906
    %v6939 = vadd.f32 %v6547, %v6907
    %v6940 = vadd.f32 %v6548, %v6908
    %v6941 = vadd.f32 %v6549, %v6909
    %v6942 = vadd.f32 %v6550, %v6910
    %v6943 = vadd.f32 %v6551, %v6911
    %v6944 = vadd.f32 %v6552, %v6912
    %v6945 = vadd.f32 %v6553, %v6913
    %v6946 = vadd.f32 %v6554, %v6914
    %v6947 = vadd.f32 %v6555, %v6915
    %v6948 = vadd.f32 %v6556, %v6916
    %v6949 = vadd.f32 %v6557, %v6917
    %v6950 = vadd.f32 %v6558, %v6918
    %6951 = vset.pattern.permute.xlu0 3
    %6952 = vperm.xlu0 %6951, %v5547
    %v6953 = vpop.permute.xlu0 %6952
    %6955 = vset.pattern.permute.xlu0 3
    %6956 = vperm.xlu0 %6955, %v5548
    %v6957 = vpop.permute.xlu0 %6956
    %6959 = vset.pattern.permute.xlu0 3
    %6960 = vperm.xlu0 %6959, %v5549
    %v6961 = vpop.permute.xlu0 %6960
    %6963 = vset.pattern.permute.xlu0 3
    %6964 = vperm.xlu0 %6963, %v5550
    %v6965 = vpop.permute.xlu0 %6964
    %6967 = vset.pattern.permute.xlu0 3
    %6968 = vperm.xlu0 %6967, %v5551
    %v6969 = vpop.permute.xlu0 %6968
    %6971 = vset.pattern.permute.xlu0 3
    %6972 = vperm.xlu0 %6971, %v5552
    %v6973 = vpop.permute.xlu0 %6972
    %6975 = vset.pattern.permute.xlu0 3
    %6976 = vperm.xlu0 %6975, %v5553
    %v6977 = vpop.permute.xlu0 %6976
    %6979 = vset.pattern.permute.xlu0 3
    %6980 = vperm.xlu0 %6979, %v5554
    %v6981 = vpop.permute.xlu0 %6980
    %6983 = vset.pattern.permute.xlu0 3
    %6984 = vperm.xlu0 %6983, %v5555
    %v6985 = vpop.permute.xlu0 %6984
    %6987 = vset.pattern.permute.xlu0 3
    %6988 = vperm.xlu0 %6987, %v5556
    %v6989 = vpop.permute.xlu0 %6988
    %6991 = vset.pattern.permute.xlu0 3
    %6992 = vperm.xlu0 %6991, %v5557
    %v6993 = vpop.permute.xlu0 %6992
    %6995 = vset.pattern.permute.xlu0 3
    %6996 = vperm.xlu0 %6995, %v5558
    %v6997 = vpop.permute.xlu0 %6996
    %6999 = vset.pattern.permute.xlu0 3
    %7000 = vperm.xlu0 %6999, %v5559
    %v7001 = vpop.permute.xlu0 %7000
    %7003 = vset.pattern.permute.xlu0 3
    %7004 = vperm.xlu0 %7003, %v5560
    %v7005 = vpop.permute.xlu0 %7004
    %7007 = vset.pattern.permute.xlu0 3
    %7008 = vperm.xlu0 %7007, %v5561
    %v7009 = vpop.permute.xlu0 %7008
    %7011 = vset.pattern.permute.xlu0 3
    %7012 = vperm.xlu0 %7011, %v5562
    %v7013 = vpop.permute.xlu0 %7012
    %7015 = vset.pattern.permute.xlu0 3
    %7016 = vperm.xlu0 %7015, %v5563
    %v7017 = vpop.permute.xlu0 %7016
    %7019 = vset.pattern.permute.xlu0 3
    %7020 = vperm.xlu0 %7019, %v5564
    %v7021 = vpop.permute.xlu0 %7020
    %7023 = vset.pattern.permute.xlu0 3
    %7024 = vperm.xlu0 %7023, %v5565
    %v7025 = vpop.permute.xlu0 %7024
    %7027 = vset.pattern.permute.xlu0 3
    %7028 = vperm.xlu0 %7027, %v5566
    %v7029 = vpop.permute.xlu0 %7028
    %7031 = vset.pattern.permute.xlu0 3
    %7032 = vperm.xlu0 %7031, %v5567
    %v7033 = vpop.permute.xlu0 %7032
    %7035 = vset.pattern.permute.xlu0 3
    %7036 = vperm.xlu0 %7035, %v5568
    %v7037 = vpop.permute.xlu0 %7036
    %7039 = vset.pattern.permute.xlu0 3
    %7040 = vperm.xlu0 %7039, %v5569
    %v7041 = vpop.permute.xlu0 %7040
    %7043 = vset.pattern.permute.xlu0 3
    %7044 = vperm.xlu0 %7043, %v5570
    %v7045 = vpop.permute.xlu0 %7044
    %7047 = vset.pattern.permute.xlu0 3
    %7048 = vperm.xlu0 %7047, %v5571
    %v7049 = vpop.permute.xlu0 %7048
    %7051 = vset.pattern.permute.xlu0 3
    %7052 = vperm.xlu0 %7051, %v5572
    %v7053 = vpop.permute.xlu0 %7052
    %7055 = vset.pattern.permute.xlu0 3
    %7056 = vperm.xlu0 %7055, %v5573
    %v7057 = vpop.permute.xlu0 %7056
    %7059 = vset.pattern.permute.xlu0 3
    %7060 = vperm.xlu0 %7059, %v5574
    %v7061 = vpop.permute.xlu0 %7060
    %7063 = vset.pattern.permute.xlu0 3
    %7064 = vperm.xlu0 %7063, %v5575
    %v7065 = vpop.permute.xlu0 %7064
    %7067 = vset.pattern.permute.xlu0 3
    %7068 = vperm.xlu0 %7067, %v5576
    %v7069 = vpop.permute.xlu0 %7068
    %7071 = vset.pattern.permute.xlu0 3
    %7072 = vperm.xlu0 %7071, %v5577
    %v7073 = vpop.permute.xlu0 %7072
    %7075 = vset.pattern.permute.xlu0 3
    %7076 = vperm.xlu0 %7075, %v5578
    %v7077 = vpop.permute.xlu0 %7076
    %v7079 = vlaneseq
    %v7080 = vshrl.u32 %v7079, 7
    %v7081 = vsub.s32 3, %v7080
    %v7082 = vrot.slane %v3764, %v7081
    %v7083 = vmul.f32 %v6953, %v7082
    %v7084 = vmul.f32 %v6957, %v7082
    %v7085 = vmul.f32 %v6961, %v7082
    %v7086 = vmul.f32 %v6965, %v7082
    %v7087 = vmul.f32 %v6969, %v7082
    %v7088 = vmul.f32 %v6973, %v7082
    %v7089 = vmul.f32 %v6977, %v7082
    %v7090 = vmul.f32 %v6981, %v7082
    %v7091 = vmul.f32 %v6985, %v7082
    %v7092 = vmul.f32 %v6989, %v7082
    %v7093 = vmul.f32 %v6993, %v7082
    %v7094 = vmul.f32 %v6997, %v7082
    %v7095 = vmul.f32 %v7001, %v7082
    %v7096 = vmul.f32 %v7005, %v7082
    %v7097 = vmul.f32 %v7009, %v7082
    %v7098 = vmul.f32 %v7013, %v7082
    %v7099 = vmul.f32 %v7017, %v7082
    %v7100 = vmul.f32 %v7021, %v7082
    %v7101 = vmul.f32 %v7025, %v7082
    %v7102 = vmul.f32 %v7029, %v7082
    %v7103 = vmul.f32 %v7033, %v7082
    %v7104 = vmul.f32 %v7037, %v7082
    %v7105 = vmul.f32 %v7041, %v7082
    %v7106 = vmul.f32 %v7045, %v7082
    %v7107 = vmul.f32 %v7049, %v7082
    %v7108 = vmul.f32 %v7053, %v7082
    %v7109 = vmul.f32 %v7057, %v7082
    %v7110 = vmul.f32 %v7061, %v7082
    %v7111 = vmul.f32 %v7065, %v7082
    %v7112 = vmul.f32 %v7069, %v7082
    %v7113 = vmul.f32 %v7073, %v7082
    %v7114 = vmul.f32 %v7077, %v7082
    %v7115 = vadd.f32 %v6723, %v7083
    %v7116 = vadd.f32 %v6724, %v7084
    %v7117 = vadd.f32 %v6725, %v7085
    %v7118 = vadd.f32 %v6726, %v7086
    %v7119 = vadd.f32 %v6727, %v7087
    %v7120 = vadd.f32 %v6728, %v7088
    %v7121 = vadd.f32 %v6729, %v7089
    %v7122 = vadd.f32 %v6730, %v7090
    %v7123 = vadd.f32 %v6731, %v7091
    %v7124 = vadd.f32 %v6732, %v7092
    %v7125 = vadd.f32 %v6733, %v7093
    %v7126 = vadd.f32 %v6734, %v7094
    %v7127 = vadd.f32 %v6735, %v7095
    %v7128 = vadd.f32 %v6736, %v7096
    %v7129 = vadd.f32 %v6737, %v7097
    %v7130 = vadd.f32 %v6738, %v7098
    %v7131 = vadd.f32 %v6739, %v7099
    %v7132 = vadd.f32 %v6740, %v7100
    %v7133 = vadd.f32 %v6741, %v7101
    %v7134 = vadd.f32 %v6742, %v7102
    %v7135 = vadd.f32 %v6743, %v7103
    %v7136 = vadd.f32 %v6744, %v7104
    %v7137 = vadd.f32 %v6745, %v7105
    %v7138 = vadd.f32 %v6746, %v7106
    %v7139 = vadd.f32 %v6747, %v7107
    %v7140 = vadd.f32 %v6748, %v7108
    %v7141 = vadd.f32 %v6749, %v7109
    %v7142 = vadd.f32 %v6750, %v7110
    %v7143 = vadd.f32 %v6751, %v7111
    %v7144 = vadd.f32 %v6752, %v7112
    %v7145 = vadd.f32 %v6753, %v7113
    %v7146 = vadd.f32 %v6754, %v7114
    %7147 = vset.pattern.permute.xlu0 4
    %7148 = vperm.xlu0 %7147, %v3909
    %v7149 = vpop.permute.xlu0 %7148
    %7151 = vset.pattern.permute.xlu0 4
    %7152 = vperm.xlu0 %7151, %v3910
    %v7153 = vpop.permute.xlu0 %7152
    %7155 = vset.pattern.permute.xlu0 4
    %7156 = vperm.xlu0 %7155, %v3911
    %v7157 = vpop.permute.xlu0 %7156
    %7159 = vset.pattern.permute.xlu0 4
    %7160 = vperm.xlu0 %7159, %v3912
    %v7161 = vpop.permute.xlu0 %7160
    %7163 = vset.pattern.permute.xlu0 4
    %7164 = vperm.xlu0 %7163, %v3913
    %v7165 = vpop.permute.xlu0 %7164
    %7167 = vset.pattern.permute.xlu0 4
    %7168 = vperm.xlu0 %7167, %v3914
    %v7169 = vpop.permute.xlu0 %7168
    %7171 = vset.pattern.permute.xlu0 4
    %7172 = vperm.xlu0 %7171, %v3915
    %v7173 = vpop.permute.xlu0 %7172
    %7175 = vset.pattern.permute.xlu0 4
    %7176 = vperm.xlu0 %7175, %v3916
    %v7177 = vpop.permute.xlu0 %7176
    %7179 = vset.pattern.permute.xlu0 4
    %7180 = vperm.xlu0 %7179, %v3917
    %v7181 = vpop.permute.xlu0 %7180
    %7183 = vset.pattern.permute.xlu0 4
    %7184 = vperm.xlu0 %7183, %v3918
    %v7185 = vpop.permute.xlu0 %7184
    %7187 = vset.pattern.permute.xlu0 4
    %7188 = vperm.xlu0 %7187, %v3919
    %v7189 = vpop.permute.xlu0 %7188
    %7191 = vset.pattern.permute.xlu0 4
    %7192 = vperm.xlu0 %7191, %v3920
    %v7193 = vpop.permute.xlu0 %7192
    %7195 = vset.pattern.permute.xlu0 4
    %7196 = vperm.xlu0 %7195, %v3921
    %v7197 = vpop.permute.xlu0 %7196
    %7199 = vset.pattern.permute.xlu0 4
    %7200 = vperm.xlu0 %7199, %v3922
    %v7201 = vpop.permute.xlu0 %7200
    %7203 = vset.pattern.permute.xlu0 4
    %7204 = vperm.xlu0 %7203, %v3923
    %v7205 = vpop.permute.xlu0 %7204
    %7207 = vset.pattern.permute.xlu0 4
    %7208 = vperm.xlu0 %7207, %v3924
    %v7209 = vpop.permute.xlu0 %7208
    %7211 = vset.pattern.permute.xlu0 4
    %7212 = vperm.xlu0 %7211, %v3925
    %v7213 = vpop.permute.xlu0 %7212
    %7215 = vset.pattern.permute.xlu0 4
    %7216 = vperm.xlu0 %7215, %v3926
    %v7217 = vpop.permute.xlu0 %7216
    %7219 = vset.pattern.permute.xlu0 4
    %7220 = vperm.xlu0 %7219, %v3927
    %v7221 = vpop.permute.xlu0 %7220
    %7223 = vset.pattern.permute.xlu0 4
    %7224 = vperm.xlu0 %7223, %v3928
    %v7225 = vpop.permute.xlu0 %7224
    %7227 = vset.pattern.permute.xlu0 4
    %7228 = vperm.xlu0 %7227, %v3929
    %v7229 = vpop.permute.xlu0 %7228
    %7231 = vset.pattern.permute.xlu0 4
    %7232 = vperm.xlu0 %7231, %v3930
    %v7233 = vpop.permute.xlu0 %7232
    %7235 = vset.pattern.permute.xlu0 4
    %7236 = vperm.xlu0 %7235, %v3931
    %v7237 = vpop.permute.xlu0 %7236
    %7239 = vset.pattern.permute.xlu0 4
    %7240 = vperm.xlu0 %7239, %v3932
    %v7241 = vpop.permute.xlu0 %7240
    %7243 = vset.pattern.permute.xlu0 4
    %7244 = vperm.xlu0 %7243, %v3933
    %v7245 = vpop.permute.xlu0 %7244
    %7247 = vset.pattern.permute.xlu0 4
    %7248 = vperm.xlu0 %7247, %v3934
    %v7249 = vpop.permute.xlu0 %7248
    %7251 = vset.pattern.permute.xlu0 4
    %7252 = vperm.xlu0 %7251, %v3935
    %v7253 = vpop.permute.xlu0 %7252
    %7255 = vset.pattern.permute.xlu0 4
    %7256 = vperm.xlu0 %7255, %v3936
    %v7257 = vpop.permute.xlu0 %7256
    %7259 = vset.pattern.permute.xlu0 4
    %7260 = vperm.xlu0 %7259, %v3937
    %v7261 = vpop.permute.xlu0 %7260
    %7263 = vset.pattern.permute.xlu0 4
    %7264 = vperm.xlu0 %7263, %v3938
    %v7265 = vpop.permute.xlu0 %7264
    %7267 = vset.pattern.permute.xlu0 4
    %7268 = vperm.xlu0 %7267, %v3939
    %v7269 = vpop.permute.xlu0 %7268
    %7271 = vset.pattern.permute.xlu0 4
    %7272 = vperm.xlu0 %7271, %v3940
    %v7273 = vpop.permute.xlu0 %7272
    %v7275 = vlaneseq
    %v7276 = vshrl.u32 %v7275, 7
    %v7277 = vsub.s32 4, %v7276
    %v7278 = vrot.slane %v3759, %v7277
    %v7279 = vmul.f32 %v7149, %v7278
    %v7280 = vmul.f32 %v7153, %v7278
    %v7281 = vmul.f32 %v7157, %v7278
    %v7282 = vmul.f32 %v7161, %v7278
    %v7283 = vmul.f32 %v7165, %v7278
    %v7284 = vmul.f32 %v7169, %v7278
    %v7285 = vmul.f32 %v7173, %v7278
    %v7286 = vmul.f32 %v7177, %v7278
    %v7287 = vmul.f32 %v7181, %v7278
    %v7288 = vmul.f32 %v7185, %v7278
    %v7289 = vmul.f32 %v7189, %v7278
    %v7290 = vmul.f32 %v7193, %v7278
    %v7291 = vmul.f32 %v7197, %v7278
    %v7292 = vmul.f32 %v7201, %v7278
    %v7293 = vmul.f32 %v7205, %v7278
    %v7294 = vmul.f32 %v7209, %v7278
    %v7295 = vmul.f32 %v7213, %v7278
    %v7296 = vmul.f32 %v7217, %v7278
    %v7297 = vmul.f32 %v7221, %v7278
    %v7298 = vmul.f32 %v7225, %v7278
    %v7299 = vmul.f32 %v7229, %v7278
    %v7300 = vmul.f32 %v7233, %v7278
    %v7301 = vmul.f32 %v7237, %v7278
    %v7302 = vmul.f32 %v7241, %v7278
    %v7303 = vmul.f32 %v7245, %v7278
    %v7304 = vmul.f32 %v7249, %v7278
    %v7305 = vmul.f32 %v7253, %v7278
    %v7306 = vmul.f32 %v7257, %v7278
    %v7307 = vmul.f32 %v7261, %v7278
    %v7308 = vmul.f32 %v7265, %v7278
    %v7309 = vmul.f32 %v7269, %v7278
    %v7310 = vmul.f32 %v7273, %v7278
    %v7311 = vadd.f32 %v6919, %v7279
    %v7312 = vadd.f32 %v6920, %v7280
    %v7313 = vadd.f32 %v6921, %v7281
    %v7314 = vadd.f32 %v6922, %v7282
    %v7315 = vadd.f32 %v6923, %v7283
    %v7316 = vadd.f32 %v6924, %v7284
    %v7317 = vadd.f32 %v6925, %v7285
    %v7318 = vadd.f32 %v6926, %v7286
    %v7319 = vadd.f32 %v6927, %v7287
    %v7320 = vadd.f32 %v6928, %v7288
    %v7321 = vadd.f32 %v6929, %v7289
    %v7322 = vadd.f32 %v6930, %v7290
    %v7323 = vadd.f32 %v6931, %v7291
    %v7324 = vadd.f32 %v6932, %v7292
    %v7325 = vadd.f32 %v6933, %v7293
    %v7326 = vadd.f32 %v6934, %v7294
    %v7327 = vadd.f32 %v6935, %v7295
    %v7328 = vadd.f32 %v6936, %v7296
    %v7329 = vadd.f32 %v6937, %v7297
    %v7330 = vadd.f32 %v6938, %v7298
    %v7331 = vadd.f32 %v6939, %v7299
    %v7332 = vadd.f32 %v6940, %v7300
    %v7333 = vadd.f32 %v6941, %v7301
    %v7334 = vadd.f32 %v6942, %v7302
    %v7335 = vadd.f32 %v6943, %v7303
    %v7336 = vadd.f32 %v6944, %v7304
    %v7337 = vadd.f32 %v6945, %v7305
    %v7338 = vadd.f32 %v6946, %v7306
    %v7339 = vadd.f32 %v6947, %v7307
    %v7340 = vadd.f32 %v6948, %v7308
    %v7341 = vadd.f32 %v6949, %v7309
    %v7342 = vadd.f32 %v6950, %v7310
    %7343 = vset.pattern.permute.xlu0 4
    %7344 = vperm.xlu0 %7343, %v5547
    %v7345 = vpop.permute.xlu0 %7344
    %7347 = vset.pattern.permute.xlu0 4
    %7348 = vperm.xlu0 %7347, %v5548
    %v7349 = vpop.permute.xlu0 %7348
    %7351 = vset.pattern.permute.xlu0 4
    %7352 = vperm.xlu0 %7351, %v5549
    %v7353 = vpop.permute.xlu0 %7352
    %7355 = vset.pattern.permute.xlu0 4
    %7356 = vperm.xlu0 %7355, %v5550
    %v7357 = vpop.permute.xlu0 %7356
    %7359 = vset.pattern.permute.xlu0 4
    %7360 = vperm.xlu0 %7359, %v5551
    %v7361 = vpop.permute.xlu0 %7360
    %7363 = vset.pattern.permute.xlu0 4
    %7364 = vperm.xlu0 %7363, %v5552
    %v7365 = vpop.permute.xlu0 %7364
    %7367 = vset.pattern.permute.xlu0 4
    %7368 = vperm.xlu0 %7367, %v5553
    %v7369 = vpop.permute.xlu0 %7368
    %7371 = vset.pattern.permute.xlu0 4
    %7372 = vperm.xlu0 %7371, %v5554
    %v7373 = vpop.permute.xlu0 %7372
    %7375 = vset.pattern.permute.xlu0 4
    %7376 = vperm.xlu0 %7375, %v5555
    %v7377 = vpop.permute.xlu0 %7376
    %7379 = vset.pattern.permute.xlu0 4
    %7380 = vperm.xlu0 %7379, %v5556
    %v7381 = vpop.permute.xlu0 %7380
    %7383 = vset.pattern.permute.xlu0 4
    %7384 = vperm.xlu0 %7383, %v5557
    %v7385 = vpop.permute.xlu0 %7384
    %7387 = vset.pattern.permute.xlu0 4
    %7388 = vperm.xlu0 %7387, %v5558
    %v7389 = vpop.permute.xlu0 %7388
    %7391 = vset.pattern.permute.xlu0 4
    %7392 = vperm.xlu0 %7391, %v5559
    %v7393 = vpop.permute.xlu0 %7392
    %7395 = vset.pattern.permute.xlu0 4
    %7396 = vperm.xlu0 %7395, %v5560
    %v7397 = vpop.permute.xlu0 %7396
    %7399 = vset.pattern.permute.xlu0 4
    %7400 = vperm.xlu0 %7399, %v5561
    %v7401 = vpop.permute.xlu0 %7400
    %7403 = vset.pattern.permute.xlu0 4
    %7404 = vperm.xlu0 %7403, %v5562
    %v7405 = vpop.permute.xlu0 %7404
    %7407 = vset.pattern.permute.xlu0 4
    %7408 = vperm.xlu0 %7407, %v5563
    %v7409 = vpop.permute.xlu0 %7408
    %7411 = vset.pattern.permute.xlu0 4
    %7412 = vperm.xlu0 %7411, %v5564
    %v7413 = vpop.permute.xlu0 %7412
    %7415 = vset.pattern.permute.xlu0 4
    %7416 = vperm.xlu0 %7415, %v5565
    %v7417 = vpop.permute.xlu0 %7416
    %7419 = vset.pattern.permute.xlu0 4
    %7420 = vperm.xlu0 %7419, %v5566
    %v7421 = vpop.permute.xlu0 %7420
    %7423 = vset.pattern.permute.xlu0 4
    %7424 = vperm.xlu0 %7423, %v5567
    %v7425 = vpop.permute.xlu0 %7424
    %7427 = vset.pattern.permute.xlu0 4
    %7428 = vperm.xlu0 %7427, %v5568
    %v7429 = vpop.permute.xlu0 %7428
    %7431 = vset.pattern.permute.xlu0 4
    %7432 = vperm.xlu0 %7431, %v5569
    %v7433 = vpop.permute.xlu0 %7432
    %7435 = vset.pattern.permute.xlu0 4
    %7436 = vperm.xlu0 %7435, %v5570
    %v7437 = vpop.permute.xlu0 %7436
    %7439 = vset.pattern.permute.xlu0 4
    %7440 = vperm.xlu0 %7439, %v5571
    %v7441 = vpop.permute.xlu0 %7440
    %7443 = vset.pattern.permute.xlu0 4
    %7444 = vperm.xlu0 %7443, %v5572
    %v7445 = vpop.permute.xlu0 %7444
    %7447 = vset.pattern.permute.xlu0 4
    %7448 = vperm.xlu0 %7447, %v5573
    %v7449 = vpop.permute.xlu0 %7448
    %7451 = vset.pattern.permute.xlu0 4
    %7452 = vperm.xlu0 %7451, %v5574
    %v7453 = vpop.permute.xlu0 %7452
    %7455 = vset.pattern.permute.xlu0 4
    %7456 = vperm.xlu0 %7455, %v5575
    %v7457 = vpop.permute.xlu0 %7456
    %7459 = vset.pattern.permute.xlu0 4
    %7460 = vperm.xlu0 %7459, %v5576
    %v7461 = vpop.permute.xlu0 %7460
    %7463 = vset.pattern.permute.xlu0 4
    %7464 = vperm.xlu0 %7463, %v5577
    %v7465 = vpop.permute.xlu0 %7464
    %7467 = vset.pattern.permute.xlu0 4
    %7468 = vperm.xlu0 %7467, %v5578
    %v7469 = vpop.permute.xlu0 %7468
    %v7471 = vlaneseq
    %v7472 = vshrl.u32 %v7471, 7
    %v7473 = vsub.s32 4, %v7472
    %v7474 = vrot.slane %v3764, %v7473
    %v7475 = vmul.f32 %v7345, %v7474
    %v7476 = vmul.f32 %v7349, %v7474
    %v7477 = vmul.f32 %v7353, %v7474
    %v7478 = vmul.f32 %v7357, %v7474
    %v7479 = vmul.f32 %v7361, %v7474
    %v7480 = vmul.f32 %v7365, %v7474
    %v7481 = vmul.f32 %v7369, %v7474
    %v7482 = vmul.f32 %v7373, %v7474
    %v7483 = vmul.f32 %v7377, %v7474
    %v7484 = vmul.f32 %v7381, %v7474
    %v7485 = vmul.f32 %v7385, %v7474
    %v7486 = vmul.f32 %v7389, %v7474
    %v7487 = vmul.f32 %v7393, %v7474
    %v7488 = vmul.f32 %v7397, %v7474
    %v7489 = vmul.f32 %v7401, %v7474
    %v7490 = vmul.f32 %v7405, %v7474
    %v7491 = vmul.f32 %v7409, %v7474
    %v7492 = vmul.f32 %v7413, %v7474
    %v7493 = vmul.f32 %v7417, %v7474
    %v7494 = vmul.f32 %v7421, %v7474
    %v7495 = vmul.f32 %v7425, %v7474
    %v7496 = vmul.f32 %v7429, %v7474
    %v7497 = vmul.f32 %v7433, %v7474
    %v7498 = vmul.f32 %v7437, %v7474
    %v7499 = vmul.f32 %v7441, %v7474
    %v7500 = vmul.f32 %v7445, %v7474
    %v7501 = vmul.f32 %v7449, %v7474
    %v7502 = vmul.f32 %v7453, %v7474
    %v7503 = vmul.f32 %v7457, %v7474
    %v7504 = vmul.f32 %v7461, %v7474
    %v7505 = vmul.f32 %v7465, %v7474
    %v7506 = vmul.f32 %v7469, %v7474
    %v7507 = vadd.f32 %v7115, %v7475
    %v7508 = vadd.f32 %v7116, %v7476
    %v7509 = vadd.f32 %v7117, %v7477
    %v7510 = vadd.f32 %v7118, %v7478
    %v7511 = vadd.f32 %v7119, %v7479
    %v7512 = vadd.f32 %v7120, %v7480
    %v7513 = vadd.f32 %v7121, %v7481
    %v7514 = vadd.f32 %v7122, %v7482
    %v7515 = vadd.f32 %v7123, %v7483
    %v7516 = vadd.f32 %v7124, %v7484
    %v7517 = vadd.f32 %v7125, %v7485
    %v7518 = vadd.f32 %v7126, %v7486
    %v7519 = vadd.f32 %v7127, %v7487
    %v7520 = vadd.f32 %v7128, %v7488
    %v7521 = vadd.f32 %v7129, %v7489
    %v7522 = vadd.f32 %v7130, %v7490
    %v7523 = vadd.f32 %v7131, %v7491
    %v7524 = vadd.f32 %v7132, %v7492
    %v7525 = vadd.f32 %v7133, %v7493
    %v7526 = vadd.f32 %v7134, %v7494
    %v7527 = vadd.f32 %v7135, %v7495
    %v7528 = vadd.f32 %v7136, %v7496
    %v7529 = vadd.f32 %v7137, %v7497
    %v7530 = vadd.f32 %v7138, %v7498
    %v7531 = vadd.f32 %v7139, %v7499
    %v7532 = vadd.f32 %v7140, %v7500
    %v7533 = vadd.f32 %v7141, %v7501
    %v7534 = vadd.f32 %v7142, %v7502
    %v7535 = vadd.f32 %v7143, %v7503
    %v7536 = vadd.f32 %v7144, %v7504
    %v7537 = vadd.f32 %v7145, %v7505
    %v7538 = vadd.f32 %v7146, %v7506
    %7539 = vset.pattern.permute.xlu0 5
    %7540 = vperm.xlu0 %7539, %v3909
    %v7541 = vpop.permute.xlu0 %7540
    %7543 = vset.pattern.permute.xlu0 5
    %7544 = vperm.xlu0 %7543, %v3910
    %v7545 = vpop.permute.xlu0 %7544
    %7547 = vset.pattern.permute.xlu0 5
    %7548 = vperm.xlu0 %7547, %v3911
    %v7549 = vpop.permute.xlu0 %7548
    %7551 = vset.pattern.permute.xlu0 5
    %7552 = vperm.xlu0 %7551, %v3912
    %v7553 = vpop.permute.xlu0 %7552
    %7555 = vset.pattern.permute.xlu0 5
    %7556 = vperm.xlu0 %7555, %v3913
    %v7557 = vpop.permute.xlu0 %7556
    %7559 = vset.pattern.permute.xlu0 5
    %7560 = vperm.xlu0 %7559, %v3914
    %v7561 = vpop.permute.xlu0 %7560
    %7563 = vset.pattern.permute.xlu0 5
    %7564 = vperm.xlu0 %7563, %v3915
    %v7565 = vpop.permute.xlu0 %7564
    %7567 = vset.pattern.permute.xlu0 5
    %7568 = vperm.xlu0 %7567, %v3916
    %v7569 = vpop.permute.xlu0 %7568
    %7571 = vset.pattern.permute.xlu0 5
    %7572 = vperm.xlu0 %7571, %v3917
    %v7573 = vpop.permute.xlu0 %7572
    %7575 = vset.pattern.permute.xlu0 5
    %7576 = vperm.xlu0 %7575, %v3918
    %v7577 = vpop.permute.xlu0 %7576
    %7579 = vset.pattern.permute.xlu0 5
    %7580 = vperm.xlu0 %7579, %v3919
    %v7581 = vpop.permute.xlu0 %7580
    %7583 = vset.pattern.permute.xlu0 5
    %7584 = vperm.xlu0 %7583, %v3920
    %v7585 = vpop.permute.xlu0 %7584
    %7587 = vset.pattern.permute.xlu0 5
    %7588 = vperm.xlu0 %7587, %v3921
    %v7589 = vpop.permute.xlu0 %7588
    %7591 = vset.pattern.permute.xlu0 5
    %7592 = vperm.xlu0 %7591, %v3922
    %v7593 = vpop.permute.xlu0 %7592
    %7595 = vset.pattern.permute.xlu0 5
    %7596 = vperm.xlu0 %7595, %v3923
    %v7597 = vpop.permute.xlu0 %7596
    %7599 = vset.pattern.permute.xlu0 5
    %7600 = vperm.xlu0 %7599, %v3924
    %v7601 = vpop.permute.xlu0 %7600
    %7603 = vset.pattern.permute.xlu0 5
    %7604 = vperm.xlu0 %7603, %v3925
    %v7605 = vpop.permute.xlu0 %7604
    %7607 = vset.pattern.permute.xlu0 5
    %7608 = vperm.xlu0 %7607, %v3926
    %v7609 = vpop.permute.xlu0 %7608
    %7611 = vset.pattern.permute.xlu0 5
    %7612 = vperm.xlu0 %7611, %v3927
    %v7613 = vpop.permute.xlu0 %7612
    %7615 = vset.pattern.permute.xlu0 5
    %7616 = vperm.xlu0 %7615, %v3928
    %v7617 = vpop.permute.xlu0 %7616
    %7619 = vset.pattern.permute.xlu0 5
    %7620 = vperm.xlu0 %7619, %v3929
    %v7621 = vpop.permute.xlu0 %7620
    %7623 = vset.pattern.permute.xlu0 5
    %7624 = vperm.xlu0 %7623, %v3930
    %v7625 = vpop.permute.xlu0 %7624
    %7627 = vset.pattern.permute.xlu0 5
    %7628 = vperm.xlu0 %7627, %v3931
    %v7629 = vpop.permute.xlu0 %7628
    %7631 = vset.pattern.permute.xlu0 5
    %7632 = vperm.xlu0 %7631, %v3932
    %v7633 = vpop.permute.xlu0 %7632
    %7635 = vset.pattern.permute.xlu0 5
    %7636 = vperm.xlu0 %7635, %v3933
    %v7637 = vpop.permute.xlu0 %7636
    %7639 = vset.pattern.permute.xlu0 5
    %7640 = vperm.xlu0 %7639, %v3934
    %v7641 = vpop.permute.xlu0 %7640
    %7643 = vset.pattern.permute.xlu0 5
    %7644 = vperm.xlu0 %7643, %v3935
    %v7645 = vpop.permute.xlu0 %7644
    %7647 = vset.pattern.permute.xlu0 5
    %7648 = vperm.xlu0 %7647, %v3936
    %v7649 = vpop.permute.xlu0 %7648
    %7651 = vset.pattern.permute.xlu0 5
    %7652 = vperm.xlu0 %7651, %v3937
    %v7653 = vpop.permute.xlu0 %7652
    %7655 = vset.pattern.permute.xlu0 5
    %7656 = vperm.xlu0 %7655, %v3938
    %v7657 = vpop.permute.xlu0 %7656
    %7659 = vset.pattern.permute.xlu0 5
    %7660 = vperm.xlu0 %7659, %v3939
    %v7661 = vpop.permute.xlu0 %7660
    %7663 = vset.pattern.permute.xlu0 5
    %7664 = vperm.xlu0 %7663, %v3940
    %v7665 = vpop.permute.xlu0 %7664
    %v7667 = vlaneseq
    %v7668 = vshrl.u32 %v7667, 7
    %v7669 = vsub.s32 5, %v7668
    %v7670 = vrot.slane %v3759, %v7669
    %v7671 = vmul.f32 %v7541, %v7670
    %v7672 = vmul.f32 %v7545, %v7670
    %v7673 = vmul.f32 %v7549, %v7670
    %v7674 = vmul.f32 %v7553, %v7670
    %v7675 = vmul.f32 %v7557, %v7670
    %v7676 = vmul.f32 %v7561, %v7670
    %v7677 = vmul.f32 %v7565, %v7670
    %v7678 = vmul.f32 %v7569, %v7670
    %v7679 = vmul.f32 %v7573, %v7670
    %v7680 = vmul.f32 %v7577, %v7670
    %v7681 = vmul.f32 %v7581, %v7670
    %v7682 = vmul.f32 %v7585, %v7670
    %v7683 = vmul.f32 %v7589, %v7670
    %v7684 = vmul.f32 %v7593, %v7670
    %v7685 = vmul.f32 %v7597, %v7670
    %v7686 = vmul.f32 %v7601, %v7670
    %v7687 = vmul.f32 %v7605, %v7670
    %v7688 = vmul.f32 %v7609, %v7670
    %v7689 = vmul.f32 %v7613, %v7670
    %v7690 = vmul.f32 %v7617, %v7670
    %v7691 = vmul.f32 %v7621, %v7670
    %v7692 = vmul.f32 %v7625, %v7670
    %v7693 = vmul.f32 %v7629, %v7670
    %v7694 = vmul.f32 %v7633, %v7670
    %v7695 = vmul.f32 %v7637, %v7670
    %v7696 = vmul.f32 %v7641, %v7670
    %v7697 = vmul.f32 %v7645, %v7670
    %v7698 = vmul.f32 %v7649, %v7670
    %v7699 = vmul.f32 %v7653, %v7670
    %v7700 = vmul.f32 %v7657, %v7670
    %v7701 = vmul.f32 %v7661, %v7670
    %v7702 = vmul.f32 %v7665, %v7670
    %v7703 = vadd.f32 %v7311, %v7671
    %v7704 = vadd.f32 %v7312, %v7672
    %v7705 = vadd.f32 %v7313, %v7673
    %v7706 = vadd.f32 %v7314, %v7674
    %v7707 = vadd.f32 %v7315, %v7675
    %v7708 = vadd.f32 %v7316, %v7676
    %v7709 = vadd.f32 %v7317, %v7677
    %v7710 = vadd.f32 %v7318, %v7678
    %v7711 = vadd.f32 %v7319, %v7679
    %v7712 = vadd.f32 %v7320, %v7680
    %v7713 = vadd.f32 %v7321, %v7681
    %v7714 = vadd.f32 %v7322, %v7682
    %v7715 = vadd.f32 %v7323, %v7683
    %v7716 = vadd.f32 %v7324, %v7684
    %v7717 = vadd.f32 %v7325, %v7685
    %v7718 = vadd.f32 %v7326, %v7686
    %v7719 = vadd.f32 %v7327, %v7687
    %v7720 = vadd.f32 %v7328, %v7688
    %v7721 = vadd.f32 %v7329, %v7689
    %v7722 = vadd.f32 %v7330, %v7690
    %v7723 = vadd.f32 %v7331, %v7691
    %v7724 = vadd.f32 %v7332, %v7692
    %v7725 = vadd.f32 %v7333, %v7693
    %v7726 = vadd.f32 %v7334, %v7694
    %v7727 = vadd.f32 %v7335, %v7695
    %v7728 = vadd.f32 %v7336, %v7696
    %v7729 = vadd.f32 %v7337, %v7697
    %v7730 = vadd.f32 %v7338, %v7698
    %v7731 = vadd.f32 %v7339, %v7699
    %v7732 = vadd.f32 %v7340, %v7700
    %v7733 = vadd.f32 %v7341, %v7701
    %v7734 = vadd.f32 %v7342, %v7702
    %7735 = vset.pattern.permute.xlu0 5
    %7736 = vperm.xlu0 %7735, %v5547
    %v7737 = vpop.permute.xlu0 %7736
    %7739 = vset.pattern.permute.xlu0 5
    %7740 = vperm.xlu0 %7739, %v5548
    %v7741 = vpop.permute.xlu0 %7740
    %7743 = vset.pattern.permute.xlu0 5
    %7744 = vperm.xlu0 %7743, %v5549
    %v7745 = vpop.permute.xlu0 %7744
    %7747 = vset.pattern.permute.xlu0 5
    %7748 = vperm.xlu0 %7747, %v5550
    %v7749 = vpop.permute.xlu0 %7748
    %7751 = vset.pattern.permute.xlu0 5
    %7752 = vperm.xlu0 %7751, %v5551
    %v7753 = vpop.permute.xlu0 %7752
    %7755 = vset.pattern.permute.xlu0 5
    %7756 = vperm.xlu0 %7755, %v5552
    %v7757 = vpop.permute.xlu0 %7756
    %7759 = vset.pattern.permute.xlu0 5
    %7760 = vperm.xlu0 %7759, %v5553
    %v7761 = vpop.permute.xlu0 %7760
    %7763 = vset.pattern.permute.xlu0 5
    %7764 = vperm.xlu0 %7763, %v5554
    %v7765 = vpop.permute.xlu0 %7764
    %7767 = vset.pattern.permute.xlu0 5
    %7768 = vperm.xlu0 %7767, %v5555
    %v7769 = vpop.permute.xlu0 %7768
    %7771 = vset.pattern.permute.xlu0 5
    %7772 = vperm.xlu0 %7771, %v5556
    %v7773 = vpop.permute.xlu0 %7772
    %7775 = vset.pattern.permute.xlu0 5
    %7776 = vperm.xlu0 %7775, %v5557
    %v7777 = vpop.permute.xlu0 %7776
    %7779 = vset.pattern.permute.xlu0 5
    %7780 = vperm.xlu0 %7779, %v5558
    %v7781 = vpop.permute.xlu0 %7780
    %7783 = vset.pattern.permute.xlu0 5
    %7784 = vperm.xlu0 %7783, %v5559
    %v7785 = vpop.permute.xlu0 %7784
    %7787 = vset.pattern.permute.xlu0 5
    %7788 = vperm.xlu0 %7787, %v5560
    %v7789 = vpop.permute.xlu0 %7788
    %7791 = vset.pattern.permute.xlu0 5
    %7792 = vperm.xlu0 %7791, %v5561
    %v7793 = vpop.permute.xlu0 %7792
    %7795 = vset.pattern.permute.xlu0 5
    %7796 = vperm.xlu0 %7795, %v5562
    %v7797 = vpop.permute.xlu0 %7796
    %7799 = vset.pattern.permute.xlu0 5
    %7800 = vperm.xlu0 %7799, %v5563
    %v7801 = vpop.permute.xlu0 %7800
    %7803 = vset.pattern.permute.xlu0 5
    %7804 = vperm.xlu0 %7803, %v5564
    %v7805 = vpop.permute.xlu0 %7804
    %7807 = vset.pattern.permute.xlu0 5
    %7808 = vperm.xlu0 %7807, %v5565
    %v7809 = vpop.permute.xlu0 %7808
    %7811 = vset.pattern.permute.xlu0 5
    %7812 = vperm.xlu0 %7811, %v5566
    %v7813 = vpop.permute.xlu0 %7812
    %7815 = vset.pattern.permute.xlu0 5
    %7816 = vperm.xlu0 %7815, %v5567
    %v7817 = vpop.permute.xlu0 %7816
    %7819 = vset.pattern.permute.xlu0 5
    %7820 = vperm.xlu0 %7819, %v5568
    %v7821 = vpop.permute.xlu0 %7820
    %7823 = vset.pattern.permute.xlu0 5
    %7824 = vperm.xlu0 %7823, %v5569
    %v7825 = vpop.permute.xlu0 %7824
    %7827 = vset.pattern.permute.xlu0 5
    %7828 = vperm.xlu0 %7827, %v5570
    %v7829 = vpop.permute.xlu0 %7828
    %7831 = vset.pattern.permute.xlu0 5
    %7832 = vperm.xlu0 %7831, %v5571
    %v7833 = vpop.permute.xlu0 %7832
    %7835 = vset.pattern.permute.xlu0 5
    %7836 = vperm.xlu0 %7835, %v5572
    %v7837 = vpop.permute.xlu0 %7836
    %7839 = vset.pattern.permute.xlu0 5
    %7840 = vperm.xlu0 %7839, %v5573
    %v7841 = vpop.permute.xlu0 %7840
    %7843 = vset.pattern.permute.xlu0 5
    %7844 = vperm.xlu0 %7843, %v5574
    %v7845 = vpop.permute.xlu0 %7844
    %7847 = vset.pattern.permute.xlu0 5
    %7848 = vperm.xlu0 %7847, %v5575
    %v7849 = vpop.permute.xlu0 %7848
    %7851 = vset.pattern.permute.xlu0 5
    %7852 = vperm.xlu0 %7851, %v5576
    %v7853 = vpop.permute.xlu0 %7852
    %7855 = vset.pattern.permute.xlu0 5
    %7856 = vperm.xlu0 %7855, %v5577
    %v7857 = vpop.permute.xlu0 %7856
    %7859 = vset.pattern.permute.xlu0 5
    %7860 = vperm.xlu0 %7859, %v5578
    %v7861 = vpop.permute.xlu0 %7860
    %v7863 = vlaneseq
    %v7864 = vshrl.u32 %v7863, 7
    %v7865 = vsub.s32 5, %v7864
    %v7866 = vrot.slane %v3764, %v7865
    %v7867 = vmul.f32 %v7737, %v7866
    %v7868 = vmul.f32 %v7741, %v7866
    %v7869 = vmul.f32 %v7745, %v7866
    %v7870 = vmul.f32 %v7749, %v7866
    %v7871 = vmul.f32 %v7753, %v7866
    %v7872 = vmul.f32 %v7757, %v7866
    %v7873 = vmul.f32 %v7761, %v7866
    %v7874 = vmul.f32 %v7765, %v7866
    %v7875 = vmul.f32 %v7769, %v7866
    %v7876 = vmul.f32 %v7773, %v7866
    %v7877 = vmul.f32 %v7777, %v7866
    %v7878 = vmul.f32 %v7781, %v7866
    %v7879 = vmul.f32 %v7785, %v7866
    %v7880 = vmul.f32 %v7789, %v7866
    %v7881 = vmul.f32 %v7793, %v7866
    %v7882 = vmul.f32 %v7797, %v7866
    %v7883 = vmul.f32 %v7801, %v7866
    %v7884 = vmul.f32 %v7805, %v7866
    %v7885 = vmul.f32 %v7809, %v7866
    %v7886 = vmul.f32 %v7813, %v7866
    %v7887 = vmul.f32 %v7817, %v7866
    %v7888 = vmul.f32 %v7821, %v7866
    %v7889 = vmul.f32 %v7825, %v7866
    %v7890 = vmul.f32 %v7829, %v7866
    %v7891 = vmul.f32 %v7833, %v7866
    %v7892 = vmul.f32 %v7837, %v7866
    %v7893 = vmul.f32 %v7841, %v7866
    %v7894 = vmul.f32 %v7845, %v7866
    %v7895 = vmul.f32 %v7849, %v7866
    %v7896 = vmul.f32 %v7853, %v7866
    %v7897 = vmul.f32 %v7857, %v7866
    %v7898 = vmul.f32 %v7861, %v7866
    %v7899 = vadd.f32 %v7507, %v7867
    %v7900 = vadd.f32 %v7508, %v7868
    %v7901 = vadd.f32 %v7509, %v7869
    %v7902 = vadd.f32 %v7510, %v7870
    %v7903 = vadd.f32 %v7511, %v7871
    %v7904 = vadd.f32 %v7512, %v7872
    %v7905 = vadd.f32 %v7513, %v7873
    %v7906 = vadd.f32 %v7514, %v7874
    %v7907 = vadd.f32 %v7515, %v7875
    %v7908 = vadd.f32 %v7516, %v7876
    %v7909 = vadd.f32 %v7517, %v7877
    %v7910 = vadd.f32 %v7518, %v7878
    %v7911 = vadd.f32 %v7519, %v7879
    %v7912 = vadd.f32 %v7520, %v7880
    %v7913 = vadd.f32 %v7521, %v7881
    %v7914 = vadd.f32 %v7522, %v7882
    %v7915 = vadd.f32 %v7523, %v7883
    %v7916 = vadd.f32 %v7524, %v7884
    %v7917 = vadd.f32 %v7525, %v7885
    %v7918 = vadd.f32 %v7526, %v7886
    %v7919 = vadd.f32 %v7527, %v7887
    %v7920 = vadd.f32 %v7528, %v7888
    %v7921 = vadd.f32 %v7529, %v7889
    %v7922 = vadd.f32 %v7530, %v7890
    %v7923 = vadd.f32 %v7531, %v7891
    %v7924 = vadd.f32 %v7532, %v7892
    %v7925 = vadd.f32 %v7533, %v7893
    %v7926 = vadd.f32 %v7534, %v7894
    %v7927 = vadd.f32 %v7535, %v7895
    %v7928 = vadd.f32 %v7536, %v7896
    %v7929 = vadd.f32 %v7537, %v7897
    %v7930 = vadd.f32 %v7538, %v7898
    %7931 = vset.pattern.permute.xlu0 6
    %7932 = vperm.xlu0 %7931, %v3909
    %v7933 = vpop.permute.xlu0 %7932
    %7935 = vset.pattern.permute.xlu0 6
    %7936 = vperm.xlu0 %7935, %v3910
    %v7937 = vpop.permute.xlu0 %7936
    %7939 = vset.pattern.permute.xlu0 6
    %7940 = vperm.xlu0 %7939, %v3911
    %v7941 = vpop.permute.xlu0 %7940
    %7943 = vset.pattern.permute.xlu0 6
    %7944 = vperm.xlu0 %7943, %v3912
    %v7945 = vpop.permute.xlu0 %7944
    %7947 = vset.pattern.permute.xlu0 6
    %7948 = vperm.xlu0 %7947, %v3913
    %v7949 = vpop.permute.xlu0 %7948
    %7951 = vset.pattern.permute.xlu0 6
    %7952 = vperm.xlu0 %7951, %v3914
    %v7953 = vpop.permute.xlu0 %7952
    %7955 = vset.pattern.permute.xlu0 6
    %7956 = vperm.xlu0 %7955, %v3915
    %v7957 = vpop.permute.xlu0 %7956
    %7959 = vset.pattern.permute.xlu0 6
    %7960 = vperm.xlu0 %7959, %v3916
    %v7961 = vpop.permute.xlu0 %7960
    %7963 = vset.pattern.permute.xlu0 6
    %7964 = vperm.xlu0 %7963, %v3917
    %v7965 = vpop.permute.xlu0 %7964
    %7967 = vset.pattern.permute.xlu0 6
    %7968 = vperm.xlu0 %7967, %v3918
    %v7969 = vpop.permute.xlu0 %7968
    %7971 = vset.pattern.permute.xlu0 6
    %7972 = vperm.xlu0 %7971, %v3919
    %v7973 = vpop.permute.xlu0 %7972
    %7975 = vset.pattern.permute.xlu0 6
    %7976 = vperm.xlu0 %7975, %v3920
    %v7977 = vpop.permute.xlu0 %7976
    %7979 = vset.pattern.permute.xlu0 6
    %7980 = vperm.xlu0 %7979, %v3921
    %v7981 = vpop.permute.xlu0 %7980
    %7983 = vset.pattern.permute.xlu0 6
    %7984 = vperm.xlu0 %7983, %v3922
    %v7985 = vpop.permute.xlu0 %7984
    %7987 = vset.pattern.permute.xlu0 6
    %7988 = vperm.xlu0 %7987, %v3923
    %v7989 = vpop.permute.xlu0 %7988
    %7991 = vset.pattern.permute.xlu0 6
    %7992 = vperm.xlu0 %7991, %v3924
    %v7993 = vpop.permute.xlu0 %7992
    %7995 = vset.pattern.permute.xlu0 6
    %7996 = vperm.xlu0 %7995, %v3925
    %v7997 = vpop.permute.xlu0 %7996
    %7999 = vset.pattern.permute.xlu0 6
    %8000 = vperm.xlu0 %7999, %v3926
    %v8001 = vpop.permute.xlu0 %8000
    %8003 = vset.pattern.permute.xlu0 6
    %8004 = vperm.xlu0 %8003, %v3927
    %v8005 = vpop.permute.xlu0 %8004
    %8007 = vset.pattern.permute.xlu0 6
    %8008 = vperm.xlu0 %8007, %v3928
    %v8009 = vpop.permute.xlu0 %8008
    %8011 = vset.pattern.permute.xlu0 6
    %8012 = vperm.xlu0 %8011, %v3929
    %v8013 = vpop.permute.xlu0 %8012
    %8015 = vset.pattern.permute.xlu0 6
    %8016 = vperm.xlu0 %8015, %v3930
    %v8017 = vpop.permute.xlu0 %8016
    %8019 = vset.pattern.permute.xlu0 6
    %8020 = vperm.xlu0 %8019, %v3931
    %v8021 = vpop.permute.xlu0 %8020
    %8023 = vset.pattern.permute.xlu0 6
    %8024 = vperm.xlu0 %8023, %v3932
    %v8025 = vpop.permute.xlu0 %8024
    %8027 = vset.pattern.permute.xlu0 6
    %8028 = vperm.xlu0 %8027, %v3933
    %v8029 = vpop.permute.xlu0 %8028
    %8031 = vset.pattern.permute.xlu0 6
    %8032 = vperm.xlu0 %8031, %v3934
    %v8033 = vpop.permute.xlu0 %8032
    %8035 = vset.pattern.permute.xlu0 6
    %8036 = vperm.xlu0 %8035, %v3935
    %v8037 = vpop.permute.xlu0 %8036
    %8039 = vset.pattern.permute.xlu0 6
    %8040 = vperm.xlu0 %8039, %v3936
    %v8041 = vpop.permute.xlu0 %8040
    %8043 = vset.pattern.permute.xlu0 6
    %8044 = vperm.xlu0 %8043, %v3937
    %v8045 = vpop.permute.xlu0 %8044
    %8047 = vset.pattern.permute.xlu0 6
    %8048 = vperm.xlu0 %8047, %v3938
    %v8049 = vpop.permute.xlu0 %8048
    %8051 = vset.pattern.permute.xlu0 6
    %8052 = vperm.xlu0 %8051, %v3939
    %v8053 = vpop.permute.xlu0 %8052
    %8055 = vset.pattern.permute.xlu0 6
    %8056 = vperm.xlu0 %8055, %v3940
    %v8057 = vpop.permute.xlu0 %8056
    %v8059 = vlaneseq
    %v8060 = vshrl.u32 %v8059, 7
    %v8061 = vsub.s32 6, %v8060
    %v8062 = vrot.slane %v3759, %v8061
    %v8063 = vmul.f32 %v7933, %v8062
    %v8064 = vmul.f32 %v7937, %v8062
    %v8065 = vmul.f32 %v7941, %v8062
    %v8066 = vmul.f32 %v7945, %v8062
    %v8067 = vmul.f32 %v7949, %v8062
    %v8068 = vmul.f32 %v7953, %v8062
    %v8069 = vmul.f32 %v7957, %v8062
    %v8070 = vmul.f32 %v7961, %v8062
    %v8071 = vmul.f32 %v7965, %v8062
    %v8072 = vmul.f32 %v7969, %v8062
    %v8073 = vmul.f32 %v7973, %v8062
    %v8074 = vmul.f32 %v7977, %v8062
    %v8075 = vmul.f32 %v7981, %v8062
    %v8076 = vmul.f32 %v7985, %v8062
    %v8077 = vmul.f32 %v7989, %v8062
    %v8078 = vmul.f32 %v7993, %v8062
    %v8079 = vmul.f32 %v7997, %v8062
    %v8080 = vmul.f32 %v8001, %v8062
    %v8081 = vmul.f32 %v8005, %v8062
    %v8082 = vmul.f32 %v8009, %v8062
    %v8083 = vmul.f32 %v8013, %v8062
    %v8084 = vmul.f32 %v8017, %v8062
    %v8085 = vmul.f32 %v8021, %v8062
    %v8086 = vmul.f32 %v8025, %v8062
    %v8087 = vmul.f32 %v8029, %v8062
    %v8088 = vmul.f32 %v8033, %v8062
    %v8089 = vmul.f32 %v8037, %v8062
    %v8090 = vmul.f32 %v8041, %v8062
    %v8091 = vmul.f32 %v8045, %v8062
    %v8092 = vmul.f32 %v8049, %v8062
    %v8093 = vmul.f32 %v8053, %v8062
    %v8094 = vmul.f32 %v8057, %v8062
    %v8095 = vadd.f32 %v7703, %v8063
    %v8096 = vadd.f32 %v7704, %v8064
    %v8097 = vadd.f32 %v7705, %v8065
    %v8098 = vadd.f32 %v7706, %v8066
    %v8099 = vadd.f32 %v7707, %v8067
    %v8100 = vadd.f32 %v7708, %v8068
    %v8101 = vadd.f32 %v7709, %v8069
    %v8102 = vadd.f32 %v7710, %v8070
    %v8103 = vadd.f32 %v7711, %v8071
    %v8104 = vadd.f32 %v7712, %v8072
    %v8105 = vadd.f32 %v7713, %v8073
    %v8106 = vadd.f32 %v7714, %v8074
    %v8107 = vadd.f32 %v7715, %v8075
    %v8108 = vadd.f32 %v7716, %v8076
    %v8109 = vadd.f32 %v7717, %v8077
    %v8110 = vadd.f32 %v7718, %v8078
    %v8111 = vadd.f32 %v7719, %v8079
    %v8112 = vadd.f32 %v7720, %v8080
    %v8113 = vadd.f32 %v7721, %v8081
    %v8114 = vadd.f32 %v7722, %v8082
    %v8115 = vadd.f32 %v7723, %v8083
    %v8116 = vadd.f32 %v7724, %v8084
    %v8117 = vadd.f32 %v7725, %v8085
    %v8118 = vadd.f32 %v7726, %v8086
    %v8119 = vadd.f32 %v7727, %v8087
    %v8120 = vadd.f32 %v7728, %v8088
    %v8121 = vadd.f32 %v7729, %v8089
    %v8122 = vadd.f32 %v7730, %v8090
    %v8123 = vadd.f32 %v7731, %v8091
    %v8124 = vadd.f32 %v7732, %v8092
    %v8125 = vadd.f32 %v7733, %v8093
    %v8126 = vadd.f32 %v7734, %v8094
    %8127 = vset.pattern.permute.xlu0 6
    %8128 = vperm.xlu0 %8127, %v5547
    %v8129 = vpop.permute.xlu0 %8128
    %8131 = vset.pattern.permute.xlu0 6
    %8132 = vperm.xlu0 %8131, %v5548
    %v8133 = vpop.permute.xlu0 %8132
    %8135 = vset.pattern.permute.xlu0 6
    %8136 = vperm.xlu0 %8135, %v5549
    %v8137 = vpop.permute.xlu0 %8136
    %8139 = vset.pattern.permute.xlu0 6
    %8140 = vperm.xlu0 %8139, %v5550
    %v8141 = vpop.permute.xlu0 %8140
    %8143 = vset.pattern.permute.xlu0 6
    %8144 = vperm.xlu0 %8143, %v5551
    %v8145 = vpop.permute.xlu0 %8144
    %8147 = vset.pattern.permute.xlu0 6
    %8148 = vperm.xlu0 %8147, %v5552
    %v8149 = vpop.permute.xlu0 %8148
    %8151 = vset.pattern.permute.xlu0 6
    %8152 = vperm.xlu0 %8151, %v5553
    %v8153 = vpop.permute.xlu0 %8152
    %8155 = vset.pattern.permute.xlu0 6
    %8156 = vperm.xlu0 %8155, %v5554
    %v8157 = vpop.permute.xlu0 %8156
    %8159 = vset.pattern.permute.xlu0 6
    %8160 = vperm.xlu0 %8159, %v5555
    %v8161 = vpop.permute.xlu0 %8160
    %8163 = vset.pattern.permute.xlu0 6
    %8164 = vperm.xlu0 %8163, %v5556
    %v8165 = vpop.permute.xlu0 %8164
    %8167 = vset.pattern.permute.xlu0 6
    %8168 = vperm.xlu0 %8167, %v5557
    %v8169 = vpop.permute.xlu0 %8168
    %8171 = vset.pattern.permute.xlu0 6
    %8172 = vperm.xlu0 %8171, %v5558
    %v8173 = vpop.permute.xlu0 %8172
    %8175 = vset.pattern.permute.xlu0 6
    %8176 = vperm.xlu0 %8175, %v5559
    %v8177 = vpop.permute.xlu0 %8176
    %8179 = vset.pattern.permute.xlu0 6
    %8180 = vperm.xlu0 %8179, %v5560
    %v8181 = vpop.permute.xlu0 %8180
    %8183 = vset.pattern.permute.xlu0 6
    %8184 = vperm.xlu0 %8183, %v5561
    %v8185 = vpop.permute.xlu0 %8184
    %8187 = vset.pattern.permute.xlu0 6
    %8188 = vperm.xlu0 %8187, %v5562
    %v8189 = vpop.permute.xlu0 %8188
    %8191 = vset.pattern.permute.xlu0 6
    %8192 = vperm.xlu0 %8191, %v5563
    %v8193 = vpop.permute.xlu0 %8192
    %8195 = vset.pattern.permute.xlu0 6
    %8196 = vperm.xlu0 %8195, %v5564
    %v8197 = vpop.permute.xlu0 %8196
    %8199 = vset.pattern.permute.xlu0 6
    %8200 = vperm.xlu0 %8199, %v5565
    %v8201 = vpop.permute.xlu0 %8200
    %8203 = vset.pattern.permute.xlu0 6
    %8204 = vperm.xlu0 %8203, %v5566
    %v8205 = vpop.permute.xlu0 %8204
    %8207 = vset.pattern.permute.xlu0 6
    %8208 = vperm.xlu0 %8207, %v5567
    %v8209 = vpop.permute.xlu0 %8208
    %8211 = vset.pattern.permute.xlu0 6
    %8212 = vperm.xlu0 %8211, %v5568
    %v8213 = vpop.permute.xlu0 %8212
    %8215 = vset.pattern.permute.xlu0 6
    %8216 = vperm.xlu0 %8215, %v5569
    %v8217 = vpop.permute.xlu0 %8216
    %8219 = vset.pattern.permute.xlu0 6
    %8220 = vperm.xlu0 %8219, %v5570
    %v8221 = vpop.permute.xlu0 %8220
    %8223 = vset.pattern.permute.xlu0 6
    %8224 = vperm.xlu0 %8223, %v5571
    %v8225 = vpop.permute.xlu0 %8224
    %8227 = vset.pattern.permute.xlu0 6
    %8228 = vperm.xlu0 %8227, %v5572
    %v8229 = vpop.permute.xlu0 %8228
    %8231 = vset.pattern.permute.xlu0 6
    %8232 = vperm.xlu0 %8231, %v5573
    %v8233 = vpop.permute.xlu0 %8232
    %8235 = vset.pattern.permute.xlu0 6
    %8236 = vperm.xlu0 %8235, %v5574
    %v8237 = vpop.permute.xlu0 %8236
    %8239 = vset.pattern.permute.xlu0 6
    %8240 = vperm.xlu0 %8239, %v5575
    %v8241 = vpop.permute.xlu0 %8240
    %8243 = vset.pattern.permute.xlu0 6
    %8244 = vperm.xlu0 %8243, %v5576
    %v8245 = vpop.permute.xlu0 %8244
    %8247 = vset.pattern.permute.xlu0 6
    %8248 = vperm.xlu0 %8247, %v5577
    %v8249 = vpop.permute.xlu0 %8248
    %8251 = vset.pattern.permute.xlu0 6
    %8252 = vperm.xlu0 %8251, %v5578
    %v8253 = vpop.permute.xlu0 %8252
    %v8255 = vlaneseq
    %v8256 = vshrl.u32 %v8255, 7
    %v8257 = vsub.s32 6, %v8256
    %v8258 = vrot.slane %v3764, %v8257
    %v8259 = vmul.f32 %v8129, %v8258
    %v8260 = vmul.f32 %v8133, %v8258
    %v8261 = vmul.f32 %v8137, %v8258
    %v8262 = vmul.f32 %v8141, %v8258
    %v8263 = vmul.f32 %v8145, %v8258
    %v8264 = vmul.f32 %v8149, %v8258
    %v8265 = vmul.f32 %v8153, %v8258
    %v8266 = vmul.f32 %v8157, %v8258
    %v8267 = vmul.f32 %v8161, %v8258
    %v8268 = vmul.f32 %v8165, %v8258
    %v8269 = vmul.f32 %v8169, %v8258
    %v8270 = vmul.f32 %v8173, %v8258
    %v8271 = vmul.f32 %v8177, %v8258
    %v8272 = vmul.f32 %v8181, %v8258
    %v8273 = vmul.f32 %v8185, %v8258
    %v8274 = vmul.f32 %v8189, %v8258
    %v8275 = vmul.f32 %v8193, %v8258
    %v8276 = vmul.f32 %v8197, %v8258
    %v8277 = vmul.f32 %v8201, %v8258
    %v8278 = vmul.f32 %v8205, %v8258
    %v8279 = vmul.f32 %v8209, %v8258
    %v8280 = vmul.f32 %v8213, %v8258
    %v8281 = vmul.f32 %v8217, %v8258
    %v8282 = vmul.f32 %v8221, %v8258
    %v8283 = vmul.f32 %v8225, %v8258
    %v8284 = vmul.f32 %v8229, %v8258
    %v8285 = vmul.f32 %v8233, %v8258
    %v8286 = vmul.f32 %v8237, %v8258
    %v8287 = vmul.f32 %v8241, %v8258
    %v8288 = vmul.f32 %v8245, %v8258
    %v8289 = vmul.f32 %v8249, %v8258
    %v8290 = vmul.f32 %v8253, %v8258
    %v8291 = vadd.f32 %v7899, %v8259
    %v8292 = vadd.f32 %v7900, %v8260
    %v8293 = vadd.f32 %v7901, %v8261
    %v8294 = vadd.f32 %v7902, %v8262
    %v8295 = vadd.f32 %v7903, %v8263
    %v8296 = vadd.f32 %v7904, %v8264
    %v8297 = vadd.f32 %v7905, %v8265
    %v8298 = vadd.f32 %v7906, %v8266
    %v8299 = vadd.f32 %v7907, %v8267
    %v8300 = vadd.f32 %v7908, %v8268
    %v8301 = vadd.f32 %v7909, %v8269
    %v8302 = vadd.f32 %v7910, %v8270
    %v8303 = vadd.f32 %v7911, %v8271
    %v8304 = vadd.f32 %v7912, %v8272
    %v8305 = vadd.f32 %v7913, %v8273
    %v8306 = vadd.f32 %v7914, %v8274
    %v8307 = vadd.f32 %v7915, %v8275
    %v8308 = vadd.f32 %v7916, %v8276
    %v8309 = vadd.f32 %v7917, %v8277
    %v8310 = vadd.f32 %v7918, %v8278
    %v8311 = vadd.f32 %v7919, %v8279
    %v8312 = vadd.f32 %v7920, %v8280
    %v8313 = vadd.f32 %v7921, %v8281
    %v8314 = vadd.f32 %v7922, %v8282
    %v8315 = vadd.f32 %v7923, %v8283
    %v8316 = vadd.f32 %v7924, %v8284
    %v8317 = vadd.f32 %v7925, %v8285
    %v8318 = vadd.f32 %v7926, %v8286
    %v8319 = vadd.f32 %v7927, %v8287
    %v8320 = vadd.f32 %v7928, %v8288
    %v8321 = vadd.f32 %v7929, %v8289
    %v8322 = vadd.f32 %v7930, %v8290
    %8323 = vset.pattern.permute.xlu0 7
    %8324 = vperm.xlu0 %8323, %v3909
    %v8325 = vpop.permute.xlu0 %8324
    %8327 = vset.pattern.permute.xlu0 7
    %8328 = vperm.xlu0 %8327, %v3910
    %v8329 = vpop.permute.xlu0 %8328
    %8331 = vset.pattern.permute.xlu0 7
    %8332 = vperm.xlu0 %8331, %v3911
    %v8333 = vpop.permute.xlu0 %8332
    %8335 = vset.pattern.permute.xlu0 7
    %8336 = vperm.xlu0 %8335, %v3912
    %v8337 = vpop.permute.xlu0 %8336
    %8339 = vset.pattern.permute.xlu0 7
    %8340 = vperm.xlu0 %8339, %v3913
    %v8341 = vpop.permute.xlu0 %8340
    %8343 = vset.pattern.permute.xlu0 7
    %8344 = vperm.xlu0 %8343, %v3914
    %v8345 = vpop.permute.xlu0 %8344
    %8347 = vset.pattern.permute.xlu0 7
    %8348 = vperm.xlu0 %8347, %v3915
    %v8349 = vpop.permute.xlu0 %8348
    %8351 = vset.pattern.permute.xlu0 7
    %8352 = vperm.xlu0 %8351, %v3916
    %v8353 = vpop.permute.xlu0 %8352
    %8355 = vset.pattern.permute.xlu0 7
    %8356 = vperm.xlu0 %8355, %v3917
    %v8357 = vpop.permute.xlu0 %8356
    %8359 = vset.pattern.permute.xlu0 7
    %8360 = vperm.xlu0 %8359, %v3918
    %v8361 = vpop.permute.xlu0 %8360
    %8363 = vset.pattern.permute.xlu0 7
    %8364 = vperm.xlu0 %8363, %v3919
    %v8365 = vpop.permute.xlu0 %8364
    %8367 = vset.pattern.permute.xlu0 7
    %8368 = vperm.xlu0 %8367, %v3920
    %v8369 = vpop.permute.xlu0 %8368
    %8371 = vset.pattern.permute.xlu0 7
    %8372 = vperm.xlu0 %8371, %v3921
    %v8373 = vpop.permute.xlu0 %8372
    %8375 = vset.pattern.permute.xlu0 7
    %8376 = vperm.xlu0 %8375, %v3922
    %v8377 = vpop.permute.xlu0 %8376
    %8379 = vset.pattern.permute.xlu0 7
    %8380 = vperm.xlu0 %8379, %v3923
    %v8381 = vpop.permute.xlu0 %8380
    %8383 = vset.pattern.permute.xlu0 7
    %8384 = vperm.xlu0 %8383, %v3924
    %v8385 = vpop.permute.xlu0 %8384
    %8387 = vset.pattern.permute.xlu0 7
    %8388 = vperm.xlu0 %8387, %v3925
    %v8389 = vpop.permute.xlu0 %8388
    %8391 = vset.pattern.permute.xlu0 7
    %8392 = vperm.xlu0 %8391, %v3926
    %v8393 = vpop.permute.xlu0 %8392
    %8395 = vset.pattern.permute.xlu0 7
    %8396 = vperm.xlu0 %8395, %v3927
    %v8397 = vpop.permute.xlu0 %8396
    %8399 = vset.pattern.permute.xlu0 7
    %8400 = vperm.xlu0 %8399, %v3928
    %v8401 = vpop.permute.xlu0 %8400
    %8403 = vset.pattern.permute.xlu0 7
    %8404 = vperm.xlu0 %8403, %v3929
    %v8405 = vpop.permute.xlu0 %8404
    %8407 = vset.pattern.permute.xlu0 7
    %8408 = vperm.xlu0 %8407, %v3930
    %v8409 = vpop.permute.xlu0 %8408
    %8411 = vset.pattern.permute.xlu0 7
    %8412 = vperm.xlu0 %8411, %v3931
    %v8413 = vpop.permute.xlu0 %8412
    %8415 = vset.pattern.permute.xlu0 7
    %8416 = vperm.xlu0 %8415, %v3932
    %v8417 = vpop.permute.xlu0 %8416
    %8419 = vset.pattern.permute.xlu0 7
    %8420 = vperm.xlu0 %8419, %v3933
    %v8421 = vpop.permute.xlu0 %8420
    %8423 = vset.pattern.permute.xlu0 7
    %8424 = vperm.xlu0 %8423, %v3934
    %v8425 = vpop.permute.xlu0 %8424
    %8427 = vset.pattern.permute.xlu0 7
    %8428 = vperm.xlu0 %8427, %v3935
    %v8429 = vpop.permute.xlu0 %8428
    %8431 = vset.pattern.permute.xlu0 7
    %8432 = vperm.xlu0 %8431, %v3936
    %v8433 = vpop.permute.xlu0 %8432
    %8435 = vset.pattern.permute.xlu0 7
    %8436 = vperm.xlu0 %8435, %v3937
    %v8437 = vpop.permute.xlu0 %8436
    %8439 = vset.pattern.permute.xlu0 7
    %8440 = vperm.xlu0 %8439, %v3938
    %v8441 = vpop.permute.xlu0 %8440
    %8443 = vset.pattern.permute.xlu0 7
    %8444 = vperm.xlu0 %8443, %v3939
    %v8445 = vpop.permute.xlu0 %8444
    %8447 = vset.pattern.permute.xlu0 7
    %8448 = vperm.xlu0 %8447, %v3940
    %v8449 = vpop.permute.xlu0 %8448
    %v8451 = vlaneseq
    %v8452 = vshrl.u32 %v8451, 7
    %v8453 = vsub.s32 7, %v8452
    %v8454 = vrot.slane %v3759, %v8453
    %v8455 = vmul.f32 %v8325, %v8454
    %v8456 = vmul.f32 %v8329, %v8454
    %v8457 = vmul.f32 %v8333, %v8454
    %v8458 = vmul.f32 %v8337, %v8454
    %v8459 = vmul.f32 %v8341, %v8454
    %v8460 = vmul.f32 %v8345, %v8454
    %v8461 = vmul.f32 %v8349, %v8454
    %v8462 = vmul.f32 %v8353, %v8454
    %v8463 = vmul.f32 %v8357, %v8454
    %v8464 = vmul.f32 %v8361, %v8454
    %v8465 = vmul.f32 %v8365, %v8454
    %v8466 = vmul.f32 %v8369, %v8454
    %v8467 = vmul.f32 %v8373, %v8454
    %v8468 = vmul.f32 %v8377, %v8454
    %v8469 = vmul.f32 %v8381, %v8454
    %v8470 = vmul.f32 %v8385, %v8454
    %v8471 = vmul.f32 %v8389, %v8454
    %v8472 = vmul.f32 %v8393, %v8454
    %v8473 = vmul.f32 %v8397, %v8454
    %v8474 = vmul.f32 %v8401, %v8454
    %v8475 = vmul.f32 %v8405, %v8454
    %v8476 = vmul.f32 %v8409, %v8454
    %v8477 = vmul.f32 %v8413, %v8454
    %v8478 = vmul.f32 %v8417, %v8454
    %v8479 = vmul.f32 %v8421, %v8454
    %v8480 = vmul.f32 %v8425, %v8454
    %v8481 = vmul.f32 %v8429, %v8454
    %v8482 = vmul.f32 %v8433, %v8454
    %v8483 = vmul.f32 %v8437, %v8454
    %v8484 = vmul.f32 %v8441, %v8454
    %v8485 = vmul.f32 %v8445, %v8454
    %v8486 = vmul.f32 %v8449, %v8454
    %v8487 = vadd.f32 %v8095, %v8455
    %v8488 = vadd.f32 %v8096, %v8456
    %v8489 = vadd.f32 %v8097, %v8457
    %v8490 = vadd.f32 %v8098, %v8458
    %v8491 = vadd.f32 %v8099, %v8459
    %v8492 = vadd.f32 %v8100, %v8460
    %v8493 = vadd.f32 %v8101, %v8461
    %v8494 = vadd.f32 %v8102, %v8462
    %v8495 = vadd.f32 %v8103, %v8463
    %v8496 = vadd.f32 %v8104, %v8464
    %v8497 = vadd.f32 %v8105, %v8465
    %v8498 = vadd.f32 %v8106, %v8466
    %v8499 = vadd.f32 %v8107, %v8467
    %v8500 = vadd.f32 %v8108, %v8468
    %v8501 = vadd.f32 %v8109, %v8469
    %v8502 = vadd.f32 %v8110, %v8470
    %v8503 = vadd.f32 %v8111, %v8471
    %v8504 = vadd.f32 %v8112, %v8472
    %v8505 = vadd.f32 %v8113, %v8473
    %v8506 = vadd.f32 %v8114, %v8474
    %v8507 = vadd.f32 %v8115, %v8475
    %v8508 = vadd.f32 %v8116, %v8476
    %v8509 = vadd.f32 %v8117, %v8477
    %v8510 = vadd.f32 %v8118, %v8478
    %v8511 = vadd.f32 %v8119, %v8479
    %v8512 = vadd.f32 %v8120, %v8480
    %v8513 = vadd.f32 %v8121, %v8481
    %v8514 = vadd.f32 %v8122, %v8482
    %v8515 = vadd.f32 %v8123, %v8483
    %v8516 = vadd.f32 %v8124, %v8484
    %v8517 = vadd.f32 %v8125, %v8485
    %v8518 = vadd.f32 %v8126, %v8486
    %8519 = vset.pattern.permute.xlu0 7
    %8520 = vperm.xlu0 %8519, %v5547
    %v8521 = vpop.permute.xlu0 %8520
    %8523 = vset.pattern.permute.xlu0 7
    %8524 = vperm.xlu0 %8523, %v5548
    %v8525 = vpop.permute.xlu0 %8524
    %8527 = vset.pattern.permute.xlu0 7
    %8528 = vperm.xlu0 %8527, %v5549
    %v8529 = vpop.permute.xlu0 %8528
    %8531 = vset.pattern.permute.xlu0 7
    %8532 = vperm.xlu0 %8531, %v5550
    %v8533 = vpop.permute.xlu0 %8532
    %8535 = vset.pattern.permute.xlu0 7
    %8536 = vperm.xlu0 %8535, %v5551
    %v8537 = vpop.permute.xlu0 %8536
    %8539 = vset.pattern.permute.xlu0 7
    %8540 = vperm.xlu0 %8539, %v5552
    %v8541 = vpop.permute.xlu0 %8540
    %8543 = vset.pattern.permute.xlu0 7
    %8544 = vperm.xlu0 %8543, %v5553
    %v8545 = vpop.permute.xlu0 %8544
    %8547 = vset.pattern.permute.xlu0 7
    %8548 = vperm.xlu0 %8547, %v5554
    %v8549 = vpop.permute.xlu0 %8548
    %8551 = vset.pattern.permute.xlu0 7
    %8552 = vperm.xlu0 %8551, %v5555
    %v8553 = vpop.permute.xlu0 %8552
    %8555 = vset.pattern.permute.xlu0 7
    %8556 = vperm.xlu0 %8555, %v5556
    %v8557 = vpop.permute.xlu0 %8556
    %8559 = vset.pattern.permute.xlu0 7
    %8560 = vperm.xlu0 %8559, %v5557
    %v8561 = vpop.permute.xlu0 %8560
    %8563 = vset.pattern.permute.xlu0 7
    %8564 = vperm.xlu0 %8563, %v5558
    %v8565 = vpop.permute.xlu0 %8564
    %8567 = vset.pattern.permute.xlu0 7
    %8568 = vperm.xlu0 %8567, %v5559
    %v8569 = vpop.permute.xlu0 %8568
    %8571 = vset.pattern.permute.xlu0 7
    %8572 = vperm.xlu0 %8571, %v5560
    %v8573 = vpop.permute.xlu0 %8572
    %8575 = vset.pattern.permute.xlu0 7
    %8576 = vperm.xlu0 %8575, %v5561
    %v8577 = vpop.permute.xlu0 %8576
    %8579 = vset.pattern.permute.xlu0 7
    %8580 = vperm.xlu0 %8579, %v5562
    %v8581 = vpop.permute.xlu0 %8580
    %8583 = vset.pattern.permute.xlu0 7
    %8584 = vperm.xlu0 %8583, %v5563
    %v8585 = vpop.permute.xlu0 %8584
    %8587 = vset.pattern.permute.xlu0 7
    %8588 = vperm.xlu0 %8587, %v5564
    %v8589 = vpop.permute.xlu0 %8588
    %8591 = vset.pattern.permute.xlu0 7
    %8592 = vperm.xlu0 %8591, %v5565
    %v8593 = vpop.permute.xlu0 %8592
    %8595 = vset.pattern.permute.xlu0 7
    %8596 = vperm.xlu0 %8595, %v5566
    %v8597 = vpop.permute.xlu0 %8596
    %8599 = vset.pattern.permute.xlu0 7
    %8600 = vperm.xlu0 %8599, %v5567
    %v8601 = vpop.permute.xlu0 %8600
    %8603 = vset.pattern.permute.xlu0 7
    %8604 = vperm.xlu0 %8603, %v5568
    %v8605 = vpop.permute.xlu0 %8604
    %8607 = vset.pattern.permute.xlu0 7
    %8608 = vperm.xlu0 %8607, %v5569
    %v8609 = vpop.permute.xlu0 %8608
    %8611 = vset.pattern.permute.xlu0 7
    %8612 = vperm.xlu0 %8611, %v5570
    %v8613 = vpop.permute.xlu0 %8612
    %8615 = vset.pattern.permute.xlu0 7
    %8616 = vperm.xlu0 %8615, %v5571
    %v8617 = vpop.permute.xlu0 %8616
    %8619 = vset.pattern.permute.xlu0 7
    %8620 = vperm.xlu0 %8619, %v5572
    %v8621 = vpop.permute.xlu0 %8620
    %8623 = vset.pattern.permute.xlu0 7
    %8624 = vperm.xlu0 %8623, %v5573
    %v8625 = vpop.permute.xlu0 %8624
    %8627 = vset.pattern.permute.xlu0 7
    %8628 = vperm.xlu0 %8627, %v5574
    %v8629 = vpop.permute.xlu0 %8628
    %8631 = vset.pattern.permute.xlu0 7
    %8632 = vperm.xlu0 %8631, %v5575
    %v8633 = vpop.permute.xlu0 %8632
    %8635 = vset.pattern.permute.xlu0 7
    %8636 = vperm.xlu0 %8635, %v5576
    %v8637 = vpop.permute.xlu0 %8636
    %8639 = vset.pattern.permute.xlu0 7
    %8640 = vperm.xlu0 %8639, %v5577
    %v8641 = vpop.permute.xlu0 %8640
    %8643 = vset.pattern.permute.xlu0 7
    %8644 = vperm.xlu0 %8643, %v5578
    %v8645 = vpop.permute.xlu0 %8644
    %v8647 = vlaneseq
    %v8648 = vshrl.u32 %v8647, 7
    %v8649 = vsub.s32 7, %v8648
    %v8650 = vrot.slane %v3764, %v8649
    %v8651 = vmul.f32 %v8521, %v8650
    %v8652 = vmul.f32 %v8525, %v8650
    %v8653 = vmul.f32 %v8529, %v8650
    %v8654 = vmul.f32 %v8533, %v8650
    %v8655 = vmul.f32 %v8537, %v8650
    %v8656 = vmul.f32 %v8541, %v8650
    %v8657 = vmul.f32 %v8545, %v8650
    %v8658 = vmul.f32 %v8549, %v8650
    %v8659 = vmul.f32 %v8553, %v8650
    %v8660 = vmul.f32 %v8557, %v8650
    %v8661 = vmul.f32 %v8561, %v8650
    %v8662 = vmul.f32 %v8565, %v8650
    %v8663 = vmul.f32 %v8569, %v8650
    %v8664 = vmul.f32 %v8573, %v8650
    %v8665 = vmul.f32 %v8577, %v8650
    %v8666 = vmul.f32 %v8581, %v8650
    %v8667 = vmul.f32 %v8585, %v8650
    %v8668 = vmul.f32 %v8589, %v8650
    %v8669 = vmul.f32 %v8593, %v8650
    %v8670 = vmul.f32 %v8597, %v8650
    %v8671 = vmul.f32 %v8601, %v8650
    %v8672 = vmul.f32 %v8605, %v8650
    %v8673 = vmul.f32 %v8609, %v8650
    %v8674 = vmul.f32 %v8613, %v8650
    %v8675 = vmul.f32 %v8617, %v8650
    %v8676 = vmul.f32 %v8621, %v8650
    %v8677 = vmul.f32 %v8625, %v8650
    %v8678 = vmul.f32 %v8629, %v8650
    %v8679 = vmul.f32 %v8633, %v8650
    %v8680 = vmul.f32 %v8637, %v8650
    %v8681 = vmul.f32 %v8641, %v8650
    %v8682 = vmul.f32 %v8645, %v8650
    %v8683 = vadd.f32 %v8291, %v8651
    %v8684 = vadd.f32 %v8292, %v8652
    %v8685 = vadd.f32 %v8293, %v8653
    %v8686 = vadd.f32 %v8294, %v8654
    %v8687 = vadd.f32 %v8295, %v8655
    %v8688 = vadd.f32 %v8296, %v8656
    %v8689 = vadd.f32 %v8297, %v8657
    %v8690 = vadd.f32 %v8298, %v8658
    %v8691 = vadd.f32 %v8299, %v8659
    %v8692 = vadd.f32 %v8300, %v8660
    %v8693 = vadd.f32 %v8301, %v8661
    %v8694 = vadd.f32 %v8302, %v8662
    %v8695 = vadd.f32 %v8303, %v8663
    %v8696 = vadd.f32 %v8304, %v8664
    %v8697 = vadd.f32 %v8305, %v8665
    %v8698 = vadd.f32 %v8306, %v8666
    %v8699 = vadd.f32 %v8307, %v8667
    %v8700 = vadd.f32 %v8308, %v8668
    %v8701 = vadd.f32 %v8309, %v8669
    %v8702 = vadd.f32 %v8310, %v8670
    %v8703 = vadd.f32 %v8311, %v8671
    %v8704 = vadd.f32 %v8312, %v8672
    %v8705 = vadd.f32 %v8313, %v8673
    %v8706 = vadd.f32 %v8314, %v8674
    %v8707 = vadd.f32 %v8315, %v8675
    %v8708 = vadd.f32 %v8316, %v8676
    %v8709 = vadd.f32 %v8317, %v8677
    %v8710 = vadd.f32 %v8318, %v8678
    %v8711 = vadd.f32 %v8319, %v8679
    %v8712 = vadd.f32 %v8320, %v8680
    %v8713 = vadd.f32 %v8321, %v8681
    %v8714 = vadd.f32 %v8322, %v8682
    %8715 = vset.pattern.permute.xlu0 8
    %8716 = vperm.xlu0 %8715, %v3909
    %v8717 = vpop.permute.xlu0 %8716
    %8719 = vset.pattern.permute.xlu0 8
    %8720 = vperm.xlu0 %8719, %v3910
    %v8721 = vpop.permute.xlu0 %8720
    %8723 = vset.pattern.permute.xlu0 8
    %8724 = vperm.xlu0 %8723, %v3911
    %v8725 = vpop.permute.xlu0 %8724
    %8727 = vset.pattern.permute.xlu0 8
    %8728 = vperm.xlu0 %8727, %v3912
    %v8729 = vpop.permute.xlu0 %8728
    %8731 = vset.pattern.permute.xlu0 8
    %8732 = vperm.xlu0 %8731, %v3913
    %v8733 = vpop.permute.xlu0 %8732
    %8735 = vset.pattern.permute.xlu0 8
    %8736 = vperm.xlu0 %8735, %v3914
    %v8737 = vpop.permute.xlu0 %8736
    %8739 = vset.pattern.permute.xlu0 8
    %8740 = vperm.xlu0 %8739, %v3915
    %v8741 = vpop.permute.xlu0 %8740
    %8743 = vset.pattern.permute.xlu0 8
    %8744 = vperm.xlu0 %8743, %v3916
    %v8745 = vpop.permute.xlu0 %8744
    %8747 = vset.pattern.permute.xlu0 8
    %8748 = vperm.xlu0 %8747, %v3917
    %v8749 = vpop.permute.xlu0 %8748
    %8751 = vset.pattern.permute.xlu0 8
    %8752 = vperm.xlu0 %8751, %v3918
    %v8753 = vpop.permute.xlu0 %8752
    %8755 = vset.pattern.permute.xlu0 8
    %8756 = vperm.xlu0 %8755, %v3919
    %v8757 = vpop.permute.xlu0 %8756
    %8759 = vset.pattern.permute.xlu0 8
    %8760 = vperm.xlu0 %8759, %v3920
    %v8761 = vpop.permute.xlu0 %8760
    %8763 = vset.pattern.permute.xlu0 8
    %8764 = vperm.xlu0 %8763, %v3921
    %v8765 = vpop.permute.xlu0 %8764
    %8767 = vset.pattern.permute.xlu0 8
    %8768 = vperm.xlu0 %8767, %v3922
    %v8769 = vpop.permute.xlu0 %8768
    %8771 = vset.pattern.permute.xlu0 8
    %8772 = vperm.xlu0 %8771, %v3923
    %v8773 = vpop.permute.xlu0 %8772
    %8775 = vset.pattern.permute.xlu0 8
    %8776 = vperm.xlu0 %8775, %v3924
    %v8777 = vpop.permute.xlu0 %8776
    %8779 = vset.pattern.permute.xlu0 8
    %8780 = vperm.xlu0 %8779, %v3925
    %v8781 = vpop.permute.xlu0 %8780
    %8783 = vset.pattern.permute.xlu0 8
    %8784 = vperm.xlu0 %8783, %v3926
    %v8785 = vpop.permute.xlu0 %8784
    %8787 = vset.pattern.permute.xlu0 8
    %8788 = vperm.xlu0 %8787, %v3927
    %v8789 = vpop.permute.xlu0 %8788
    %8791 = vset.pattern.permute.xlu0 8
    %8792 = vperm.xlu0 %8791, %v3928
    %v8793 = vpop.permute.xlu0 %8792
    %8795 = vset.pattern.permute.xlu0 8
    %8796 = vperm.xlu0 %8795, %v3929
    %v8797 = vpop.permute.xlu0 %8796
    %8799 = vset.pattern.permute.xlu0 8
    %8800 = vperm.xlu0 %8799, %v3930
    %v8801 = vpop.permute.xlu0 %8800
    %8803 = vset.pattern.permute.xlu0 8
    %8804 = vperm.xlu0 %8803, %v3931
    %v8805 = vpop.permute.xlu0 %8804
    %8807 = vset.pattern.permute.xlu0 8
    %8808 = vperm.xlu0 %8807, %v3932
    %v8809 = vpop.permute.xlu0 %8808
    %8811 = vset.pattern.permute.xlu0 8
    %8812 = vperm.xlu0 %8811, %v3933
    %v8813 = vpop.permute.xlu0 %8812
    %8815 = vset.pattern.permute.xlu0 8
    %8816 = vperm.xlu0 %8815, %v3934
    %v8817 = vpop.permute.xlu0 %8816
    %8819 = vset.pattern.permute.xlu0 8
    %8820 = vperm.xlu0 %8819, %v3935
    %v8821 = vpop.permute.xlu0 %8820
    %8823 = vset.pattern.permute.xlu0 8
    %8824 = vperm.xlu0 %8823, %v3936
    %v8825 = vpop.permute.xlu0 %8824
    %8827 = vset.pattern.permute.xlu0 8
    %8828 = vperm.xlu0 %8827, %v3937
    %v8829 = vpop.permute.xlu0 %8828
    %8831 = vset.pattern.permute.xlu0 8
    %8832 = vperm.xlu0 %8831, %v3938
    %v8833 = vpop.permute.xlu0 %8832
    %8835 = vset.pattern.permute.xlu0 8
    %8836 = vperm.xlu0 %8835, %v3939
    %v8837 = vpop.permute.xlu0 %8836
    %8839 = vset.pattern.permute.xlu0 8
    %8840 = vperm.xlu0 %8839, %v3940
    %v8841 = vpop.permute.xlu0 %8840
    %v8843 = vlaneseq
    %v8844 = vshrl.u32 %v8843, 7
    %v8845 = vsub.s32 0, %v8844
    %v8846 = vrot.slane %v3760, %v8845
    %v8847 = vmul.f32 %v8717, %v8846
    %v8848 = vmul.f32 %v8721, %v8846
    %v8849 = vmul.f32 %v8725, %v8846
    %v8850 = vmul.f32 %v8729, %v8846
    %v8851 = vmul.f32 %v8733, %v8846
    %v8852 = vmul.f32 %v8737, %v8846
    %v8853 = vmul.f32 %v8741, %v8846
    %v8854 = vmul.f32 %v8745, %v8846
    %v8855 = vmul.f32 %v8749, %v8846
    %v8856 = vmul.f32 %v8753, %v8846
    %v8857 = vmul.f32 %v8757, %v8846
    %v8858 = vmul.f32 %v8761, %v8846
    %v8859 = vmul.f32 %v8765, %v8846
    %v8860 = vmul.f32 %v8769, %v8846
    %v8861 = vmul.f32 %v8773, %v8846
    %v8862 = vmul.f32 %v8777, %v8846
    %v8863 = vmul.f32 %v8781, %v8846
    %v8864 = vmul.f32 %v8785, %v8846
    %v8865 = vmul.f32 %v8789, %v8846
    %v8866 = vmul.f32 %v8793, %v8846
    %v8867 = vmul.f32 %v8797, %v8846
    %v8868 = vmul.f32 %v8801, %v8846
    %v8869 = vmul.f32 %v8805, %v8846
    %v8870 = vmul.f32 %v8809, %v8846
    %v8871 = vmul.f32 %v8813, %v8846
    %v8872 = vmul.f32 %v8817, %v8846
    %v8873 = vmul.f32 %v8821, %v8846
    %v8874 = vmul.f32 %v8825, %v8846
    %v8875 = vmul.f32 %v8829, %v8846
    %v8876 = vmul.f32 %v8833, %v8846
    %v8877 = vmul.f32 %v8837, %v8846
    %v8878 = vmul.f32 %v8841, %v8846
    %v8879 = vadd.f32 %v8487, %v8847
    %v8880 = vadd.f32 %v8488, %v8848
    %v8881 = vadd.f32 %v8489, %v8849
    %v8882 = vadd.f32 %v8490, %v8850
    %v8883 = vadd.f32 %v8491, %v8851
    %v8884 = vadd.f32 %v8492, %v8852
    %v8885 = vadd.f32 %v8493, %v8853
    %v8886 = vadd.f32 %v8494, %v8854
    %v8887 = vadd.f32 %v8495, %v8855
    %v8888 = vadd.f32 %v8496, %v8856
    %v8889 = vadd.f32 %v8497, %v8857
    %v8890 = vadd.f32 %v8498, %v8858
    %v8891 = vadd.f32 %v8499, %v8859
    %v8892 = vadd.f32 %v8500, %v8860
    %v8893 = vadd.f32 %v8501, %v8861
    %v8894 = vadd.f32 %v8502, %v8862
    %v8895 = vadd.f32 %v8503, %v8863
    %v8896 = vadd.f32 %v8504, %v8864
    %v8897 = vadd.f32 %v8505, %v8865
    %v8898 = vadd.f32 %v8506, %v8866
    %v8899 = vadd.f32 %v8507, %v8867
    %v8900 = vadd.f32 %v8508, %v8868
    %v8901 = vadd.f32 %v8509, %v8869
    %v8902 = vadd.f32 %v8510, %v8870
    %v8903 = vadd.f32 %v8511, %v8871
    %v8904 = vadd.f32 %v8512, %v8872
    %v8905 = vadd.f32 %v8513, %v8873
    %v8906 = vadd.f32 %v8514, %v8874
    %v8907 = vadd.f32 %v8515, %v8875
    %v8908 = vadd.f32 %v8516, %v8876
    %v8909 = vadd.f32 %v8517, %v8877
    %v8910 = vadd.f32 %v8518, %v8878
    %8911 = vset.pattern.permute.xlu0 8
    %8912 = vperm.xlu0 %8911, %v5547
    %v8913 = vpop.permute.xlu0 %8912
    %8915 = vset.pattern.permute.xlu0 8
    %8916 = vperm.xlu0 %8915, %v5548
    %v8917 = vpop.permute.xlu0 %8916
    %8919 = vset.pattern.permute.xlu0 8
    %8920 = vperm.xlu0 %8919, %v5549
    %v8921 = vpop.permute.xlu0 %8920
    %8923 = vset.pattern.permute.xlu0 8
    %8924 = vperm.xlu0 %8923, %v5550
    %v8925 = vpop.permute.xlu0 %8924
    %8927 = vset.pattern.permute.xlu0 8
    %8928 = vperm.xlu0 %8927, %v5551
    %v8929 = vpop.permute.xlu0 %8928
    %8931 = vset.pattern.permute.xlu0 8
    %8932 = vperm.xlu0 %8931, %v5552
    %v8933 = vpop.permute.xlu0 %8932
    %8935 = vset.pattern.permute.xlu0 8
    %8936 = vperm.xlu0 %8935, %v5553
    %v8937 = vpop.permute.xlu0 %8936
    %8939 = vset.pattern.permute.xlu0 8
    %8940 = vperm.xlu0 %8939, %v5554
    %v8941 = vpop.permute.xlu0 %8940
    %8943 = vset.pattern.permute.xlu0 8
    %8944 = vperm.xlu0 %8943, %v5555
    %v8945 = vpop.permute.xlu0 %8944
    %8947 = vset.pattern.permute.xlu0 8
    %8948 = vperm.xlu0 %8947, %v5556
    %v8949 = vpop.permute.xlu0 %8948
    %8951 = vset.pattern.permute.xlu0 8
    %8952 = vperm.xlu0 %8951, %v5557
    %v8953 = vpop.permute.xlu0 %8952
    %8955 = vset.pattern.permute.xlu0 8
    %8956 = vperm.xlu0 %8955, %v5558
    %v8957 = vpop.permute.xlu0 %8956
    %8959 = vset.pattern.permute.xlu0 8
    %8960 = vperm.xlu0 %8959, %v5559
    %v8961 = vpop.permute.xlu0 %8960
    %8963 = vset.pattern.permute.xlu0 8
    %8964 = vperm.xlu0 %8963, %v5560
    %v8965 = vpop.permute.xlu0 %8964
    %8967 = vset.pattern.permute.xlu0 8
    %8968 = vperm.xlu0 %8967, %v5561
    %v8969 = vpop.permute.xlu0 %8968
    %8971 = vset.pattern.permute.xlu0 8
    %8972 = vperm.xlu0 %8971, %v5562
    %v8973 = vpop.permute.xlu0 %8972
    %8975 = vset.pattern.permute.xlu0 8
    %8976 = vperm.xlu0 %8975, %v5563
    %v8977 = vpop.permute.xlu0 %8976
    %8979 = vset.pattern.permute.xlu0 8
    %8980 = vperm.xlu0 %8979, %v5564
    %v8981 = vpop.permute.xlu0 %8980
    %8983 = vset.pattern.permute.xlu0 8
    %8984 = vperm.xlu0 %8983, %v5565
    %v8985 = vpop.permute.xlu0 %8984
    %8987 = vset.pattern.permute.xlu0 8
    %8988 = vperm.xlu0 %8987, %v5566
    %v8989 = vpop.permute.xlu0 %8988
    %8991 = vset.pattern.permute.xlu0 8
    %8992 = vperm.xlu0 %8991, %v5567
    %v8993 = vpop.permute.xlu0 %8992
    %8995 = vset.pattern.permute.xlu0 8
    %8996 = vperm.xlu0 %8995, %v5568
    %v8997 = vpop.permute.xlu0 %8996
    %8999 = vset.pattern.permute.xlu0 8
    %9000 = vperm.xlu0 %8999, %v5569
    %v9001 = vpop.permute.xlu0 %9000
    %9003 = vset.pattern.permute.xlu0 8
    %9004 = vperm.xlu0 %9003, %v5570
    %v9005 = vpop.permute.xlu0 %9004
    %9007 = vset.pattern.permute.xlu0 8
    %9008 = vperm.xlu0 %9007, %v5571
    %v9009 = vpop.permute.xlu0 %9008
    %9011 = vset.pattern.permute.xlu0 8
    %9012 = vperm.xlu0 %9011, %v5572
    %v9013 = vpop.permute.xlu0 %9012
    %9015 = vset.pattern.permute.xlu0 8
    %9016 = vperm.xlu0 %9015, %v5573
    %v9017 = vpop.permute.xlu0 %9016
    %9019 = vset.pattern.permute.xlu0 8
    %9020 = vperm.xlu0 %9019, %v5574
    %v9021 = vpop.permute.xlu0 %9020
    %9023 = vset.pattern.permute.xlu0 8
    %9024 = vperm.xlu0 %9023, %v5575
    %v9025 = vpop.permute.xlu0 %9024
    %9027 = vset.pattern.permute.xlu0 8
    %9028 = vperm.xlu0 %9027, %v5576
    %v9029 = vpop.permute.xlu0 %9028
    %9031 = vset.pattern.permute.xlu0 8
    %9032 = vperm.xlu0 %9031, %v5577
    %v9033 = vpop.permute.xlu0 %9032
    %9035 = vset.pattern.permute.xlu0 8
    %9036 = vperm.xlu0 %9035, %v5578
    %v9037 = vpop.permute.xlu0 %9036
    %v9039 = vlaneseq
    %v9040 = vshrl.u32 %v9039, 7
    %v9041 = vsub.s32 0, %v9040
    %v9042 = vrot.slane %v3765, %v9041
    %v9043 = vmul.f32 %v8913, %v9042
    %v9044 = vmul.f32 %v8917, %v9042
    %v9045 = vmul.f32 %v8921, %v9042
    %v9046 = vmul.f32 %v8925, %v9042
    %v9047 = vmul.f32 %v8929, %v9042
    %v9048 = vmul.f32 %v8933, %v9042
    %v9049 = vmul.f32 %v8937, %v9042
    %v9050 = vmul.f32 %v8941, %v9042
    %v9051 = vmul.f32 %v8945, %v9042
    %v9052 = vmul.f32 %v8949, %v9042
    %v9053 = vmul.f32 %v8953, %v9042
    %v9054 = vmul.f32 %v8957, %v9042
    %v9055 = vmul.f32 %v8961, %v9042
    %v9056 = vmul.f32 %v8965, %v9042
    %v9057 = vmul.f32 %v8969, %v9042
    %v9058 = vmul.f32 %v8973, %v9042
    %v9059 = vmul.f32 %v8977, %v9042
    %v9060 = vmul.f32 %v8981, %v9042
    %v9061 = vmul.f32 %v8985, %v9042
    %v9062 = vmul.f32 %v8989, %v9042
    %v9063 = vmul.f32 %v8993, %v9042
    %v9064 = vmul.f32 %v8997, %v9042
    %v9065 = vmul.f32 %v9001, %v9042
    %v9066 = vmul.f32 %v9005, %v9042
    %v9067 = vmul.f32 %v9009, %v9042
    %v9068 = vmul.f32 %v9013, %v9042
    %v9069 = vmul.f32 %v9017, %v9042
    %v9070 = vmul.f32 %v9021, %v9042
    %v9071 = vmul.f32 %v9025, %v9042
    %v9072 = vmul.f32 %v9029, %v9042
    %v9073 = vmul.f32 %v9033, %v9042
    %v9074 = vmul.f32 %v9037, %v9042
    %v9075 = vadd.f32 %v8683, %v9043
    %v9076 = vadd.f32 %v8684, %v9044
    %v9077 = vadd.f32 %v8685, %v9045
    %v9078 = vadd.f32 %v8686, %v9046
    %v9079 = vadd.f32 %v8687, %v9047
    %v9080 = vadd.f32 %v8688, %v9048
    %v9081 = vadd.f32 %v8689, %v9049
    %v9082 = vadd.f32 %v8690, %v9050
    %v9083 = vadd.f32 %v8691, %v9051
    %v9084 = vadd.f32 %v8692, %v9052
    %v9085 = vadd.f32 %v8693, %v9053
    %v9086 = vadd.f32 %v8694, %v9054
    %v9087 = vadd.f32 %v8695, %v9055
    %v9088 = vadd.f32 %v8696, %v9056
    %v9089 = vadd.f32 %v8697, %v9057
    %v9090 = vadd.f32 %v8698, %v9058
    %v9091 = vadd.f32 %v8699, %v9059
    %v9092 = vadd.f32 %v8700, %v9060
    %v9093 = vadd.f32 %v8701, %v9061
    %v9094 = vadd.f32 %v8702, %v9062
    %v9095 = vadd.f32 %v8703, %v9063
    %v9096 = vadd.f32 %v8704, %v9064
    %v9097 = vadd.f32 %v8705, %v9065
    %v9098 = vadd.f32 %v8706, %v9066
    %v9099 = vadd.f32 %v8707, %v9067
    %v9100 = vadd.f32 %v8708, %v9068
    %v9101 = vadd.f32 %v8709, %v9069
    %v9102 = vadd.f32 %v8710, %v9070
    %v9103 = vadd.f32 %v8711, %v9071
    %v9104 = vadd.f32 %v8712, %v9072
    %v9105 = vadd.f32 %v8713, %v9073
    %v9106 = vadd.f32 %v8714, %v9074
    %9107 = vset.pattern.permute.xlu0 9
    %9108 = vperm.xlu0 %9107, %v3909
    %v9109 = vpop.permute.xlu0 %9108
    %9111 = vset.pattern.permute.xlu0 9
    %9112 = vperm.xlu0 %9111, %v3910
    %v9113 = vpop.permute.xlu0 %9112
    %9115 = vset.pattern.permute.xlu0 9
    %9116 = vperm.xlu0 %9115, %v3911
    %v9117 = vpop.permute.xlu0 %9116
    %9119 = vset.pattern.permute.xlu0 9
    %9120 = vperm.xlu0 %9119, %v3912
    %v9121 = vpop.permute.xlu0 %9120
    %9123 = vset.pattern.permute.xlu0 9
    %9124 = vperm.xlu0 %9123, %v3913
    %v9125 = vpop.permute.xlu0 %9124
    %9127 = vset.pattern.permute.xlu0 9
    %9128 = vperm.xlu0 %9127, %v3914
    %v9129 = vpop.permute.xlu0 %9128
    %9131 = vset.pattern.permute.xlu0 9
    %9132 = vperm.xlu0 %9131, %v3915
    %v9133 = vpop.permute.xlu0 %9132
    %9135 = vset.pattern.permute.xlu0 9
    %9136 = vperm.xlu0 %9135, %v3916
    %v9137 = vpop.permute.xlu0 %9136
    %9139 = vset.pattern.permute.xlu0 9
    %9140 = vperm.xlu0 %9139, %v3917
    %v9141 = vpop.permute.xlu0 %9140
    %9143 = vset.pattern.permute.xlu0 9
    %9144 = vperm.xlu0 %9143, %v3918
    %v9145 = vpop.permute.xlu0 %9144
    %9147 = vset.pattern.permute.xlu0 9
    %9148 = vperm.xlu0 %9147, %v3919
    %v9149 = vpop.permute.xlu0 %9148
    %9151 = vset.pattern.permute.xlu0 9
    %9152 = vperm.xlu0 %9151, %v3920
    %v9153 = vpop.permute.xlu0 %9152
    %9155 = vset.pattern.permute.xlu0 9
    %9156 = vperm.xlu0 %9155, %v3921
    %v9157 = vpop.permute.xlu0 %9156
    %9159 = vset.pattern.permute.xlu0 9
    %9160 = vperm.xlu0 %9159, %v3922
    %v9161 = vpop.permute.xlu0 %9160
    %9163 = vset.pattern.permute.xlu0 9
    %9164 = vperm.xlu0 %9163, %v3923
    %v9165 = vpop.permute.xlu0 %9164
    %9167 = vset.pattern.permute.xlu0 9
    %9168 = vperm.xlu0 %9167, %v3924
    %v9169 = vpop.permute.xlu0 %9168
    %9171 = vset.pattern.permute.xlu0 9
    %9172 = vperm.xlu0 %9171, %v3925
    %v9173 = vpop.permute.xlu0 %9172
    %9175 = vset.pattern.permute.xlu0 9
    %9176 = vperm.xlu0 %9175, %v3926
    %v9177 = vpop.permute.xlu0 %9176
    %9179 = vset.pattern.permute.xlu0 9
    %9180 = vperm.xlu0 %9179, %v3927
    %v9181 = vpop.permute.xlu0 %9180
    %9183 = vset.pattern.permute.xlu0 9
    %9184 = vperm.xlu0 %9183, %v3928
    %v9185 = vpop.permute.xlu0 %9184
    %9187 = vset.pattern.permute.xlu0 9
    %9188 = vperm.xlu0 %9187, %v3929
    %v9189 = vpop.permute.xlu0 %9188
    %9191 = vset.pattern.permute.xlu0 9
    %9192 = vperm.xlu0 %9191, %v3930
    %v9193 = vpop.permute.xlu0 %9192
    %9195 = vset.pattern.permute.xlu0 9
    %9196 = vperm.xlu0 %9195, %v3931
    %v9197 = vpop.permute.xlu0 %9196
    %9199 = vset.pattern.permute.xlu0 9
    %9200 = vperm.xlu0 %9199, %v3932
    %v9201 = vpop.permute.xlu0 %9200
    %9203 = vset.pattern.permute.xlu0 9
    %9204 = vperm.xlu0 %9203, %v3933
    %v9205 = vpop.permute.xlu0 %9204
    %9207 = vset.pattern.permute.xlu0 9
    %9208 = vperm.xlu0 %9207, %v3934
    %v9209 = vpop.permute.xlu0 %9208
    %9211 = vset.pattern.permute.xlu0 9
    %9212 = vperm.xlu0 %9211, %v3935
    %v9213 = vpop.permute.xlu0 %9212
    %9215 = vset.pattern.permute.xlu0 9
    %9216 = vperm.xlu0 %9215, %v3936
    %v9217 = vpop.permute.xlu0 %9216
    %9219 = vset.pattern.permute.xlu0 9
    %9220 = vperm.xlu0 %9219, %v3937
    %v9221 = vpop.permute.xlu0 %9220
    %9223 = vset.pattern.permute.xlu0 9
    %9224 = vperm.xlu0 %9223, %v3938
    %v9225 = vpop.permute.xlu0 %9224
    %9227 = vset.pattern.permute.xlu0 9
    %9228 = vperm.xlu0 %9227, %v3939
    %v9229 = vpop.permute.xlu0 %9228
    %9231 = vset.pattern.permute.xlu0 9
    %9232 = vperm.xlu0 %9231, %v3940
    %v9233 = vpop.permute.xlu0 %9232
    %v9235 = vlaneseq
    %v9236 = vshrl.u32 %v9235, 7
    %v9237 = vsub.s32 1, %v9236
    %v9238 = vrot.slane %v3760, %v9237
    %v9239 = vmul.f32 %v9109, %v9238
    %v9240 = vmul.f32 %v9113, %v9238
    %v9241 = vmul.f32 %v9117, %v9238
    %v9242 = vmul.f32 %v9121, %v9238
    %v9243 = vmul.f32 %v9125, %v9238
    %v9244 = vmul.f32 %v9129, %v9238
    %v9245 = vmul.f32 %v9133, %v9238
    %v9246 = vmul.f32 %v9137, %v9238
    %v9247 = vmul.f32 %v9141, %v9238
    %v9248 = vmul.f32 %v9145, %v9238
    %v9249 = vmul.f32 %v9149, %v9238
    %v9250 = vmul.f32 %v9153, %v9238
    %v9251 = vmul.f32 %v9157, %v9238
    %v9252 = vmul.f32 %v9161, %v9238
    %v9253 = vmul.f32 %v9165, %v9238
    %v9254 = vmul.f32 %v9169, %v9238
    %v9255 = vmul.f32 %v9173, %v9238
    %v9256 = vmul.f32 %v9177, %v9238
    %v9257 = vmul.f32 %v9181, %v9238
    %v9258 = vmul.f32 %v9185, %v9238
    %v9259 = vmul.f32 %v9189, %v9238
    %v9260 = vmul.f32 %v9193, %v9238
    %v9261 = vmul.f32 %v9197, %v9238
    %v9262 = vmul.f32 %v9201, %v9238
    %v9263 = vmul.f32 %v9205, %v9238
    %v9264 = vmul.f32 %v9209, %v9238
    %v9265 = vmul.f32 %v9213, %v9238
    %v9266 = vmul.f32 %v9217, %v9238
    %v9267 = vmul.f32 %v9221, %v9238
    %v9268 = vmul.f32 %v9225, %v9238
    %v9269 = vmul.f32 %v9229, %v9238
    %v9270 = vmul.f32 %v9233, %v9238
    %v9271 = vadd.f32 %v8879, %v9239
    %v9272 = vadd.f32 %v8880, %v9240
    %v9273 = vadd.f32 %v8881, %v9241
    %v9274 = vadd.f32 %v8882, %v9242
    %v9275 = vadd.f32 %v8883, %v9243
    %v9276 = vadd.f32 %v8884, %v9244
    %v9277 = vadd.f32 %v8885, %v9245
    %v9278 = vadd.f32 %v8886, %v9246
    %v9279 = vadd.f32 %v8887, %v9247
    %v9280 = vadd.f32 %v8888, %v9248
    %v9281 = vadd.f32 %v8889, %v9249
    %v9282 = vadd.f32 %v8890, %v9250
    %v9283 = vadd.f32 %v8891, %v9251
    %v9284 = vadd.f32 %v8892, %v9252
    %v9285 = vadd.f32 %v8893, %v9253
    %v9286 = vadd.f32 %v8894, %v9254
    %v9287 = vadd.f32 %v8895, %v9255
    %v9288 = vadd.f32 %v8896, %v9256
    %v9289 = vadd.f32 %v8897, %v9257
    %v9290 = vadd.f32 %v8898, %v9258
    %v9291 = vadd.f32 %v8899, %v9259
    %v9292 = vadd.f32 %v8900, %v9260
    %v9293 = vadd.f32 %v8901, %v9261
    %v9294 = vadd.f32 %v8902, %v9262
    %v9295 = vadd.f32 %v8903, %v9263
    %v9296 = vadd.f32 %v8904, %v9264
    %v9297 = vadd.f32 %v8905, %v9265
    %v9298 = vadd.f32 %v8906, %v9266
    %v9299 = vadd.f32 %v8907, %v9267
    %v9300 = vadd.f32 %v8908, %v9268
    %v9301 = vadd.f32 %v8909, %v9269
    %v9302 = vadd.f32 %v8910, %v9270
    %9303 = vset.pattern.permute.xlu0 9
    %9304 = vperm.xlu0 %9303, %v5547
    %v9305 = vpop.permute.xlu0 %9304
    %9307 = vset.pattern.permute.xlu0 9
    %9308 = vperm.xlu0 %9307, %v5548
    %v9309 = vpop.permute.xlu0 %9308
    %9311 = vset.pattern.permute.xlu0 9
    %9312 = vperm.xlu0 %9311, %v5549
    %v9313 = vpop.permute.xlu0 %9312
    %9315 = vset.pattern.permute.xlu0 9
    %9316 = vperm.xlu0 %9315, %v5550
    %v9317 = vpop.permute.xlu0 %9316
    %9319 = vset.pattern.permute.xlu0 9
    %9320 = vperm.xlu0 %9319, %v5551
    %v9321 = vpop.permute.xlu0 %9320
    %9323 = vset.pattern.permute.xlu0 9
    %9324 = vperm.xlu0 %9323, %v5552
    %v9325 = vpop.permute.xlu0 %9324
    %9327 = vset.pattern.permute.xlu0 9
    %9328 = vperm.xlu0 %9327, %v5553
    %v9329 = vpop.permute.xlu0 %9328
    %9331 = vset.pattern.permute.xlu0 9
    %9332 = vperm.xlu0 %9331, %v5554
    %v9333 = vpop.permute.xlu0 %9332
    %9335 = vset.pattern.permute.xlu0 9
    %9336 = vperm.xlu0 %9335, %v5555
    %v9337 = vpop.permute.xlu0 %9336
    %9339 = vset.pattern.permute.xlu0 9
    %9340 = vperm.xlu0 %9339, %v5556
    %v9341 = vpop.permute.xlu0 %9340
    %9343 = vset.pattern.permute.xlu0 9
    %9344 = vperm.xlu0 %9343, %v5557
    %v9345 = vpop.permute.xlu0 %9344
    %9347 = vset.pattern.permute.xlu0 9
    %9348 = vperm.xlu0 %9347, %v5558
    %v9349 = vpop.permute.xlu0 %9348
    %9351 = vset.pattern.permute.xlu0 9
    %9352 = vperm.xlu0 %9351, %v5559
    %v9353 = vpop.permute.xlu0 %9352
    %9355 = vset.pattern.permute.xlu0 9
    %9356 = vperm.xlu0 %9355, %v5560
    %v9357 = vpop.permute.xlu0 %9356
    %9359 = vset.pattern.permute.xlu0 9
    %9360 = vperm.xlu0 %9359, %v5561
    %v9361 = vpop.permute.xlu0 %9360
    %9363 = vset.pattern.permute.xlu0 9
    %9364 = vperm.xlu0 %9363, %v5562
    %v9365 = vpop.permute.xlu0 %9364
    %9367 = vset.pattern.permute.xlu0 9
    %9368 = vperm.xlu0 %9367, %v5563
    %v9369 = vpop.permute.xlu0 %9368
    %9371 = vset.pattern.permute.xlu0 9
    %9372 = vperm.xlu0 %9371, %v5564
    %v9373 = vpop.permute.xlu0 %9372
    %9375 = vset.pattern.permute.xlu0 9
    %9376 = vperm.xlu0 %9375, %v5565
    %v9377 = vpop.permute.xlu0 %9376
    %9379 = vset.pattern.permute.xlu0 9
    %9380 = vperm.xlu0 %9379, %v5566
    %v9381 = vpop.permute.xlu0 %9380
    %9383 = vset.pattern.permute.xlu0 9
    %9384 = vperm.xlu0 %9383, %v5567
    %v9385 = vpop.permute.xlu0 %9384
    %9387 = vset.pattern.permute.xlu0 9
    %9388 = vperm.xlu0 %9387, %v5568
    %v9389 = vpop.permute.xlu0 %9388
    %9391 = vset.pattern.permute.xlu0 9
    %9392 = vperm.xlu0 %9391, %v5569
    %v9393 = vpop.permute.xlu0 %9392
    %9395 = vset.pattern.permute.xlu0 9
    %9396 = vperm.xlu0 %9395, %v5570
    %v9397 = vpop.permute.xlu0 %9396
    %9399 = vset.pattern.permute.xlu0 9
    %9400 = vperm.xlu0 %9399, %v5571
    %v9401 = vpop.permute.xlu0 %9400
    %9403 = vset.pattern.permute.xlu0 9
    %9404 = vperm.xlu0 %9403, %v5572
    %v9405 = vpop.permute.xlu0 %9404
    %9407 = vset.pattern.permute.xlu0 9
    %9408 = vperm.xlu0 %9407, %v5573
    %v9409 = vpop.permute.xlu0 %9408
    %9411 = vset.pattern.permute.xlu0 9
    %9412 = vperm.xlu0 %9411, %v5574
    %v9413 = vpop.permute.xlu0 %9412
    %9415 = vset.pattern.permute.xlu0 9
    %9416 = vperm.xlu0 %9415, %v5575
    %v9417 = vpop.permute.xlu0 %9416
    %9419 = vset.pattern.permute.xlu0 9
    %9420 = vperm.xlu0 %9419, %v5576
    %v9421 = vpop.permute.xlu0 %9420
    %9423 = vset.pattern.permute.xlu0 9
    %9424 = vperm.xlu0 %9423, %v5577
    %v9425 = vpop.permute.xlu0 %9424
    %9427 = vset.pattern.permute.xlu0 9
    %9428 = vperm.xlu0 %9427, %v5578
    %v9429 = vpop.permute.xlu0 %9428
    %v9431 = vlaneseq
    %v9432 = vshrl.u32 %v9431, 7
    %v9433 = vsub.s32 1, %v9432
    %v9434 = vrot.slane %v3765, %v9433
    %v9435 = vmul.f32 %v9305, %v9434
    %v9436 = vmul.f32 %v9309, %v9434
    %v9437 = vmul.f32 %v9313, %v9434
    %v9438 = vmul.f32 %v9317, %v9434
    %v9439 = vmul.f32 %v9321, %v9434
    %v9440 = vmul.f32 %v9325, %v9434
    %v9441 = vmul.f32 %v9329, %v9434
    %v9442 = vmul.f32 %v9333, %v9434
    %v9443 = vmul.f32 %v9337, %v9434
    %v9444 = vmul.f32 %v9341, %v9434
    %v9445 = vmul.f32 %v9345, %v9434
    %v9446 = vmul.f32 %v9349, %v9434
    %v9447 = vmul.f32 %v9353, %v9434
    %v9448 = vmul.f32 %v9357, %v9434
    %v9449 = vmul.f32 %v9361, %v9434
    %v9450 = vmul.f32 %v9365, %v9434
    %v9451 = vmul.f32 %v9369, %v9434
    %v9452 = vmul.f32 %v9373, %v9434
    %v9453 = vmul.f32 %v9377, %v9434
    %v9454 = vmul.f32 %v9381, %v9434
    %v9455 = vmul.f32 %v9385, %v9434
    %v9456 = vmul.f32 %v9389, %v9434
    %v9457 = vmul.f32 %v9393, %v9434
    %v9458 = vmul.f32 %v9397, %v9434
    %v9459 = vmul.f32 %v9401, %v9434
    %v9460 = vmul.f32 %v9405, %v9434
    %v9461 = vmul.f32 %v9409, %v9434
    %v9462 = vmul.f32 %v9413, %v9434
    %v9463 = vmul.f32 %v9417, %v9434
    %v9464 = vmul.f32 %v9421, %v9434
    %v9465 = vmul.f32 %v9425, %v9434
    %v9466 = vmul.f32 %v9429, %v9434
    %v9467 = vadd.f32 %v9075, %v9435
    %v9468 = vadd.f32 %v9076, %v9436
    %v9469 = vadd.f32 %v9077, %v9437
    %v9470 = vadd.f32 %v9078, %v9438
    %v9471 = vadd.f32 %v9079, %v9439
    %v9472 = vadd.f32 %v9080, %v9440
    %v9473 = vadd.f32 %v9081, %v9441
    %v9474 = vadd.f32 %v9082, %v9442
    %v9475 = vadd.f32 %v9083, %v9443
    %v9476 = vadd.f32 %v9084, %v9444
    %v9477 = vadd.f32 %v9085, %v9445
    %v9478 = vadd.f32 %v9086, %v9446
    %v9479 = vadd.f32 %v9087, %v9447
    %v9480 = vadd.f32 %v9088, %v9448
    %v9481 = vadd.f32 %v9089, %v9449
    %v9482 = vadd.f32 %v9090, %v9450
    %v9483 = vadd.f32 %v9091, %v9451
    %v9484 = vadd.f32 %v9092, %v9452
    %v9485 = vadd.f32 %v9093, %v9453
    %v9486 = vadd.f32 %v9094, %v9454
    %v9487 = vadd.f32 %v9095, %v9455
    %v9488 = vadd.f32 %v9096, %v9456
    %v9489 = vadd.f32 %v9097, %v9457
    %v9490 = vadd.f32 %v9098, %v9458
    %v9491 = vadd.f32 %v9099, %v9459
    %v9492 = vadd.f32 %v9100, %v9460
    %v9493 = vadd.f32 %v9101, %v9461
    %v9494 = vadd.f32 %v9102, %v9462
    %v9495 = vadd.f32 %v9103, %v9463
    %v9496 = vadd.f32 %v9104, %v9464
    %v9497 = vadd.f32 %v9105, %v9465
    %v9498 = vadd.f32 %v9106, %v9466
    %v9500 = vlaneseq
    %v9501 = vshrl.u32 %v9500, 7
    %v9502 = vsub.s32 0, %v9501
    %v9503 = vrot.slane %v3761, %v9502
    %v9505 = vadd.f32 %v9271, %v9503
    %v9506 = vadd.f32 %v9272, %v9503
    %v9507 = vadd.f32 %v9273, %v9503
    %v9508 = vadd.f32 %v9274, %v9503
    %v9509 = vadd.f32 %v9275, %v9503
    %v9510 = vadd.f32 %v9276, %v9503
    %v9511 = vadd.f32 %v9277, %v9503
    %v9512 = vadd.f32 %v9278, %v9503
    %v9513 = vadd.f32 %v9279, %v9503
    %v9514 = vadd.f32 %v9280, %v9503
    %v9515 = vadd.f32 %v9281, %v9503
    %v9516 = vadd.f32 %v9282, %v9503
    %v9517 = vadd.f32 %v9283, %v9503
    %v9518 = vadd.f32 %v9284, %v9503
    %v9519 = vadd.f32 %v9285, %v9503
    %v9520 = vadd.f32 %v9286, %v9503
    %v9521 = vadd.f32 %v9287, %v9503
    %v9522 = vadd.f32 %v9288, %v9503
    %v9523 = vadd.f32 %v9289, %v9503
    %v9524 = vadd.f32 %v9290, %v9503
    %v9525 = vadd.f32 %v9291, %v9503
    %v9526 = vadd.f32 %v9292, %v9503
    %v9527 = vadd.f32 %v9293, %v9503
    %v9528 = vadd.f32 %v9294, %v9503
    %v9529 = vadd.f32 %v9295, %v9503
    %v9530 = vadd.f32 %v9296, %v9503
    %v9531 = vadd.f32 %v9297, %v9503
    %v9532 = vadd.f32 %v9298, %v9503
    %v9533 = vadd.f32 %v9299, %v9503
    %v9534 = vadd.f32 %v9300, %v9503
    %v9535 = vadd.f32 %v9301, %v9503
    %v9536 = vadd.f32 %v9302, %v9503
    %v9537 = vmax.f32 %v9505, 0.0
    %v9538 = vmax.f32 %v9506, 0.0
    %v9539 = vmax.f32 %v9507, 0.0
    %v9540 = vmax.f32 %v9508, 0.0
    %v9541 = vmax.f32 %v9509, 0.0
    %v9542 = vmax.f32 %v9510, 0.0
    %v9543 = vmax.f32 %v9511, 0.0
    %v9544 = vmax.f32 %v9512, 0.0
    %v9545 = vmax.f32 %v9513, 0.0
    %v9546 = vmax.f32 %v9514, 0.0
    %v9547 = vmax.f32 %v9515, 0.0
    %v9548 = vmax.f32 %v9516, 0.0
    %v9549 = vmax.f32 %v9517, 0.0
    %v9550 = vmax.f32 %v9518, 0.0
    %v9551 = vmax.f32 %v9519, 0.0
    %v9552 = vmax.f32 %v9520, 0.0
    %v9553 = vmax.f32 %v9521, 0.0
    %v9554 = vmax.f32 %v9522, 0.0
    %v9555 = vmax.f32 %v9523, 0.0
    %v9556 = vmax.f32 %v9524, 0.0
    %v9557 = vmax.f32 %v9525, 0.0
    %v9558 = vmax.f32 %v9526, 0.0
    %v9559 = vmax.f32 %v9527, 0.0
    %v9560 = vmax.f32 %v9528, 0.0
    %v9561 = vmax.f32 %v9529, 0.0
    %v9562 = vmax.f32 %v9530, 0.0
    %v9563 = vmax.f32 %v9531, 0.0
    %v9564 = vmax.f32 %v9532, 0.0
    %v9565 = vmax.f32 %v9533, 0.0
    %v9566 = vmax.f32 %v9534, 0.0
    %v9567 = vmax.f32 %v9535, 0.0
    %v9568 = vmax.f32 %v9536, 0.0
    %v9570 = vlaneseq
    %v9571 = vshrl.u32 %v9570, 7
    %v9572 = vsub.s32 0, %v9571
    %v9573 = vrot.slane %v3766, %v9572
    %v9575 = vadd.f32 %v9467, %v9573
    %v9576 = vadd.f32 %v9468, %v9573
    %v9577 = vadd.f32 %v9469, %v9573
    %v9578 = vadd.f32 %v9470, %v9573
    %v9579 = vadd.f32 %v9471, %v9573
    %v9580 = vadd.f32 %v9472, %v9573
    %v9581 = vadd.f32 %v9473, %v9573
    %v9582 = vadd.f32 %v9474, %v9573
    %v9583 = vadd.f32 %v9475, %v9573
    %v9584 = vadd.f32 %v9476, %v9573
    %v9585 = vadd.f32 %v9477, %v9573
    %v9586 = vadd.f32 %v9478, %v9573
    %v9587 = vadd.f32 %v9479, %v9573
    %v9588 = vadd.f32 %v9480, %v9573
    %v9589 = vadd.f32 %v9481, %v9573
    %v9590 = vadd.f32 %v9482, %v9573
    %v9591 = vadd.f32 %v9483, %v9573
    %v9592 = vadd.f32 %v9484, %v9573
    %v9593 = vadd.f32 %v9485, %v9573
    %v9594 = vadd.f32 %v9486, %v9573
    %v9595 = vadd.f32 %v9487, %v9573
    %v9596 = vadd.f32 %v9488, %v9573
    %v9597 = vadd.f32 %v9489, %v9573
    %v9598 = vadd.f32 %v9490, %v9573
    %v9599 = vadd.f32 %v9491, %v9573
    %v9600 = vadd.f32 %v9492, %v9573
    %v9601 = vadd.f32 %v9493, %v9573
    %v9602 = vadd.f32 %v9494, %v9573
    %v9603 = vadd.f32 %v9495, %v9573
    %v9604 = vadd.f32 %v9496, %v9573
    %v9605 = vadd.f32 %v9497, %v9573
    %v9606 = vadd.f32 %v9498, %v9573
    %v9607 = vmax.f32 %v9575, 0.0
    %v9608 = vmax.f32 %v9576, 0.0
    %v9609 = vmax.f32 %v9577, 0.0
    %v9610 = vmax.f32 %v9578, 0.0
    %v9611 = vmax.f32 %v9579, 0.0
    %v9612 = vmax.f32 %v9580, 0.0
    %v9613 = vmax.f32 %v9581, 0.0
    %v9614 = vmax.f32 %v9582, 0.0
    %v9615 = vmax.f32 %v9583, 0.0
    %v9616 = vmax.f32 %v9584, 0.0
    %v9617 = vmax.f32 %v9585, 0.0
    %v9618 = vmax.f32 %v9586, 0.0
    %v9619 = vmax.f32 %v9587, 0.0
    %v9620 = vmax.f32 %v9588, 0.0
    %v9621 = vmax.f32 %v9589, 0.0
    %v9622 = vmax.f32 %v9590, 0.0
    %v9623 = vmax.f32 %v9591, 0.0
    %v9624 = vmax.f32 %v9592, 0.0
    %v9625 = vmax.f32 %v9593, 0.0
    %v9626 = vmax.f32 %v9594, 0.0
    %v9627 = vmax.f32 %v9595, 0.0
    %v9628 = vmax.f32 %v9596, 0.0
    %v9629 = vmax.f32 %v9597, 0.0
    %v9630 = vmax.f32 %v9598, 0.0
    %v9631 = vmax.f32 %v9599, 0.0
    %v9632 = vmax.f32 %v9600, 0.0
    %v9633 = vmax.f32 %v9601, 0.0
    %v9634 = vmax.f32 %v9602, 0.0
    %v9635 = vmax.f32 %v9603, 0.0
    %v9636 = vmax.f32 %v9604, 0.0
    %v9637 = vmax.f32 %v9605, 0.0
    %v9638 = vmax.f32 %v9606, 0.0
    %vm9639 = vcmask 80896
    %v9640 = vsel %vm9639, %v3909, -inf
    %v9641 = vsel %vm9639, %v3911, -inf
    %v9642 = vsel %vm9639, %v3913, -inf
    %v9643 = vmax.f32 %v9640, %v9642
    %v9644 = vsel %vm9639, %v3915, -inf
    %v9645 = vmax.f32 %v9641, %v9644
    %v9646 = vmax.f32 %v9643, %v9645
    %v9647 = vsel %vm9639, %v3910, -inf
    %v9648 = vsel %vm9639, %v3912, -inf
    %v9649 = vsel %vm9639, %v3914, -inf
    %v9650 = vmax.f32 %v9647, %v9649
    %v9651 = vsel %vm9639, %v3916, -inf
    %v9652 = vmax.f32 %v9648, %v9651
    %v9653 = vmax.f32 %v9650, %v9652
    %vm9654 = vcmask 76800
    %v9655 = vsel %vm9654, %v9646, -inf
    %v9656 = vrot.slane %v9655, 4
    %v9657 = vmax.f32 %v9655, %v9656
    %v9658 = vrot.slane %v9657, 2
    %v9659 = vmax.f32 %v9657, %v9658
    %v9660 = vrot.slane %v9659, 1
    %v9661 = vmax.f32 %v9659, %v9660
    %vm9662 = vcmask 80900
    %v9663 = vsel %vm9662, %v9646, -inf
    %v9664 = vrot.slane %v9663, 4
    %v9665 = vmax.f32 %v9663, %v9664
    %v9666 = vrot.slane %v9665, 2
    %v9667 = vmax.f32 %v9665, %v9666
    %v9668 = vrot.slane %v9667, 1
    %v9669 = vmax.f32 %v9667, %v9668
    %v9670 = vsel %vm9654, %v9653, -inf
    %v9671 = vrot.slane %v9670, 4
    %v9672 = vmax.f32 %v9670, %v9671
    %v9673 = vrot.slane %v9672, 2
    %v9674 = vmax.f32 %v9672, %v9673
    %v9675 = vrot.slane %v9674, 1
    %v9676 = vmax.f32 %v9674, %v9675
    %v9677 = vsel %vm9662, %v9653, -inf
    %v9678 = vrot.slane %v9677, 4
    %v9679 = vmax.f32 %v9677, %v9678
    %v9680 = vrot.slane %v9679, 2
    %v9681 = vmax.f32 %v9679, %v9680
    %v9682 = vrot.slane %v9681, 1
    %v9683 = vmax.f32 %v9681, %v9682
    %v9684 = vsel %vm9639, %v3917, -inf
    %v9685 = vsel %vm9639, %v3919, -inf
    %v9686 = vsel %vm9639, %v3921, -inf
    %v9687 = vmax.f32 %v9684, %v9686
    %v9688 = vsel %vm9639, %v3923, -inf
    %v9689 = vmax.f32 %v9685, %v9688
    %v9690 = vmax.f32 %v9687, %v9689
    %v9691 = vsel %vm9639, %v3918, -inf
    %v9692 = vsel %vm9639, %v3920, -inf
    %v9693 = vsel %vm9639, %v3922, -inf
    %v9694 = vmax.f32 %v9691, %v9693
    %v9695 = vsel %vm9639, %v3924, -inf
    %v9696 = vmax.f32 %v9692, %v9695
    %v9697 = vmax.f32 %v9694, %v9696
    %v9698 = vsel %vm9654, %v9690, -inf
    %v9699 = vrot.slane %v9698, 4
    %v9700 = vmax.f32 %v9698, %v9699
    %v9701 = vrot.slane %v9700, 2
    %v9702 = vmax.f32 %v9700, %v9701
    %v9703 = vrot.slane %v9702, 1
    %v9704 = vmax.f32 %v9702, %v9703
    %v9705 = vsel %vm9662, %v9690, -inf
    %v9706 = vrot.slane %v9705, 4
    %v9707 = vmax.f32 %v9705, %v9706
    %v9708 = vrot.slane %v9707, 2
    %v9709 = vmax.f32 %v9707, %v9708
    %v9710 = vrot.slane %v9709, 1
    %v9711 = vmax.f32 %v9709, %v9710
    %v9712 = vsel %vm9654, %v9697, -inf
    %v9713 = vrot.slane %v9712, 4
    %v9714 = vmax.f32 %v9712, %v9713
    %v9715 = vrot.slane %v9714, 2
    %v9716 = vmax.f32 %v9714, %v9715
    %v9717 = vrot.slane %v9716, 1
    %v9718 = vmax.f32 %v9716, %v9717
    %v9719 = vsel %vm9662, %v9697, -inf
    %v9720 = vrot.slane %v9719, 4
    %v9721 = vmax.f32 %v9719, %v9720
    %v9722 = vrot.slane %v9721, 2
    %v9723 = vmax.f32 %v9721, %v9722
    %v9724 = vrot.slane %v9723, 1
    %v9725 = vmax.f32 %v9723, %v9724
    %v9726 = vsel %vm9639, %v3925, -inf
    %v9727 = vsel %vm9639, %v3927, -inf
    %v9728 = vsel %vm9639, %v3929, -inf
    %v9729 = vmax.f32 %v9726, %v9728
    %v9730 = vsel %vm9639, %v3931, -inf
    %v9731 = vmax.f32 %v9727, %v9730
    %v9732 = vmax.f32 %v9729, %v9731
    %v9733 = vsel %vm9639, %v3926, -inf
    %v9734 = vsel %vm9639, %v3928, -inf
    %v9735 = vsel %vm9639, %v3930, -inf
    %v9736 = vmax.f32 %v9733, %v9735
    %v9737 = vsel %vm9639, %v3932, -inf
    %v9738 = vmax.f32 %v9734, %v9737
    %v9739 = vmax.f32 %v9736, %v9738
    %v9740 = vsel %vm9654, %v9732, -inf
    %v9741 = vrot.slane %v9740, 4
    %v9742 = vmax.f32 %v9740, %v9741
    %v9743 = vrot.slane %v9742, 2
    %v9744 = vmax.f32 %v9742, %v9743
    %v9745 = vrot.slane %v9744, 1
    %v9746 = vmax.f32 %v9744, %v9745
    %v9747 = vsel %vm9662, %v9732, -inf
    %v9748 = vrot.slane %v9747, 4
    %v9749 = vmax.f32 %v9747, %v9748
    %v9750 = vrot.slane %v9749, 2
    %v9751 = vmax.f32 %v9749, %v9750
    %v9752 = vrot.slane %v9751, 1
    %v9753 = vmax.f32 %v9751, %v9752
    %v9754 = vsel %vm9654, %v9739, -inf
    %v9755 = vrot.slane %v9754, 4
    %v9756 = vmax.f32 %v9754, %v9755
    %v9757 = vrot.slane %v9756, 2
    %v9758 = vmax.f32 %v9756, %v9757
    %v9759 = vrot.slane %v9758, 1
    %v9760 = vmax.f32 %v9758, %v9759
    %v9761 = vsel %vm9662, %v9739, -inf
    %v9762 = vrot.slane %v9761, 4
    %v9763 = vmax.f32 %v9761, %v9762
    %v9764 = vrot.slane %v9763, 2
    %v9765 = vmax.f32 %v9763, %v9764
    %v9766 = vrot.slane %v9765, 1
    %v9767 = vmax.f32 %v9765, %v9766
    %v9768 = vsel %vm9639, %v3933, -inf
    %v9769 = vsel %vm9639, %v3935, -inf
    %v9770 = vsel %vm9639, %v3937, -inf
    %v9771 = vmax.f32 %v9768, %v9770
    %v9772 = vsel %vm9639, %v3939, -inf
    %v9773 = vmax.f32 %v9769, %v9772
    %v9774 = vmax.f32 %v9771, %v9773
    %v9775 = vsel %vm9639, %v3934, -inf
    %v9776 = vsel %vm9639, %v3936, -inf
    %v9777 = vsel %vm9639, %v3938, -inf
    %v9778 = vmax.f32 %v9775, %v9777
    %v9779 = vsel %vm9639, %v3940, -inf
    %v9780 = vmax.f32 %v9776, %v9779
    %v9781 = vmax.f32 %v9778, %v9780
    %v9782 = vsel %vm9654, %v9774, -inf
    %v9783 = vrot.slane %v9782, 4
    %v9784 = vmax.f32 %v9782, %v9783
    %v9785 = vrot.slane %v9784, 2
    %v9786 = vmax.f32 %v9784, %v9785
    %v9787 = vrot.slane %v9786, 1
    %v9788 = vmax.f32 %v9786, %v9787
    %v9789 = vsel %vm9662, %v9774, -inf
    %v9790 = vrot.slane %v9789, 4
    %v9791 = vmax.f32 %v9789, %v9790
    %v9792 = vrot.slane %v9791, 2
    %v9793 = vmax.f32 %v9791, %v9792
    %v9794 = vrot.slane %v9793, 1
    %v9795 = vmax.f32 %v9793, %v9794
    %v9796 = vsel %vm9654, %v9781, -inf
    %v9797 = vrot.slane %v9796, 4
    %v9798 = vmax.f32 %v9796, %v9797
    %v9799 = vrot.slane %v9798, 2
    %v9800 = vmax.f32 %v9798, %v9799
    %v9801 = vrot.slane %v9800, 1
    %v9802 = vmax.f32 %v9800, %v9801
    %v9803 = vsel %vm9662, %v9781, -inf
    %v9804 = vrot.slane %v9803, 4
    %v9805 = vmax.f32 %v9803, %v9804
    %v9806 = vrot.slane %v9805, 2
    %v9807 = vmax.f32 %v9805, %v9806
    %v9808 = vrot.slane %v9807, 1
    %v9809 = vmax.f32 %v9807, %v9808
    %v9810 = vsel %vm9639, %v9537, -inf
    %v9811 = vsel %vm9639, %v9539, -inf
    %v9812 = vsel %vm9639, %v9541, -inf
    %v9813 = vmax.f32 %v9810, %v9812
    %v9814 = vsel %vm9639, %v9543, -inf
    %v9815 = vmax.f32 %v9811, %v9814
    %v9816 = vmax.f32 %v9813, %v9815
    %v9817 = vsel %vm9639, %v9538, -inf
    %v9818 = vsel %vm9639, %v9540, -inf
    %v9819 = vsel %vm9639, %v9542, -inf
    %v9820 = vmax.f32 %v9817, %v9819
    %v9821 = vsel %vm9639, %v9544, -inf
    %v9822 = vmax.f32 %v9818, %v9821
    %v9823 = vmax.f32 %v9820, %v9822
    %v9824 = vsel %vm9654, %v9816, -inf
    %v9825 = vrot.slane %v9824, 4
    %v9826 = vmax.f32 %v9824, %v9825
    %v9827 = vrot.slane %v9826, 2
    %v9828 = vmax.f32 %v9826, %v9827
    %v9829 = vrot.slane %v9828, 1
    %v9830 = vmax.f32 %v9828, %v9829
    %v9831 = vsel %vm9662, %v9816, -inf
    %v9832 = vrot.slane %v9831, 4
    %v9833 = vmax.f32 %v9831, %v9832
    %v9834 = vrot.slane %v9833, 2
    %v9835 = vmax.f32 %v9833, %v9834
    %v9836 = vrot.slane %v9835, 1
    %v9837 = vmax.f32 %v9835, %v9836
    %v9838 = vsel %vm9654, %v9823, -inf
    %v9839 = vrot.slane %v9838, 4
    %v9840 = vmax.f32 %v9838, %v9839
    %v9841 = vrot.slane %v9840, 2
    %v9842 = vmax.f32 %v9840, %v9841
    %v9843 = vrot.slane %v9842, 1
    %v9844 = vmax.f32 %v9842, %v9843
    %v9845 = vsel %vm9662, %v9823, -inf
    %v9846 = vrot.slane %v9845, 4
    %v9847 = vmax.f32 %v9845, %v9846
    %v9848 = vrot.slane %v9847, 2
    %v9849 = vmax.f32 %v9847, %v9848
    %v9850 = vrot.slane %v9849, 1
    %v9851 = vmax.f32 %v9849, %v9850
    %v9852 = vsel %vm9639, %v9545, -inf
    %v9853 = vsel %vm9639, %v9547, -inf
    %v9854 = vsel %vm9639, %v9549, -inf
    %v9855 = vmax.f32 %v9852, %v9854
    %v9856 = vsel %vm9639, %v9551, -inf
    %v9857 = vmax.f32 %v9853, %v9856
    %v9858 = vmax.f32 %v9855, %v9857
    %v9859 = vsel %vm9639, %v9546, -inf
    %v9860 = vsel %vm9639, %v9548, -inf
    %v9861 = vsel %vm9639, %v9550, -inf
    %v9862 = vmax.f32 %v9859, %v9861
    %v9863 = vsel %vm9639, %v9552, -inf
    %v9864 = vmax.f32 %v9860, %v9863
    %v9865 = vmax.f32 %v9862, %v9864
    %v9866 = vsel %vm9654, %v9858, -inf
    %v9867 = vrot.slane %v9866, 4
    %v9868 = vmax.f32 %v9866, %v9867
    %v9869 = vrot.slane %v9868, 2
    %v9870 = vmax.f32 %v9868, %v9869
    %v9871 = vrot.slane %v9870, 1
    %v9872 = vmax.f32 %v9870, %v9871
    %v9873 = vsel %vm9662, %v9858, -inf
    %v9874 = vrot.slane %v9873, 4
    %v9875 = vmax.f32 %v9873, %v9874
    %v9876 = vrot.slane %v9875, 2
    %v9877 = vmax.f32 %v9875, %v9876
    %v9878 = vrot.slane %v9877, 1
    %v9879 = vmax.f32 %v9877, %v9878
    %v9880 = vsel %vm9654, %v9865, -inf
    %v9881 = vrot.slane %v9880, 4
    %v9882 = vmax.f32 %v9880, %v9881
    %v9883 = vrot.slane %v9882, 2
    %v9884 = vmax.f32 %v9882, %v9883
    %v9885 = vrot.slane %v9884, 1
    %v9886 = vmax.f32 %v9884, %v9885
    %v9887 = vsel %vm9662, %v9865, -inf
    %v9888 = vrot.slane %v9887, 4
    %v9889 = vmax.f32 %v9887, %v9888
    %v9890 = vrot.slane %v9889, 2
    %v9891 = vmax.f32 %v9889, %v9890
    %v9892 = vrot.slane %v9891, 1
    %v9893 = vmax.f32 %v9891, %v9892
    %v9894 = vsel %vm9639, %v9553, -inf
    %v9895 = vsel %vm9639, %v9555, -inf
    %v9896 = vsel %vm9639, %v9557, -inf
    %v9897 = vmax.f32 %v9894, %v9896
    %v9898 = vsel %vm9639, %v9559, -inf
    %v9899 = vmax.f32 %v9895, %v9898
    %v9900 = vmax.f32 %v9897, %v9899
    %v9901 = vsel %vm9639, %v9554, -inf
    %v9902 = vsel %vm9639, %v9556, -inf
    %v9903 = vsel %vm9639, %v9558, -inf
    %v9904 = vmax.f32 %v9901, %v9903
    %v9905 = vsel %vm9639, %v9560, -inf
    %v9906 = vmax.f32 %v9902, %v9905
    %v9907 = vmax.f32 %v9904, %v9906
    %v9908 = vsel %vm9654, %v9900, -inf
    %v9909 = vrot.slane %v9908, 4
    %v9910 = vmax.f32 %v9908, %v9909
    %v9911 = vrot.slane %v9910, 2
    %v9912 = vmax.f32 %v9910, %v9911
    %v9913 = vrot.slane %v9912, 1
    %v9914 = vmax.f32 %v9912, %v9913
    %v9915 = vsel %vm9662, %v9900, -inf
    %v9916 = vrot.slane %v9915, 4
    %v9917 = vmax.f32 %v9915, %v9916
    %v9918 = vrot.slane %v9917, 2
    %v9919 = vmax.f32 %v9917, %v9918
    %v9920 = vrot.slane %v9919, 1
    %v9921 = vmax.f32 %v9919, %v9920
    %v9922 = vsel %vm9654, %v9907, -inf
    %v9923 = vrot.slane %v9922, 4
    %v9924 = vmax.f32 %v9922, %v9923
    %v9925 = vrot.slane %v9924, 2
    %v9926 = vmax.f32 %v9924, %v9925
    %v9927 = vrot.slane %v9926, 1
    %v9928 = vmax.f32 %v9926, %v9927
    %v9929 = vsel %vm9662, %v9907, -inf
    %v9930 = vrot.slane %v9929, 4
    %v9931 = vmax.f32 %v9929, %v9930
    %v9932 = vrot.slane %v9931, 2
    %v9933 = vmax.f32 %v9931, %v9932
    %v9934 = vrot.slane %v9933, 1
    %v9935 = vmax.f32 %v9933, %v9934
    %v9936 = vsel %vm9639, %v9561, -inf
    %v9937 = vsel %vm9639, %v9563, -inf
    %v9938 = vsel %vm9639, %v9565, -inf
    %v9939 = vmax.f32 %v9936, %v9938
    %v9940 = vsel %vm9639, %v9567, -inf
    %v9941 = vmax.f32 %v9937, %v9940
    %v9942 = vmax.f32 %v9939, %v9941
    %v9943 = vsel %vm9639, %v9562, -inf
    %v9944 = vsel %vm9639, %v9564, -inf
    %v9945 = vsel %vm9639, %v9566, -inf
    %v9946 = vmax.f32 %v9943, %v9945
    %v9947 = vsel %vm9639, %v9568, -inf
    %v9948 = vmax.f32 %v9944, %v9947
    %v9949 = vmax.f32 %v9946, %v9948
    %v9950 = vsel %vm9654, %v9942, -inf
    %v9951 = vrot.slane %v9950, 4
    %v9952 = vmax.f32 %v9950, %v9951
    %v9953 = vrot.slane %v9952, 2
    %v9954 = vmax.f32 %v9952, %v9953
    %v9955 = vrot.slane %v9954, 1
    %v9956 = vmax.f32 %v9954, %v9955
    %v9957 = vsel %vm9662, %v9942, -inf
    %v9958 = vrot.slane %v9957, 4
    %v9959 = vmax.f32 %v9957, %v9958
    %v9960 = vrot.slane %v9959, 2
    %v9961 = vmax.f32 %v9959, %v9960
    %v9962 = vrot.slane %v9961, 1
    %v9963 = vmax.f32 %v9961, %v9962
    %v9964 = vsel %vm9654, %v9949, -inf
    %v9965 = vrot.slane %v9964, 4
    %v9966 = vmax.f32 %v9964, %v9965
    %v9967 = vrot.slane %v9966, 2
    %v9968 = vmax.f32 %v9966, %v9967
    %v9969 = vrot.slane %v9968, 1
    %v9970 = vmax.f32 %v9968, %v9969
    %v9971 = vsel %vm9662, %v9949, -inf
    %v9972 = vrot.slane %v9971, 4
    %v9973 = vmax.f32 %v9971, %v9972
    %v9974 = vrot.slane %v9973, 2
    %v9975 = vmax.f32 %v9973, %v9974
    %v9976 = vrot.slane %v9975, 1
    %v9977 = vmax.f32 %v9975, %v9976
    %v9978 = vsel %vm9639, %v5547, -inf
    %v9979 = vsel %vm9639, %v5549, -inf
    %v9980 = vsel %vm9639, %v5551, -inf
    %v9981 = vmax.f32 %v9978, %v9980
    %v9982 = vsel %vm9639, %v5553, -inf
    %v9983 = vmax.f32 %v9979, %v9982
    %v9984 = vmax.f32 %v9981, %v9983
    %v9985 = vsel %vm9639, %v5548, -inf
    %v9986 = vsel %vm9639, %v5550, -inf
    %v9987 = vsel %vm9639, %v5552, -inf
    %v9988 = vmax.f32 %v9985, %v9987
    %v9989 = vsel %vm9639, %v5554, -inf
    %v9990 = vmax.f32 %v9986, %v9989
    %v9991 = vmax.f32 %v9988, %v9990
    %v9992 = vsel %vm9654, %v9984, -inf
    %v9993 = vrot.slane %v9992, 4
    %v9994 = vmax.f32 %v9992, %v9993
    %v9995 = vrot.slane %v9994, 2
    %v9996 = vmax.f32 %v9994, %v9995
    %v9997 = vrot.slane %v9996, 1
    %v9998 = vmax.f32 %v9996, %v9997
    %v9999 = vsel %vm9662, %v9984, -inf
    %v10000 = vrot.slane %v9999, 4
    %v10001 = vmax.f32 %v9999, %v10000
    %v10002 = vrot.slane %v10001, 2
    %v10003 = vmax.f32 %v10001, %v10002
    %v10004 = vrot.slane %v10003, 1
    %v10005 = vmax.f32 %v10003, %v10004
    %v10006 = vsel %vm9654, %v9991, -inf
    %v10007 = vrot.slane %v10006, 4
    %v10008 = vmax.f32 %v10006, %v10007
    %v10009 = vrot.slane %v10008, 2
    %v10010 = vmax.f32 %v10008, %v10009
    %v10011 = vrot.slane %v10010, 1
    %v10012 = vmax.f32 %v10010, %v10011
    %v10013 = vsel %vm9662, %v9991, -inf
    %v10014 = vrot.slane %v10013, 4
    %v10015 = vmax.f32 %v10013, %v10014
    %v10016 = vrot.slane %v10015, 2
    %v10017 = vmax.f32 %v10015, %v10016
    %v10018 = vrot.slane %v10017, 1
    %v10019 = vmax.f32 %v10017, %v10018
    %v10020 = vsel %vm9639, %v5555, -inf
    %v10021 = vsel %vm9639, %v5557, -inf
    %v10022 = vsel %vm9639, %v5559, -inf
    %v10023 = vmax.f32 %v10020, %v10022
    %v10024 = vsel %vm9639, %v5561, -inf
    %v10025 = vmax.f32 %v10021, %v10024
    %v10026 = vmax.f32 %v10023, %v10025
    %v10027 = vsel %vm9639, %v5556, -inf
    %v10028 = vsel %vm9639, %v5558, -inf
    %v10029 = vsel %vm9639, %v5560, -inf
    %v10030 = vmax.f32 %v10027, %v10029
    %v10031 = vsel %vm9639, %v5562, -inf
    %v10032 = vmax.f32 %v10028, %v10031
    %v10033 = vmax.f32 %v10030, %v10032
    %v10034 = vsel %vm9654, %v10026, -inf
    %v10035 = vrot.slane %v10034, 4
    %v10036 = vmax.f32 %v10034, %v10035
    %v10037 = vrot.slane %v10036, 2
    %v10038 = vmax.f32 %v10036, %v10037
    %v10039 = vrot.slane %v10038, 1
    %v10040 = vmax.f32 %v10038, %v10039
    %v10041 = vsel %vm9662, %v10026, -inf
    %v10042 = vrot.slane %v10041, 4
    %v10043 = vmax.f32 %v10041, %v10042
    %v10044 = vrot.slane %v10043, 2
    %v10045 = vmax.f32 %v10043, %v10044
    %v10046 = vrot.slane %v10045, 1
    %v10047 = vmax.f32 %v10045, %v10046
    %v10048 = vsel %vm9654, %v10033, -inf
    %v10049 = vrot.slane %v10048, 4
    %v10050 = vmax.f32 %v10048, %v10049
    %v10051 = vrot.slane %v10050, 2
    %v10052 = vmax.f32 %v10050, %v10051
    %v10053 = vrot.slane %v10052, 1
    %v10054 = vmax.f32 %v10052, %v10053
    %v10055 = vsel %vm9662, %v10033, -inf
    %v10056 = vrot.slane %v10055, 4
    %v10057 = vmax.f32 %v10055, %v10056
    %v10058 = vrot.slane %v10057, 2
    %v10059 = vmax.f32 %v10057, %v10058
    %v10060 = vrot.slane %v10059, 1
    %v10061 = vmax.f32 %v10059, %v10060
    %v10062 = vsel %vm9639, %v5563, -inf
    %v10063 = vsel %vm9639, %v5565, -inf
    %v10064 = vsel %vm9639, %v5567, -inf
    %v10065 = vmax.f32 %v10062, %v10064
    %v10066 = vsel %vm9639, %v5569, -inf
    %v10067 = vmax.f32 %v10063, %v10066
    %v10068 = vmax.f32 %v10065, %v10067
    %v10069 = vsel %vm9639, %v5564, -inf
    %v10070 = vsel %vm9639, %v5566, -inf
    %v10071 = vsel %vm9639, %v5568, -inf
    %v10072 = vmax.f32 %v10069, %v10071
    %v10073 = vsel %vm9639, %v5570, -inf
    %v10074 = vmax.f32 %v10070, %v10073
    %v10075 = vmax.f32 %v10072, %v10074
    %v10076 = vsel %vm9654, %v10068, -inf
    %v10077 = vrot.slane %v10076, 4
    %v10078 = vmax.f32 %v10076, %v10077
    %v10079 = vrot.slane %v10078, 2
    %v10080 = vmax.f32 %v10078, %v10079
    %v10081 = vrot.slane %v10080, 1
    %v10082 = vmax.f32 %v10080, %v10081
    %v10083 = vsel %vm9662, %v10068, -inf
    %v10084 = vrot.slane %v10083, 4
    %v10085 = vmax.f32 %v10083, %v10084
    %v10086 = vrot.slane %v10085, 2
    %v10087 = vmax.f32 %v10085, %v10086
    %v10088 = vrot.slane %v10087, 1
    %v10089 = vmax.f32 %v10087, %v10088
    %v10090 = vsel %vm9654, %v10075, -inf
    %v10091 = vrot.slane %v10090, 4
    %v10092 = vmax.f32 %v10090, %v10091
    %v10093 = vrot.slane %v10092, 2
    %v10094 = vmax.f32 %v10092, %v10093
    %v10095 = vrot.slane %v10094, 1
    %v10096 = vmax.f32 %v10094, %v10095
    %v10097 = vsel %vm9662, %v10075, -inf
    %v10098 = vrot.slane %v10097, 4
    %v10099 = vmax.f32 %v10097, %v10098
    %v10100 = vrot.slane %v10099, 2
    %v10101 = vmax.f32 %v10099, %v10100
    %v10102 = vrot.slane %v10101, 1
    %v10103 = vmax.f32 %v10101, %v10102
    %v10104 = vsel %vm9639, %v5571, -inf
    %v10105 = vsel %vm9639, %v5573, -inf
    %v10106 = vsel %vm9639, %v5575, -inf
    %v10107 = vmax.f32 %v10104, %v10106
    %v10108 = vsel %vm9639, %v5577, -inf
    %v10109 = vmax.f32 %v10105, %v10108
    %v10110 = vmax.f32 %v10107, %v10109
    %v10111 = vsel %vm9639, %v5572, -inf
    %v10112 = vsel %vm9639, %v5574, -inf
    %v10113 = vsel %vm9639, %v5576, -inf
    %v10114 = vmax.f32 %v10111, %v10113
    %v10115 = vsel %vm9639, %v5578, -inf
    %v10116 = vmax.f32 %v10112, %v10115
    %v10117 = vmax.f32 %v10114, %v10116
    %v10118 = vsel %vm9654, %v10110, -inf
    %v10119 = vrot.slane %v10118, 4
    %v10120 = vmax.f32 %v10118, %v10119
    %v10121 = vrot.slane %v10120, 2
    %v10122 = vmax.f32 %v10120, %v10121
    %v10123 = vrot.slane %v10122, 1
    %v10124 = vmax.f32 %v10122, %v10123
    %v10125 = vsel %vm9662, %v10110, -inf
    %v10126 = vrot.slane %v10125, 4
    %v10127 = vmax.f32 %v10125, %v10126
    %v10128 = vrot.slane %v10127, 2
    %v10129 = vmax.f32 %v10127, %v10128
    %v10130 = vrot.slane %v10129, 1
    %v10131 = vmax.f32 %v10129, %v10130
    %v10132 = vsel %vm9654, %v10117, -inf
    %v10133 = vrot.slane %v10132, 4
    %v10134 = vmax.f32 %v10132, %v10133
    %v10135 = vrot.slane %v10134, 2
    %v10136 = vmax.f32 %v10134, %v10135
    %v10137 = vrot.slane %v10136, 1
    %v10138 = vmax.f32 %v10136, %v10137
    %v10139 = vsel %vm9662, %v10117, -inf
    %v10140 = vrot.slane %v10139, 4
    %v10141 = vmax.f32 %v10139, %v10140
    %v10142 = vrot.slane %v10141, 2
    %v10143 = vmax.f32 %v10141, %v10142
    %v10144 = vrot.slane %v10143, 1
    %v10145 = vmax.f32 %v10143, %v10144
    %v10146 = vsel %vm9639, %v9607, -inf
    %v10147 = vsel %vm9639, %v9609, -inf
    %v10148 = vsel %vm9639, %v9611, -inf
    %v10149 = vmax.f32 %v10146, %v10148
    %v10150 = vsel %vm9639, %v9613, -inf
    %v10151 = vmax.f32 %v10147, %v10150
    %v10152 = vmax.f32 %v10149, %v10151
    %v10153 = vsel %vm9639, %v9608, -inf
    %v10154 = vsel %vm9639, %v9610, -inf
    %v10155 = vsel %vm9639, %v9612, -inf
    %v10156 = vmax.f32 %v10153, %v10155
    %v10157 = vsel %vm9639, %v9614, -inf
    %v10158 = vmax.f32 %v10154, %v10157
    %v10159 = vmax.f32 %v10156, %v10158
    %v10160 = vsel %vm9654, %v10152, -inf
    %v10161 = vrot.slane %v10160, 4
    %v10162 = vmax.f32 %v10160, %v10161
    %v10163 = vrot.slane %v10162, 2
    %v10164 = vmax.f32 %v10162, %v10163
    %v10165 = vrot.slane %v10164, 1
    %v10166 = vmax.f32 %v10164, %v10165
    %v10167 = vsel %vm9662, %v10152, -inf
    %v10168 = vrot.slane %v10167, 4
    %v10169 = vmax.f32 %v10167, %v10168
    %v10170 = vrot.slane %v10169, 2
    %v10171 = vmax.f32 %v10169, %v10170
    %v10172 = vrot.slane %v10171, 1
    %v10173 = vmax.f32 %v10171, %v10172
    %v10174 = vsel %vm9654, %v10159, -inf
    %v10175 = vrot.slane %v10174, 4
    %v10176 = vmax.f32 %v10174, %v10175
    %v10177 = vrot.slane %v10176, 2
    %v10178 = vmax.f32 %v10176, %v10177
    %v10179 = vrot.slane %v10178, 1
    %v10180 = vmax.f32 %v10178, %v10179
    %v10181 = vsel %vm9662, %v10159, -inf
    %v10182 = vrot.slane %v10181, 4
    %v10183 = vmax.f32 %v10181, %v10182
    %v10184 = vrot.slane %v10183, 2
    %v10185 = vmax.f32 %v10183, %v10184
    %v10186 = vrot.slane %v10185, 1
    %v10187 = vmax.f32 %v10185, %v10186
    %v10188 = vsel %vm9639, %v9615, -inf
    %v10189 = vsel %vm9639, %v9617, -inf
    %v10190 = vsel %vm9639, %v9619, -inf
    %v10191 = vmax.f32 %v10188, %v10190
    %v10192 = vsel %vm9639, %v9621, -inf
    %v10193 = vmax.f32 %v10189, %v10192
    %v10194 = vmax.f32 %v10191, %v10193
    %v10195 = vsel %vm9639, %v9616, -inf
    %v10196 = vsel %vm9639, %v9618, -inf
    %v10197 = vsel %vm9639, %v9620, -inf
    %v10198 = vmax.f32 %v10195, %v10197
    %v10199 = vsel %vm9639, %v9622, -inf
    %v10200 = vmax.f32 %v10196, %v10199
    %v10201 = vmax.f32 %v10198, %v10200
    %v10202 = vsel %vm9654, %v10194, -inf
    %v10203 = vrot.slane %v10202, 4
    %v10204 = vmax.f32 %v10202, %v10203
    %v10205 = vrot.slane %v10204, 2
    %v10206 = vmax.f32 %v10204, %v10205
    %v10207 = vrot.slane %v10206, 1
    %v10208 = vmax.f32 %v10206, %v10207
    %v10209 = vsel %vm9662, %v10194, -inf
    %v10210 = vrot.slane %v10209, 4
    %v10211 = vmax.f32 %v10209, %v10210
    %v10212 = vrot.slane %v10211, 2
    %v10213 = vmax.f32 %v10211, %v10212
    %v10214 = vrot.slane %v10213, 1
    %v10215 = vmax.f32 %v10213, %v10214
    %v10216 = vsel %vm9654, %v10201, -inf
    %v10217 = vrot.slane %v10216, 4
    %v10218 = vmax.f32 %v10216, %v10217
    %v10219 = vrot.slane %v10218, 2
    %v10220 = vmax.f32 %v10218, %v10219
    %v10221 = vrot.slane %v10220, 1
    %v10222 = vmax.f32 %v10220, %v10221
    %v10223 = vsel %vm9662, %v10201, -inf
    %v10224 = vrot.slane %v10223, 4
    %v10225 = vmax.f32 %v10223, %v10224
    %v10226 = vrot.slane %v10225, 2
    %v10227 = vmax.f32 %v10225, %v10226
    %v10228 = vrot.slane %v10227, 1
    %v10229 = vmax.f32 %v10227, %v10228
    %v10230 = vsel %vm9639, %v9623, -inf
    %v10231 = vsel %vm9639, %v9625, -inf
    %v10232 = vsel %vm9639, %v9627, -inf
    %v10233 = vmax.f32 %v10230, %v10232
    %v10234 = vsel %vm9639, %v9629, -inf
    %v10235 = vmax.f32 %v10231, %v10234
    %v10236 = vmax.f32 %v10233, %v10235
    %v10237 = vsel %vm9639, %v9624, -inf
    %v10238 = vsel %vm9639, %v9626, -inf
    %v10239 = vsel %vm9639, %v9628, -inf
    %v10240 = vmax.f32 %v10237, %v10239
    %v10241 = vsel %vm9639, %v9630, -inf
    %v10242 = vmax.f32 %v10238, %v10241
    %v10243 = vmax.f32 %v10240, %v10242
    %v10244 = vsel %vm9654, %v10236, -inf
    %v10245 = vrot.slane %v10244, 4
    %v10246 = vmax.f32 %v10244, %v10245
    %v10247 = vrot.slane %v10246, 2
    %v10248 = vmax.f32 %v10246, %v10247
    %v10249 = vrot.slane %v10248, 1
    %v10250 = vmax.f32 %v10248, %v10249
    %v10251 = vsel %vm9662, %v10236, -inf
    %v10252 = vrot.slane %v10251, 4
    %v10253 = vmax.f32 %v10251, %v10252
    %v10254 = vrot.slane %v10253, 2
    %v10255 = vmax.f32 %v10253, %v10254
    %v10256 = vrot.slane %v10255, 1
    %v10257 = vmax.f32 %v10255, %v10256
    %v10258 = vsel %vm9654, %v10243, -inf
    %v10259 = vrot.slane %v10258, 4
    %v10260 = vmax.f32 %v10258, %v10259
    %v10261 = vrot.slane %v10260, 2
    %v10262 = vmax.f32 %v10260, %v10261
    %v10263 = vrot.slane %v10262, 1
    %v10264 = vmax.f32 %v10262, %v10263
    %v10265 = vsel %vm9662, %v10243, -inf
    %v10266 = vrot.slane %v10265, 4
    %v10267 = vmax.f32 %v10265, %v10266
    %v10268 = vrot.slane %v10267, 2
    %v10269 = vmax.f32 %v10267, %v10268
    %v10270 = vrot.slane %v10269, 1
    %v10271 = vmax.f32 %v10269, %v10270
    %v10272 = vsel %vm9639, %v9631, -inf
    %v10273 = vsel %vm9639, %v9633, -inf
    %v10274 = vsel %vm9639, %v9635, -inf
    %v10275 = vmax.f32 %v10272, %v10274
    %v10276 = vsel %vm9639, %v9637, -inf
    %v10277 = vmax.f32 %v10273, %v10276
    %v10278 = vmax.f32 %v10275, %v10277
    %v10279 = vsel %vm9639, %v9632, -inf
    %v10280 = vsel %vm9639, %v9634, -inf
    %v10281 = vsel %vm9639, %v9636, -inf
    %v10282 = vmax.f32 %v10279, %v10281
    %v10283 = vsel %vm9639, %v9638, -inf
    %v10284 = vmax.f32 %v10280, %v10283
    %v10285 = vmax.f32 %v10282, %v10284
    %v10286 = vsel %vm9654, %v10278, -inf
    %v10287 = vrot.slane %v10286, 4
    %v10288 = vmax.f32 %v10286, %v10287
    %v10289 = vrot.slane %v10288, 2
    %v10290 = vmax.f32 %v10288, %v10289
    %v10291 = vrot.slane %v10290, 1
    %v10292 = vmax.f32 %v10290, %v10291
    %v10293 = vsel %vm9662, %v10278, -inf
    %v10294 = vrot.slane %v10293, 4
    %v10295 = vmax.f32 %v10293, %v10294
    %v10296 = vrot.slane %v10295, 2
    %v10297 = vmax.f32 %v10295, %v10296
    %v10298 = vrot.slane %v10297, 1
    %v10299 = vmax.f32 %v10297, %v10298
    %v10300 = vsel %vm9654, %v10285, -inf
    %v10301 = vrot.slane %v10300, 4
    %v10302 = vmax.f32 %v10300, %v10301
    %v10303 = vrot.slane %v10302, 2
    %v10304 = vmax.f32 %v10302, %v10303
    %v10305 = vrot.slane %v10304, 1
    %v10306 = vmax.f32 %v10304, %v10305
    %v10307 = vsel %vm9662, %v10285, -inf
    %v10308 = vrot.slane %v10307, 4
    %v10309 = vmax.f32 %v10307, %v10308
    %v10310 = vrot.slane %v10309, 2
    %v10311 = vmax.f32 %v10309, %v10310
    %v10312 = vrot.slane %v10311, 1
    %v10313 = vmax.f32 %v10311, %v10312
    %v10314 = vmax.f32 %v9661, %v9669
    %v10315 = vmin.f32 %v9661, %v9669
    %v10316 = vmax.f32 %v10314, %v9676
    %v10317 = vmin.f32 %v10315, %v9676
    %v10318 = vmax.f32 %v10316, %v9683
    %v10319 = vmin.f32 %v10317, %v9683
    %v10320 = vmax.f32 %v10318, %v9704
    %v10321 = vmin.f32 %v10319, %v9704
    %v10322 = vmax.f32 %v10320, %v9711
    %v10323 = vmin.f32 %v10321, %v9711
    %v10324 = vmax.f32 %v10322, %v9718
    %v10325 = vmin.f32 %v10323, %v9718
    %v10326 = vmax.f32 %v10324, %v9725
    %v10327 = vmin.f32 %v10325, %v9725
    %v10328 = vmax.f32 %v10326, %v9746
    %v10329 = vmin.f32 %v10327, %v9746
    %v10330 = vmax.f32 %v10328, %v9753
    %v10331 = vmin.f32 %v10329, %v9753
    %v10332 = vmax.f32 %v10330, %v9760
    %v10333 = vmin.f32 %v10331, %v9760
    %v10334 = vmax.f32 %v10332, %v9767
    %v10335 = vmin.f32 %v10333, %v9767
    %v10336 = vmax.f32 %v10334, %v9788
    %v10337 = vmin.f32 %v10335, %v9788
    %v10338 = vmax.f32 %v10336, %v9795
    %v10339 = vmin.f32 %v10337, %v9795
    %v10340 = vmax.f32 %v10338, %v9802
    %v10341 = vmin.f32 %v10339, %v9802
    %v10342 = vmax.f32 %v10340, %v9809
    %v10343 = vmin.f32 %v10341, %v9809
    %v10344 = vadd.f32 %v10342, %v10343
    %v10345 = vsel %vm9639, %v10344, -inf
    %10346 = vmax.xlane.f32.xlu0 %v10345
    %v10347 = vpop.xlane.xlu0 %10346
    %v10348 = vsub.f32 %v10344, %v10347
    %v10349 = vmul.f32 %v10348, 1.442695
    %v10350 = vpow.pop %v10349
    %v10351 = vsel %vm9639, %v10350, 0.0
    %10352 = vadd.xlane.f32.xlu0 %v10351
    %v10353 = vpop.xlane.xlu0 %10352
    %v10354 = vrcp.pop %v10353
    %v10355 = vmul.f32 %v10350, %v10354
    %vm10356 = vcmask 73728
    %10357 = vst.msk [vmem:[#allocation2] sm:$0x1] %vm10356, %v10355
    %v10358 = vmax.f32 %v9830, %v9837
    %v10359 = vmin.f32 %v9830, %v9837
    %v10360 = vmax.f32 %v10358, %v9844
    %v10361 = vmin.f32 %v10359, %v9844
    %v10362 = vmax.f32 %v10360, %v9851
    %v10363 = vmin.f32 %v10361, %v9851
    %v10364 = vmax.f32 %v10362, %v9872
    %v10365 = vmin.f32 %v10363, %v9872
    %v10366 = vmax.f32 %v10364, %v9879
    %v10367 = vmin.f32 %v10365, %v9879
    %v10368 = vmax.f32 %v10366, %v9886
    %v10369 = vmin.f32 %v10367, %v9886
    %v10370 = vmax.f32 %v10368, %v9893
    %v10371 = vmin.f32 %v10369, %v9893
    %v10372 = vmax.f32 %v10370, %v9914
    %v10373 = vmin.f32 %v10371, %v9914
    %v10374 = vmax.f32 %v10372, %v9921
    %v10375 = vmin.f32 %v10373, %v9921
    %v10376 = vmax.f32 %v10374, %v9928
    %v10377 = vmin.f32 %v10375, %v9928
    %v10378 = vmax.f32 %v10376, %v9935
    %v10379 = vmin.f32 %v10377, %v9935
    %v10380 = vmax.f32 %v10378, %v9956
    %v10381 = vmin.f32 %v10379, %v9956
    %v10382 = vmax.f32 %v10380, %v9963
    %v10383 = vmin.f32 %v10381, %v9963
    %v10384 = vmax.f32 %v10382, %v9970
    %v10385 = vmin.f32 %v10383, %v9970
    %v10386 = vmax.f32 %v10384, %v9977
    %v10387 = vmin.f32 %v10385, %v9977
    %v10388 = vadd.f32 %v10386, %v10387
    %v10389 = vsel %vm9639, %v10388, -inf
    %10390 = vmax.xlane.f32.xlu0 %v10389
    %v10391 = vpop.xlane.xlu0 %10390
    %v10392 = vsub.f32 %v10388, %v10391
    %v10393 = vmul.f32 %v10392, 1.442695
    %v10394 = vpow.pop %v10393
    %v10395 = vsel %vm9639, %v10394, 0.0
    %10396 = vadd.xlane.f32.xlu0 %v10395
    %v10397 = vpop.xlane.xlu0 %10396
    %v10398 = vrcp.pop %v10397
    %v10399 = vmul.f32 %v10394, %v10398
    %10400 = vst.msk [vmem:[#allocation2 + $0x1] sm:$0x1] %vm10356, %v10399
    %v10401 = vmax.f32 %v9998, %v10005
    %v10402 = vmin.f32 %v9998, %v10005
    %v10403 = vmax.f32 %v10401, %v10012
    %v10404 = vmin.f32 %v10402, %v10012
    %v10405 = vmax.f32 %v10403, %v10019
    %v10406 = vmin.f32 %v10404, %v10019
    %v10407 = vmax.f32 %v10405, %v10040
    %v10408 = vmin.f32 %v10406, %v10040
    %v10409 = vmax.f32 %v10407, %v10047
    %v10410 = vmin.f32 %v10408, %v10047
    %v10411 = vmax.f32 %v10409, %v10054
    %v10412 = vmin.f32 %v10410, %v10054
    %v10413 = vmax.f32 %v10411, %v10061
    %v10414 = vmin.f32 %v10412, %v10061
    %v10415 = vmax.f32 %v10413, %v10082
    %v10416 = vmin.f32 %v10414, %v10082
    %v10417 = vmax.f32 %v10415, %v10089
    %v10418 = vmin.f32 %v10416, %v10089
    %v10419 = vmax.f32 %v10417, %v10096
    %v10420 = vmin.f32 %v10418, %v10096
    %v10421 = vmax.f32 %v10419, %v10103
    %v10422 = vmin.f32 %v10420, %v10103
    %v10423 = vmax.f32 %v10421, %v10124
    %v10424 = vmin.f32 %v10422, %v10124
    %v10425 = vmax.f32 %v10423, %v10131
    %v10426 = vmin.f32 %v10424, %v10131
    %v10427 = vmax.f32 %v10425, %v10138
    %v10428 = vmin.f32 %v10426, %v10138
    %v10429 = vmax.f32 %v10427, %v10145
    %v10430 = vmin.f32 %v10428, %v10145
    %v10431 = vadd.f32 %v10429, %v10430
    %v10432 = vsel %vm9639, %v10431, -inf
    %10433 = vmax.xlane.f32.xlu0 %v10432
    %v10434 = vpop.xlane.xlu0 %10433
    %v10435 = vsub.f32 %v10431, %v10434
    %v10436 = vmul.f32 %v10435, 1.442695
    %v10437 = vpow.pop %v10436
    %v10438 = vsel %vm9639, %v10437, 0.0
    %10439 = vadd.xlane.f32.xlu0 %v10438
    %v10440 = vpop.xlane.xlu0 %10439
    %v10441 = vrcp.pop %v10440
    %v10442 = vmul.f32 %v10437, %v10441
    %10443 = vst.msk [vmem:[#allocation4] sm:$0x1] %vm10356, %v10442
    %v10444 = vmax.f32 %v10166, %v10173
    %v10445 = vmin.f32 %v10166, %v10173
    %v10446 = vmax.f32 %v10444, %v10180
    %v10447 = vmin.f32 %v10445, %v10180
    %v10448 = vmax.f32 %v10446, %v10187
    %v10449 = vmin.f32 %v10447, %v10187
    %v10450 = vmax.f32 %v10448, %v10208
    %v10451 = vmin.f32 %v10449, %v10208
    %v10452 = vmax.f32 %v10450, %v10215
    %v10453 = vmin.f32 %v10451, %v10215
    %v10454 = vmax.f32 %v10452, %v10222
    %v10455 = vmin.f32 %v10453, %v10222
    %v10456 = vmax.f32 %v10454, %v10229
    %v10457 = vmin.f32 %v10455, %v10229
    %v10458 = vmax.f32 %v10456, %v10250
    %v10459 = vmin.f32 %v10457, %v10250
    %v10460 = vmax.f32 %v10458, %v10257
    %v10461 = vmin.f32 %v10459, %v10257
    %v10462 = vmax.f32 %v10460, %v10264
    %v10463 = vmin.f32 %v10461, %v10264
    %v10464 = vmax.f32 %v10462, %v10271
    %v10465 = vmin.f32 %v10463, %v10271
    %v10466 = vmax.f32 %v10464, %v10292
    %v10467 = vmin.f32 %v10465, %v10292
    %v10468 = vmax.f32 %v10466, %v10299
    %v10469 = vmin.f32 %v10467, %v10299
    %v10470 = vmax.f32 %v10468, %v10306
    %v10471 = vmin.f32 %v10469, %v10306
    %v10472 = vmax.f32 %v10470, %v10313
    %v10473 = vmin.f32 %v10471, %v10313
    %v10474 = vadd.f32 %v10472, %v10473
    %v10475 = vsel %vm9639, %v10474, -inf
    %10476 = vmax.xlane.f32.xlu0 %v10475
    %v10477 = vpop.xlane.xlu0 %10476
    %v10478 = vsub.f32 %v10474, %v10477
    %v10479 = vmul.f32 %v10478, 1.442695
    %v10480 = vpow.pop %v10479
    %v10481 = vsel %vm9639, %v10480, 0.0
    %10482 = vadd.xlane.f32.xlu0 %v10481
    %v10483 = vpop.xlane.xlu0 %10482
    %v10484 = vrcp.pop %v10483
    %v10485 = vmul.f32 %v10480, %v10484
    %10486 = vst.msk [vmem:[#allocation4 + $0x1] sm:$0x1] %vm10356, %v10485
    %v10487 = vld [vmem:[%s12] sm:$0x1]
    %v10488 = vld [vmem:[%s13] sm:$0x1]
    %v10489 = vmul.f32 %v10166, %v10487
    %v10490 = vadd.f32 %v10489, %v10488
    %v10491 = vmul.f32 %v9830, %v10487
    %v10492 = vadd.f32 %v10491, %v10488
    %v10493 = vadd.f32 %v10490, %v10492
    %v10494 = vmul.f32 %v10173, %v10487
    %v10495 = vadd.f32 %v10494, %v10488
    %v10496 = vmul.f32 %v9837, %v10487
    %v10497 = vadd.f32 %v10496, %v10488
    %v10498 = vadd.f32 %v10495, %v10497
    %v10499 = vmul.f32 %v10180, %v10487
    %v10500 = vadd.f32 %v10499, %v10488
    %v10501 = vmul.f32 %v9844, %v10487
    %v10502 = vadd.f32 %v10501, %v10488
    %v10503 = vadd.f32 %v10500, %v10502
    %v10504 = vmul.f32 %v10187, %v10487
    %v10505 = vadd.f32 %v10504, %v10488
    %v10506 = vmul.f32 %v9851, %v10487
    %v10507 = vadd.f32 %v10506, %v10488
    %v10508 = vadd.f32 %v10505, %v10507
    %v10509 = vmul.f32 %v10208, %v10487
    %v10510 = vadd.f32 %v10509, %v10488
    %v10511 = vmul.f32 %v9872, %v10487
    %v10512 = vadd.f32 %v10511, %v10488
    %v10513 = vadd.f32 %v10510, %v10512
    %v10514 = vmul.f32 %v10215, %v10487
    %v10515 = vadd.f32 %v10514, %v10488
    %v10516 = vmul.f32 %v9879, %v10487
    %v10517 = vadd.f32 %v10516, %v10488
    %v10518 = vadd.f32 %v10515, %v10517
    %v10519 = vmul.f32 %v10222, %v10487
    %v10520 = vadd.f32 %v10519, %v10488
    %v10521 = vmul.f32 %v9886, %v10487
    %v10522 = vadd.f32 %v10521, %v10488
    %v10523 = vadd.f32 %v10520, %v10522
    %v10524 = vmul.f32 %v10229, %v10487
    %v10525 = vadd.f32 %v10524, %v10488
    %v10526 = vmul.f32 %v9893, %v10487
    %v10527 = vadd.f32 %v10526, %v10488
    %v10528 = vadd.f32 %v10525, %v10527
    %v10529 = vmul.f32 %v10250, %v10487
    %v10530 = vadd.f32 %v10529, %v10488
    %v10531 = vmul.f32 %v9914, %v10487
    %v10532 = vadd.f32 %v10531, %v10488
    %v10533 = vadd.f32 %v10530, %v10532
    %v10534 = vmul.f32 %v10257, %v10487
    %v10535 = vadd.f32 %v10534, %v10488
    %v10536 = vmul.f32 %v9921, %v10487
    %v10537 = vadd.f32 %v10536, %v10488
    %v10538 = vadd.f32 %v10535, %v10537
    %v10539 = vmul.f32 %v10264, %v10487
    %v10540 = vadd.f32 %v10539, %v10488
    %v10541 = vmul.f32 %v9928, %v10487
    %v10542 = vadd.f32 %v10541, %v10488
    %v10543 = vadd.f32 %v10540, %v10542
    %v10544 = vmul.f32 %v10271, %v10487
    %v10545 = vadd.f32 %v10544, %v10488
    %v10546 = vmul.f32 %v9935, %v10487
    %v10547 = vadd.f32 %v10546, %v10488
    %v10548 = vadd.f32 %v10545, %v10547
    %v10549 = vmul.f32 %v10292, %v10487
    %v10550 = vadd.f32 %v10549, %v10488
    %v10551 = vmul.f32 %v9956, %v10487
    %v10552 = vadd.f32 %v10551, %v10488
    %v10553 = vadd.f32 %v10550, %v10552
    %v10554 = vmul.f32 %v10299, %v10487
    %v10555 = vadd.f32 %v10554, %v10488
    %v10556 = vmul.f32 %v9963, %v10487
    %v10557 = vadd.f32 %v10556, %v10488
    %v10558 = vadd.f32 %v10555, %v10557
    %v10559 = vmul.f32 %v10306, %v10487
    %v10560 = vadd.f32 %v10559, %v10488
    %v10561 = vmul.f32 %v9970, %v10487
    %v10562 = vadd.f32 %v10561, %v10488
    %v10563 = vadd.f32 %v10560, %v10562
    %v10564 = vmul.f32 %v10313, %v10487
    %v10565 = vadd.f32 %v10564, %v10488
    %v10566 = vmul.f32 %v9977, %v10487
    %v10567 = vadd.f32 %v10566, %v10488
    %v10568 = vadd.f32 %v10565, %v10567
    %v10569 = vmax.f32 %v10493, %v10498
    %v10570 = vmin.f32 %v10493, %v10498
    %v10571 = vmax.f32 %v10569, %v10503
    %v10572 = vmin.f32 %v10570, %v10503
    %v10573 = vmax.f32 %v10571, %v10508
    %v10574 = vmin.f32 %v10572, %v10508
    %v10575 = vmax.f32 %v10573, %v10513
    %v10576 = vmin.f32 %v10574, %v10513
    %v10577 = vmax.f32 %v10575, %v10518
    %v10578 = vmin.f32 %v10576, %v10518
    %v10579 = vmax.f32 %v10577, %v10523
    %v10580 = vmin.f32 %v10578, %v10523
    %v10581 = vmax.f32 %v10579, %v10528
    %v10582 = vmin.f32 %v10580, %v10528
    %v10583 = vmax.f32 %v10581, %v10533
    %v10584 = vmin.f32 %v10582, %v10533
    %v10585 = vmax.f32 %v10583, %v10538
    %v10586 = vmin.f32 %v10584, %v10538
    %v10587 = vmax.f32 %v10585, %v10543
    %v10588 = vmin.f32 %v10586, %v10543
    %v10589 = vmax.f32 %v10587, %v10548
    %v10590 = vmin.f32 %v10588, %v10548
    %v10591 = vmax.f32 %v10589, %v10553
    %v10592 = vmin.f32 %v10590, %v10553
    %v10593 = vmax.f32 %v10591, %v10558
    %v10594 = vmin.f32 %v10592, %v10558
    %v10595 = vmax.f32 %v10593, %v10563
    %v10596 = vmin.f32 %v10594, %v10563
    %v10597 = vmax.f32 %v10595, %v10568
    %v10598 = vmin.f32 %v10596, %v10568
    %v10599 = vadd.f32 %v10597, %v10598
    %v10600 = vsel %vm10356, %v10599, -inf
    %10601 = vmax.xlane.f32.xlu0 %v10600
    %v10602 = vpop.xlane.xlu0 %10601
    %v10603 = vsub.f32 %v10599, %v10602
    %v10604 = vmul.f32 %v10603, 1.442695
    %v10605 = vpow.pop %v10604
    %v10606 = vsel %vm10356, %v10605, 0.0
    %10607 = vadd.xlane.f32.xlu0 %v10606
    %v10608 = vpop.xlane.xlu0 %10607
    %v10609 = vrcp.pop %v10608
    %v10610 = vmul.f32 %v10605, %v10609
    %10611 = vst.msk [vmem:[#allocation6] sm:$0x1] %vm10356, %v10610
    // Predicated region
    $region58: #{deephar_smaller_forward.1} parent=1 // pred_check
      _
    $region59: #{deephar_smaller_forward.1} parent=1 // pred_check_branch
      %10613 = sbr.rel (0) target = $region61
    $region60: #{deephar_smaller_forward.1} parent=1 // pred_region
      _
    $region61: #{deephar_smaller_forward.1} parent=1 // pred_fallthru
      _
    // Predicated region
    $region62: #{deephar_smaller_forward.1} parent=1 // pred_check
      _
    $region63: #{deephar_smaller_forward.1} parent=1 // pred_check_branch
      %10615 = sbr.rel (0) target = $region65
    $region64: #{deephar_smaller_forward.1} parent=1 // pred_region
      %s10617 = ssub.s32 32, 32
      %10618 = vsyncadd [#allocation3], %s10617
      %s10620 = sshll.u32 [#allocation2], 4
      %s10621 = int_to_ptr.vmem [resolvable:$true] %s10620
      %10623 = dma.vmem_to_hbm [thread:$0]  %s10621, 32, %s15, [#allocation3]
    $region65: #{deephar_smaller_forward.1} parent=1 // pred_fallthru
      _
    // Predicated region
    $region66: #{deephar_smaller_forward.1} parent=1 // pred_check
      _
    $region67: #{deephar_smaller_forward.1} parent=1 // pred_check_branch
      %10625 = sbr.rel (0) target = $region69
    $region68: #{deephar_smaller_forward.1} parent=1 // pred_region
      %s10627 = ssub.s32 32, 32
      %10628 = vsyncadd [#allocation5], %s10627
      %s10630 = sshll.u32 [#allocation4], 4
      %s10631 = int_to_ptr.vmem [resolvable:$true] %s10630
      %10633 = dma.vmem_to_hbm [thread:$0]  %s10631, 32, %s16, [#allocation5]
    $region69: #{deephar_smaller_forward.1} parent=1 // pred_fallthru
      _
    // Predicated region
    $region70: #{deephar_smaller_forward.1} parent=1 // pred_check
      _
    $region71: #{deephar_smaller_forward.1} parent=1 // pred_check_branch
      %10635 = sbr.rel (0) target = $region73
    $region72: #{deephar_smaller_forward.1} parent=1 // pred_region
      %s10637 = ssub.s32 16, 16
      %10638 = vsyncadd [#allocation5], %s10637
      %s10640 = sshll.u32 [#allocation6], 4
      %s10641 = int_to_ptr.vmem [resolvable:$true] %s10640
      %10643 = dma.vmem_to_hbm [thread:$0]  %s10641, 16, %s17, [#allocation5]
    $region73: #{deephar_smaller_forward.1} parent=1 // pred_fallthru
      _
    // Predicated region
    $region74: #{deephar_smaller_forward.1} parent=1 // pred_check
      _
    $region75: #{deephar_smaller_forward.1} parent=1 // pred_check_branch
      %10645 = sbr.rel (0) target = $region77
    $region76: #{deephar_smaller_forward.1} parent=1 // pred_region
      _
    $region77: #{deephar_smaller_forward.1} parent=1 // pred_fallthru
      _
    // Predicated region
    $region78: #{deephar_smaller_forward.1} parent=1 // pred_check
      _
    $region79: #{deephar_smaller_forward.1} parent=1 // pred_check_branch
      %10647 = sbr.rel (0) target = $region81
    $region80: #{deephar_smaller_forward.1} parent=1 // pred_region
      %10648 = dma.done [#allocation3], 32
    $region81: #{deephar_smaller_forward.1} parent=1 // pred_fallthru
      _
    // Predicated region
    $region82: #{deephar_smaller_forward.1} parent=1 // pred_check
      _
    $region83: #{deephar_smaller_forward.1} parent=1 // pred_check_branch
      %10650 = sbr.rel (0) target = $region85
    $region84: #{deephar_smaller_forward.1} parent=1 // pred_region
      %10651 = dma.done [#allocation5], 32
    $region85: #{deephar_smaller_forward.1} parent=1 // pred_fallthru
      _
    // Predicated region
    $region86: #{deephar_smaller_forward.1} parent=1 // pred_check
      _
    $region87: #{deephar_smaller_forward.1} parent=1 // pred_check_branch
      %10653 = sbr.rel (0) target = $region89
    $region88: #{deephar_smaller_forward.1} parent=1 // pred_region
      %10654 = dma.done [#allocation5], 16
    $region89: #{deephar_smaller_forward.1} parent=1 // pred_fallthru
      _
    %10655 = vsyncpa [#allocation3], 1
    %10656 = vsyncpa [#allocation5], 1

</llo_original>
